<compile_context>
chip_gen: v6e
topology: v6e:2x2x1
jax: 0.10.0
libtpu: 0.0.40
codegen_flags: <defaults>
</compile_context>

<pallas_src>
import math

import jax
import jax.numpy as jnp
from jax.experimental import pallas as pl
from jax.experimental.pallas import tpu as pltpu

INPUT = 768             # LSTM input size / classifier input size
HIDDEN = 384            # LSTM hidden size per direction
NUM_CLASSES = 2         # classifier output size
GATES = 4 * HIDDEN      # PyTorch gate rows per direction (i, f, g, o)
FUSED = 6 * HIDDEN      # fused per-layer gate columns: [i_f|i_b|g_f|g_b|o_f|o_b]
PADDED_CLASSES = 128    # lane-dense classifier output width (zero-padded)


def classifier_net_kernel(x_ref, w1_ref, b1_ref, w2_ref, b2_ref,
                          wc_ref, bc_ref, out_ref):
    """One row-tile of the full forward pass; weights stay VMEM-resident."""

    def fused_lstm_layer(h_bf16, w_ref, b_ref):
        # Single bf16 MXU matmul covers both directions and all (kept) gates.
        gates = jnp.dot(h_bf16, w_ref[...],
                        preferred_element_type=jnp.float32) + b_ref[...]
        i = jax.nn.sigmoid(gates[:, 0 * HIDDEN:2 * HIDDEN])   # [i_fwd | i_bwd]
        g = jnp.tanh(gates[:, 2 * HIDDEN:4 * HIDDEN])         # [g_fwd | g_bwd]
        o = jax.nn.sigmoid(gates[:, 4 * HIDDEN:6 * HIDDEN])   # [o_fwd | o_bwd]
        # forget gate omitted: f * c0 == 0 (zero initial cell state)
        return o * jnp.tanh(i * g)                            # (tile, 768) f32

    x = x_ref[...].astype(jnp.bfloat16)                       # (tile, 768)
    h1 = fused_lstm_layer(x, w1_ref, b1_ref)                  # layer 1 (bi-dir)
    h2 = fused_lstm_layer(h1.astype(jnp.bfloat16), w2_ref, b2_ref)  # layer 2
    # Classifier Linear(768 -> 2), zero-padded to 128 lanes for dense stores.
    out_ref[...] = (jnp.dot(h2.astype(jnp.bfloat16), wc_ref[...],
                            preferred_element_type=jnp.float32) + bc_ref[...])


def classifier_net_forward(x, params):
    n = x.shape[0]
    # Row tile: multiple of 8 (f32 sublane), capped at 256 for large batches.
    tile_n = 256 if n >= 256 else max(8, ((n + 7) // 8) * 8)
    n_pad = ((n + tile_n - 1) // tile_n) * tile_n
    if n_pad != n:
        x = jnp.pad(x, ((0, n_pad - n), (0, 0)))
    grid = (n_pad // tile_n,)

    def resident(arr):
        # Full-extent block, constant index_map -> stays in VMEM across steps.
        return pl.BlockSpec(arr.shape, lambda i: (0, 0))

    w1, b1 = params["w1"], params["b1"]
    w2, b2 = params["w2"], params["b2"]
    wc, bc = params["wc"], params["bc"]

    out = pl.pallas_call(
        classifier_net_kernel,
        out_shape=jax.ShapeDtypeStruct((n_pad, PADDED_CLASSES), jnp.float32),
        grid=grid,
        in_specs=[
            pl.BlockSpec((tile_n, INPUT), lambda i: (i, 0)),   # x (tiled rows)
            resident(w1), resident(b1),
            resident(w2), resident(b2),
            resident(wc), resident(bc),
        ],
        out_specs=pl.BlockSpec((tile_n, PADDED_CLASSES), lambda i: (i, 0)),
        compiler_params=pltpu.CompilerParams(
            dimension_semantics=("parallel",),
            vmem_limit_bytes=40 << 20,   # ~20 MiB real footprint; fits v7x 64 MiB
        ),
    )(x, w1, b1, w2, b2, wc, bc)

    return out[:n, :NUM_CLASSES]


def init_params(key):
    """PyTorch-style uniform init, then: drop forget gate, fuse directions,
    pre-transpose for x @ W, cast weights to bf16 (biases stay f32)."""
    ks = jax.random.split(key, 16)
    bnd_lstm = 1.0 / math.sqrt(HIDDEN)
    bnd_cls = 1.0 / math.sqrt(INPUT)

    def uni(k, shape, bound):
        return jax.random.uniform(k, shape, jnp.float32, -bound, bound)

    def lstm_dir(k_w, k_bi, k_bh, in_dim):
        # PyTorch rows: [input, forget, cell, output]; weight_hh contributes
        # nothing (h0 == 0) so it is never materialized.
        w_ih = uni(k_w, (GATES, in_dim), bnd_lstm)            # (4H, in)
        b = uni(k_bi, (GATES,), bnd_lstm) + uni(k_bh, (GATES,), bnd_lstm)
        w_i, w_g, w_o = (w_ih[0:HIDDEN],
                         w_ih[2 * HIDDEN:3 * HIDDEN],
                         w_ih[3 * HIDDEN:4 * HIDDEN])
        b_i, b_g, b_o = (b[0:HIDDEN],
                         b[2 * HIDDEN:3 * HIDDEN],
                         b[3 * HIDDEN:4 * HIDDEN])
        return (w_i, w_g, w_o), (b_i, b_g, b_o)

    def fuse_layer(fwd, bwd):
        (wfi, wfg, wfo), (bfi, bfg, bfo) = fwd
        (wbi, wbg, wbo), (bbi, bbg, bbo) = bwd
        # fused columns: [i_f | i_b | g_f | g_b | o_f | o_b]
        w = jnp.concatenate([wfi, wbi, wfg, wbg, wfo, wbo], axis=0).T  # (in, 6H)
        b = jnp.concatenate([bfi, bbi, bfg, bbg, bfo, bbo]).reshape(1, FUSED)
        return w.astype(jnp.bfloat16), b.astype(jnp.float32)

    w1, b1 = fuse_layer(lstm_dir(ks[0], ks[1], ks[2], INPUT),
                        lstm_dir(ks[3], ks[4], ks[5], INPUT))
    w2, b2 = fuse_layer(lstm_dir(ks[6], ks[7], ks[8], 2 * HIDDEN),
                        lstm_dir(ks[9], ks[10], ks[11], 2 * HIDDEN))

    wc = uni(ks[12], (NUM_CLASSES, INPUT), bnd_cls)           # (2, 768)
    bc = uni(ks[13], (NUM_CLASSES,), bnd_cls)
    wc_p = jnp.zeros((INPUT, PADDED_CLASSES), jnp.float32)
    wc_p = wc_p.at[:, :NUM_CLASSES].set(wc.T).astype(jnp.bfloat16)
    bc_p = jnp.zeros((1, PADDED_CLASSES), jnp.float32)
    bc_p = bc_p.at[0, :NUM_CLASSES].set(bc)

    return {"w1": w1, "b1": b1, "w2": w2, "b2": b2, "wc": wc_p, "bc": bc_p}


def reference_forward(x, p):
    """Pure-jnp reference mirroring the kernel math (bf16 operands, f32 acc)."""
    def layer(h, w, b):
        g = jnp.dot(h.astype(jnp.bfloat16), w,
                    preferred_element_type=jnp.float32) + b
        i = jax.nn.sigmoid(g[:, :2 * HIDDEN])
        gg = jnp.tanh(g[:, 2 * HIDDEN:4 * HIDDEN])
        o = jax.nn.sigmoid(g[:, 4 * HIDDEN:])
        return o * jnp.tanh(i * gg)

    h1 = layer(x, p["w1"], p["b1"])
    h2 = layer(h1, p["w2"], p["b2"])
    out = jnp.dot(h2.astype(jnp.bfloat16), p["wc"],
                  preferred_element_type=jnp.float32) + p["bc"]
    return out[:, :NUM_CLASSES]


if __name__ == "__main__":
    key = jax.random.PRNGKey(0)
    pkey, xkey = jax.random.split(key)
    params = init_params(pkey)

    N = 8  # tokens (become the LSTM batch dim after unsqueeze(0))
    x = jax.random.normal(xkey, (N, INPUT), dtype=jnp.float32)

    out = classifier_net_forward(x, params)
    out = jax.block_until_ready(out)

    ref = reference_forward(x, params)
    assert out.shape == (N, NUM_CLASSES), out.shape
    assert jnp.allclose(out, ref, atol=1e-2, rtol=1e-2), "mismatch vs reference"

    print("KERNEL_OK")
</pallas_src>

<mosaic_0001>
module attributes {stable_mosaic.version = 11 : i64} {
  func.func @classifier_net_kernel(%arg0: i32, %arg1: memref<8x768xf32, #tpu.memory_space<vmem>>, %arg2: memref<768x2304xbf16, #tpu.memory_space<vmem>>, %arg3: memref<1x2304xf32, #tpu.memory_space<vmem>>, %arg4: memref<768x2304xbf16, #tpu.memory_space<vmem>>, %arg5: memref<1x2304xf32, #tpu.memory_space<vmem>>, %arg6: memref<768x128xbf16, #tpu.memory_space<vmem>>, %arg7: memref<1x128xf32, #tpu.memory_space<vmem>>, %arg8: memref<8x128xf32, #tpu.memory_space<vmem>>) attributes {dimension_semantics = [#tpu.dimension_semantics<parallel>], iteration_bounds = array<i64: 1>, scalar_prefetch = 0 : i64, scratch_operands = 0 : i64, tpu.core_type = #tpu.core_type<tc>, window_params = [{transform_indices = @transform_0, window_bounds = array<i64: 8, 768>}, {pipeline_mode = #tpu.pipeline_mode<synchronous>, transform_indices = @transform_1, window_bounds = array<i64: 768, 2304>}, {pipeline_mode = #tpu.pipeline_mode<synchronous>, transform_indices = @transform_2, window_bounds = array<i64: 1, 2304>}, {pipeline_mode = #tpu.pipeline_mode<synchronous>, transform_indices = @transform_3, window_bounds = array<i64: 768, 2304>}, {pipeline_mode = #tpu.pipeline_mode<synchronous>, transform_indices = @transform_4, window_bounds = array<i64: 1, 2304>}, {pipeline_mode = #tpu.pipeline_mode<synchronous>, transform_indices = @transform_5, window_bounds = array<i64: 768, 128>}, {pipeline_mode = #tpu.pipeline_mode<synchronous>, transform_indices = @transform_6, window_bounds = array<i64: 1, 128>}, {transform_indices = @transform_7, window_bounds = array<i64: 8, 128>}]} {
    %c0 = arith.constant 0 : index
    %c0_0 = arith.constant 0 : index
    %0 = vector.load %arg1[%c0, %c0_0] : memref<8x768xf32, #tpu.memory_space<vmem>>, vector<8x768xf32>
    %1 = arith.truncf %0 : vector<8x768xf32> to vector<8x768xbf16>
    %c0_1 = arith.constant 0 : index
    %c0_2 = arith.constant 0 : index
    %2 = vector.load %arg2[%c0_1, %c0_2] : memref<768x2304xbf16, #tpu.memory_space<vmem>>, vector<768x2304xbf16>
    %cst = arith.constant dense<0.000000e+00> : vector<8x2304xf32>
    %3 = tpu.matmul %1, %2, %cst {dimension_numbers = #tpu.dot_dimension_numbers<[1], [0], [0], [1], [0, 0, 1, 1], [], []>} : vector<8x768xbf16>, vector<768x2304xbf16>, vector<8x2304xf32> -> vector<8x2304xf32>
    %c0_3 = arith.constant 0 : index
    %c0_4 = arith.constant 0 : index
    %4 = vector.load %arg3[%c0_3, %c0_4] : memref<1x2304xf32, #tpu.memory_space<vmem>>, vector<1x2304xf32>
    %5 = vector.broadcast %4 : vector<1x2304xf32> to vector<8x2304xf32>
    %6 = arith.addf %3, %5 : vector<8x2304xf32>
    %7 = vector.extract_strided_slice %6 {offsets = [0, 0], sizes = [8, 768], strides = [1, 1]} : vector<8x2304xf32> to vector<8x768xf32>
    %8 = arith.negf %7 : vector<8x768xf32>
    %9 = math.exp %8 : vector<8x768xf32>
    %cst_5 = arith.constant 1.000000e+00 : f32
    %10 = vector.broadcast %cst_5 : f32 to vector<8x768xf32>
    %11 = arith.addf %10, %9 : vector<8x768xf32>
    %12 = arith.divf %10, %11 : vector<8x768xf32>
    %13 = vector.extract_strided_slice %6 {offsets = [0, 768], sizes = [8, 768], strides = [1, 1]} : vector<8x2304xf32> to vector<8x768xf32>
    %14 = math.tanh %13 : vector<8x768xf32>
    %15 = vector.extract_strided_slice %6 {offsets = [0, 1536], sizes = [8, 768], strides = [1, 1]} : vector<8x2304xf32> to vector<8x768xf32>
    %16 = arith.negf %15 : vector<8x768xf32>
    %17 = math.exp %16 : vector<8x768xf32>
    %cst_6 = arith.constant 1.000000e+00 : f32
    %18 = vector.broadcast %cst_6 : f32 to vector<8x768xf32>
    %19 = arith.addf %18, %17 : vector<8x768xf32>
    %20 = arith.divf %18, %19 : vector<8x768xf32>
    %21 = arith.mulf %12, %14 : vector<8x768xf32>
    %22 = math.tanh %21 : vector<8x768xf32>
    %23 = arith.mulf %20, %22 : vector<8x768xf32>
    %24 = arith.truncf %23 : vector<8x768xf32> to vector<8x768xbf16>
    %c0_7 = arith.constant 0 : index
    %c0_8 = arith.constant 0 : index
    %25 = vector.load %arg4[%c0_7, %c0_8] : memref<768x2304xbf16, #tpu.memory_space<vmem>>, vector<768x2304xbf16>
    %cst_9 = arith.constant dense<0.000000e+00> : vector<8x2304xf32>
    %26 = tpu.matmul %24, %25, %cst_9 {dimension_numbers = #tpu.dot_dimension_numbers<[1], [0], [0], [1], [0, 0, 1, 1], [], []>} : vector<8x768xbf16>, vector<768x2304xbf16>, vector<8x2304xf32> -> vector<8x2304xf32>
    %c0_10 = arith.constant 0 : index
    %c0_11 = arith.constant 0 : index
    %27 = vector.load %arg5[%c0_10, %c0_11] : memref<1x2304xf32, #tpu.memory_space<vmem>>, vector<1x2304xf32>
    %28 = vector.broadcast %27 : vector<1x2304xf32> to vector<8x2304xf32>
    %29 = arith.addf %26, %28 : vector<8x2304xf32>
    %30 = vector.extract_strided_slice %29 {offsets = [0, 0], sizes = [8, 768], strides = [1, 1]} : vector<8x2304xf32> to vector<8x768xf32>
    %31 = arith.negf %30 : vector<8x768xf32>
    %32 = math.exp %31 : vector<8x768xf32>
    %cst_12 = arith.constant 1.000000e+00 : f32
    %33 = vector.broadcast %cst_12 : f32 to vector<8x768xf32>
    %34 = arith.addf %33, %32 : vector<8x768xf32>
    %35 = arith.divf %33, %34 : vector<8x768xf32>
    %36 = vector.extract_strided_slice %29 {offsets = [0, 768], sizes = [8, 768], strides = [1, 1]} : vector<8x2304xf32> to vector<8x768xf32>
    %37 = math.tanh %36 : vector<8x768xf32>
    %38 = vector.extract_strided_slice %29 {offsets = [0, 1536], sizes = [8, 768], strides = [1, 1]} : vector<8x2304xf32> to vector<8x768xf32>
    %39 = arith.negf %38 : vector<8x768xf32>
    %40 = math.exp %39 : vector<8x768xf32>
    %cst_13 = arith.constant 1.000000e+00 : f32
    %41 = vector.broadcast %cst_13 : f32 to vector<8x768xf32>
    %42 = arith.addf %41, %40 : vector<8x768xf32>
    %43 = arith.divf %41, %42 : vector<8x768xf32>
    %44 = arith.mulf %35, %37 : vector<8x768xf32>
    %45 = math.tanh %44 : vector<8x768xf32>
    %46 = arith.mulf %43, %45 : vector<8x768xf32>
    %47 = arith.truncf %46 : vector<8x768xf32> to vector<8x768xbf16>
    %c0_14 = arith.constant 0 : index
    %c0_15 = arith.constant 0 : index
    %48 = vector.load %arg6[%c0_14, %c0_15] : memref<768x128xbf16, #tpu.memory_space<vmem>>, vector<768x128xbf16>
    %cst_16 = arith.constant dense<0.000000e+00> : vector<8x128xf32>
    %49 = tpu.matmul %47, %48, %cst_16 {dimension_numbers = #tpu.dot_dimension_numbers<[1], [0], [0], [1], [0, 0, 1, 1], [], []>} : vector<8x768xbf16>, vector<768x128xbf16>, vector<8x128xf32> -> vector<8x128xf32>
    %c0_17 = arith.constant 0 : index
    %c0_18 = arith.constant 0 : index
    %50 = vector.load %arg7[%c0_17, %c0_18] : memref<1x128xf32, #tpu.memory_space<vmem>>, vector<1x128xf32>
    %51 = vector.broadcast %50 : vector<1x128xf32> to vector<8x128xf32>
    %52 = arith.addf %49, %51 : vector<8x128xf32>
    %c0_19 = arith.constant 0 : index
    %c0_20 = arith.constant 0 : index
    %53 = vector.load %arg8[%c0_19, %c0_20] : memref<8x128xf32, #tpu.memory_space<vmem>>, vector<8x128xf32>
    tpu.vector_store %arg8[%c0_19, %c0_20], %52 {strides = array<i32>} : memref<8x128xf32, #tpu.memory_space<vmem>>, vector<8x128xf32>,
    return
  }
  func.func @transform_0(%arg0: i32) -> (i32, i32) {
    %c0_i32 = arith.constant 0 : i32
    %c0_i32_0 = arith.constant 0 : i32
    return %arg0, %c0_i32 : i32, i32
  }
  func.func @transform_1(%arg0: i32) -> (i32, i32) {
    %c0_i32 = arith.constant 0 : i32
    %c0_i32_0 = arith.constant 0 : i32
    %c0_i32_1 = arith.constant 0 : i32
    return %c0_i32, %c0_i32_0 : i32, i32
  }
  func.func @transform_2(%arg0: i32) -> (i32, i32) {
    %c0_i32 = arith.constant 0 : i32
    %c0_i32_0 = arith.constant 0 : i32
    %c0_i32_1 = arith.constant 0 : i32
    return %c0_i32, %c0_i32_0 : i32, i32
  }
  func.func @transform_3(%arg0: i32) -> (i32, i32) {
    %c0_i32 = arith.constant 0 : i32
    %c0_i32_0 = arith.constant 0 : i32
    %c0_i32_1 = arith.constant 0 : i32
    return %c0_i32, %c0_i32_0 : i32, i32
  }
  func.func @transform_4(%arg0: i32) -> (i32, i32) {
    %c0_i32 = arith.constant 0 : i32
    %c0_i32_0 = arith.constant 0 : i32
    %c0_i32_1 = arith.constant 0 : i32
    return %c0_i32, %c0_i32_0 : i32, i32
  }
  func.func @transform_5(%arg0: i32) -> (i32, i32) {
    %c0_i32 = arith.constant 0 : i32
    %c0_i32_0 = arith.constant 0 : i32
    %c0_i32_1 = arith.constant 0 : i32
    return %c0_i32, %c0_i32_0 : i32, i32
  }
  func.func @transform_6(%arg0: i32) -> (i32, i32) {
    %c0_i32 = arith.constant 0 : i32
    %c0_i32_0 = arith.constant 0 : i32
    %c0_i32_1 = arith.constant 0 : i32
    return %c0_i32, %c0_i32_0 : i32, i32
  }
  func.func @transform_7(%arg0: i32) -> (i32, i32) {
    %c0_i32 = arith.constant 0 : i32
    %c0_i32_0 = arith.constant 0 : i32
    return %arg0, %c0_i32 : i32, i32
  }
}

</mosaic_0001>

<llo_original>
// kernel: tpu_custom_call.1
$region0: #{tpu_custom_call.1}
  #allocation0 [shape = 'u32[]', space=smem, size = 0x4, offset = 0x4, fixed_abs, tag = 'smem constant byte address 0x4 - core index']
  #allocation1 [shape = 'u32[144,128]{1,0:T(1,128)}', space=vmem, size = 0x12000, scoped, tag = 'internal scratch']
  %s0 = inlined_call_operand.hbm [shape: f32[8,768], index: 0, kind: input, shape index: {}]
  %s1 = inlined_call_operand.hbm [shape: bf16[768,2304], index: 1, kind: input, shape index: {}]
  %s2 = inlined_call_operand.hbm [shape: f32[1,2304], index: 2, kind: input, shape index: {}]
  %s3 = inlined_call_operand.hbm [shape: bf16[768,2304], index: 3, kind: input, shape index: {}]
  %s4 = inlined_call_operand.hbm [shape: f32[1,2304], index: 4, kind: input, shape index: {}]
  %s5 = inlined_call_operand.hbm [shape: bf16[768,128], index: 5, kind: input, shape index: {}]
  %s6 = inlined_call_operand.hbm [shape: f32[1,128], index: 6, kind: input, shape index: {}]
  %s7 = inlined_call_operand.hbm [shape: f32[8,128], index: 7, kind: output, shape index: {}]
  %s8 = sld [smem:[#allocation0]]
  $region66: #{tpu_custom_call.1} parent=0
    _
  %s10 = ssub.s32 1, %s8
  %s11 = scalar_select 0, %s10, %s8
  $region1: #{tpu_custom_call.1} parent=0
    #allocation2 [shape = 'u8[24576]{0}', space=vmem, size = 0x6000, scoped, tag = 'input window, operand 0, single buffered']
    #allocation3 [shape = 's32[1]{0}', space=sflag, size = 0x4, scoped, tag = 'scoped memory for tpu_custom_call.1']
    #allocation4 [shape = 's32[1]{0}', space=sflag, size = 0x4, scoped, tag = 'scoped memory for tpu_custom_call.1']
    #allocation5 [shape = 'u8[3538944]{0}', space=vmem, size = 0x360000, scoped, tag = 'input window, operand 1, single buffered']
    #allocation6 [shape = 's32[1]{0}', space=sflag, size = 0x4, scoped, tag = 'scoped memory for tpu_custom_call.1']
    #allocation7 [shape = 'u8[9216]{0}', space=vmem, size = 0x2400, scoped, tag = 'input window, operand 2, single buffered']
    #allocation8 [shape = 'u8[3538944]{0}', space=vmem, size = 0x360000, scoped, tag = 'input window, operand 3, single buffered']
    #allocation9 [shape = 's32[1]{0}', space=sflag, size = 0x4, scoped, tag = 'scoped memory for tpu_custom_call.1']
    #allocation10 [shape = 'u8[9216]{0}', space=vmem, size = 0x2400, scoped, tag = 'input window, operand 4, single buffered']
    #allocation11 [shape = 'u8[196608]{0}', space=vmem, size = 0x30000, scoped, tag = 'input window, operand 5, single buffered']
    #allocation12 [shape = 's32[1]{0}', space=sflag, size = 0x4, scoped, tag = 'scoped memory for tpu_custom_call.1']
    #allocation13 [shape = 'u8[512]{0}', space=vmem, size = 0x400, scoped, tag = 'input window, operand 6, single buffered']
    #allocation14 [shape = 'u8[4096]{0}', space=vmem, size = 0x1000, scoped, tag = 'output window, operand 0, single buffered']
    %12 = vsyncpa [#allocation3], 0
    %13 = vsyncpa [#allocation6], 0
    %14 = vsyncpa [#allocation9], 0
    %15 = vsyncpa [#allocation12], 0
    %16 = vsyncpa [#allocation4], 0
    // Predicated region
    $region2: #{tpu_custom_call.1} parent=1 // pred_check
      _
    $region3: #{tpu_custom_call.1} parent=1 // pred_check_branch
      %18 = sbr.rel (0) target = $region5
    $region4: #{tpu_custom_call.1} parent=1 // pred_region
      %s20 = ssub.s32 768, 768
      %21 = vsyncadd [#allocation3], %s20
      %s23 = sshll.u32 [#allocation2], 4
      %s24 = int_to_ptr.vmem [resolvable:$true] %s23
      %26 = dma.hbm_to_vmem [thread:$0]  %s0, 768, %s24, [#allocation3]
    $region5: #{tpu_custom_call.1} parent=1 // pred_fallthru
      _
    // Predicated region
    $region6: #{tpu_custom_call.1} parent=1 // pred_check
      _
    $region7: #{tpu_custom_call.1} parent=1 // pred_check_branch
      %28 = sbr.rel (0) target = $region9
    $region8: #{tpu_custom_call.1} parent=1 // pred_region
      %s30 = ssub.s32 110592, 110592
      %31 = vsyncadd [#allocation6], %s30
      %s32 = sshll.u32 [#allocation5], 4
      %s33 = int_to_ptr.vmem [resolvable:$true] %s32
      %38 = dma.hbm_to_vmem [thread:$0]  %s1, 110592, %s33, [#allocation6], 1152, 1152, 72
    $region9: #{tpu_custom_call.1} parent=1 // pred_fallthru
      _
    // Predicated region
    $region10: #{tpu_custom_call.1} parent=1 // pred_check
      _
    $region11: #{tpu_custom_call.1} parent=1 // pred_check_branch
      %40 = sbr.rel (0) target = $region13
    $region12: #{tpu_custom_call.1} parent=1 // pred_region
      %s42 = ssub.s32 288, 288
      %43 = vsyncadd [#allocation6], %s42
      %s45 = sshll.u32 [#allocation7], 4
      %s46 = int_to_ptr.vmem [resolvable:$true] %s45
      %48 = dma.hbm_to_vmem [thread:$0]  %s2, 288, %s46, [#allocation6]
    $region13: #{tpu_custom_call.1} parent=1 // pred_fallthru
      _
    // Predicated region
    $region14: #{tpu_custom_call.1} parent=1 // pred_check
      _
    $region15: #{tpu_custom_call.1} parent=1 // pred_check_branch
      %50 = sbr.rel (0) target = $region17
    $region16: #{tpu_custom_call.1} parent=1 // pred_region
      %s52 = ssub.s32 110592, 110592
      %53 = vsyncadd [#allocation9], %s52
      %s54 = sshll.u32 [#allocation8], 4
      %s55 = int_to_ptr.vmem [resolvable:$true] %s54
      %60 = dma.hbm_to_vmem [thread:$0]  %s3, 110592, %s55, [#allocation9], 1152, 1152, 72
    $region17: #{tpu_custom_call.1} parent=1 // pred_fallthru
      _
    // Predicated region
    $region18: #{tpu_custom_call.1} parent=1 // pred_check
      _
    $region19: #{tpu_custom_call.1} parent=1 // pred_check_branch
      %62 = sbr.rel (0) target = $region21
    $region20: #{tpu_custom_call.1} parent=1 // pred_region
      %s64 = ssub.s32 288, 288
      %65 = vsyncadd [#allocation9], %s64
      %s67 = sshll.u32 [#allocation10], 4
      %s68 = int_to_ptr.vmem [resolvable:$true] %s67
      %70 = dma.hbm_to_vmem [thread:$0]  %s4, 288, %s68, [#allocation9]
    $region21: #{tpu_custom_call.1} parent=1 // pred_fallthru
      _
    // Predicated region
    $region22: #{tpu_custom_call.1} parent=1 // pred_check
      _
    $region23: #{tpu_custom_call.1} parent=1 // pred_check_branch
      %72 = sbr.rel (0) target = $region25
    $region24: #{tpu_custom_call.1} parent=1 // pred_region
      %s74 = ssub.s32 6144, 6144
      %75 = vsyncadd [#allocation12], %s74
      %s76 = sshll.u32 [#allocation11], 4
      %s77 = int_to_ptr.vmem [resolvable:$true] %s76
      %82 = dma.hbm_to_vmem [thread:$0]  %s5, 6144, %s77, [#allocation12], 64, 64, 4
    $region25: #{tpu_custom_call.1} parent=1 // pred_fallthru
      _
    // Predicated region
    $region26: #{tpu_custom_call.1} parent=1 // pred_check
      _
    $region27: #{tpu_custom_call.1} parent=1 // pred_check_branch
      %84 = sbr.rel (0) target = $region29
    $region28: #{tpu_custom_call.1} parent=1 // pred_region
      %s86 = ssub.s32 16, 16
      %87 = vsyncadd [#allocation12], %s86
      %s89 = sshll.u32 [#allocation13], 4
      %s90 = int_to_ptr.vmem [resolvable:$true] %s89
      %92 = dma.hbm_to_vmem [thread:$0]  %s6, 16, %s90, [#allocation12]
    $region29: #{tpu_custom_call.1} parent=1 // pred_fallthru
      _
    // Predicated region
    $region30: #{tpu_custom_call.1} parent=1 // pred_check
      _
    $region31: #{tpu_custom_call.1} parent=1 // pred_check_branch
      %94 = sbr.rel (0) target = $region33
    $region32: #{tpu_custom_call.1} parent=1 // pred_region
      %95 = dma.done [#allocation3], 768
    $region33: #{tpu_custom_call.1} parent=1 // pred_fallthru
      _
    // Predicated region
    $region34: #{tpu_custom_call.1} parent=1 // pred_check
      _
    $region35: #{tpu_custom_call.1} parent=1 // pred_check_branch
      %97 = sbr.rel (0) target = $region37
    $region36: #{tpu_custom_call.1} parent=1 // pred_region
      %98 = dma.done [#allocation6], 110592
    $region37: #{tpu_custom_call.1} parent=1 // pred_fallthru
      _
    // Predicated region
    $region38: #{tpu_custom_call.1} parent=1 // pred_check
      _
    $region39: #{tpu_custom_call.1} parent=1 // pred_check_branch
      %100 = sbr.rel (0) target = $region41
    $region40: #{tpu_custom_call.1} parent=1 // pred_region
      %101 = dma.done [#allocation6], 288
    $region41: #{tpu_custom_call.1} parent=1 // pred_fallthru
      _
    // Predicated region
    $region42: #{tpu_custom_call.1} parent=1 // pred_check
      _
    $region43: #{tpu_custom_call.1} parent=1 // pred_check_branch
      %103 = sbr.rel (0) target = $region45
    $region44: #{tpu_custom_call.1} parent=1 // pred_region
      %104 = dma.done [#allocation9], 110592
    $region45: #{tpu_custom_call.1} parent=1 // pred_fallthru
      _
    // Predicated region
    $region46: #{tpu_custom_call.1} parent=1 // pred_check
      _
    $region47: #{tpu_custom_call.1} parent=1 // pred_check_branch
      %106 = sbr.rel (0) target = $region49
    $region48: #{tpu_custom_call.1} parent=1 // pred_region
      %107 = dma.done [#allocation9], 288
    $region49: #{tpu_custom_call.1} parent=1 // pred_fallthru
      _
    // Predicated region
    $region50: #{tpu_custom_call.1} parent=1 // pred_check
      _
    $region51: #{tpu_custom_call.1} parent=1 // pred_check_branch
      %109 = sbr.rel (0) target = $region53
    $region52: #{tpu_custom_call.1} parent=1 // pred_region
      %110 = dma.done [#allocation12], 6144
    $region53: #{tpu_custom_call.1} parent=1 // pred_fallthru
      _
    // Predicated region
    $region54: #{tpu_custom_call.1} parent=1 // pred_check
      _
    $region55: #{tpu_custom_call.1} parent=1 // pred_check_branch
      %112 = sbr.rel (0) target = $region57
    $region56: #{tpu_custom_call.1} parent=1 // pred_region
      %113 = dma.done [#allocation12], 16
    $region57: #{tpu_custom_call.1} parent=1 // pred_fallthru
      _
    %v115 = vld [vmem:[#allocation2] sm:$0xff]
    %v116 = vld [vmem:[#allocation2 + $0x8] sm:$0xff]
    %v117 = vld [vmem:[#allocation2 + $0x10] sm:$0xff]
    %v118 = vld [vmem:[#allocation2 + $0x18] sm:$0xff]
    %v119 = vld [vmem:[#allocation2 + $0x20] sm:$0xff]
    %v120 = vld [vmem:[#allocation2 + $0x28] sm:$0xff]
    %v121 = vpack.c.bf16 %v115, %v115
    %v122 = vpack.c.bf16 %v116, %v116
    %v123 = vpack.c.bf16 %v117, %v117
    %v124 = vpack.c.bf16 %v118, %v118
    %v125 = vpack.c.bf16 %v119, %v119
    %v126 = vpack.c.bf16 %v120, %v120
    %v127 = vld [vmem:[#allocation5] sm:$0xff]
    %v128 = vld [vmem:[#allocation5 + $0x8] sm:$0xff]
    %v129 = vld [vmem:[#allocation5 + $0x10] sm:$0xff]
    %v130 = vld [vmem:[#allocation5 + $0x18] sm:$0xff]
    %v131 = vld [vmem:[#allocation5 + $0x20] sm:$0xff]
    %v132 = vld [vmem:[#allocation5 + $0x28] sm:$0xff]
    %v133 = vld [vmem:[#allocation5 + $0x30] sm:$0xff]
    %v134 = vld [vmem:[#allocation5 + $0x38] sm:$0xff]
    %v135 = vld [vmem:[#allocation5 + $0x40] sm:$0xff]
    %v136 = vld [vmem:[#allocation5 + $0x48] sm:$0xff]
    %v137 = vld [vmem:[#allocation5 + $0x50] sm:$0xff]
    %v138 = vld [vmem:[#allocation5 + $0x58] sm:$0xff]
    %v139 = vld [vmem:[#allocation5 + $0x60] sm:$0xff]
    %v140 = vld [vmem:[#allocation5 + $0x68] sm:$0xff]
    %v141 = vld [vmem:[#allocation5 + $0x70] sm:$0xff]
    %v142 = vld [vmem:[#allocation5 + $0x78] sm:$0xff]
    %v143 = vld [vmem:[#allocation5 + $0x80] sm:$0xff]
    %v144 = vld [vmem:[#allocation5 + $0x88] sm:$0xff]
    %v145 = vld [vmem:[#allocation5 + $0x90] sm:$0xff]
    %v146 = vld [vmem:[#allocation5 + $0x98] sm:$0xff]
    %v147 = vld [vmem:[#allocation5 + $0xa0] sm:$0xff]
    %v148 = vld [vmem:[#allocation5 + $0xa8] sm:$0xff]
    %v149 = vld [vmem:[#allocation5 + $0xb0] sm:$0xff]
    %v150 = vld [vmem:[#allocation5 + $0xb8] sm:$0xff]
    %v151 = vld [vmem:[#allocation5 + $0xc0] sm:$0xff]
    %v152 = vld [vmem:[#allocation5 + $0xc8] sm:$0xff]
    %v153 = vld [vmem:[#allocation5 + $0xd0] sm:$0xff]
    %v154 = vld [vmem:[#allocation5 + $0xd8] sm:$0xff]
    %v155 = vld [vmem:[#allocation5 + $0xe0] sm:$0xff]
    %v156 = vld [vmem:[#allocation5 + $0xe8] sm:$0xff]
    %v157 = vld [vmem:[#allocation5 + $0xf0] sm:$0xff]
    %v158 = vld [vmem:[#allocation5 + $0xf8] sm:$0xff]
    %v159 = vld [vmem:[#allocation5 + $0x100] sm:$0xff]
    %v160 = vld [vmem:[#allocation5 + $0x108] sm:$0xff]
    %v161 = vld [vmem:[#allocation5 + $0x110] sm:$0xff]
    %v162 = vld [vmem:[#allocation5 + $0x118] sm:$0xff]
    %v163 = vld [vmem:[#allocation5 + $0x120] sm:$0xff]
    %v164 = vld [vmem:[#allocation5 + $0x128] sm:$0xff]
    %v165 = vld [vmem:[#allocation5 + $0x130] sm:$0xff]
    %v166 = vld [vmem:[#allocation5 + $0x138] sm:$0xff]
    %v167 = vld [vmem:[#allocation5 + $0x140] sm:$0xff]
    %v168 = vld [vmem:[#allocation5 + $0x148] sm:$0xff]
    %v169 = vld [vmem:[#allocation5 + $0x150] sm:$0xff]
    %v170 = vld [vmem:[#allocation5 + $0x158] sm:$0xff]
    %v171 = vld [vmem:[#allocation5 + $0x160] sm:$0xff]
    %v172 = vld [vmem:[#allocation5 + $0x168] sm:$0xff]
    %v173 = vld [vmem:[#allocation5 + $0x170] sm:$0xff]
    %v174 = vld [vmem:[#allocation5 + $0x178] sm:$0xff]
    %v175 = vld [vmem:[#allocation5 + $0x180] sm:$0xff]
    %v176 = vld [vmem:[#allocation5 + $0x188] sm:$0xff]
    %v177 = vld [vmem:[#allocation5 + $0x190] sm:$0xff]
    %v178 = vld [vmem:[#allocation5 + $0x198] sm:$0xff]
    %v179 = vld [vmem:[#allocation5 + $0x1a0] sm:$0xff]
    %v180 = vld [vmem:[#allocation5 + $0x1a8] sm:$0xff]
    %v181 = vld [vmem:[#allocation5 + $0x1b0] sm:$0xff]
    %v182 = vld [vmem:[#allocation5 + $0x1b8] sm:$0xff]
    %v183 = vld [vmem:[#allocation5 + $0x1c0] sm:$0xff]
    %v184 = vld [vmem:[#allocation5 + $0x1c8] sm:$0xff]
    %v185 = vld [vmem:[#allocation5 + $0x1d0] sm:$0xff]
    %v186 = vld [vmem:[#allocation5 + $0x1d8] sm:$0xff]
    %v187 = vld [vmem:[#allocation5 + $0x1e0] sm:$0xff]
    %v188 = vld [vmem:[#allocation5 + $0x1e8] sm:$0xff]
    %v189 = vld [vmem:[#allocation5 + $0x1f0] sm:$0xff]
    %v190 = vld [vmem:[#allocation5 + $0x1f8] sm:$0xff]
    %v191 = vld [vmem:[#allocation5 + $0x200] sm:$0xff]
    %v192 = vld [vmem:[#allocation5 + $0x208] sm:$0xff]
    %v193 = vld [vmem:[#allocation5 + $0x210] sm:$0xff]
    %v194 = vld [vmem:[#allocation5 + $0x218] sm:$0xff]
    %v195 = vld [vmem:[#allocation5 + $0x220] sm:$0xff]
    %v196 = vld [vmem:[#allocation5 + $0x228] sm:$0xff]
    %v197 = vld [vmem:[#allocation5 + $0x230] sm:$0xff]
    %v198 = vld [vmem:[#allocation5 + $0x238] sm:$0xff]
    %v199 = vld [vmem:[#allocation5 + $0x240] sm:$0xff]
    %v200 = vld [vmem:[#allocation5 + $0x248] sm:$0xff]
    %v201 = vld [vmem:[#allocation5 + $0x250] sm:$0xff]
    %v202 = vld [vmem:[#allocation5 + $0x258] sm:$0xff]
    %v203 = vld [vmem:[#allocation5 + $0x260] sm:$0xff]
    %v204 = vld [vmem:[#allocation5 + $0x268] sm:$0xff]
    %v205 = vld [vmem:[#allocation5 + $0x270] sm:$0xff]
    %v206 = vld [vmem:[#allocation5 + $0x278] sm:$0xff]
    %v207 = vld [vmem:[#allocation5 + $0x280] sm:$0xff]
    %v208 = vld [vmem:[#allocation5 + $0x288] sm:$0xff]
    %v209 = vld [vmem:[#allocation5 + $0x290] sm:$0xff]
    %v210 = vld [vmem:[#allocation5 + $0x298] sm:$0xff]
    %v211 = vld [vmem:[#allocation5 + $0x2a0] sm:$0xff]
    %v212 = vld [vmem:[#allocation5 + $0x2a8] sm:$0xff]
    %v213 = vld [vmem:[#allocation5 + $0x2b0] sm:$0xff]
    %v214 = vld [vmem:[#allocation5 + $0x2b8] sm:$0xff]
    %v215 = vld [vmem:[#allocation5 + $0x2c0] sm:$0xff]
    %v216 = vld [vmem:[#allocation5 + $0x2c8] sm:$0xff]
    %v217 = vld [vmem:[#allocation5 + $0x2d0] sm:$0xff]
    %v218 = vld [vmem:[#allocation5 + $0x2d8] sm:$0xff]
    %v219 = vld [vmem:[#allocation5 + $0x2e0] sm:$0xff]
    %v220 = vld [vmem:[#allocation5 + $0x2e8] sm:$0xff]
    %v221 = vld [vmem:[#allocation5 + $0x2f0] sm:$0xff]
    %v222 = vld [vmem:[#allocation5 + $0x2f8] sm:$0xff]
    %v223 = vld [vmem:[#allocation5 + $0x300] sm:$0xff]
    %v224 = vld [vmem:[#allocation5 + $0x308] sm:$0xff]
    %v225 = vld [vmem:[#allocation5 + $0x310] sm:$0xff]
    %v226 = vld [vmem:[#allocation5 + $0x318] sm:$0xff]
    %v227 = vld [vmem:[#allocation5 + $0x320] sm:$0xff]
    %v228 = vld [vmem:[#allocation5 + $0x328] sm:$0xff]
    %v229 = vld [vmem:[#allocation5 + $0x330] sm:$0xff]
    %v230 = vld [vmem:[#allocation5 + $0x338] sm:$0xff]
    %v231 = vld [vmem:[#allocation5 + $0x340] sm:$0xff]
    %v232 = vld [vmem:[#allocation5 + $0x348] sm:$0xff]
    %v233 = vld [vmem:[#allocation5 + $0x350] sm:$0xff]
    %v234 = vld [vmem:[#allocation5 + $0x358] sm:$0xff]
    %v235 = vld [vmem:[#allocation5 + $0x360] sm:$0xff]
    %v236 = vld [vmem:[#allocation5 + $0x368] sm:$0xff]
    %v237 = vld [vmem:[#allocation5 + $0x370] sm:$0xff]
    %v238 = vld [vmem:[#allocation5 + $0x378] sm:$0xff]
    %v239 = vld [vmem:[#allocation5 + $0x380] sm:$0xff]
    %v240 = vld [vmem:[#allocation5 + $0x388] sm:$0xff]
    %v241 = vld [vmem:[#allocation5 + $0x390] sm:$0xff]
    %v242 = vld [vmem:[#allocation5 + $0x398] sm:$0xff]
    %v243 = vld [vmem:[#allocation5 + $0x3a0] sm:$0xff]
    %v244 = vld [vmem:[#allocation5 + $0x3a8] sm:$0xff]
    %v245 = vld [vmem:[#allocation5 + $0x3b0] sm:$0xff]
    %v246 = vld [vmem:[#allocation5 + $0x3b8] sm:$0xff]
    %v247 = vld [vmem:[#allocation5 + $0x3c0] sm:$0xff]
    %v248 = vld [vmem:[#allocation5 + $0x3c8] sm:$0xff]
    %v249 = vld [vmem:[#allocation5 + $0x3d0] sm:$0xff]
    %v250 = vld [vmem:[#allocation5 + $0x3d8] sm:$0xff]
    %v251 = vld [vmem:[#allocation5 + $0x3e0] sm:$0xff]
    %v252 = vld [vmem:[#allocation5 + $0x3e8] sm:$0xff]
    %v253 = vld [vmem:[#allocation5 + $0x3f0] sm:$0xff]
    %v254 = vld [vmem:[#allocation5 + $0x3f8] sm:$0xff]
    %v255 = vld [vmem:[#allocation5 + $0x400] sm:$0xff]
    %v256 = vld [vmem:[#allocation5 + $0x408] sm:$0xff]
    %v257 = vld [vmem:[#allocation5 + $0x410] sm:$0xff]
    %v258 = vld [vmem:[#allocation5 + $0x418] sm:$0xff]
    %v259 = vld [vmem:[#allocation5 + $0x420] sm:$0xff]
    %v260 = vld [vmem:[#allocation5 + $0x428] sm:$0xff]
    %v261 = vld [vmem:[#allocation5 + $0x430] sm:$0xff]
    %v262 = vld [vmem:[#allocation5 + $0x438] sm:$0xff]
    %v263 = vld [vmem:[#allocation5 + $0x440] sm:$0xff]
    %v264 = vld [vmem:[#allocation5 + $0x448] sm:$0xff]
    %v265 = vld [vmem:[#allocation5 + $0x450] sm:$0xff]
    %v266 = vld [vmem:[#allocation5 + $0x458] sm:$0xff]
    %v267 = vld [vmem:[#allocation5 + $0x460] sm:$0xff]
    %v268 = vld [vmem:[#allocation5 + $0x468] sm:$0xff]
    %v269 = vld [vmem:[#allocation5 + $0x470] sm:$0xff]
    %v270 = vld [vmem:[#allocation5 + $0x478] sm:$0xff]
    %v271 = vld [vmem:[#allocation5 + $0x480] sm:$0xff]
    %v272 = vld [vmem:[#allocation5 + $0x488] sm:$0xff]
    %v273 = vld [vmem:[#allocation5 + $0x490] sm:$0xff]
    %v274 = vld [vmem:[#allocation5 + $0x498] sm:$0xff]
    %v275 = vld [vmem:[#allocation5 + $0x4a0] sm:$0xff]
    %v276 = vld [vmem:[#allocation5 + $0x4a8] sm:$0xff]
    %v277 = vld [vmem:[#allocation5 + $0x4b0] sm:$0xff]
    %v278 = vld [vmem:[#allocation5 + $0x4b8] sm:$0xff]
    %v279 = vld [vmem:[#allocation5 + $0x4c0] sm:$0xff]
    %v280 = vld [vmem:[#allocation5 + $0x4c8] sm:$0xff]
    %v281 = vld [vmem:[#allocation5 + $0x4d0] sm:$0xff]
    %v282 = vld [vmem:[#allocation5 + $0x4d8] sm:$0xff]
    %v283 = vld [vmem:[#allocation5 + $0x4e0] sm:$0xff]
    %v284 = vld [vmem:[#allocation5 + $0x4e8] sm:$0xff]
    %v285 = vld [vmem:[#allocation5 + $0x4f0] sm:$0xff]
    %v286 = vld [vmem:[#allocation5 + $0x4f8] sm:$0xff]
    %v287 = vld [vmem:[#allocation5 + $0x500] sm:$0xff]
    %v288 = vld [vmem:[#allocation5 + $0x508] sm:$0xff]
    %v289 = vld [vmem:[#allocation5 + $0x510] sm:$0xff]
    %v290 = vld [vmem:[#allocation5 + $0x518] sm:$0xff]
    %v291 = vld [vmem:[#allocation5 + $0x520] sm:$0xff]
    %v292 = vld [vmem:[#allocation5 + $0x528] sm:$0xff]
    %v293 = vld [vmem:[#allocation5 + $0x530] sm:$0xff]
    %v294 = vld [vmem:[#allocation5 + $0x538] sm:$0xff]
    %v295 = vld [vmem:[#allocation5 + $0x540] sm:$0xff]
    %v296 = vld [vmem:[#allocation5 + $0x548] sm:$0xff]
    %v297 = vld [vmem:[#allocation5 + $0x550] sm:$0xff]
    %v298 = vld [vmem:[#allocation5 + $0x558] sm:$0xff]
    %v299 = vld [vmem:[#allocation5 + $0x560] sm:$0xff]
    %v300 = vld [vmem:[#allocation5 + $0x568] sm:$0xff]
    %v301 = vld [vmem:[#allocation5 + $0x570] sm:$0xff]
    %v302 = vld [vmem:[#allocation5 + $0x578] sm:$0xff]
    %v303 = vld [vmem:[#allocation5 + $0x580] sm:$0xff]
    %v304 = vld [vmem:[#allocation5 + $0x588] sm:$0xff]
    %v305 = vld [vmem:[#allocation5 + $0x590] sm:$0xff]
    %v306 = vld [vmem:[#allocation5 + $0x598] sm:$0xff]
    %v307 = vld [vmem:[#allocation5 + $0x5a0] sm:$0xff]
    %v308 = vld [vmem:[#allocation5 + $0x5a8] sm:$0xff]
    %v309 = vld [vmem:[#allocation5 + $0x5b0] sm:$0xff]
    %v310 = vld [vmem:[#allocation5 + $0x5b8] sm:$0xff]
    %v311 = vld [vmem:[#allocation5 + $0x5c0] sm:$0xff]
    %v312 = vld [vmem:[#allocation5 + $0x5c8] sm:$0xff]
    %v313 = vld [vmem:[#allocation5 + $0x5d0] sm:$0xff]
    %v314 = vld [vmem:[#allocation5 + $0x5d8] sm:$0xff]
    %v315 = vld [vmem:[#allocation5 + $0x5e0] sm:$0xff]
    %v316 = vld [vmem:[#allocation5 + $0x5e8] sm:$0xff]
    %v317 = vld [vmem:[#allocation5 + $0x5f0] sm:$0xff]
    %v318 = vld [vmem:[#allocation5 + $0x5f8] sm:$0xff]
    %v319 = vld [vmem:[#allocation5 + $0x600] sm:$0xff]
    %v320 = vld [vmem:[#allocation5 + $0x608] sm:$0xff]
    %v321 = vld [vmem:[#allocation5 + $0x610] sm:$0xff]
    %v322 = vld [vmem:[#allocation5 + $0x618] sm:$0xff]
    %v323 = vld [vmem:[#allocation5 + $0x620] sm:$0xff]
    %v324 = vld [vmem:[#allocation5 + $0x628] sm:$0xff]
    %v325 = vld [vmem:[#allocation5 + $0x630] sm:$0xff]
    %v326 = vld [vmem:[#allocation5 + $0x638] sm:$0xff]
    %v327 = vld [vmem:[#allocation5 + $0x640] sm:$0xff]
    %v328 = vld [vmem:[#allocation5 + $0x648] sm:$0xff]
    %v329 = vld [vmem:[#allocation5 + $0x650] sm:$0xff]
    %v330 = vld [vmem:[#allocation5 + $0x658] sm:$0xff]
    %v331 = vld [vmem:[#allocation5 + $0x660] sm:$0xff]
    %v332 = vld [vmem:[#allocation5 + $0x668] sm:$0xff]
    %v333 = vld [vmem:[#allocation5 + $0x670] sm:$0xff]
    %v334 = vld [vmem:[#allocation5 + $0x678] sm:$0xff]
    %v335 = vld [vmem:[#allocation5 + $0x680] sm:$0xff]
    %v336 = vld [vmem:[#allocation5 + $0x688] sm:$0xff]
    %v337 = vld [vmem:[#allocation5 + $0x690] sm:$0xff]
    %v338 = vld [vmem:[#allocation5 + $0x698] sm:$0xff]
    %v339 = vld [vmem:[#allocation5 + $0x6a0] sm:$0xff]
    %v340 = vld [vmem:[#allocation5 + $0x6a8] sm:$0xff]
    %v341 = vld [vmem:[#allocation5 + $0x6b0] sm:$0xff]
    %v342 = vld [vmem:[#allocation5 + $0x6b8] sm:$0xff]
    %v343 = vld [vmem:[#allocation5 + $0x6c0] sm:$0xff]
    %v344 = vld [vmem:[#allocation5 + $0x6c8] sm:$0xff]
    %v345 = vld [vmem:[#allocation5 + $0x6d0] sm:$0xff]
    %v346 = vld [vmem:[#allocation5 + $0x6d8] sm:$0xff]
    %v347 = vld [vmem:[#allocation5 + $0x6e0] sm:$0xff]
    %v348 = vld [vmem:[#allocation5 + $0x6e8] sm:$0xff]
    %v349 = vld [vmem:[#allocation5 + $0x6f0] sm:$0xff]
    %v350 = vld [vmem:[#allocation5 + $0x6f8] sm:$0xff]
    %v351 = vld [vmem:[#allocation5 + $0x700] sm:$0xff]
    %v352 = vld [vmem:[#allocation5 + $0x708] sm:$0xff]
    %v353 = vld [vmem:[#allocation5 + $0x710] sm:$0xff]
    %v354 = vld [vmem:[#allocation5 + $0x718] sm:$0xff]
    %v355 = vld [vmem:[#allocation5 + $0x720] sm:$0xff]
    %v356 = vld [vmem:[#allocation5 + $0x728] sm:$0xff]
    %v357 = vld [vmem:[#allocation5 + $0x730] sm:$0xff]
    %v358 = vld [vmem:[#allocation5 + $0x738] sm:$0xff]
    %v359 = vld [vmem:[#allocation5 + $0x740] sm:$0xff]
    %v360 = vld [vmem:[#allocation5 + $0x748] sm:$0xff]
    %v361 = vld [vmem:[#allocation5 + $0x750] sm:$0xff]
    %v362 = vld [vmem:[#allocation5 + $0x758] sm:$0xff]
    %v363 = vld [vmem:[#allocation5 + $0x760] sm:$0xff]
    %v364 = vld [vmem:[#allocation5 + $0x768] sm:$0xff]
    %v365 = vld [vmem:[#allocation5 + $0x770] sm:$0xff]
    %v366 = vld [vmem:[#allocation5 + $0x778] sm:$0xff]
    %v367 = vld [vmem:[#allocation5 + $0x780] sm:$0xff]
    %v368 = vld [vmem:[#allocation5 + $0x788] sm:$0xff]
    %v369 = vld [vmem:[#allocation5 + $0x790] sm:$0xff]
    %v370 = vld [vmem:[#allocation5 + $0x798] sm:$0xff]
    %v371 = vld [vmem:[#allocation5 + $0x7a0] sm:$0xff]
    %v372 = vld [vmem:[#allocation5 + $0x7a8] sm:$0xff]
    %v373 = vld [vmem:[#allocation5 + $0x7b0] sm:$0xff]
    %v374 = vld [vmem:[#allocation5 + $0x7b8] sm:$0xff]
    %v375 = vld [vmem:[#allocation5 + $0x7c0] sm:$0xff]
    %v376 = vld [vmem:[#allocation5 + $0x7c8] sm:$0xff]
    %v377 = vld [vmem:[#allocation5 + $0x7d0] sm:$0xff]
    %v378 = vld [vmem:[#allocation5 + $0x7d8] sm:$0xff]
    %v379 = vld [vmem:[#allocation5 + $0x7e0] sm:$0xff]
    %v380 = vld [vmem:[#allocation5 + $0x7e8] sm:$0xff]
    %v381 = vld [vmem:[#allocation5 + $0x7f0] sm:$0xff]
    %v382 = vld [vmem:[#allocation5 + $0x7f8] sm:$0xff]
    %v383 = vld [vmem:[#allocation5 + $0x800] sm:$0xff]
    %v384 = vld [vmem:[#allocation5 + $0x808] sm:$0xff]
    %v385 = vld [vmem:[#allocation5 + $0x810] sm:$0xff]
    %v386 = vld [vmem:[#allocation5 + $0x818] sm:$0xff]
    %v387 = vld [vmem:[#allocation5 + $0x820] sm:$0xff]
    %v388 = vld [vmem:[#allocation5 + $0x828] sm:$0xff]
    %v389 = vld [vmem:[#allocation5 + $0x830] sm:$0xff]
    %v390 = vld [vmem:[#allocation5 + $0x838] sm:$0xff]
    %v391 = vld [vmem:[#allocation5 + $0x840] sm:$0xff]
    %v392 = vld [vmem:[#allocation5 + $0x848] sm:$0xff]
    %v393 = vld [vmem:[#allocation5 + $0x850] sm:$0xff]
    %v394 = vld [vmem:[#allocation5 + $0x858] sm:$0xff]
    %v395 = vld [vmem:[#allocation5 + $0x860] sm:$0xff]
    %v396 = vld [vmem:[#allocation5 + $0x868] sm:$0xff]
    %v397 = vld [vmem:[#allocation5 + $0x870] sm:$0xff]
    %v398 = vld [vmem:[#allocation5 + $0x878] sm:$0xff]
    %v399 = vld [vmem:[#allocation5 + $0x880] sm:$0xff]
    %v400 = vld [vmem:[#allocation5 + $0x888] sm:$0xff]
    %v401 = vld [vmem:[#allocation5 + $0x890] sm:$0xff]
    %v402 = vld [vmem:[#allocation5 + $0x898] sm:$0xff]
    %v403 = vld [vmem:[#allocation5 + $0x8a0] sm:$0xff]
    %v404 = vld [vmem:[#allocation5 + $0x8a8] sm:$0xff]
    %v405 = vld [vmem:[#allocation5 + $0x8b0] sm:$0xff]
    %v406 = vld [vmem:[#allocation5 + $0x8b8] sm:$0xff]
    %v407 = vld [vmem:[#allocation5 + $0x8c0] sm:$0xff]
    %v408 = vld [vmem:[#allocation5 + $0x8c8] sm:$0xff]
    %v409 = vld [vmem:[#allocation5 + $0x8d0] sm:$0xff]
    %v410 = vld [vmem:[#allocation5 + $0x8d8] sm:$0xff]
    %v411 = vld [vmem:[#allocation5 + $0x8e0] sm:$0xff]
    %v412 = vld [vmem:[#allocation5 + $0x8e8] sm:$0xff]
    %v413 = vld [vmem:[#allocation5 + $0x8f0] sm:$0xff]
    %v414 = vld [vmem:[#allocation5 + $0x8f8] sm:$0xff]
    %v415 = vld [vmem:[#allocation5 + $0x900] sm:$0xff]
    %v416 = vld [vmem:[#allocation5 + $0x908] sm:$0xff]
    %v417 = vld [vmem:[#allocation5 + $0x910] sm:$0xff]
    %v418 = vld [vmem:[#allocation5 + $0x918] sm:$0xff]
    %v419 = vld [vmem:[#allocation5 + $0x920] sm:$0xff]
    %v420 = vld [vmem:[#allocation5 + $0x928] sm:$0xff]
    %v421 = vld [vmem:[#allocation5 + $0x930] sm:$0xff]
    %v422 = vld [vmem:[#allocation5 + $0x938] sm:$0xff]
    %v423 = vld [vmem:[#allocation5 + $0x940] sm:$0xff]
    %v424 = vld [vmem:[#allocation5 + $0x948] sm:$0xff]
    %v425 = vld [vmem:[#allocation5 + $0x950] sm:$0xff]
    %v426 = vld [vmem:[#allocation5 + $0x958] sm:$0xff]
    %v427 = vld [vmem:[#allocation5 + $0x960] sm:$0xff]
    %v428 = vld [vmem:[#allocation5 + $0x968] sm:$0xff]
    %v429 = vld [vmem:[#allocation5 + $0x970] sm:$0xff]
    %v430 = vld [vmem:[#allocation5 + $0x978] sm:$0xff]
    %v431 = vld [vmem:[#allocation5 + $0x980] sm:$0xff]
    %v432 = vld [vmem:[#allocation5 + $0x988] sm:$0xff]
    %v433 = vld [vmem:[#allocation5 + $0x990] sm:$0xff]
    %v434 = vld [vmem:[#allocation5 + $0x998] sm:$0xff]
    %v435 = vld [vmem:[#allocation5 + $0x9a0] sm:$0xff]
    %v436 = vld [vmem:[#allocation5 + $0x9a8] sm:$0xff]
    %v437 = vld [vmem:[#allocation5 + $0x9b0] sm:$0xff]
    %v438 = vld [vmem:[#allocation5 + $0x9b8] sm:$0xff]
    %v439 = vld [vmem:[#allocation5 + $0x9c0] sm:$0xff]
    %v440 = vld [vmem:[#allocation5 + $0x9c8] sm:$0xff]
    %v441 = vld [vmem:[#allocation5 + $0x9d0] sm:$0xff]
    %v442 = vld [vmem:[#allocation5 + $0x9d8] sm:$0xff]
    %v443 = vld [vmem:[#allocation5 + $0x9e0] sm:$0xff]
    %v444 = vld [vmem:[#allocation5 + $0x9e8] sm:$0xff]
    %v445 = vld [vmem:[#allocation5 + $0x9f0] sm:$0xff]
    %v446 = vld [vmem:[#allocation5 + $0x9f8] sm:$0xff]
    %v447 = vld [vmem:[#allocation5 + $0xa00] sm:$0xff]
    %v448 = vld [vmem:[#allocation5 + $0xa08] sm:$0xff]
    %v449 = vld [vmem:[#allocation5 + $0xa10] sm:$0xff]
    %v450 = vld [vmem:[#allocation5 + $0xa18] sm:$0xff]
    %v451 = vld [vmem:[#allocation5 + $0xa20] sm:$0xff]
    %v452 = vld [vmem:[#allocation5 + $0xa28] sm:$0xff]
    %v453 = vld [vmem:[#allocation5 + $0xa30] sm:$0xff]
    %v454 = vld [vmem:[#allocation5 + $0xa38] sm:$0xff]
    %v455 = vld [vmem:[#allocation5 + $0xa40] sm:$0xff]
    %v456 = vld [vmem:[#allocation5 + $0xa48] sm:$0xff]
    %v457 = vld [vmem:[#allocation5 + $0xa50] sm:$0xff]
    %v458 = vld [vmem:[#allocation5 + $0xa58] sm:$0xff]
    %v459 = vld [vmem:[#allocation5 + $0xa60] sm:$0xff]
    %v460 = vld [vmem:[#allocation5 + $0xa68] sm:$0xff]
    %v461 = vld [vmem:[#allocation5 + $0xa70] sm:$0xff]
    %v462 = vld [vmem:[#allocation5 + $0xa78] sm:$0xff]
    %v463 = vld [vmem:[#allocation5 + $0xa80] sm:$0xff]
    %v464 = vld [vmem:[#allocation5 + $0xa88] sm:$0xff]
    %v465 = vld [vmem:[#allocation5 + $0xa90] sm:$0xff]
    %v466 = vld [vmem:[#allocation5 + $0xa98] sm:$0xff]
    %v467 = vld [vmem:[#allocation5 + $0xaa0] sm:$0xff]
    %v468 = vld [vmem:[#allocation5 + $0xaa8] sm:$0xff]
    %v469 = vld [vmem:[#allocation5 + $0xab0] sm:$0xff]
    %v470 = vld [vmem:[#allocation5 + $0xab8] sm:$0xff]
    %v471 = vld [vmem:[#allocation5 + $0xac0] sm:$0xff]
    %v472 = vld [vmem:[#allocation5 + $0xac8] sm:$0xff]
    %v473 = vld [vmem:[#allocation5 + $0xad0] sm:$0xff]
    %v474 = vld [vmem:[#allocation5 + $0xad8] sm:$0xff]
    %v475 = vld [vmem:[#allocation5 + $0xae0] sm:$0xff]
    %v476 = vld [vmem:[#allocation5 + $0xae8] sm:$0xff]
    %v477 = vld [vmem:[#allocation5 + $0xaf0] sm:$0xff]
    %v478 = vld [vmem:[#allocation5 + $0xaf8] sm:$0xff]
    %v479 = vld [vmem:[#allocation5 + $0xb00] sm:$0xff]
    %v480 = vld [vmem:[#allocation5 + $0xb08] sm:$0xff]
    %v481 = vld [vmem:[#allocation5 + $0xb10] sm:$0xff]
    %v482 = vld [vmem:[#allocation5 + $0xb18] sm:$0xff]
    %v483 = vld [vmem:[#allocation5 + $0xb20] sm:$0xff]
    %v484 = vld [vmem:[#allocation5 + $0xb28] sm:$0xff]
    %v485 = vld [vmem:[#allocation5 + $0xb30] sm:$0xff]
    %v486 = vld [vmem:[#allocation5 + $0xb38] sm:$0xff]
    %v487 = vld [vmem:[#allocation5 + $0xb40] sm:$0xff]
    %v488 = vld [vmem:[#allocation5 + $0xb48] sm:$0xff]
    %v489 = vld [vmem:[#allocation5 + $0xb50] sm:$0xff]
    %v490 = vld [vmem:[#allocation5 + $0xb58] sm:$0xff]
    %v491 = vld [vmem:[#allocation5 + $0xb60] sm:$0xff]
    %v492 = vld [vmem:[#allocation5 + $0xb68] sm:$0xff]
    %v493 = vld [vmem:[#allocation5 + $0xb70] sm:$0xff]
    %v494 = vld [vmem:[#allocation5 + $0xb78] sm:$0xff]
    %v495 = vld [vmem:[#allocation5 + $0xb80] sm:$0xff]
    %v496 = vld [vmem:[#allocation5 + $0xb88] sm:$0xff]
    %v497 = vld [vmem:[#allocation5 + $0xb90] sm:$0xff]
    %v498 = vld [vmem:[#allocation5 + $0xb98] sm:$0xff]
    %v499 = vld [vmem:[#allocation5 + $0xba0] sm:$0xff]
    %v500 = vld [vmem:[#allocation5 + $0xba8] sm:$0xff]
    %v501 = vld [vmem:[#allocation5 + $0xbb0] sm:$0xff]
    %v502 = vld [vmem:[#allocation5 + $0xbb8] sm:$0xff]
    %v503 = vld [vmem:[#allocation5 + $0xbc0] sm:$0xff]
    %v504 = vld [vmem:[#allocation5 + $0xbc8] sm:$0xff]
    %v505 = vld [vmem:[#allocation5 + $0xbd0] sm:$0xff]
    %v506 = vld [vmem:[#allocation5 + $0xbd8] sm:$0xff]
    %v507 = vld [vmem:[#allocation5 + $0xbe0] sm:$0xff]
    %v508 = vld [vmem:[#allocation5 + $0xbe8] sm:$0xff]
    %v509 = vld [vmem:[#allocation5 + $0xbf0] sm:$0xff]
    %v510 = vld [vmem:[#allocation5 + $0xbf8] sm:$0xff]
    %v511 = vld [vmem:[#allocation5 + $0xc00] sm:$0xff]
    %v512 = vld [vmem:[#allocation5 + $0xc08] sm:$0xff]
    %v513 = vld [vmem:[#allocation5 + $0xc10] sm:$0xff]
    %v514 = vld [vmem:[#allocation5 + $0xc18] sm:$0xff]
    %v515 = vld [vmem:[#allocation5 + $0xc20] sm:$0xff]
    %v516 = vld [vmem:[#allocation5 + $0xc28] sm:$0xff]
    %v517 = vld [vmem:[#allocation5 + $0xc30] sm:$0xff]
    %v518 = vld [vmem:[#allocation5 + $0xc38] sm:$0xff]
    %v519 = vld [vmem:[#allocation5 + $0xc40] sm:$0xff]
    %v520 = vld [vmem:[#allocation5 + $0xc48] sm:$0xff]
    %v521 = vld [vmem:[#allocation5 + $0xc50] sm:$0xff]
    %v522 = vld [vmem:[#allocation5 + $0xc58] sm:$0xff]
    %v523 = vld [vmem:[#allocation5 + $0xc60] sm:$0xff]
    %v524 = vld [vmem:[#allocation5 + $0xc68] sm:$0xff]
    %v525 = vld [vmem:[#allocation5 + $0xc70] sm:$0xff]
    %v526 = vld [vmem:[#allocation5 + $0xc78] sm:$0xff]
    %v527 = vld [vmem:[#allocation5 + $0xc80] sm:$0xff]
    %v528 = vld [vmem:[#allocation5 + $0xc88] sm:$0xff]
    %v529 = vld [vmem:[#allocation5 + $0xc90] sm:$0xff]
    %v530 = vld [vmem:[#allocation5 + $0xc98] sm:$0xff]
    %v531 = vld [vmem:[#allocation5 + $0xca0] sm:$0xff]
    %v532 = vld [vmem:[#allocation5 + $0xca8] sm:$0xff]
    %v533 = vld [vmem:[#allocation5 + $0xcb0] sm:$0xff]
    %v534 = vld [vmem:[#allocation5 + $0xcb8] sm:$0xff]
    %v535 = vld [vmem:[#allocation5 + $0xcc0] sm:$0xff]
    %v536 = vld [vmem:[#allocation5 + $0xcc8] sm:$0xff]
    %v537 = vld [vmem:[#allocation5 + $0xcd0] sm:$0xff]
    %v538 = vld [vmem:[#allocation5 + $0xcd8] sm:$0xff]
    %v539 = vld [vmem:[#allocation5 + $0xce0] sm:$0xff]
    %v540 = vld [vmem:[#allocation5 + $0xce8] sm:$0xff]
    %v541 = vld [vmem:[#allocation5 + $0xcf0] sm:$0xff]
    %v542 = vld [vmem:[#allocation5 + $0xcf8] sm:$0xff]
    %v543 = vld [vmem:[#allocation5 + $0xd00] sm:$0xff]
    %v544 = vld [vmem:[#allocation5 + $0xd08] sm:$0xff]
    %v545 = vld [vmem:[#allocation5 + $0xd10] sm:$0xff]
    %v546 = vld [vmem:[#allocation5 + $0xd18] sm:$0xff]
    %v547 = vld [vmem:[#allocation5 + $0xd20] sm:$0xff]
    %v548 = vld [vmem:[#allocation5 + $0xd28] sm:$0xff]
    %v549 = vld [vmem:[#allocation5 + $0xd30] sm:$0xff]
    %v550 = vld [vmem:[#allocation5 + $0xd38] sm:$0xff]
    %v551 = vld [vmem:[#allocation5 + $0xd40] sm:$0xff]
    %v552 = vld [vmem:[#allocation5 + $0xd48] sm:$0xff]
    %v553 = vld [vmem:[#allocation5 + $0xd50] sm:$0xff]
    %v554 = vld [vmem:[#allocation5 + $0xd58] sm:$0xff]
    %v555 = vld [vmem:[#allocation5 + $0xd60] sm:$0xff]
    %v556 = vld [vmem:[#allocation5 + $0xd68] sm:$0xff]
    %v557 = vld [vmem:[#allocation5 + $0xd70] sm:$0xff]
    %v558 = vld [vmem:[#allocation5 + $0xd78] sm:$0xff]
    %v559 = vld [vmem:[#allocation5 + $0xd80] sm:$0xff]
    %v560 = vld [vmem:[#allocation5 + $0xd88] sm:$0xff]
    %v561 = vld [vmem:[#allocation5 + $0xd90] sm:$0xff]
    %v562 = vld [vmem:[#allocation5 + $0xd98] sm:$0xff]
    %v563 = vld [vmem:[#allocation5 + $0xda0] sm:$0xff]
    %v564 = vld [vmem:[#allocation5 + $0xda8] sm:$0xff]
    %v565 = vld [vmem:[#allocation5 + $0xdb0] sm:$0xff]
    %v566 = vld [vmem:[#allocation5 + $0xdb8] sm:$0xff]
    %v567 = vld [vmem:[#allocation5 + $0xdc0] sm:$0xff]
    %v568 = vld [vmem:[#allocation5 + $0xdc8] sm:$0xff]
    %v569 = vld [vmem:[#allocation5 + $0xdd0] sm:$0xff]
    %v570 = vld [vmem:[#allocation5 + $0xdd8] sm:$0xff]
    %v571 = vld [vmem:[#allocation5 + $0xde0] sm:$0xff]
    %v572 = vld [vmem:[#allocation5 + $0xde8] sm:$0xff]
    %v573 = vld [vmem:[#allocation5 + $0xdf0] sm:$0xff]
    %v574 = vld [vmem:[#allocation5 + $0xdf8] sm:$0xff]
    %v575 = vld [vmem:[#allocation5 + $0xe00] sm:$0xff]
    %v576 = vld [vmem:[#allocation5 + $0xe08] sm:$0xff]
    %v577 = vld [vmem:[#allocation5 + $0xe10] sm:$0xff]
    %v578 = vld [vmem:[#allocation5 + $0xe18] sm:$0xff]
    %v579 = vld [vmem:[#allocation5 + $0xe20] sm:$0xff]
    %v580 = vld [vmem:[#allocation5 + $0xe28] sm:$0xff]
    %v581 = vld [vmem:[#allocation5 + $0xe30] sm:$0xff]
    %v582 = vld [vmem:[#allocation5 + $0xe38] sm:$0xff]
    %v583 = vld [vmem:[#allocation5 + $0xe40] sm:$0xff]
    %v584 = vld [vmem:[#allocation5 + $0xe48] sm:$0xff]
    %v585 = vld [vmem:[#allocation5 + $0xe50] sm:$0xff]
    %v586 = vld [vmem:[#allocation5 + $0xe58] sm:$0xff]
    %v587 = vld [vmem:[#allocation5 + $0xe60] sm:$0xff]
    %v588 = vld [vmem:[#allocation5 + $0xe68] sm:$0xff]
    %v589 = vld [vmem:[#allocation5 + $0xe70] sm:$0xff]
    %v590 = vld [vmem:[#allocation5 + $0xe78] sm:$0xff]
    %v591 = vld [vmem:[#allocation5 + $0xe80] sm:$0xff]
    %v592 = vld [vmem:[#allocation5 + $0xe88] sm:$0xff]
    %v593 = vld [vmem:[#allocation5 + $0xe90] sm:$0xff]
    %v594 = vld [vmem:[#allocation5 + $0xe98] sm:$0xff]
    %v595 = vld [vmem:[#allocation5 + $0xea0] sm:$0xff]
    %v596 = vld [vmem:[#allocation5 + $0xea8] sm:$0xff]
    %v597 = vld [vmem:[#allocation5 + $0xeb0] sm:$0xff]
    %v598 = vld [vmem:[#allocation5 + $0xeb8] sm:$0xff]
    %v599 = vld [vmem:[#allocation5 + $0xec0] sm:$0xff]
    %v600 = vld [vmem:[#allocation5 + $0xec8] sm:$0xff]
    %v601 = vld [vmem:[#allocation5 + $0xed0] sm:$0xff]
    %v602 = vld [vmem:[#allocation5 + $0xed8] sm:$0xff]
    %v603 = vld [vmem:[#allocation5 + $0xee0] sm:$0xff]
    %v604 = vld [vmem:[#allocation5 + $0xee8] sm:$0xff]
    %v605 = vld [vmem:[#allocation5 + $0xef0] sm:$0xff]
    %v606 = vld [vmem:[#allocation5 + $0xef8] sm:$0xff]
    %v607 = vld [vmem:[#allocation5 + $0xf00] sm:$0xff]
    %v608 = vld [vmem:[#allocation5 + $0xf08] sm:$0xff]
    %v609 = vld [vmem:[#allocation5 + $0xf10] sm:$0xff]
    %v610 = vld [vmem:[#allocation5 + $0xf18] sm:$0xff]
    %v611 = vld [vmem:[#allocation5 + $0xf20] sm:$0xff]
    %v612 = vld [vmem:[#allocation5 + $0xf28] sm:$0xff]
    %v613 = vld [vmem:[#allocation5 + $0xf30] sm:$0xff]
    %v614 = vld [vmem:[#allocation5 + $0xf38] sm:$0xff]
    %v615 = vld [vmem:[#allocation5 + $0xf40] sm:$0xff]
    %v616 = vld [vmem:[#allocation5 + $0xf48] sm:$0xff]
    %v617 = vld [vmem:[#allocation5 + $0xf50] sm:$0xff]
    %v618 = vld [vmem:[#allocation5 + $0xf58] sm:$0xff]
    %v619 = vld [vmem:[#allocation5 + $0xf60] sm:$0xff]
    %v620 = vld [vmem:[#allocation5 + $0xf68] sm:$0xff]
    %v621 = vld [vmem:[#allocation5 + $0xf70] sm:$0xff]
    %v622 = vld [vmem:[#allocation5 + $0xf78] sm:$0xff]
    %v623 = vld [vmem:[#allocation5 + $0xf80] sm:$0xff]
    %v624 = vld [vmem:[#allocation5 + $0xf88] sm:$0xff]
    %v625 = vld [vmem:[#allocation5 + $0xf90] sm:$0xff]
    %v626 = vld [vmem:[#allocation5 + $0xf98] sm:$0xff]
    %v627 = vld [vmem:[#allocation5 + $0xfa0] sm:$0xff]
    %v628 = vld [vmem:[#allocation5 + $0xfa8] sm:$0xff]
    %v629 = vld [vmem:[#allocation5 + $0xfb0] sm:$0xff]
    %v630 = vld [vmem:[#allocation5 + $0xfb8] sm:$0xff]
    %v631 = vld [vmem:[#allocation5 + $0xfc0] sm:$0xff]
    %v632 = vld [vmem:[#allocation5 + $0xfc8] sm:$0xff]
    %v633 = vld [vmem:[#allocation5 + $0xfd0] sm:$0xff]
    %v634 = vld [vmem:[#allocation5 + $0xfd8] sm:$0xff]
    %v635 = vld [vmem:[#allocation5 + $0xfe0] sm:$0xff]
    %v636 = vld [vmem:[#allocation5 + $0xfe8] sm:$0xff]
    %v637 = vld [vmem:[#allocation5 + $0xff0] sm:$0xff]
    %v638 = vld [vmem:[#allocation5 + $0xff8] sm:$0xff]
    %v639 = vld [vmem:[#allocation5 + $0x1000] sm:$0xff]
    %v640 = vld [vmem:[#allocation5 + $0x1008] sm:$0xff]
    %v641 = vld [vmem:[#allocation5 + $0x1010] sm:$0xff]
    %v642 = vld [vmem:[#allocation5 + $0x1018] sm:$0xff]
    %v643 = vld [vmem:[#allocation5 + $0x1020] sm:$0xff]
    %v644 = vld [vmem:[#allocation5 + $0x1028] sm:$0xff]
    %v645 = vld [vmem:[#allocation5 + $0x1030] sm:$0xff]
    %v646 = vld [vmem:[#allocation5 + $0x1038] sm:$0xff]
    %v647 = vld [vmem:[#allocation5 + $0x1040] sm:$0xff]
    %v648 = vld [vmem:[#allocation5 + $0x1048] sm:$0xff]
    %v649 = vld [vmem:[#allocation5 + $0x1050] sm:$0xff]
    %v650 = vld [vmem:[#allocation5 + $0x1058] sm:$0xff]
    %v651 = vld [vmem:[#allocation5 + $0x1060] sm:$0xff]
    %v652 = vld [vmem:[#allocation5 + $0x1068] sm:$0xff]
    %v653 = vld [vmem:[#allocation5 + $0x1070] sm:$0xff]
    %v654 = vld [vmem:[#allocation5 + $0x1078] sm:$0xff]
    %v655 = vld [vmem:[#allocation5 + $0x1080] sm:$0xff]
    %v656 = vld [vmem:[#allocation5 + $0x1088] sm:$0xff]
    %v657 = vld [vmem:[#allocation5 + $0x1090] sm:$0xff]
    %v658 = vld [vmem:[#allocation5 + $0x1098] sm:$0xff]
    %v659 = vld [vmem:[#allocation5 + $0x10a0] sm:$0xff]
    %v660 = vld [vmem:[#allocation5 + $0x10a8] sm:$0xff]
    %v661 = vld [vmem:[#allocation5 + $0x10b0] sm:$0xff]
    %v662 = vld [vmem:[#allocation5 + $0x10b8] sm:$0xff]
    %v663 = vld [vmem:[#allocation5 + $0x10c0] sm:$0xff]
    %v664 = vld [vmem:[#allocation5 + $0x10c8] sm:$0xff]
    %v665 = vld [vmem:[#allocation5 + $0x10d0] sm:$0xff]
    %v666 = vld [vmem:[#allocation5 + $0x10d8] sm:$0xff]
    %v667 = vld [vmem:[#allocation5 + $0x10e0] sm:$0xff]
    %v668 = vld [vmem:[#allocation5 + $0x10e8] sm:$0xff]
    %v669 = vld [vmem:[#allocation5 + $0x10f0] sm:$0xff]
    %v670 = vld [vmem:[#allocation5 + $0x10f8] sm:$0xff]
    %v671 = vld [vmem:[#allocation5 + $0x1100] sm:$0xff]
    %v672 = vld [vmem:[#allocation5 + $0x1108] sm:$0xff]
    %v673 = vld [vmem:[#allocation5 + $0x1110] sm:$0xff]
    %v674 = vld [vmem:[#allocation5 + $0x1118] sm:$0xff]
    %v675 = vld [vmem:[#allocation5 + $0x1120] sm:$0xff]
    %v676 = vld [vmem:[#allocation5 + $0x1128] sm:$0xff]
    %v677 = vld [vmem:[#allocation5 + $0x1130] sm:$0xff]
    %v678 = vld [vmem:[#allocation5 + $0x1138] sm:$0xff]
    %v679 = vld [vmem:[#allocation5 + $0x1140] sm:$0xff]
    %v680 = vld [vmem:[#allocation5 + $0x1148] sm:$0xff]
    %v681 = vld [vmem:[#allocation5 + $0x1150] sm:$0xff]
    %v682 = vld [vmem:[#allocation5 + $0x1158] sm:$0xff]
    %v683 = vld [vmem:[#allocation5 + $0x1160] sm:$0xff]
    %v684 = vld [vmem:[#allocation5 + $0x1168] sm:$0xff]
    %v685 = vld [vmem:[#allocation5 + $0x1170] sm:$0xff]
    %v686 = vld [vmem:[#allocation5 + $0x1178] sm:$0xff]
    %v687 = vld [vmem:[#allocation5 + $0x1180] sm:$0xff]
    %v688 = vld [vmem:[#allocation5 + $0x1188] sm:$0xff]
    %v689 = vld [vmem:[#allocation5 + $0x1190] sm:$0xff]
    %v690 = vld [vmem:[#allocation5 + $0x1198] sm:$0xff]
    %v691 = vld [vmem:[#allocation5 + $0x11a0] sm:$0xff]
    %v692 = vld [vmem:[#allocation5 + $0x11a8] sm:$0xff]
    %v693 = vld [vmem:[#allocation5 + $0x11b0] sm:$0xff]
    %v694 = vld [vmem:[#allocation5 + $0x11b8] sm:$0xff]
    %v695 = vld [vmem:[#allocation5 + $0x11c0] sm:$0xff]
    %v696 = vld [vmem:[#allocation5 + $0x11c8] sm:$0xff]
    %v697 = vld [vmem:[#allocation5 + $0x11d0] sm:$0xff]
    %v698 = vld [vmem:[#allocation5 + $0x11d8] sm:$0xff]
    %v699 = vld [vmem:[#allocation5 + $0x11e0] sm:$0xff]
    %v700 = vld [vmem:[#allocation5 + $0x11e8] sm:$0xff]
    %v701 = vld [vmem:[#allocation5 + $0x11f0] sm:$0xff]
    %v702 = vld [vmem:[#allocation5 + $0x11f8] sm:$0xff]
    %v703 = vld [vmem:[#allocation5 + $0x1200] sm:$0xff]
    %v704 = vld [vmem:[#allocation5 + $0x1208] sm:$0xff]
    %v705 = vld [vmem:[#allocation5 + $0x1210] sm:$0xff]
    %v706 = vld [vmem:[#allocation5 + $0x1218] sm:$0xff]
    %v707 = vld [vmem:[#allocation5 + $0x1220] sm:$0xff]
    %v708 = vld [vmem:[#allocation5 + $0x1228] sm:$0xff]
    %v709 = vld [vmem:[#allocation5 + $0x1230] sm:$0xff]
    %v710 = vld [vmem:[#allocation5 + $0x1238] sm:$0xff]
    %v711 = vld [vmem:[#allocation5 + $0x1240] sm:$0xff]
    %v712 = vld [vmem:[#allocation5 + $0x1248] sm:$0xff]
    %v713 = vld [vmem:[#allocation5 + $0x1250] sm:$0xff]
    %v714 = vld [vmem:[#allocation5 + $0x1258] sm:$0xff]
    %v715 = vld [vmem:[#allocation5 + $0x1260] sm:$0xff]
    %v716 = vld [vmem:[#allocation5 + $0x1268] sm:$0xff]
    %v717 = vld [vmem:[#allocation5 + $0x1270] sm:$0xff]
    %v718 = vld [vmem:[#allocation5 + $0x1278] sm:$0xff]
    %v719 = vld [vmem:[#allocation5 + $0x1280] sm:$0xff]
    %v720 = vld [vmem:[#allocation5 + $0x1288] sm:$0xff]
    %v721 = vld [vmem:[#allocation5 + $0x1290] sm:$0xff]
    %v722 = vld [vmem:[#allocation5 + $0x1298] sm:$0xff]
    %v723 = vld [vmem:[#allocation5 + $0x12a0] sm:$0xff]
    %v724 = vld [vmem:[#allocation5 + $0x12a8] sm:$0xff]
    %v725 = vld [vmem:[#allocation5 + $0x12b0] sm:$0xff]
    %v726 = vld [vmem:[#allocation5 + $0x12b8] sm:$0xff]
    %v727 = vld [vmem:[#allocation5 + $0x12c0] sm:$0xff]
    %v728 = vld [vmem:[#allocation5 + $0x12c8] sm:$0xff]
    %v729 = vld [vmem:[#allocation5 + $0x12d0] sm:$0xff]
    %v730 = vld [vmem:[#allocation5 + $0x12d8] sm:$0xff]
    %v731 = vld [vmem:[#allocation5 + $0x12e0] sm:$0xff]
    %v732 = vld [vmem:[#allocation5 + $0x12e8] sm:$0xff]
    %v733 = vld [vmem:[#allocation5 + $0x12f0] sm:$0xff]
    %v734 = vld [vmem:[#allocation5 + $0x12f8] sm:$0xff]
    %v735 = vld [vmem:[#allocation5 + $0x1300] sm:$0xff]
    %v736 = vld [vmem:[#allocation5 + $0x1308] sm:$0xff]
    %v737 = vld [vmem:[#allocation5 + $0x1310] sm:$0xff]
    %v738 = vld [vmem:[#allocation5 + $0x1318] sm:$0xff]
    %v739 = vld [vmem:[#allocation5 + $0x1320] sm:$0xff]
    %v740 = vld [vmem:[#allocation5 + $0x1328] sm:$0xff]
    %v741 = vld [vmem:[#allocation5 + $0x1330] sm:$0xff]
    %v742 = vld [vmem:[#allocation5 + $0x1338] sm:$0xff]
    %v743 = vld [vmem:[#allocation5 + $0x1340] sm:$0xff]
    %v744 = vld [vmem:[#allocation5 + $0x1348] sm:$0xff]
    %v745 = vld [vmem:[#allocation5 + $0x1350] sm:$0xff]
    %v746 = vld [vmem:[#allocation5 + $0x1358] sm:$0xff]
    %v747 = vld [vmem:[#allocation5 + $0x1360] sm:$0xff]
    %v748 = vld [vmem:[#allocation5 + $0x1368] sm:$0xff]
    %v749 = vld [vmem:[#allocation5 + $0x1370] sm:$0xff]
    %v750 = vld [vmem:[#allocation5 + $0x1378] sm:$0xff]
    %v751 = vld [vmem:[#allocation5 + $0x1380] sm:$0xff]
    %v752 = vld [vmem:[#allocation5 + $0x1388] sm:$0xff]
    %v753 = vld [vmem:[#allocation5 + $0x1390] sm:$0xff]
    %v754 = vld [vmem:[#allocation5 + $0x1398] sm:$0xff]
    %v755 = vld [vmem:[#allocation5 + $0x13a0] sm:$0xff]
    %v756 = vld [vmem:[#allocation5 + $0x13a8] sm:$0xff]
    %v757 = vld [vmem:[#allocation5 + $0x13b0] sm:$0xff]
    %v758 = vld [vmem:[#allocation5 + $0x13b8] sm:$0xff]
    %v759 = vld [vmem:[#allocation5 + $0x13c0] sm:$0xff]
    %v760 = vld [vmem:[#allocation5 + $0x13c8] sm:$0xff]
    %v761 = vld [vmem:[#allocation5 + $0x13d0] sm:$0xff]
    %v762 = vld [vmem:[#allocation5 + $0x13d8] sm:$0xff]
    %v763 = vld [vmem:[#allocation5 + $0x13e0] sm:$0xff]
    %v764 = vld [vmem:[#allocation5 + $0x13e8] sm:$0xff]
    %v765 = vld [vmem:[#allocation5 + $0x13f0] sm:$0xff]
    %v766 = vld [vmem:[#allocation5 + $0x13f8] sm:$0xff]
    %v767 = vld [vmem:[#allocation5 + $0x1400] sm:$0xff]
    %v768 = vld [vmem:[#allocation5 + $0x1408] sm:$0xff]
    %v769 = vld [vmem:[#allocation5 + $0x1410] sm:$0xff]
    %v770 = vld [vmem:[#allocation5 + $0x1418] sm:$0xff]
    %v771 = vld [vmem:[#allocation5 + $0x1420] sm:$0xff]
    %v772 = vld [vmem:[#allocation5 + $0x1428] sm:$0xff]
    %v773 = vld [vmem:[#allocation5 + $0x1430] sm:$0xff]
    %v774 = vld [vmem:[#allocation5 + $0x1438] sm:$0xff]
    %v775 = vld [vmem:[#allocation5 + $0x1440] sm:$0xff]
    %v776 = vld [vmem:[#allocation5 + $0x1448] sm:$0xff]
    %v777 = vld [vmem:[#allocation5 + $0x1450] sm:$0xff]
    %v778 = vld [vmem:[#allocation5 + $0x1458] sm:$0xff]
    %v779 = vld [vmem:[#allocation5 + $0x1460] sm:$0xff]
    %v780 = vld [vmem:[#allocation5 + $0x1468] sm:$0xff]
    %v781 = vld [vmem:[#allocation5 + $0x1470] sm:$0xff]
    %v782 = vld [vmem:[#allocation5 + $0x1478] sm:$0xff]
    %v783 = vld [vmem:[#allocation5 + $0x1480] sm:$0xff]
    %v784 = vld [vmem:[#allocation5 + $0x1488] sm:$0xff]
    %v785 = vld [vmem:[#allocation5 + $0x1490] sm:$0xff]
    %v786 = vld [vmem:[#allocation5 + $0x1498] sm:$0xff]
    %v787 = vld [vmem:[#allocation5 + $0x14a0] sm:$0xff]
    %v788 = vld [vmem:[#allocation5 + $0x14a8] sm:$0xff]
    %v789 = vld [vmem:[#allocation5 + $0x14b0] sm:$0xff]
    %v790 = vld [vmem:[#allocation5 + $0x14b8] sm:$0xff]
    %v791 = vld [vmem:[#allocation5 + $0x14c0] sm:$0xff]
    %v792 = vld [vmem:[#allocation5 + $0x14c8] sm:$0xff]
    %v793 = vld [vmem:[#allocation5 + $0x14d0] sm:$0xff]
    %v794 = vld [vmem:[#allocation5 + $0x14d8] sm:$0xff]
    %v795 = vld [vmem:[#allocation5 + $0x14e0] sm:$0xff]
    %v796 = vld [vmem:[#allocation5 + $0x14e8] sm:$0xff]
    %v797 = vld [vmem:[#allocation5 + $0x14f0] sm:$0xff]
    %v798 = vld [vmem:[#allocation5 + $0x14f8] sm:$0xff]
    %v799 = vld [vmem:[#allocation5 + $0x1500] sm:$0xff]
    %v800 = vld [vmem:[#allocation5 + $0x1508] sm:$0xff]
    %v801 = vld [vmem:[#allocation5 + $0x1510] sm:$0xff]
    %v802 = vld [vmem:[#allocation5 + $0x1518] sm:$0xff]
    %v803 = vld [vmem:[#allocation5 + $0x1520] sm:$0xff]
    %v804 = vld [vmem:[#allocation5 + $0x1528] sm:$0xff]
    %v805 = vld [vmem:[#allocation5 + $0x1530] sm:$0xff]
    %v806 = vld [vmem:[#allocation5 + $0x1538] sm:$0xff]
    %v807 = vld [vmem:[#allocation5 + $0x1540] sm:$0xff]
    %v808 = vld [vmem:[#allocation5 + $0x1548] sm:$0xff]
    %v809 = vld [vmem:[#allocation5 + $0x1550] sm:$0xff]
    %v810 = vld [vmem:[#allocation5 + $0x1558] sm:$0xff]
    %v811 = vld [vmem:[#allocation5 + $0x1560] sm:$0xff]
    %v812 = vld [vmem:[#allocation5 + $0x1568] sm:$0xff]
    %v813 = vld [vmem:[#allocation5 + $0x1570] sm:$0xff]
    %v814 = vld [vmem:[#allocation5 + $0x1578] sm:$0xff]
    %v815 = vld [vmem:[#allocation5 + $0x1580] sm:$0xff]
    %v816 = vld [vmem:[#allocation5 + $0x1588] sm:$0xff]
    %v817 = vld [vmem:[#allocation5 + $0x1590] sm:$0xff]
    %v818 = vld [vmem:[#allocation5 + $0x1598] sm:$0xff]
    %v819 = vld [vmem:[#allocation5 + $0x15a0] sm:$0xff]
    %v820 = vld [vmem:[#allocation5 + $0x15a8] sm:$0xff]
    %v821 = vld [vmem:[#allocation5 + $0x15b0] sm:$0xff]
    %v822 = vld [vmem:[#allocation5 + $0x15b8] sm:$0xff]
    %v823 = vld [vmem:[#allocation5 + $0x15c0] sm:$0xff]
    %v824 = vld [vmem:[#allocation5 + $0x15c8] sm:$0xff]
    %v825 = vld [vmem:[#allocation5 + $0x15d0] sm:$0xff]
    %v826 = vld [vmem:[#allocation5 + $0x15d8] sm:$0xff]
    %v827 = vld [vmem:[#allocation5 + $0x15e0] sm:$0xff]
    %v828 = vld [vmem:[#allocation5 + $0x15e8] sm:$0xff]
    %v829 = vld [vmem:[#allocation5 + $0x15f0] sm:$0xff]
    %v830 = vld [vmem:[#allocation5 + $0x15f8] sm:$0xff]
    %v831 = vld [vmem:[#allocation5 + $0x1600] sm:$0xff]
    %v832 = vld [vmem:[#allocation5 + $0x1608] sm:$0xff]
    %v833 = vld [vmem:[#allocation5 + $0x1610] sm:$0xff]
    %v834 = vld [vmem:[#allocation5 + $0x1618] sm:$0xff]
    %v835 = vld [vmem:[#allocation5 + $0x1620] sm:$0xff]
    %v836 = vld [vmem:[#allocation5 + $0x1628] sm:$0xff]
    %v837 = vld [vmem:[#allocation5 + $0x1630] sm:$0xff]
    %v838 = vld [vmem:[#allocation5 + $0x1638] sm:$0xff]
    %v839 = vld [vmem:[#allocation5 + $0x1640] sm:$0xff]
    %v840 = vld [vmem:[#allocation5 + $0x1648] sm:$0xff]
    %v841 = vld [vmem:[#allocation5 + $0x1650] sm:$0xff]
    %v842 = vld [vmem:[#allocation5 + $0x1658] sm:$0xff]
    %v843 = vld [vmem:[#allocation5 + $0x1660] sm:$0xff]
    %v844 = vld [vmem:[#allocation5 + $0x1668] sm:$0xff]
    %v845 = vld [vmem:[#allocation5 + $0x1670] sm:$0xff]
    %v846 = vld [vmem:[#allocation5 + $0x1678] sm:$0xff]
    %v847 = vld [vmem:[#allocation5 + $0x1680] sm:$0xff]
    %v848 = vld [vmem:[#allocation5 + $0x1688] sm:$0xff]
    %v849 = vld [vmem:[#allocation5 + $0x1690] sm:$0xff]
    %v850 = vld [vmem:[#allocation5 + $0x1698] sm:$0xff]
    %v851 = vld [vmem:[#allocation5 + $0x16a0] sm:$0xff]
    %v852 = vld [vmem:[#allocation5 + $0x16a8] sm:$0xff]
    %v853 = vld [vmem:[#allocation5 + $0x16b0] sm:$0xff]
    %v854 = vld [vmem:[#allocation5 + $0x16b8] sm:$0xff]
    %v855 = vld [vmem:[#allocation5 + $0x16c0] sm:$0xff]
    %v856 = vld [vmem:[#allocation5 + $0x16c8] sm:$0xff]
    %v857 = vld [vmem:[#allocation5 + $0x16d0] sm:$0xff]
    %v858 = vld [vmem:[#allocation5 + $0x16d8] sm:$0xff]
    %v859 = vld [vmem:[#allocation5 + $0x16e0] sm:$0xff]
    %v860 = vld [vmem:[#allocation5 + $0x16e8] sm:$0xff]
    %v861 = vld [vmem:[#allocation5 + $0x16f0] sm:$0xff]
    %v862 = vld [vmem:[#allocation5 + $0x16f8] sm:$0xff]
    %v863 = vld [vmem:[#allocation5 + $0x1700] sm:$0xff]
    %v864 = vld [vmem:[#allocation5 + $0x1708] sm:$0xff]
    %v865 = vld [vmem:[#allocation5 + $0x1710] sm:$0xff]
    %v866 = vld [vmem:[#allocation5 + $0x1718] sm:$0xff]
    %v867 = vld [vmem:[#allocation5 + $0x1720] sm:$0xff]
    %v868 = vld [vmem:[#allocation5 + $0x1728] sm:$0xff]
    %v869 = vld [vmem:[#allocation5 + $0x1730] sm:$0xff]
    %v870 = vld [vmem:[#allocation5 + $0x1738] sm:$0xff]
    %v871 = vld [vmem:[#allocation5 + $0x1740] sm:$0xff]
    %v872 = vld [vmem:[#allocation5 + $0x1748] sm:$0xff]
    %v873 = vld [vmem:[#allocation5 + $0x1750] sm:$0xff]
    %v874 = vld [vmem:[#allocation5 + $0x1758] sm:$0xff]
    %v875 = vld [vmem:[#allocation5 + $0x1760] sm:$0xff]
    %v876 = vld [vmem:[#allocation5 + $0x1768] sm:$0xff]
    %v877 = vld [vmem:[#allocation5 + $0x1770] sm:$0xff]
    %v878 = vld [vmem:[#allocation5 + $0x1778] sm:$0xff]
    %v879 = vld [vmem:[#allocation5 + $0x1780] sm:$0xff]
    %v880 = vld [vmem:[#allocation5 + $0x1788] sm:$0xff]
    %v881 = vld [vmem:[#allocation5 + $0x1790] sm:$0xff]
    %v882 = vld [vmem:[#allocation5 + $0x1798] sm:$0xff]
    %v883 = vld [vmem:[#allocation5 + $0x17a0] sm:$0xff]
    %v884 = vld [vmem:[#allocation5 + $0x17a8] sm:$0xff]
    %v885 = vld [vmem:[#allocation5 + $0x17b0] sm:$0xff]
    %v886 = vld [vmem:[#allocation5 + $0x17b8] sm:$0xff]
    %v887 = vld [vmem:[#allocation5 + $0x17c0] sm:$0xff]
    %v888 = vld [vmem:[#allocation5 + $0x17c8] sm:$0xff]
    %v889 = vld [vmem:[#allocation5 + $0x17d0] sm:$0xff]
    %v890 = vld [vmem:[#allocation5 + $0x17d8] sm:$0xff]
    %v891 = vld [vmem:[#allocation5 + $0x17e0] sm:$0xff]
    %v892 = vld [vmem:[#allocation5 + $0x17e8] sm:$0xff]
    %v893 = vld [vmem:[#allocation5 + $0x17f0] sm:$0xff]
    %v894 = vld [vmem:[#allocation5 + $0x17f8] sm:$0xff]
    %v895 = vld [vmem:[#allocation5 + $0x1800] sm:$0xff]
    %v896 = vld [vmem:[#allocation5 + $0x1808] sm:$0xff]
    %v897 = vld [vmem:[#allocation5 + $0x1810] sm:$0xff]
    %v898 = vld [vmem:[#allocation5 + $0x1818] sm:$0xff]
    %v899 = vld [vmem:[#allocation5 + $0x1820] sm:$0xff]
    %v900 = vld [vmem:[#allocation5 + $0x1828] sm:$0xff]
    %v901 = vld [vmem:[#allocation5 + $0x1830] sm:$0xff]
    %v902 = vld [vmem:[#allocation5 + $0x1838] sm:$0xff]
    %v903 = vld [vmem:[#allocation5 + $0x1840] sm:$0xff]
    %v904 = vld [vmem:[#allocation5 + $0x1848] sm:$0xff]
    %v905 = vld [vmem:[#allocation5 + $0x1850] sm:$0xff]
    %v906 = vld [vmem:[#allocation5 + $0x1858] sm:$0xff]
    %v907 = vld [vmem:[#allocation5 + $0x1860] sm:$0xff]
    %v908 = vld [vmem:[#allocation5 + $0x1868] sm:$0xff]
    %v909 = vld [vmem:[#allocation5 + $0x1870] sm:$0xff]
    %v910 = vld [vmem:[#allocation5 + $0x1878] sm:$0xff]
    %v911 = vld [vmem:[#allocation5 + $0x1880] sm:$0xff]
    %v912 = vld [vmem:[#allocation5 + $0x1888] sm:$0xff]
    %v913 = vld [vmem:[#allocation5 + $0x1890] sm:$0xff]
    %v914 = vld [vmem:[#allocation5 + $0x1898] sm:$0xff]
    %v915 = vld [vmem:[#allocation5 + $0x18a0] sm:$0xff]
    %v916 = vld [vmem:[#allocation5 + $0x18a8] sm:$0xff]
    %v917 = vld [vmem:[#allocation5 + $0x18b0] sm:$0xff]
    %v918 = vld [vmem:[#allocation5 + $0x18b8] sm:$0xff]
    %v919 = vld [vmem:[#allocation5 + $0x18c0] sm:$0xff]
    %v920 = vld [vmem:[#allocation5 + $0x18c8] sm:$0xff]
    %v921 = vld [vmem:[#allocation5 + $0x18d0] sm:$0xff]
    %v922 = vld [vmem:[#allocation5 + $0x18d8] sm:$0xff]
    %v923 = vld [vmem:[#allocation5 + $0x18e0] sm:$0xff]
    %v924 = vld [vmem:[#allocation5 + $0x18e8] sm:$0xff]
    %v925 = vld [vmem:[#allocation5 + $0x18f0] sm:$0xff]
    %v926 = vld [vmem:[#allocation5 + $0x18f8] sm:$0xff]
    %v927 = vld [vmem:[#allocation5 + $0x1900] sm:$0xff]
    %v928 = vld [vmem:[#allocation5 + $0x1908] sm:$0xff]
    %v929 = vld [vmem:[#allocation5 + $0x1910] sm:$0xff]
    %v930 = vld [vmem:[#allocation5 + $0x1918] sm:$0xff]
    %v931 = vld [vmem:[#allocation5 + $0x1920] sm:$0xff]
    %v932 = vld [vmem:[#allocation5 + $0x1928] sm:$0xff]
    %v933 = vld [vmem:[#allocation5 + $0x1930] sm:$0xff]
    %v934 = vld [vmem:[#allocation5 + $0x1938] sm:$0xff]
    %v935 = vld [vmem:[#allocation5 + $0x1940] sm:$0xff]
    %v936 = vld [vmem:[#allocation5 + $0x1948] sm:$0xff]
    %v937 = vld [vmem:[#allocation5 + $0x1950] sm:$0xff]
    %v938 = vld [vmem:[#allocation5 + $0x1958] sm:$0xff]
    %v939 = vld [vmem:[#allocation5 + $0x1960] sm:$0xff]
    %v940 = vld [vmem:[#allocation5 + $0x1968] sm:$0xff]
    %v941 = vld [vmem:[#allocation5 + $0x1970] sm:$0xff]
    %v942 = vld [vmem:[#allocation5 + $0x1978] sm:$0xff]
    %v943 = vld [vmem:[#allocation5 + $0x1980] sm:$0xff]
    %v944 = vld [vmem:[#allocation5 + $0x1988] sm:$0xff]
    %v945 = vld [vmem:[#allocation5 + $0x1990] sm:$0xff]
    %v946 = vld [vmem:[#allocation5 + $0x1998] sm:$0xff]
    %v947 = vld [vmem:[#allocation5 + $0x19a0] sm:$0xff]
    %v948 = vld [vmem:[#allocation5 + $0x19a8] sm:$0xff]
    %v949 = vld [vmem:[#allocation5 + $0x19b0] sm:$0xff]
    %v950 = vld [vmem:[#allocation5 + $0x19b8] sm:$0xff]
    %v951 = vld [vmem:[#allocation5 + $0x19c0] sm:$0xff]
    %v952 = vld [vmem:[#allocation5 + $0x19c8] sm:$0xff]
    %v953 = vld [vmem:[#allocation5 + $0x19d0] sm:$0xff]
    %v954 = vld [vmem:[#allocation5 + $0x19d8] sm:$0xff]
    %v955 = vld [vmem:[#allocation5 + $0x19e0] sm:$0xff]
    %v956 = vld [vmem:[#allocation5 + $0x19e8] sm:$0xff]
    %v957 = vld [vmem:[#allocation5 + $0x19f0] sm:$0xff]
    %v958 = vld [vmem:[#allocation5 + $0x19f8] sm:$0xff]
    %v959 = vld [vmem:[#allocation5 + $0x1a00] sm:$0xff]
    %v960 = vld [vmem:[#allocation5 + $0x1a08] sm:$0xff]
    %v961 = vld [vmem:[#allocation5 + $0x1a10] sm:$0xff]
    %v962 = vld [vmem:[#allocation5 + $0x1a18] sm:$0xff]
    %v963 = vld [vmem:[#allocation5 + $0x1a20] sm:$0xff]
    %v964 = vld [vmem:[#allocation5 + $0x1a28] sm:$0xff]
    %v965 = vld [vmem:[#allocation5 + $0x1a30] sm:$0xff]
    %v966 = vld [vmem:[#allocation5 + $0x1a38] sm:$0xff]
    %v967 = vld [vmem:[#allocation5 + $0x1a40] sm:$0xff]
    %v968 = vld [vmem:[#allocation5 + $0x1a48] sm:$0xff]
    %v969 = vld [vmem:[#allocation5 + $0x1a50] sm:$0xff]
    %v970 = vld [vmem:[#allocation5 + $0x1a58] sm:$0xff]
    %v971 = vld [vmem:[#allocation5 + $0x1a60] sm:$0xff]
    %v972 = vld [vmem:[#allocation5 + $0x1a68] sm:$0xff]
    %v973 = vld [vmem:[#allocation5 + $0x1a70] sm:$0xff]
    %v974 = vld [vmem:[#allocation5 + $0x1a78] sm:$0xff]
    %v975 = vld [vmem:[#allocation5 + $0x1a80] sm:$0xff]
    %v976 = vld [vmem:[#allocation5 + $0x1a88] sm:$0xff]
    %v977 = vld [vmem:[#allocation5 + $0x1a90] sm:$0xff]
    %v978 = vld [vmem:[#allocation5 + $0x1a98] sm:$0xff]
    %v979 = vld [vmem:[#allocation5 + $0x1aa0] sm:$0xff]
    %v980 = vld [vmem:[#allocation5 + $0x1aa8] sm:$0xff]
    %v981 = vld [vmem:[#allocation5 + $0x1ab0] sm:$0xff]
    %v982 = vld [vmem:[#allocation5 + $0x1ab8] sm:$0xff]
    %v983 = vld [vmem:[#allocation5 + $0x1ac0] sm:$0xff]
    %v984 = vld [vmem:[#allocation5 + $0x1ac8] sm:$0xff]
    %v985 = vld [vmem:[#allocation5 + $0x1ad0] sm:$0xff]
    %v986 = vld [vmem:[#allocation5 + $0x1ad8] sm:$0xff]
    %v987 = vld [vmem:[#allocation5 + $0x1ae0] sm:$0xff]
    %v988 = vld [vmem:[#allocation5 + $0x1ae8] sm:$0xff]
    %v989 = vld [vmem:[#allocation5 + $0x1af0] sm:$0xff]
    %v990 = vld [vmem:[#allocation5 + $0x1af8] sm:$0xff]
    %v991 = vld [vmem:[#allocation7] sm:$0xff]
    %v992 = vld [vmem:[#allocation7 + $0x8] sm:$0xff]
    %v993 = vld [vmem:[#allocation7 + $0x10] sm:$0x3]
    %v997 = vlaneseq
    %v998 = vshrl.u32 %v997, 7
    %v999 = vsub.s32 0, %v998
    %v1000 = vrot.slane %v991, %v999
    %v1001 = vlaneseq
    %v1002 = vshrl.u32 %v1001, 7
    %v1003 = vsub.s32 1, %v1002
    %v1004 = vrot.slane %v991, %v1003
    %v1005 = vlaneseq
    %v1006 = vshrl.u32 %v1005, 7
    %v1007 = vsub.s32 2, %v1006
    %v1008 = vrot.slane %v991, %v1007
    %v1009 = vlaneseq
    %v1010 = vshrl.u32 %v1009, 7
    %v1011 = vsub.s32 3, %v1010
    %v1012 = vrot.slane %v991, %v1011
    %v1013 = vlaneseq
    %v1014 = vshrl.u32 %v1013, 7
    %v1015 = vsub.s32 4, %v1014
    %v1016 = vrot.slane %v991, %v1015
    %v1017 = vlaneseq
    %v1018 = vshrl.u32 %v1017, 7
    %v1019 = vsub.s32 5, %v1018
    %v1020 = vrot.slane %v991, %v1019
    %v1021 = vlaneseq
    %v1022 = vshrl.u32 %v1021, 7
    %v1023 = vsub.s32 6, %v1022
    %v1024 = vrot.slane %v991, %v1023
    %v1025 = vlaneseq
    %v1026 = vshrl.u32 %v1025, 7
    %v1027 = vsub.s32 7, %v1026
    %v1028 = vrot.slane %v991, %v1027
    %v1029 = vlaneseq
    %v1030 = vshrl.u32 %v1029, 7
    %v1031 = vsub.s32 0, %v1030
    %v1032 = vrot.slane %v992, %v1031
    %v1033 = vlaneseq
    %v1034 = vshrl.u32 %v1033, 7
    %v1035 = vsub.s32 1, %v1034
    %v1036 = vrot.slane %v992, %v1035
    %v1037 = vlaneseq
    %v1038 = vshrl.u32 %v1037, 7
    %v1039 = vsub.s32 2, %v1038
    %v1040 = vrot.slane %v992, %v1039
    %v1041 = vlaneseq
    %v1042 = vshrl.u32 %v1041, 7
    %v1043 = vsub.s32 3, %v1042
    %v1044 = vrot.slane %v992, %v1043
    %v1045 = vlaneseq
    %v1046 = vshrl.u32 %v1045, 7
    %v1047 = vsub.s32 4, %v1046
    %v1048 = vrot.slane %v992, %v1047
    %v1049 = vlaneseq
    %v1050 = vshrl.u32 %v1049, 7
    %v1051 = vsub.s32 5, %v1050
    %v1052 = vrot.slane %v992, %v1051
    %v1053 = vlaneseq
    %v1054 = vshrl.u32 %v1053, 7
    %v1055 = vsub.s32 6, %v1054
    %v1056 = vrot.slane %v992, %v1055
    %v1057 = vlaneseq
    %v1058 = vshrl.u32 %v1057, 7
    %v1059 = vsub.s32 7, %v1058
    %v1060 = vrot.slane %v992, %v1059
    %v1061 = vlaneseq
    %v1062 = vshrl.u32 %v1061, 7
    %v1063 = vsub.s32 0, %v1062
    %v1064 = vrot.slane %v993, %v1063
    %v1065 = vlaneseq
    %v1066 = vshrl.u32 %v1065, 7
    %v1067 = vsub.s32 1, %v1066
    %v1068 = vrot.slane %v993, %v1067
    %v1951 = vunpack.c.l.b16 %v127
    %v1952 = vunpack.c.h.b16 %v127
    %v1953 = vunpack.c.l.b16 %v128
    %v1954 = vunpack.c.h.b16 %v128
    %v1955 = vunpack.c.l.b16 %v129
    %v1956 = vunpack.c.h.b16 %v129
    %v1957 = vunpack.c.l.b16 %v130
    %v1958 = vunpack.c.h.b16 %v130
    %v1959 = vunpack.c.l.b16 %v131
    %v1960 = vunpack.c.h.b16 %v131
    %v1961 = vunpack.c.l.b16 %v132
    %v1962 = vunpack.c.h.b16 %v132
    %v1963 = vunpack.c.l.b16 %v133
    %v1964 = vunpack.c.h.b16 %v133
    %v1965 = vunpack.c.l.b16 %v134
    %v1966 = vunpack.c.h.b16 %v134
    %v1967 = vunpack.c.l.b16 %v135
    %v1968 = vunpack.c.h.b16 %v135
    %v1969 = vunpack.c.l.b16 %v136
    %v1970 = vunpack.c.h.b16 %v136
    %v1971 = vunpack.c.l.b16 %v137
    %v1972 = vunpack.c.h.b16 %v137
    %v1973 = vunpack.c.l.b16 %v138
    %v1974 = vunpack.c.h.b16 %v138
    %v1975 = vunpack.c.l.b16 %v139
    %v1976 = vunpack.c.h.b16 %v139
    %v1977 = vunpack.c.l.b16 %v140
    %v1978 = vunpack.c.h.b16 %v140
    %v1979 = vunpack.c.l.b16 %v141
    %v1980 = vunpack.c.h.b16 %v141
    %v1981 = vunpack.c.l.b16 %v142
    %v1982 = vunpack.c.h.b16 %v142
    %v1983 = vunpack.c.l.b16 %v143
    %v1984 = vunpack.c.h.b16 %v143
    %v1985 = vunpack.c.l.b16 %v144
    %v1986 = vunpack.c.h.b16 %v144
    %v1987 = vunpack.c.l.b16 %v145
    %v1988 = vunpack.c.h.b16 %v145
    %v1989 = vunpack.c.l.b16 %v146
    %v1990 = vunpack.c.h.b16 %v146
    %v1991 = vunpack.c.l.b16 %v147
    %v1992 = vunpack.c.h.b16 %v147
    %v1993 = vunpack.c.l.b16 %v148
    %v1994 = vunpack.c.h.b16 %v148
    %v1995 = vunpack.c.l.b16 %v149
    %v1996 = vunpack.c.h.b16 %v149
    %v1997 = vunpack.c.l.b16 %v150
    %v1998 = vunpack.c.h.b16 %v150
    %v1999 = vunpack.c.l.b16 %v151
    %v2000 = vunpack.c.h.b16 %v151
    %v2001 = vunpack.c.l.b16 %v152
    %v2002 = vunpack.c.h.b16 %v152
    %v2003 = vunpack.c.l.b16 %v153
    %v2004 = vunpack.c.h.b16 %v153
    %v2005 = vunpack.c.l.b16 %v154
    %v2006 = vunpack.c.h.b16 %v154
    %v2007 = vunpack.c.l.b16 %v155
    %v2008 = vunpack.c.h.b16 %v155
    %v2009 = vunpack.c.l.b16 %v156
    %v2010 = vunpack.c.h.b16 %v156
    %v2011 = vunpack.c.l.b16 %v157
    %v2012 = vunpack.c.h.b16 %v157
    %v2013 = vunpack.c.l.b16 %v158
    %v2014 = vunpack.c.h.b16 %v158
    %v2015 = vunpack.c.l.b16 %v159
    %v2016 = vunpack.c.h.b16 %v159
    %v2017 = vunpack.c.l.b16 %v160
    %v2018 = vunpack.c.h.b16 %v160
    %v2019 = vunpack.c.l.b16 %v161
    %v2020 = vunpack.c.h.b16 %v161
    %v2021 = vunpack.c.l.b16 %v162
    %v2022 = vunpack.c.h.b16 %v162
    %v2023 = vunpack.c.l.b16 %v163
    %v2024 = vunpack.c.h.b16 %v163
    %v2025 = vunpack.c.l.b16 %v164
    %v2026 = vunpack.c.h.b16 %v164
    %v2027 = vunpack.c.l.b16 %v165
    %v2028 = vunpack.c.h.b16 %v165
    %v2029 = vunpack.c.l.b16 %v166
    %v2030 = vunpack.c.h.b16 %v166
    %v2031 = vunpack.c.l.b16 %v167
    %v2032 = vunpack.c.h.b16 %v167
    %v2033 = vunpack.c.l.b16 %v168
    %v2034 = vunpack.c.h.b16 %v168
    %v2035 = vunpack.c.l.b16 %v169
    %v2036 = vunpack.c.h.b16 %v169
    %v2037 = vunpack.c.l.b16 %v170
    %v2038 = vunpack.c.h.b16 %v170
    %v2039 = vunpack.c.l.b16 %v171
    %v2040 = vunpack.c.h.b16 %v171
    %v2041 = vunpack.c.l.b16 %v172
    %v2042 = vunpack.c.h.b16 %v172
    %v2043 = vunpack.c.l.b16 %v173
    %v2044 = vunpack.c.h.b16 %v173
    %v2045 = vunpack.c.l.b16 %v174
    %v2046 = vunpack.c.h.b16 %v174
    %v2047 = vunpack.c.l.b16 %v175
    %v2048 = vunpack.c.h.b16 %v175
    %v2049 = vunpack.c.l.b16 %v176
    %v2050 = vunpack.c.h.b16 %v176
    %v2051 = vunpack.c.l.b16 %v177
    %v2052 = vunpack.c.h.b16 %v177
    %v2053 = vunpack.c.l.b16 %v178
    %v2054 = vunpack.c.h.b16 %v178
    %v2055 = vunpack.c.l.b16 %v179
    %v2056 = vunpack.c.h.b16 %v179
    %v2057 = vunpack.c.l.b16 %v180
    %v2058 = vunpack.c.h.b16 %v180
    %v2059 = vunpack.c.l.b16 %v181
    %v2060 = vunpack.c.h.b16 %v181
    %v2061 = vunpack.c.l.b16 %v182
    %v2062 = vunpack.c.h.b16 %v182
    %v2063 = vunpack.c.l.b16 %v183
    %v2064 = vunpack.c.h.b16 %v183
    %v2065 = vunpack.c.l.b16 %v184
    %v2066 = vunpack.c.h.b16 %v184
    %v2067 = vunpack.c.l.b16 %v185
    %v2068 = vunpack.c.h.b16 %v185
    %v2069 = vunpack.c.l.b16 %v186
    %v2070 = vunpack.c.h.b16 %v186
    %v2071 = vunpack.c.l.b16 %v187
    %v2072 = vunpack.c.h.b16 %v187
    %v2073 = vunpack.c.l.b16 %v188
    %v2074 = vunpack.c.h.b16 %v188
    %v2075 = vunpack.c.l.b16 %v189
    %v2076 = vunpack.c.h.b16 %v189
    %v2077 = vunpack.c.l.b16 %v190
    %v2078 = vunpack.c.h.b16 %v190
    %v2079 = vunpack.c.l.b16 %v191
    %v2080 = vunpack.c.h.b16 %v191
    %v2081 = vunpack.c.l.b16 %v192
    %v2082 = vunpack.c.h.b16 %v192
    %v2083 = vunpack.c.l.b16 %v193
    %v2084 = vunpack.c.h.b16 %v193
    %v2085 = vunpack.c.l.b16 %v194
    %v2086 = vunpack.c.h.b16 %v194
    %v2087 = vunpack.c.l.b16 %v195
    %v2088 = vunpack.c.h.b16 %v195
    %v2089 = vunpack.c.l.b16 %v196
    %v2090 = vunpack.c.h.b16 %v196
    %v2091 = vunpack.c.l.b16 %v197
    %v2092 = vunpack.c.h.b16 %v197
    %v2093 = vunpack.c.l.b16 %v198
    %v2094 = vunpack.c.h.b16 %v198
    %v2095 = vunpack.c.l.b16 %v199
    %v2096 = vunpack.c.h.b16 %v199
    %v2097 = vunpack.c.l.b16 %v200
    %v2098 = vunpack.c.h.b16 %v200
    %v2099 = vunpack.c.l.b16 %v201
    %v2100 = vunpack.c.h.b16 %v201
    %v2101 = vunpack.c.l.b16 %v202
    %v2102 = vunpack.c.h.b16 %v202
    %v2103 = vunpack.c.l.b16 %v203
    %v2104 = vunpack.c.h.b16 %v203
    %v2105 = vunpack.c.l.b16 %v204
    %v2106 = vunpack.c.h.b16 %v204
    %v2107 = vunpack.c.l.b16 %v205
    %v2108 = vunpack.c.h.b16 %v205
    %v2109 = vunpack.c.l.b16 %v206
    %v2110 = vunpack.c.h.b16 %v206
    %v2111 = vunpack.c.l.b16 %v207
    %v2112 = vunpack.c.h.b16 %v207
    %v2113 = vunpack.c.l.b16 %v208
    %v2114 = vunpack.c.h.b16 %v208
    %v2115 = vunpack.c.l.b16 %v209
    %v2116 = vunpack.c.h.b16 %v209
    %v2117 = vunpack.c.l.b16 %v210
    %v2118 = vunpack.c.h.b16 %v210
    %v2119 = vunpack.c.l.b16 %v211
    %v2120 = vunpack.c.h.b16 %v211
    %v2121 = vunpack.c.l.b16 %v212
    %v2122 = vunpack.c.h.b16 %v212
    %v2123 = vunpack.c.l.b16 %v213
    %v2124 = vunpack.c.h.b16 %v213
    %v2125 = vunpack.c.l.b16 %v214
    %v2126 = vunpack.c.h.b16 %v214
    %v2127 = vunpack.c.l.b16 %v215
    %v2128 = vunpack.c.h.b16 %v215
    %v2129 = vunpack.c.l.b16 %v216
    %v2130 = vunpack.c.h.b16 %v216
    %v2131 = vunpack.c.l.b16 %v217
    %v2132 = vunpack.c.h.b16 %v217
    %v2133 = vunpack.c.l.b16 %v218
    %v2134 = vunpack.c.h.b16 %v218
    %v2135 = vunpack.c.l.b16 %v219
    %v2136 = vunpack.c.h.b16 %v219
    %v2137 = vunpack.c.l.b16 %v220
    %v2138 = vunpack.c.h.b16 %v220
    %v2139 = vunpack.c.l.b16 %v221
    %v2140 = vunpack.c.h.b16 %v221
    %v2141 = vunpack.c.l.b16 %v222
    %v2142 = vunpack.c.h.b16 %v222
    %v2143 = vunpack.c.l.b16 %v223
    %v2144 = vunpack.c.h.b16 %v223
    %v2145 = vunpack.c.l.b16 %v224
    %v2146 = vunpack.c.h.b16 %v224
    %v2147 = vunpack.c.l.b16 %v225
    %v2148 = vunpack.c.h.b16 %v225
    %v2149 = vunpack.c.l.b16 %v226
    %v2150 = vunpack.c.h.b16 %v226
    %v2151 = vunpack.c.l.b16 %v227
    %v2152 = vunpack.c.h.b16 %v227
    %v2153 = vunpack.c.l.b16 %v228
    %v2154 = vunpack.c.h.b16 %v228
    %v2155 = vunpack.c.l.b16 %v229
    %v2156 = vunpack.c.h.b16 %v229
    %v2157 = vunpack.c.l.b16 %v230
    %v2158 = vunpack.c.h.b16 %v230
    %v2159 = vunpack.c.l.b16 %v231
    %v2160 = vunpack.c.h.b16 %v231
    %v2161 = vunpack.c.l.b16 %v232
    %v2162 = vunpack.c.h.b16 %v232
    %v2163 = vunpack.c.l.b16 %v233
    %v2164 = vunpack.c.h.b16 %v233
    %v2165 = vunpack.c.l.b16 %v234
    %v2166 = vunpack.c.h.b16 %v234
    %v2167 = vunpack.c.l.b16 %v235
    %v2168 = vunpack.c.h.b16 %v235
    %v2169 = vunpack.c.l.b16 %v236
    %v2170 = vunpack.c.h.b16 %v236
    %v2171 = vunpack.c.l.b16 %v237
    %v2172 = vunpack.c.h.b16 %v237
    %v2173 = vunpack.c.l.b16 %v238
    %v2174 = vunpack.c.h.b16 %v238
    %v2175 = vunpack.c.l.b16 %v239
    %v2176 = vunpack.c.h.b16 %v239
    %v2177 = vunpack.c.l.b16 %v240
    %v2178 = vunpack.c.h.b16 %v240
    %v2179 = vunpack.c.l.b16 %v241
    %v2180 = vunpack.c.h.b16 %v241
    %v2181 = vunpack.c.l.b16 %v242
    %v2182 = vunpack.c.h.b16 %v242
    %v2183 = vunpack.c.l.b16 %v243
    %v2184 = vunpack.c.h.b16 %v243
    %v2185 = vunpack.c.l.b16 %v244
    %v2186 = vunpack.c.h.b16 %v244
    %v2187 = vunpack.c.l.b16 %v245
    %v2188 = vunpack.c.h.b16 %v245
    %v2189 = vunpack.c.l.b16 %v246
    %v2190 = vunpack.c.h.b16 %v246
    %v2191 = vunpack.c.l.b16 %v247
    %v2192 = vunpack.c.h.b16 %v247
    %v2193 = vunpack.c.l.b16 %v248
    %v2194 = vunpack.c.h.b16 %v248
    %v2195 = vunpack.c.l.b16 %v249
    %v2196 = vunpack.c.h.b16 %v249
    %v2197 = vunpack.c.l.b16 %v250
    %v2198 = vunpack.c.h.b16 %v250
    %v2199 = vunpack.c.l.b16 %v251
    %v2200 = vunpack.c.h.b16 %v251
    %v2201 = vunpack.c.l.b16 %v252
    %v2202 = vunpack.c.h.b16 %v252
    %v2203 = vunpack.c.l.b16 %v253
    %v2204 = vunpack.c.h.b16 %v253
    %v2205 = vunpack.c.l.b16 %v254
    %v2206 = vunpack.c.h.b16 %v254
    %v2207 = vunpack.c.l.b16 %v255
    %v2208 = vunpack.c.h.b16 %v255
    %v2209 = vunpack.c.l.b16 %v256
    %v2210 = vunpack.c.h.b16 %v256
    %v2211 = vunpack.c.l.b16 %v257
    %v2212 = vunpack.c.h.b16 %v257
    %v2213 = vunpack.c.l.b16 %v258
    %v2214 = vunpack.c.h.b16 %v258
    %v2215 = vunpack.c.l.b16 %v259
    %v2216 = vunpack.c.h.b16 %v259
    %v2217 = vunpack.c.l.b16 %v260
    %v2218 = vunpack.c.h.b16 %v260
    %v2219 = vunpack.c.l.b16 %v261
    %v2220 = vunpack.c.h.b16 %v261
    %v2221 = vunpack.c.l.b16 %v262
    %v2222 = vunpack.c.h.b16 %v262
    %v2223 = vunpack.c.l.b16 %v263
    %v2224 = vunpack.c.h.b16 %v263
    %v2225 = vunpack.c.l.b16 %v264
    %v2226 = vunpack.c.h.b16 %v264
    %v2227 = vunpack.c.l.b16 %v265
    %v2228 = vunpack.c.h.b16 %v265
    %v2229 = vunpack.c.l.b16 %v266
    %v2230 = vunpack.c.h.b16 %v266
    %v2231 = vunpack.c.l.b16 %v267
    %v2232 = vunpack.c.h.b16 %v267
    %v2233 = vunpack.c.l.b16 %v268
    %v2234 = vunpack.c.h.b16 %v268
    %v2235 = vunpack.c.l.b16 %v269
    %v2236 = vunpack.c.h.b16 %v269
    %v2237 = vunpack.c.l.b16 %v270
    %v2238 = vunpack.c.h.b16 %v270
    %v2239 = vunpack.c.l.b16 %v271
    %v2240 = vunpack.c.h.b16 %v271
    %v2241 = vunpack.c.l.b16 %v272
    %v2242 = vunpack.c.h.b16 %v272
    %v2243 = vunpack.c.l.b16 %v273
    %v2244 = vunpack.c.h.b16 %v273
    %v2245 = vunpack.c.l.b16 %v274
    %v2246 = vunpack.c.h.b16 %v274
    %v2247 = vunpack.c.l.b16 %v275
    %v2248 = vunpack.c.h.b16 %v275
    %v2249 = vunpack.c.l.b16 %v276
    %v2250 = vunpack.c.h.b16 %v276
    %v2251 = vunpack.c.l.b16 %v277
    %v2252 = vunpack.c.h.b16 %v277
    %v2253 = vunpack.c.l.b16 %v278
    %v2254 = vunpack.c.h.b16 %v278
    %v2255 = vunpack.c.l.b16 %v279
    %v2256 = vunpack.c.h.b16 %v279
    %v2257 = vunpack.c.l.b16 %v280
    %v2258 = vunpack.c.h.b16 %v280
    %v2259 = vunpack.c.l.b16 %v281
    %v2260 = vunpack.c.h.b16 %v281
    %v2261 = vunpack.c.l.b16 %v282
    %v2262 = vunpack.c.h.b16 %v282
    %v2263 = vunpack.c.l.b16 %v283
    %v2264 = vunpack.c.h.b16 %v283
    %v2265 = vunpack.c.l.b16 %v284
    %v2266 = vunpack.c.h.b16 %v284
    %v2267 = vunpack.c.l.b16 %v285
    %v2268 = vunpack.c.h.b16 %v285
    %v2269 = vunpack.c.l.b16 %v286
    %v2270 = vunpack.c.h.b16 %v286
    %v2271 = vunpack.c.l.b16 %v287
    %v2272 = vunpack.c.h.b16 %v287
    %v2273 = vunpack.c.l.b16 %v288
    %v2274 = vunpack.c.h.b16 %v288
    %v2275 = vunpack.c.l.b16 %v289
    %v2276 = vunpack.c.h.b16 %v289
    %v2277 = vunpack.c.l.b16 %v290
    %v2278 = vunpack.c.h.b16 %v290
    %v2279 = vunpack.c.l.b16 %v291
    %v2280 = vunpack.c.h.b16 %v291
    %v2281 = vunpack.c.l.b16 %v292
    %v2282 = vunpack.c.h.b16 %v292
    %v2283 = vunpack.c.l.b16 %v293
    %v2284 = vunpack.c.h.b16 %v293
    %v2285 = vunpack.c.l.b16 %v294
    %v2286 = vunpack.c.h.b16 %v294
    %v2287 = vunpack.c.l.b16 %v295
    %v2288 = vunpack.c.h.b16 %v295
    %v2289 = vunpack.c.l.b16 %v296
    %v2290 = vunpack.c.h.b16 %v296
    %v2291 = vunpack.c.l.b16 %v297
    %v2292 = vunpack.c.h.b16 %v297
    %v2293 = vunpack.c.l.b16 %v298
    %v2294 = vunpack.c.h.b16 %v298
    %v2295 = vunpack.c.l.b16 %v299
    %v2296 = vunpack.c.h.b16 %v299
    %v2297 = vunpack.c.l.b16 %v300
    %v2298 = vunpack.c.h.b16 %v300
    %v2299 = vunpack.c.l.b16 %v301
    %v2300 = vunpack.c.h.b16 %v301
    %v2301 = vunpack.c.l.b16 %v302
    %v2302 = vunpack.c.h.b16 %v302
    %v2303 = vunpack.c.l.b16 %v303
    %v2304 = vunpack.c.h.b16 %v303
    %v2305 = vunpack.c.l.b16 %v304
    %v2306 = vunpack.c.h.b16 %v304
    %v2307 = vunpack.c.l.b16 %v305
    %v2308 = vunpack.c.h.b16 %v305
    %v2309 = vunpack.c.l.b16 %v306
    %v2310 = vunpack.c.h.b16 %v306
    %v2311 = vunpack.c.l.b16 %v307
    %v2312 = vunpack.c.h.b16 %v307
    %v2313 = vunpack.c.l.b16 %v308
    %v2314 = vunpack.c.h.b16 %v308
    %v2315 = vunpack.c.l.b16 %v309
    %v2316 = vunpack.c.h.b16 %v309
    %v2317 = vunpack.c.l.b16 %v310
    %v2318 = vunpack.c.h.b16 %v310
    %v2319 = vunpack.c.l.b16 %v311
    %v2320 = vunpack.c.h.b16 %v311
    %v2321 = vunpack.c.l.b16 %v312
    %v2322 = vunpack.c.h.b16 %v312
    %v2323 = vunpack.c.l.b16 %v313
    %v2324 = vunpack.c.h.b16 %v313
    %v2325 = vunpack.c.l.b16 %v314
    %v2326 = vunpack.c.h.b16 %v314
    %v2327 = vunpack.c.l.b16 %v315
    %v2328 = vunpack.c.h.b16 %v315
    %v2329 = vunpack.c.l.b16 %v316
    %v2330 = vunpack.c.h.b16 %v316
    %v2331 = vunpack.c.l.b16 %v317
    %v2332 = vunpack.c.h.b16 %v317
    %v2333 = vunpack.c.l.b16 %v318
    %v2334 = vunpack.c.h.b16 %v318
    %v2335 = vunpack.c.l.b16 %v319
    %v2336 = vunpack.c.h.b16 %v319
    %v2337 = vunpack.c.l.b16 %v320
    %v2338 = vunpack.c.h.b16 %v320
    %v2339 = vunpack.c.l.b16 %v321
    %v2340 = vunpack.c.h.b16 %v321
    %v2341 = vunpack.c.l.b16 %v322
    %v2342 = vunpack.c.h.b16 %v322
    %v2343 = vunpack.c.l.b16 %v323
    %v2344 = vunpack.c.h.b16 %v323
    %v2345 = vunpack.c.l.b16 %v324
    %v2346 = vunpack.c.h.b16 %v324
    %v2347 = vunpack.c.l.b16 %v325
    %v2348 = vunpack.c.h.b16 %v325
    %v2349 = vunpack.c.l.b16 %v326
    %v2350 = vunpack.c.h.b16 %v326
    %v2351 = vunpack.c.l.b16 %v327
    %v2352 = vunpack.c.h.b16 %v327
    %v2353 = vunpack.c.l.b16 %v328
    %v2354 = vunpack.c.h.b16 %v328
    %v2355 = vunpack.c.l.b16 %v329
    %v2356 = vunpack.c.h.b16 %v329
    %v2357 = vunpack.c.l.b16 %v330
    %v2358 = vunpack.c.h.b16 %v330
    %v2359 = vunpack.c.l.b16 %v331
    %v2360 = vunpack.c.h.b16 %v331
    %v2361 = vunpack.c.l.b16 %v332
    %v2362 = vunpack.c.h.b16 %v332
    %v2363 = vunpack.c.l.b16 %v333
    %v2364 = vunpack.c.h.b16 %v333
    %v2365 = vunpack.c.l.b16 %v334
    %v2366 = vunpack.c.h.b16 %v334
    %v2367 = vunpack.c.l.b16 %v335
    %v2368 = vunpack.c.h.b16 %v335
    %v2369 = vunpack.c.l.b16 %v336
    %v2370 = vunpack.c.h.b16 %v336
    %v2371 = vunpack.c.l.b16 %v337
    %v2372 = vunpack.c.h.b16 %v337
    %v2373 = vunpack.c.l.b16 %v338
    %v2374 = vunpack.c.h.b16 %v338
    %v2375 = vunpack.c.l.b16 %v339
    %v2376 = vunpack.c.h.b16 %v339
    %v2377 = vunpack.c.l.b16 %v340
    %v2378 = vunpack.c.h.b16 %v340
    %v2379 = vunpack.c.l.b16 %v341
    %v2380 = vunpack.c.h.b16 %v341
    %v2381 = vunpack.c.l.b16 %v342
    %v2382 = vunpack.c.h.b16 %v342
    %v2383 = vunpack.c.l.b16 %v343
    %v2384 = vunpack.c.h.b16 %v343
    %v2385 = vunpack.c.l.b16 %v344
    %v2386 = vunpack.c.h.b16 %v344
    %v2387 = vunpack.c.l.b16 %v345
    %v2388 = vunpack.c.h.b16 %v345
    %v2389 = vunpack.c.l.b16 %v346
    %v2390 = vunpack.c.h.b16 %v346
    %v2391 = vunpack.c.l.b16 %v347
    %v2392 = vunpack.c.h.b16 %v347
    %v2393 = vunpack.c.l.b16 %v348
    %v2394 = vunpack.c.h.b16 %v348
    %v2395 = vunpack.c.l.b16 %v349
    %v2396 = vunpack.c.h.b16 %v349
    %v2397 = vunpack.c.l.b16 %v350
    %v2398 = vunpack.c.h.b16 %v350
    %v2399 = vunpack.c.l.b16 %v351
    %v2400 = vunpack.c.h.b16 %v351
    %v2401 = vunpack.c.l.b16 %v352
    %v2402 = vunpack.c.h.b16 %v352
    %v2403 = vunpack.c.l.b16 %v353
    %v2404 = vunpack.c.h.b16 %v353
    %v2405 = vunpack.c.l.b16 %v354
    %v2406 = vunpack.c.h.b16 %v354
    %v2407 = vunpack.c.l.b16 %v355
    %v2408 = vunpack.c.h.b16 %v355
    %v2409 = vunpack.c.l.b16 %v356
    %v2410 = vunpack.c.h.b16 %v356
    %v2411 = vunpack.c.l.b16 %v357
    %v2412 = vunpack.c.h.b16 %v357
    %v2413 = vunpack.c.l.b16 %v358
    %v2414 = vunpack.c.h.b16 %v358
    %v2415 = vunpack.c.l.b16 %v359
    %v2416 = vunpack.c.h.b16 %v359
    %v2417 = vunpack.c.l.b16 %v360
    %v2418 = vunpack.c.h.b16 %v360
    %v2419 = vunpack.c.l.b16 %v361
    %v2420 = vunpack.c.h.b16 %v361
    %v2421 = vunpack.c.l.b16 %v362
    %v2422 = vunpack.c.h.b16 %v362
    %v2423 = vunpack.c.l.b16 %v363
    %v2424 = vunpack.c.h.b16 %v363
    %v2425 = vunpack.c.l.b16 %v364
    %v2426 = vunpack.c.h.b16 %v364
    %v2427 = vunpack.c.l.b16 %v365
    %v2428 = vunpack.c.h.b16 %v365
    %v2429 = vunpack.c.l.b16 %v366
    %v2430 = vunpack.c.h.b16 %v366
    %v2431 = vunpack.c.l.b16 %v367
    %v2432 = vunpack.c.h.b16 %v367
    %v2433 = vunpack.c.l.b16 %v368
    %v2434 = vunpack.c.h.b16 %v368
    %v2435 = vunpack.c.l.b16 %v369
    %v2436 = vunpack.c.h.b16 %v369
    %v2437 = vunpack.c.l.b16 %v370
    %v2438 = vunpack.c.h.b16 %v370
    %v2439 = vunpack.c.l.b16 %v371
    %v2440 = vunpack.c.h.b16 %v371
    %v2441 = vunpack.c.l.b16 %v372
    %v2442 = vunpack.c.h.b16 %v372
    %v2443 = vunpack.c.l.b16 %v373
    %v2444 = vunpack.c.h.b16 %v373
    %v2445 = vunpack.c.l.b16 %v374
    %v2446 = vunpack.c.h.b16 %v374
    %v2447 = vunpack.c.l.b16 %v375
    %v2448 = vunpack.c.h.b16 %v375
    %v2449 = vunpack.c.l.b16 %v376
    %v2450 = vunpack.c.h.b16 %v376
    %v2451 = vunpack.c.l.b16 %v377
    %v2452 = vunpack.c.h.b16 %v377
    %v2453 = vunpack.c.l.b16 %v378
    %v2454 = vunpack.c.h.b16 %v378
    %v2455 = vunpack.c.l.b16 %v379
    %v2456 = vunpack.c.h.b16 %v379
    %v2457 = vunpack.c.l.b16 %v380
    %v2458 = vunpack.c.h.b16 %v380
    %v2459 = vunpack.c.l.b16 %v381
    %v2460 = vunpack.c.h.b16 %v381
    %v2461 = vunpack.c.l.b16 %v382
    %v2462 = vunpack.c.h.b16 %v382
    %v2463 = vunpack.c.l.b16 %v383
    %v2464 = vunpack.c.h.b16 %v383
    %v2465 = vunpack.c.l.b16 %v384
    %v2466 = vunpack.c.h.b16 %v384
    %v2467 = vunpack.c.l.b16 %v385
    %v2468 = vunpack.c.h.b16 %v385
    %v2469 = vunpack.c.l.b16 %v386
    %v2470 = vunpack.c.h.b16 %v386
    %v2471 = vunpack.c.l.b16 %v387
    %v2472 = vunpack.c.h.b16 %v387
    %v2473 = vunpack.c.l.b16 %v388
    %v2474 = vunpack.c.h.b16 %v388
    %v2475 = vunpack.c.l.b16 %v389
    %v2476 = vunpack.c.h.b16 %v389
    %v2477 = vunpack.c.l.b16 %v390
    %v2478 = vunpack.c.h.b16 %v390
    %v2479 = vunpack.c.l.b16 %v391
    %v2480 = vunpack.c.h.b16 %v391
    %v2481 = vunpack.c.l.b16 %v392
    %v2482 = vunpack.c.h.b16 %v392
    %v2483 = vunpack.c.l.b16 %v393
    %v2484 = vunpack.c.h.b16 %v393
    %v2485 = vunpack.c.l.b16 %v394
    %v2486 = vunpack.c.h.b16 %v394
    %v2487 = vunpack.c.l.b16 %v395
    %v2488 = vunpack.c.h.b16 %v395
    %v2489 = vunpack.c.l.b16 %v396
    %v2490 = vunpack.c.h.b16 %v396
    %v2491 = vunpack.c.l.b16 %v397
    %v2492 = vunpack.c.h.b16 %v397
    %v2493 = vunpack.c.l.b16 %v398
    %v2494 = vunpack.c.h.b16 %v398
    %v2495 = vunpack.c.l.b16 %v399
    %v2496 = vunpack.c.h.b16 %v399
    %v2497 = vunpack.c.l.b16 %v400
    %v2498 = vunpack.c.h.b16 %v400
    %v2499 = vunpack.c.l.b16 %v401
    %v2500 = vunpack.c.h.b16 %v401
    %v2501 = vunpack.c.l.b16 %v402
    %v2502 = vunpack.c.h.b16 %v402
    %v2503 = vunpack.c.l.b16 %v403
    %v2504 = vunpack.c.h.b16 %v403
    %v2505 = vunpack.c.l.b16 %v404
    %v2506 = vunpack.c.h.b16 %v404
    %v2507 = vunpack.c.l.b16 %v405
    %v2508 = vunpack.c.h.b16 %v405
    %v2509 = vunpack.c.l.b16 %v406
    %v2510 = vunpack.c.h.b16 %v406
    %v2511 = vunpack.c.l.b16 %v407
    %v2512 = vunpack.c.h.b16 %v407
    %v2513 = vunpack.c.l.b16 %v408
    %v2514 = vunpack.c.h.b16 %v408
    %v2515 = vunpack.c.l.b16 %v409
    %v2516 = vunpack.c.h.b16 %v409
    %v2517 = vunpack.c.l.b16 %v410
    %v2518 = vunpack.c.h.b16 %v410
    %v2519 = vunpack.c.l.b16 %v411
    %v2520 = vunpack.c.h.b16 %v411
    %v2521 = vunpack.c.l.b16 %v412
    %v2522 = vunpack.c.h.b16 %v412
    %v2523 = vunpack.c.l.b16 %v413
    %v2524 = vunpack.c.h.b16 %v413
    %v2525 = vunpack.c.l.b16 %v414
    %v2526 = vunpack.c.h.b16 %v414
    %v2527 = vunpack.c.l.b16 %v415
    %v2528 = vunpack.c.h.b16 %v415
    %v2529 = vunpack.c.l.b16 %v416
    %v2530 = vunpack.c.h.b16 %v416
    %v2531 = vunpack.c.l.b16 %v417
    %v2532 = vunpack.c.h.b16 %v417
    %v2533 = vunpack.c.l.b16 %v418
    %v2534 = vunpack.c.h.b16 %v418
    %v2535 = vunpack.c.l.b16 %v419
    %v2536 = vunpack.c.h.b16 %v419
    %v2537 = vunpack.c.l.b16 %v420
    %v2538 = vunpack.c.h.b16 %v420
    %v2539 = vunpack.c.l.b16 %v421
    %v2540 = vunpack.c.h.b16 %v421
    %v2541 = vunpack.c.l.b16 %v422
    %v2542 = vunpack.c.h.b16 %v422
    %v2543 = vunpack.c.l.b16 %v423
    %v2544 = vunpack.c.h.b16 %v423
    %v2545 = vunpack.c.l.b16 %v424
    %v2546 = vunpack.c.h.b16 %v424
    %v2547 = vunpack.c.l.b16 %v425
    %v2548 = vunpack.c.h.b16 %v425
    %v2549 = vunpack.c.l.b16 %v426
    %v2550 = vunpack.c.h.b16 %v426
    %v2551 = vunpack.c.l.b16 %v427
    %v2552 = vunpack.c.h.b16 %v427
    %v2553 = vunpack.c.l.b16 %v428
    %v2554 = vunpack.c.h.b16 %v428
    %v2555 = vunpack.c.l.b16 %v429
    %v2556 = vunpack.c.h.b16 %v429
    %v2557 = vunpack.c.l.b16 %v430
    %v2558 = vunpack.c.h.b16 %v430
    %v2559 = vunpack.c.l.b16 %v431
    %v2560 = vunpack.c.h.b16 %v431
    %v2561 = vunpack.c.l.b16 %v432
    %v2562 = vunpack.c.h.b16 %v432
    %v2563 = vunpack.c.l.b16 %v433
    %v2564 = vunpack.c.h.b16 %v433
    %v2565 = vunpack.c.l.b16 %v434
    %v2566 = vunpack.c.h.b16 %v434
    %v2567 = vunpack.c.l.b16 %v435
    %v2568 = vunpack.c.h.b16 %v435
    %v2569 = vunpack.c.l.b16 %v436
    %v2570 = vunpack.c.h.b16 %v436
    %v2571 = vunpack.c.l.b16 %v437
    %v2572 = vunpack.c.h.b16 %v437
    %v2573 = vunpack.c.l.b16 %v438
    %v2574 = vunpack.c.h.b16 %v438
    %v2575 = vunpack.c.l.b16 %v439
    %v2576 = vunpack.c.h.b16 %v439
    %v2577 = vunpack.c.l.b16 %v440
    %v2578 = vunpack.c.h.b16 %v440
    %v2579 = vunpack.c.l.b16 %v441
    %v2580 = vunpack.c.h.b16 %v441
    %v2581 = vunpack.c.l.b16 %v442
    %v2582 = vunpack.c.h.b16 %v442
    %v2583 = vunpack.c.l.b16 %v443
    %v2584 = vunpack.c.h.b16 %v443
    %v2585 = vunpack.c.l.b16 %v444
    %v2586 = vunpack.c.h.b16 %v444
    %v2587 = vunpack.c.l.b16 %v445
    %v2588 = vunpack.c.h.b16 %v445
    %v2589 = vunpack.c.l.b16 %v446
    %v2590 = vunpack.c.h.b16 %v446
    %v2591 = vunpack.c.l.b16 %v447
    %v2592 = vunpack.c.h.b16 %v447
    %v2593 = vunpack.c.l.b16 %v448
    %v2594 = vunpack.c.h.b16 %v448
    %v2595 = vunpack.c.l.b16 %v449
    %v2596 = vunpack.c.h.b16 %v449
    %v2597 = vunpack.c.l.b16 %v450
    %v2598 = vunpack.c.h.b16 %v450
    %v2599 = vunpack.c.l.b16 %v451
    %v2600 = vunpack.c.h.b16 %v451
    %v2601 = vunpack.c.l.b16 %v452
    %v2602 = vunpack.c.h.b16 %v452
    %v2603 = vunpack.c.l.b16 %v453
    %v2604 = vunpack.c.h.b16 %v453
    %v2605 = vunpack.c.l.b16 %v454
    %v2606 = vunpack.c.h.b16 %v454
    %v2607 = vunpack.c.l.b16 %v455
    %v2608 = vunpack.c.h.b16 %v455
    %v2609 = vunpack.c.l.b16 %v456
    %v2610 = vunpack.c.h.b16 %v456
    %v2611 = vunpack.c.l.b16 %v457
    %v2612 = vunpack.c.h.b16 %v457
    %v2613 = vunpack.c.l.b16 %v458
    %v2614 = vunpack.c.h.b16 %v458
    %v2615 = vunpack.c.l.b16 %v459
    %v2616 = vunpack.c.h.b16 %v459
    %v2617 = vunpack.c.l.b16 %v460
    %v2618 = vunpack.c.h.b16 %v460
    %v2619 = vunpack.c.l.b16 %v461
    %v2620 = vunpack.c.h.b16 %v461
    %v2621 = vunpack.c.l.b16 %v462
    %v2622 = vunpack.c.h.b16 %v462
    %v2623 = vunpack.c.l.b16 %v463
    %v2624 = vunpack.c.h.b16 %v463
    %v2625 = vunpack.c.l.b16 %v464
    %v2626 = vunpack.c.h.b16 %v464
    %v2627 = vunpack.c.l.b16 %v465
    %v2628 = vunpack.c.h.b16 %v465
    %v2629 = vunpack.c.l.b16 %v466
    %v2630 = vunpack.c.h.b16 %v466
    %v2631 = vunpack.c.l.b16 %v467
    %v2632 = vunpack.c.h.b16 %v467
    %v2633 = vunpack.c.l.b16 %v468
    %v2634 = vunpack.c.h.b16 %v468
    %v2635 = vunpack.c.l.b16 %v469
    %v2636 = vunpack.c.h.b16 %v469
    %v2637 = vunpack.c.l.b16 %v470
    %v2638 = vunpack.c.h.b16 %v470
    %v2639 = vunpack.c.l.b16 %v471
    %v2640 = vunpack.c.h.b16 %v471
    %v2641 = vunpack.c.l.b16 %v472
    %v2642 = vunpack.c.h.b16 %v472
    %v2643 = vunpack.c.l.b16 %v473
    %v2644 = vunpack.c.h.b16 %v473
    %v2645 = vunpack.c.l.b16 %v474
    %v2646 = vunpack.c.h.b16 %v474
    %v2647 = vunpack.c.l.b16 %v475
    %v2648 = vunpack.c.h.b16 %v475
    %v2649 = vunpack.c.l.b16 %v476
    %v2650 = vunpack.c.h.b16 %v476
    %v2651 = vunpack.c.l.b16 %v477
    %v2652 = vunpack.c.h.b16 %v477
    %v2653 = vunpack.c.l.b16 %v478
    %v2654 = vunpack.c.h.b16 %v478
    %v2655 = vunpack.c.l.b16 %v479
    %v2656 = vunpack.c.h.b16 %v479
    %v2657 = vunpack.c.l.b16 %v480
    %v2658 = vunpack.c.h.b16 %v480
    %v2659 = vunpack.c.l.b16 %v481
    %v2660 = vunpack.c.h.b16 %v481
    %v2661 = vunpack.c.l.b16 %v482
    %v2662 = vunpack.c.h.b16 %v482
    %v2663 = vunpack.c.l.b16 %v483
    %v2664 = vunpack.c.h.b16 %v483
    %v2665 = vunpack.c.l.b16 %v484
    %v2666 = vunpack.c.h.b16 %v484
    %v2667 = vunpack.c.l.b16 %v485
    %v2668 = vunpack.c.h.b16 %v485
    %v2669 = vunpack.c.l.b16 %v486
    %v2670 = vunpack.c.h.b16 %v486
    %v2671 = vunpack.c.l.b16 %v487
    %v2672 = vunpack.c.h.b16 %v487
    %v2673 = vunpack.c.l.b16 %v488
    %v2674 = vunpack.c.h.b16 %v488
    %v2675 = vunpack.c.l.b16 %v489
    %v2676 = vunpack.c.h.b16 %v489
    %v2677 = vunpack.c.l.b16 %v490
    %v2678 = vunpack.c.h.b16 %v490
    %v2679 = vunpack.c.l.b16 %v491
    %v2680 = vunpack.c.h.b16 %v491
    %v2681 = vunpack.c.l.b16 %v492
    %v2682 = vunpack.c.h.b16 %v492
    %v2683 = vunpack.c.l.b16 %v493
    %v2684 = vunpack.c.h.b16 %v493
    %v2685 = vunpack.c.l.b16 %v494
    %v2686 = vunpack.c.h.b16 %v494
    %v2687 = vunpack.c.l.b16 %v495
    %v2688 = vunpack.c.h.b16 %v495
    %v2689 = vunpack.c.l.b16 %v496
    %v2690 = vunpack.c.h.b16 %v496
    %v2691 = vunpack.c.l.b16 %v497
    %v2692 = vunpack.c.h.b16 %v497
    %v2693 = vunpack.c.l.b16 %v498
    %v2694 = vunpack.c.h.b16 %v498
    %v2695 = vunpack.c.l.b16 %v499
    %v2696 = vunpack.c.h.b16 %v499
    %v2697 = vunpack.c.l.b16 %v500
    %v2698 = vunpack.c.h.b16 %v500
    %v2699 = vunpack.c.l.b16 %v501
    %v2700 = vunpack.c.h.b16 %v501
    %v2701 = vunpack.c.l.b16 %v502
    %v2702 = vunpack.c.h.b16 %v502
    %v2703 = vunpack.c.l.b16 %v503
    %v2704 = vunpack.c.h.b16 %v503
    %v2705 = vunpack.c.l.b16 %v504
    %v2706 = vunpack.c.h.b16 %v504
    %v2707 = vunpack.c.l.b16 %v505
    %v2708 = vunpack.c.h.b16 %v505
    %v2709 = vunpack.c.l.b16 %v506
    %v2710 = vunpack.c.h.b16 %v506
    %v2711 = vunpack.c.l.b16 %v507
    %v2712 = vunpack.c.h.b16 %v507
    %v2713 = vunpack.c.l.b16 %v508
    %v2714 = vunpack.c.h.b16 %v508
    %v2715 = vunpack.c.l.b16 %v509
    %v2716 = vunpack.c.h.b16 %v509
    %v2717 = vunpack.c.l.b16 %v510
    %v2718 = vunpack.c.h.b16 %v510
    %v2719 = vunpack.c.l.b16 %v511
    %v2720 = vunpack.c.h.b16 %v511
    %v2721 = vunpack.c.l.b16 %v512
    %v2722 = vunpack.c.h.b16 %v512
    %v2723 = vunpack.c.l.b16 %v513
    %v2724 = vunpack.c.h.b16 %v513
    %v2725 = vunpack.c.l.b16 %v514
    %v2726 = vunpack.c.h.b16 %v514
    %v2727 = vunpack.c.l.b16 %v515
    %v2728 = vunpack.c.h.b16 %v515
    %v2729 = vunpack.c.l.b16 %v516
    %v2730 = vunpack.c.h.b16 %v516
    %v2731 = vunpack.c.l.b16 %v517
    %v2732 = vunpack.c.h.b16 %v517
    %v2733 = vunpack.c.l.b16 %v518
    %v2734 = vunpack.c.h.b16 %v518
    %v2735 = vunpack.c.l.b16 %v519
    %v2736 = vunpack.c.h.b16 %v519
    %v2737 = vunpack.c.l.b16 %v520
    %v2738 = vunpack.c.h.b16 %v520
    %v2739 = vunpack.c.l.b16 %v521
    %v2740 = vunpack.c.h.b16 %v521
    %v2741 = vunpack.c.l.b16 %v522
    %v2742 = vunpack.c.h.b16 %v522
    %v2743 = vunpack.c.l.b16 %v523
    %v2744 = vunpack.c.h.b16 %v523
    %v2745 = vunpack.c.l.b16 %v524
    %v2746 = vunpack.c.h.b16 %v524
    %v2747 = vunpack.c.l.b16 %v525
    %v2748 = vunpack.c.h.b16 %v525
    %v2749 = vunpack.c.l.b16 %v526
    %v2750 = vunpack.c.h.b16 %v526
    %v2751 = vunpack.c.l.b16 %v527
    %v2752 = vunpack.c.h.b16 %v527
    %v2753 = vunpack.c.l.b16 %v528
    %v2754 = vunpack.c.h.b16 %v528
    %v2755 = vunpack.c.l.b16 %v529
    %v2756 = vunpack.c.h.b16 %v529
    %v2757 = vunpack.c.l.b16 %v530
    %v2758 = vunpack.c.h.b16 %v530
    %v2759 = vunpack.c.l.b16 %v531
    %v2760 = vunpack.c.h.b16 %v531
    %v2761 = vunpack.c.l.b16 %v532
    %v2762 = vunpack.c.h.b16 %v532
    %v2763 = vunpack.c.l.b16 %v533
    %v2764 = vunpack.c.h.b16 %v533
    %v2765 = vunpack.c.l.b16 %v534
    %v2766 = vunpack.c.h.b16 %v534
    %v2767 = vunpack.c.l.b16 %v535
    %v2768 = vunpack.c.h.b16 %v535
    %v2769 = vunpack.c.l.b16 %v536
    %v2770 = vunpack.c.h.b16 %v536
    %v2771 = vunpack.c.l.b16 %v537
    %v2772 = vunpack.c.h.b16 %v537
    %v2773 = vunpack.c.l.b16 %v538
    %v2774 = vunpack.c.h.b16 %v538
    %v2775 = vunpack.c.l.b16 %v539
    %v2776 = vunpack.c.h.b16 %v539
    %v2777 = vunpack.c.l.b16 %v540
    %v2778 = vunpack.c.h.b16 %v540
    %v2779 = vunpack.c.l.b16 %v541
    %v2780 = vunpack.c.h.b16 %v541
    %v2781 = vunpack.c.l.b16 %v542
    %v2782 = vunpack.c.h.b16 %v542
    %v2783 = vunpack.c.l.b16 %v543
    %v2784 = vunpack.c.h.b16 %v543
    %v2785 = vunpack.c.l.b16 %v544
    %v2786 = vunpack.c.h.b16 %v544
    %v2787 = vunpack.c.l.b16 %v545
    %v2788 = vunpack.c.h.b16 %v545
    %v2789 = vunpack.c.l.b16 %v546
    %v2790 = vunpack.c.h.b16 %v546
    %v2791 = vunpack.c.l.b16 %v547
    %v2792 = vunpack.c.h.b16 %v547
    %v2793 = vunpack.c.l.b16 %v548
    %v2794 = vunpack.c.h.b16 %v548
    %v2795 = vunpack.c.l.b16 %v549
    %v2796 = vunpack.c.h.b16 %v549
    %v2797 = vunpack.c.l.b16 %v550
    %v2798 = vunpack.c.h.b16 %v550
    %v2799 = vunpack.c.l.b16 %v551
    %v2800 = vunpack.c.h.b16 %v551
    %v2801 = vunpack.c.l.b16 %v552
    %v2802 = vunpack.c.h.b16 %v552
    %v2803 = vunpack.c.l.b16 %v553
    %v2804 = vunpack.c.h.b16 %v553
    %v2805 = vunpack.c.l.b16 %v554
    %v2806 = vunpack.c.h.b16 %v554
    %v2807 = vunpack.c.l.b16 %v555
    %v2808 = vunpack.c.h.b16 %v555
    %v2809 = vunpack.c.l.b16 %v556
    %v2810 = vunpack.c.h.b16 %v556
    %v2811 = vunpack.c.l.b16 %v557
    %v2812 = vunpack.c.h.b16 %v557
    %v2813 = vunpack.c.l.b16 %v558
    %v2814 = vunpack.c.h.b16 %v558
    %v2815 = vunpack.c.l.b16 %v559
    %v2816 = vunpack.c.h.b16 %v559
    %v2817 = vunpack.c.l.b16 %v560
    %v2818 = vunpack.c.h.b16 %v560
    %v2819 = vunpack.c.l.b16 %v561
    %v2820 = vunpack.c.h.b16 %v561
    %v2821 = vunpack.c.l.b16 %v562
    %v2822 = vunpack.c.h.b16 %v562
    %v2823 = vunpack.c.l.b16 %v563
    %v2824 = vunpack.c.h.b16 %v563
    %v2825 = vunpack.c.l.b16 %v564
    %v2826 = vunpack.c.h.b16 %v564
    %v2827 = vunpack.c.l.b16 %v565
    %v2828 = vunpack.c.h.b16 %v565
    %v2829 = vunpack.c.l.b16 %v566
    %v2830 = vunpack.c.h.b16 %v566
    %v2831 = vunpack.c.l.b16 %v567
    %v2832 = vunpack.c.h.b16 %v567
    %v2833 = vunpack.c.l.b16 %v568
    %v2834 = vunpack.c.h.b16 %v568
    %v2835 = vunpack.c.l.b16 %v569
    %v2836 = vunpack.c.h.b16 %v569
    %v2837 = vunpack.c.l.b16 %v570
    %v2838 = vunpack.c.h.b16 %v570
    %v2839 = vunpack.c.l.b16 %v571
    %v2840 = vunpack.c.h.b16 %v571
    %v2841 = vunpack.c.l.b16 %v572
    %v2842 = vunpack.c.h.b16 %v572
    %v2843 = vunpack.c.l.b16 %v573
    %v2844 = vunpack.c.h.b16 %v573
    %v2845 = vunpack.c.l.b16 %v574
    %v2846 = vunpack.c.h.b16 %v574
    %v2847 = vunpack.c.l.b16 %v575
    %v2848 = vunpack.c.h.b16 %v575
    %v2849 = vunpack.c.l.b16 %v576
    %v2850 = vunpack.c.h.b16 %v576
    %v2851 = vunpack.c.l.b16 %v577
    %v2852 = vunpack.c.h.b16 %v577
    %v2853 = vunpack.c.l.b16 %v578
    %v2854 = vunpack.c.h.b16 %v578
    %v2855 = vunpack.c.l.b16 %v579
    %v2856 = vunpack.c.h.b16 %v579
    %v2857 = vunpack.c.l.b16 %v580
    %v2858 = vunpack.c.h.b16 %v580
    %v2859 = vunpack.c.l.b16 %v581
    %v2860 = vunpack.c.h.b16 %v581
    %v2861 = vunpack.c.l.b16 %v582
    %v2862 = vunpack.c.h.b16 %v582
    %v2863 = vunpack.c.l.b16 %v583
    %v2864 = vunpack.c.h.b16 %v583
    %v2865 = vunpack.c.l.b16 %v584
    %v2866 = vunpack.c.h.b16 %v584
    %v2867 = vunpack.c.l.b16 %v585
    %v2868 = vunpack.c.h.b16 %v585
    %v2869 = vunpack.c.l.b16 %v586
    %v2870 = vunpack.c.h.b16 %v586
    %v2871 = vunpack.c.l.b16 %v587
    %v2872 = vunpack.c.h.b16 %v587
    %v2873 = vunpack.c.l.b16 %v588
    %v2874 = vunpack.c.h.b16 %v588
    %v2875 = vunpack.c.l.b16 %v589
    %v2876 = vunpack.c.h.b16 %v589
    %v2877 = vunpack.c.l.b16 %v590
    %v2878 = vunpack.c.h.b16 %v590
    %v2879 = vunpack.c.l.b16 %v591
    %v2880 = vunpack.c.h.b16 %v591
    %v2881 = vunpack.c.l.b16 %v592
    %v2882 = vunpack.c.h.b16 %v592
    %v2883 = vunpack.c.l.b16 %v593
    %v2884 = vunpack.c.h.b16 %v593
    %v2885 = vunpack.c.l.b16 %v594
    %v2886 = vunpack.c.h.b16 %v594
    %v2887 = vunpack.c.l.b16 %v595
    %v2888 = vunpack.c.h.b16 %v595
    %v2889 = vunpack.c.l.b16 %v596
    %v2890 = vunpack.c.h.b16 %v596
    %v2891 = vunpack.c.l.b16 %v597
    %v2892 = vunpack.c.h.b16 %v597
    %v2893 = vunpack.c.l.b16 %v598
    %v2894 = vunpack.c.h.b16 %v598
    %v2895 = vunpack.c.l.b16 %v599
    %v2896 = vunpack.c.h.b16 %v599
    %v2897 = vunpack.c.l.b16 %v600
    %v2898 = vunpack.c.h.b16 %v600
    %v2899 = vunpack.c.l.b16 %v601
    %v2900 = vunpack.c.h.b16 %v601
    %v2901 = vunpack.c.l.b16 %v602
    %v2902 = vunpack.c.h.b16 %v602
    %v2903 = vunpack.c.l.b16 %v603
    %v2904 = vunpack.c.h.b16 %v603
    %v2905 = vunpack.c.l.b16 %v604
    %v2906 = vunpack.c.h.b16 %v604
    %v2907 = vunpack.c.l.b16 %v605
    %v2908 = vunpack.c.h.b16 %v605
    %v2909 = vunpack.c.l.b16 %v606
    %v2910 = vunpack.c.h.b16 %v606
    %v2911 = vunpack.c.l.b16 %v607
    %v2912 = vunpack.c.h.b16 %v607
    %v2913 = vunpack.c.l.b16 %v608
    %v2914 = vunpack.c.h.b16 %v608
    %v2915 = vunpack.c.l.b16 %v609
    %v2916 = vunpack.c.h.b16 %v609
    %v2917 = vunpack.c.l.b16 %v610
    %v2918 = vunpack.c.h.b16 %v610
    %v2919 = vunpack.c.l.b16 %v611
    %v2920 = vunpack.c.h.b16 %v611
    %v2921 = vunpack.c.l.b16 %v612
    %v2922 = vunpack.c.h.b16 %v612
    %v2923 = vunpack.c.l.b16 %v613
    %v2924 = vunpack.c.h.b16 %v613
    %v2925 = vunpack.c.l.b16 %v614
    %v2926 = vunpack.c.h.b16 %v614
    %v2927 = vunpack.c.l.b16 %v615
    %v2928 = vunpack.c.h.b16 %v615
    %v2929 = vunpack.c.l.b16 %v616
    %v2930 = vunpack.c.h.b16 %v616
    %v2931 = vunpack.c.l.b16 %v617
    %v2932 = vunpack.c.h.b16 %v617
    %v2933 = vunpack.c.l.b16 %v618
    %v2934 = vunpack.c.h.b16 %v618
    %v2935 = vunpack.c.l.b16 %v619
    %v2936 = vunpack.c.h.b16 %v619
    %v2937 = vunpack.c.l.b16 %v620
    %v2938 = vunpack.c.h.b16 %v620
    %v2939 = vunpack.c.l.b16 %v621
    %v2940 = vunpack.c.h.b16 %v621
    %v2941 = vunpack.c.l.b16 %v622
    %v2942 = vunpack.c.h.b16 %v622
    %v2943 = vunpack.c.l.b16 %v623
    %v2944 = vunpack.c.h.b16 %v623
    %v2945 = vunpack.c.l.b16 %v624
    %v2946 = vunpack.c.h.b16 %v624
    %v2947 = vunpack.c.l.b16 %v625
    %v2948 = vunpack.c.h.b16 %v625
    %v2949 = vunpack.c.l.b16 %v626
    %v2950 = vunpack.c.h.b16 %v626
    %v2951 = vunpack.c.l.b16 %v627
    %v2952 = vunpack.c.h.b16 %v627
    %v2953 = vunpack.c.l.b16 %v628
    %v2954 = vunpack.c.h.b16 %v628
    %v2955 = vunpack.c.l.b16 %v629
    %v2956 = vunpack.c.h.b16 %v629
    %v2957 = vunpack.c.l.b16 %v630
    %v2958 = vunpack.c.h.b16 %v630
    %v2959 = vunpack.c.l.b16 %v631
    %v2960 = vunpack.c.h.b16 %v631
    %v2961 = vunpack.c.l.b16 %v632
    %v2962 = vunpack.c.h.b16 %v632
    %v2963 = vunpack.c.l.b16 %v633
    %v2964 = vunpack.c.h.b16 %v633
    %v2965 = vunpack.c.l.b16 %v634
    %v2966 = vunpack.c.h.b16 %v634
    %v2967 = vunpack.c.l.b16 %v635
    %v2968 = vunpack.c.h.b16 %v635
    %v2969 = vunpack.c.l.b16 %v636
    %v2970 = vunpack.c.h.b16 %v636
    %v2971 = vunpack.c.l.b16 %v637
    %v2972 = vunpack.c.h.b16 %v637
    %v2973 = vunpack.c.l.b16 %v638
    %v2974 = vunpack.c.h.b16 %v638
    %v2975 = vunpack.c.l.b16 %v639
    %v2976 = vunpack.c.h.b16 %v639
    %v2977 = vunpack.c.l.b16 %v640
    %v2978 = vunpack.c.h.b16 %v640
    %v2979 = vunpack.c.l.b16 %v641
    %v2980 = vunpack.c.h.b16 %v641
    %v2981 = vunpack.c.l.b16 %v642
    %v2982 = vunpack.c.h.b16 %v642
    %v2983 = vunpack.c.l.b16 %v643
    %v2984 = vunpack.c.h.b16 %v643
    %v2985 = vunpack.c.l.b16 %v644
    %v2986 = vunpack.c.h.b16 %v644
    %v2987 = vunpack.c.l.b16 %v645
    %v2988 = vunpack.c.h.b16 %v645
    %v2989 = vunpack.c.l.b16 %v646
    %v2990 = vunpack.c.h.b16 %v646
    %v2991 = vunpack.c.l.b16 %v647
    %v2992 = vunpack.c.h.b16 %v647
    %v2993 = vunpack.c.l.b16 %v648
    %v2994 = vunpack.c.h.b16 %v648
    %v2995 = vunpack.c.l.b16 %v649
    %v2996 = vunpack.c.h.b16 %v649
    %v2997 = vunpack.c.l.b16 %v650
    %v2998 = vunpack.c.h.b16 %v650
    %v2999 = vunpack.c.l.b16 %v651
    %v3000 = vunpack.c.h.b16 %v651
    %v3001 = vunpack.c.l.b16 %v652
    %v3002 = vunpack.c.h.b16 %v652
    %v3003 = vunpack.c.l.b16 %v653
    %v3004 = vunpack.c.h.b16 %v653
    %v3005 = vunpack.c.l.b16 %v654
    %v3006 = vunpack.c.h.b16 %v654
    %v3007 = vunpack.c.l.b16 %v655
    %v3008 = vunpack.c.h.b16 %v655
    %v3009 = vunpack.c.l.b16 %v656
    %v3010 = vunpack.c.h.b16 %v656
    %v3011 = vunpack.c.l.b16 %v657
    %v3012 = vunpack.c.h.b16 %v657
    %v3013 = vunpack.c.l.b16 %v658
    %v3014 = vunpack.c.h.b16 %v658
    %v3015 = vunpack.c.l.b16 %v659
    %v3016 = vunpack.c.h.b16 %v659
    %v3017 = vunpack.c.l.b16 %v660
    %v3018 = vunpack.c.h.b16 %v660
    %v3019 = vunpack.c.l.b16 %v661
    %v3020 = vunpack.c.h.b16 %v661
    %v3021 = vunpack.c.l.b16 %v662
    %v3022 = vunpack.c.h.b16 %v662
    %v3023 = vunpack.c.l.b16 %v663
    %v3024 = vunpack.c.h.b16 %v663
    %v3025 = vunpack.c.l.b16 %v664
    %v3026 = vunpack.c.h.b16 %v664
    %v3027 = vunpack.c.l.b16 %v665
    %v3028 = vunpack.c.h.b16 %v665
    %v3029 = vunpack.c.l.b16 %v666
    %v3030 = vunpack.c.h.b16 %v666
    %v3031 = vunpack.c.l.b16 %v667
    %v3032 = vunpack.c.h.b16 %v667
    %v3033 = vunpack.c.l.b16 %v668
    %v3034 = vunpack.c.h.b16 %v668
    %v3035 = vunpack.c.l.b16 %v669
    %v3036 = vunpack.c.h.b16 %v669
    %v3037 = vunpack.c.l.b16 %v670
    %v3038 = vunpack.c.h.b16 %v670
    %v3039 = vunpack.c.l.b16 %v671
    %v3040 = vunpack.c.h.b16 %v671
    %v3041 = vunpack.c.l.b16 %v672
    %v3042 = vunpack.c.h.b16 %v672
    %v3043 = vunpack.c.l.b16 %v673
    %v3044 = vunpack.c.h.b16 %v673
    %v3045 = vunpack.c.l.b16 %v674
    %v3046 = vunpack.c.h.b16 %v674
    %v3047 = vunpack.c.l.b16 %v675
    %v3048 = vunpack.c.h.b16 %v675
    %v3049 = vunpack.c.l.b16 %v676
    %v3050 = vunpack.c.h.b16 %v676
    %v3051 = vunpack.c.l.b16 %v677
    %v3052 = vunpack.c.h.b16 %v677
    %v3053 = vunpack.c.l.b16 %v678
    %v3054 = vunpack.c.h.b16 %v678
    %v3055 = vunpack.c.l.b16 %v679
    %v3056 = vunpack.c.h.b16 %v679
    %v3057 = vunpack.c.l.b16 %v680
    %v3058 = vunpack.c.h.b16 %v680
    %v3059 = vunpack.c.l.b16 %v681
    %v3060 = vunpack.c.h.b16 %v681
    %v3061 = vunpack.c.l.b16 %v682
    %v3062 = vunpack.c.h.b16 %v682
    %v3063 = vunpack.c.l.b16 %v683
    %v3064 = vunpack.c.h.b16 %v683
    %v3065 = vunpack.c.l.b16 %v684
    %v3066 = vunpack.c.h.b16 %v684
    %v3067 = vunpack.c.l.b16 %v685
    %v3068 = vunpack.c.h.b16 %v685
    %v3069 = vunpack.c.l.b16 %v686
    %v3070 = vunpack.c.h.b16 %v686
    %v3071 = vunpack.c.l.b16 %v687
    %v3072 = vunpack.c.h.b16 %v687
    %v3073 = vunpack.c.l.b16 %v688
    %v3074 = vunpack.c.h.b16 %v688
    %v3075 = vunpack.c.l.b16 %v689
    %v3076 = vunpack.c.h.b16 %v689
    %v3077 = vunpack.c.l.b16 %v690
    %v3078 = vunpack.c.h.b16 %v690
    %v3079 = vunpack.c.l.b16 %v691
    %v3080 = vunpack.c.h.b16 %v691
    %v3081 = vunpack.c.l.b16 %v692
    %v3082 = vunpack.c.h.b16 %v692
    %v3083 = vunpack.c.l.b16 %v693
    %v3084 = vunpack.c.h.b16 %v693
    %v3085 = vunpack.c.l.b16 %v694
    %v3086 = vunpack.c.h.b16 %v694
    %v3087 = vunpack.c.l.b16 %v695
    %v3088 = vunpack.c.h.b16 %v695
    %v3089 = vunpack.c.l.b16 %v696
    %v3090 = vunpack.c.h.b16 %v696
    %v3091 = vunpack.c.l.b16 %v697
    %v3092 = vunpack.c.h.b16 %v697
    %v3093 = vunpack.c.l.b16 %v698
    %v3094 = vunpack.c.h.b16 %v698
    %v3095 = vunpack.c.l.b16 %v699
    %v3096 = vunpack.c.h.b16 %v699
    %v3097 = vunpack.c.l.b16 %v700
    %v3098 = vunpack.c.h.b16 %v700
    %v3099 = vunpack.c.l.b16 %v701
    %v3100 = vunpack.c.h.b16 %v701
    %v3101 = vunpack.c.l.b16 %v702
    %v3102 = vunpack.c.h.b16 %v702
    %v3103 = vunpack.c.l.b16 %v703
    %v3104 = vunpack.c.h.b16 %v703
    %v3105 = vunpack.c.l.b16 %v704
    %v3106 = vunpack.c.h.b16 %v704
    %v3107 = vunpack.c.l.b16 %v705
    %v3108 = vunpack.c.h.b16 %v705
    %v3109 = vunpack.c.l.b16 %v706
    %v3110 = vunpack.c.h.b16 %v706
    %v3111 = vunpack.c.l.b16 %v707
    %v3112 = vunpack.c.h.b16 %v707
    %v3113 = vunpack.c.l.b16 %v708
    %v3114 = vunpack.c.h.b16 %v708
    %v3115 = vunpack.c.l.b16 %v709
    %v3116 = vunpack.c.h.b16 %v709
    %v3117 = vunpack.c.l.b16 %v710
    %v3118 = vunpack.c.h.b16 %v710
    %v3119 = vunpack.c.l.b16 %v711
    %v3120 = vunpack.c.h.b16 %v711
    %v3121 = vunpack.c.l.b16 %v712
    %v3122 = vunpack.c.h.b16 %v712
    %v3123 = vunpack.c.l.b16 %v713
    %v3124 = vunpack.c.h.b16 %v713
    %v3125 = vunpack.c.l.b16 %v714
    %v3126 = vunpack.c.h.b16 %v714
    %v3127 = vunpack.c.l.b16 %v715
    %v3128 = vunpack.c.h.b16 %v715
    %v3129 = vunpack.c.l.b16 %v716
    %v3130 = vunpack.c.h.b16 %v716
    %v3131 = vunpack.c.l.b16 %v717
    %v3132 = vunpack.c.h.b16 %v717
    %v3133 = vunpack.c.l.b16 %v718
    %v3134 = vunpack.c.h.b16 %v718
    %v3135 = vunpack.c.l.b16 %v719
    %v3136 = vunpack.c.h.b16 %v719
    %v3137 = vunpack.c.l.b16 %v720
    %v3138 = vunpack.c.h.b16 %v720
    %v3139 = vunpack.c.l.b16 %v721
    %v3140 = vunpack.c.h.b16 %v721
    %v3141 = vunpack.c.l.b16 %v722
    %v3142 = vunpack.c.h.b16 %v722
    %v3143 = vunpack.c.l.b16 %v723
    %v3144 = vunpack.c.h.b16 %v723
    %v3145 = vunpack.c.l.b16 %v724
    %v3146 = vunpack.c.h.b16 %v724
    %v3147 = vunpack.c.l.b16 %v725
    %v3148 = vunpack.c.h.b16 %v725
    %v3149 = vunpack.c.l.b16 %v726
    %v3150 = vunpack.c.h.b16 %v726
    %v3151 = vunpack.c.l.b16 %v727
    %v3152 = vunpack.c.h.b16 %v727
    %v3153 = vunpack.c.l.b16 %v728
    %v3154 = vunpack.c.h.b16 %v728
    %v3155 = vunpack.c.l.b16 %v729
    %v3156 = vunpack.c.h.b16 %v729
    %v3157 = vunpack.c.l.b16 %v730
    %v3158 = vunpack.c.h.b16 %v730
    %v3159 = vunpack.c.l.b16 %v731
    %v3160 = vunpack.c.h.b16 %v731
    %v3161 = vunpack.c.l.b16 %v732
    %v3162 = vunpack.c.h.b16 %v732
    %v3163 = vunpack.c.l.b16 %v733
    %v3164 = vunpack.c.h.b16 %v733
    %v3165 = vunpack.c.l.b16 %v734
    %v3166 = vunpack.c.h.b16 %v734
    %v3167 = vunpack.c.l.b16 %v735
    %v3168 = vunpack.c.h.b16 %v735
    %v3169 = vunpack.c.l.b16 %v736
    %v3170 = vunpack.c.h.b16 %v736
    %v3171 = vunpack.c.l.b16 %v737
    %v3172 = vunpack.c.h.b16 %v737
    %v3173 = vunpack.c.l.b16 %v738
    %v3174 = vunpack.c.h.b16 %v738
    %v3175 = vunpack.c.l.b16 %v739
    %v3176 = vunpack.c.h.b16 %v739
    %v3177 = vunpack.c.l.b16 %v740
    %v3178 = vunpack.c.h.b16 %v740
    %v3179 = vunpack.c.l.b16 %v741
    %v3180 = vunpack.c.h.b16 %v741
    %v3181 = vunpack.c.l.b16 %v742
    %v3182 = vunpack.c.h.b16 %v742
    %v3183 = vunpack.c.l.b16 %v743
    %v3184 = vunpack.c.h.b16 %v743
    %v3185 = vunpack.c.l.b16 %v744
    %v3186 = vunpack.c.h.b16 %v744
    %v3187 = vunpack.c.l.b16 %v745
    %v3188 = vunpack.c.h.b16 %v745
    %v3189 = vunpack.c.l.b16 %v746
    %v3190 = vunpack.c.h.b16 %v746
    %v3191 = vunpack.c.l.b16 %v747
    %v3192 = vunpack.c.h.b16 %v747
    %v3193 = vunpack.c.l.b16 %v748
    %v3194 = vunpack.c.h.b16 %v748
    %v3195 = vunpack.c.l.b16 %v749
    %v3196 = vunpack.c.h.b16 %v749
    %v3197 = vunpack.c.l.b16 %v750
    %v3198 = vunpack.c.h.b16 %v750
    %v3199 = vunpack.c.l.b16 %v751
    %v3200 = vunpack.c.h.b16 %v751
    %v3201 = vunpack.c.l.b16 %v752
    %v3202 = vunpack.c.h.b16 %v752
    %v3203 = vunpack.c.l.b16 %v753
    %v3204 = vunpack.c.h.b16 %v753
    %v3205 = vunpack.c.l.b16 %v754
    %v3206 = vunpack.c.h.b16 %v754
    %v3207 = vunpack.c.l.b16 %v755
    %v3208 = vunpack.c.h.b16 %v755
    %v3209 = vunpack.c.l.b16 %v756
    %v3210 = vunpack.c.h.b16 %v756
    %v3211 = vunpack.c.l.b16 %v757
    %v3212 = vunpack.c.h.b16 %v757
    %v3213 = vunpack.c.l.b16 %v758
    %v3214 = vunpack.c.h.b16 %v758
    %v3215 = vunpack.c.l.b16 %v759
    %v3216 = vunpack.c.h.b16 %v759
    %v3217 = vunpack.c.l.b16 %v760
    %v3218 = vunpack.c.h.b16 %v760
    %v3219 = vunpack.c.l.b16 %v761
    %v3220 = vunpack.c.h.b16 %v761
    %v3221 = vunpack.c.l.b16 %v762
    %v3222 = vunpack.c.h.b16 %v762
    %v3223 = vunpack.c.l.b16 %v763
    %v3224 = vunpack.c.h.b16 %v763
    %v3225 = vunpack.c.l.b16 %v764
    %v3226 = vunpack.c.h.b16 %v764
    %v3227 = vunpack.c.l.b16 %v765
    %v3228 = vunpack.c.h.b16 %v765
    %v3229 = vunpack.c.l.b16 %v766
    %v3230 = vunpack.c.h.b16 %v766
    %v3231 = vunpack.c.l.b16 %v767
    %v3232 = vunpack.c.h.b16 %v767
    %v3233 = vunpack.c.l.b16 %v768
    %v3234 = vunpack.c.h.b16 %v768
    %v3235 = vunpack.c.l.b16 %v769
    %v3236 = vunpack.c.h.b16 %v769
    %v3237 = vunpack.c.l.b16 %v770
    %v3238 = vunpack.c.h.b16 %v770
    %v3239 = vunpack.c.l.b16 %v771
    %v3240 = vunpack.c.h.b16 %v771
    %v3241 = vunpack.c.l.b16 %v772
    %v3242 = vunpack.c.h.b16 %v772
    %v3243 = vunpack.c.l.b16 %v773
    %v3244 = vunpack.c.h.b16 %v773
    %v3245 = vunpack.c.l.b16 %v774
    %v3246 = vunpack.c.h.b16 %v774
    %v3247 = vunpack.c.l.b16 %v775
    %v3248 = vunpack.c.h.b16 %v775
    %v3249 = vunpack.c.l.b16 %v776
    %v3250 = vunpack.c.h.b16 %v776
    %v3251 = vunpack.c.l.b16 %v777
    %v3252 = vunpack.c.h.b16 %v777
    %v3253 = vunpack.c.l.b16 %v778
    %v3254 = vunpack.c.h.b16 %v778
    %v3255 = vunpack.c.l.b16 %v779
    %v3256 = vunpack.c.h.b16 %v779
    %v3257 = vunpack.c.l.b16 %v780
    %v3258 = vunpack.c.h.b16 %v780
    %v3259 = vunpack.c.l.b16 %v781
    %v3260 = vunpack.c.h.b16 %v781
    %v3261 = vunpack.c.l.b16 %v782
    %v3262 = vunpack.c.h.b16 %v782
    %v3263 = vunpack.c.l.b16 %v783
    %v3264 = vunpack.c.h.b16 %v783
    %v3265 = vunpack.c.l.b16 %v784
    %v3266 = vunpack.c.h.b16 %v784
    %v3267 = vunpack.c.l.b16 %v785
    %v3268 = vunpack.c.h.b16 %v785
    %v3269 = vunpack.c.l.b16 %v786
    %v3270 = vunpack.c.h.b16 %v786
    %v3271 = vunpack.c.l.b16 %v787
    %v3272 = vunpack.c.h.b16 %v787
    %v3273 = vunpack.c.l.b16 %v788
    %v3274 = vunpack.c.h.b16 %v788
    %v3275 = vunpack.c.l.b16 %v789
    %v3276 = vunpack.c.h.b16 %v789
    %v3277 = vunpack.c.l.b16 %v790
    %v3278 = vunpack.c.h.b16 %v790
    %v3279 = vunpack.c.l.b16 %v791
    %v3280 = vunpack.c.h.b16 %v791
    %v3281 = vunpack.c.l.b16 %v792
    %v3282 = vunpack.c.h.b16 %v792
    %v3283 = vunpack.c.l.b16 %v793
    %v3284 = vunpack.c.h.b16 %v793
    %v3285 = vunpack.c.l.b16 %v794
    %v3286 = vunpack.c.h.b16 %v794
    %v3287 = vunpack.c.l.b16 %v795
    %v3288 = vunpack.c.h.b16 %v795
    %v3289 = vunpack.c.l.b16 %v796
    %v3290 = vunpack.c.h.b16 %v796
    %v3291 = vunpack.c.l.b16 %v797
    %v3292 = vunpack.c.h.b16 %v797
    %v3293 = vunpack.c.l.b16 %v798
    %v3294 = vunpack.c.h.b16 %v798
    %v3295 = vunpack.c.l.b16 %v799
    %v3296 = vunpack.c.h.b16 %v799
    %v3297 = vunpack.c.l.b16 %v800
    %v3298 = vunpack.c.h.b16 %v800
    %v3299 = vunpack.c.l.b16 %v801
    %v3300 = vunpack.c.h.b16 %v801
    %v3301 = vunpack.c.l.b16 %v802
    %v3302 = vunpack.c.h.b16 %v802
    %v3303 = vunpack.c.l.b16 %v803
    %v3304 = vunpack.c.h.b16 %v803
    %v3305 = vunpack.c.l.b16 %v804
    %v3306 = vunpack.c.h.b16 %v804
    %v3307 = vunpack.c.l.b16 %v805
    %v3308 = vunpack.c.h.b16 %v805
    %v3309 = vunpack.c.l.b16 %v806
    %v3310 = vunpack.c.h.b16 %v806
    %v3311 = vunpack.c.l.b16 %v807
    %v3312 = vunpack.c.h.b16 %v807
    %v3313 = vunpack.c.l.b16 %v808
    %v3314 = vunpack.c.h.b16 %v808
    %v3315 = vunpack.c.l.b16 %v809
    %v3316 = vunpack.c.h.b16 %v809
    %v3317 = vunpack.c.l.b16 %v810
    %v3318 = vunpack.c.h.b16 %v810
    %v3319 = vunpack.c.l.b16 %v811
    %v3320 = vunpack.c.h.b16 %v811
    %v3321 = vunpack.c.l.b16 %v812
    %v3322 = vunpack.c.h.b16 %v812
    %v3323 = vunpack.c.l.b16 %v813
    %v3324 = vunpack.c.h.b16 %v813
    %v3325 = vunpack.c.l.b16 %v814
    %v3326 = vunpack.c.h.b16 %v814
    %v3327 = vunpack.c.l.b16 %v815
    %v3328 = vunpack.c.h.b16 %v815
    %v3329 = vunpack.c.l.b16 %v816
    %v3330 = vunpack.c.h.b16 %v816
    %v3331 = vunpack.c.l.b16 %v817
    %v3332 = vunpack.c.h.b16 %v817
    %v3333 = vunpack.c.l.b16 %v818
    %v3334 = vunpack.c.h.b16 %v818
    %v3335 = vunpack.c.l.b16 %v819
    %v3336 = vunpack.c.h.b16 %v819
    %v3337 = vunpack.c.l.b16 %v820
    %v3338 = vunpack.c.h.b16 %v820
    %v3339 = vunpack.c.l.b16 %v821
    %v3340 = vunpack.c.h.b16 %v821
    %v3341 = vunpack.c.l.b16 %v822
    %v3342 = vunpack.c.h.b16 %v822
    %v3343 = vunpack.c.l.b16 %v823
    %v3344 = vunpack.c.h.b16 %v823
    %v3345 = vunpack.c.l.b16 %v824
    %v3346 = vunpack.c.h.b16 %v824
    %v3347 = vunpack.c.l.b16 %v825
    %v3348 = vunpack.c.h.b16 %v825
    %v3349 = vunpack.c.l.b16 %v826
    %v3350 = vunpack.c.h.b16 %v826
    %v3351 = vunpack.c.l.b16 %v827
    %v3352 = vunpack.c.h.b16 %v827
    %v3353 = vunpack.c.l.b16 %v828
    %v3354 = vunpack.c.h.b16 %v828
    %v3355 = vunpack.c.l.b16 %v829
    %v3356 = vunpack.c.h.b16 %v829
    %v3357 = vunpack.c.l.b16 %v830
    %v3358 = vunpack.c.h.b16 %v830
    %v3359 = vunpack.c.l.b16 %v831
    %v3360 = vunpack.c.h.b16 %v831
    %v3361 = vunpack.c.l.b16 %v832
    %v3362 = vunpack.c.h.b16 %v832
    %v3363 = vunpack.c.l.b16 %v833
    %v3364 = vunpack.c.h.b16 %v833
    %v3365 = vunpack.c.l.b16 %v834
    %v3366 = vunpack.c.h.b16 %v834
    %v3367 = vunpack.c.l.b16 %v835
    %v3368 = vunpack.c.h.b16 %v835
    %v3369 = vunpack.c.l.b16 %v836
    %v3370 = vunpack.c.h.b16 %v836
    %v3371 = vunpack.c.l.b16 %v837
    %v3372 = vunpack.c.h.b16 %v837
    %v3373 = vunpack.c.l.b16 %v838
    %v3374 = vunpack.c.h.b16 %v838
    %v3375 = vunpack.c.l.b16 %v839
    %v3376 = vunpack.c.h.b16 %v839
    %v3377 = vunpack.c.l.b16 %v840
    %v3378 = vunpack.c.h.b16 %v840
    %v3379 = vunpack.c.l.b16 %v841
    %v3380 = vunpack.c.h.b16 %v841
    %v3381 = vunpack.c.l.b16 %v842
    %v3382 = vunpack.c.h.b16 %v842
    %v3383 = vunpack.c.l.b16 %v843
    %v3384 = vunpack.c.h.b16 %v843
    %v3385 = vunpack.c.l.b16 %v844
    %v3386 = vunpack.c.h.b16 %v844
    %v3387 = vunpack.c.l.b16 %v845
    %v3388 = vunpack.c.h.b16 %v845
    %v3389 = vunpack.c.l.b16 %v846
    %v3390 = vunpack.c.h.b16 %v846
    %v3391 = vunpack.c.l.b16 %v847
    %v3392 = vunpack.c.h.b16 %v847
    %v3393 = vunpack.c.l.b16 %v848
    %v3394 = vunpack.c.h.b16 %v848
    %v3395 = vunpack.c.l.b16 %v849
    %v3396 = vunpack.c.h.b16 %v849
    %v3397 = vunpack.c.l.b16 %v850
    %v3398 = vunpack.c.h.b16 %v850
    %v3399 = vunpack.c.l.b16 %v851
    %v3400 = vunpack.c.h.b16 %v851
    %v3401 = vunpack.c.l.b16 %v852
    %v3402 = vunpack.c.h.b16 %v852
    %v3403 = vunpack.c.l.b16 %v853
    %v3404 = vunpack.c.h.b16 %v853
    %v3405 = vunpack.c.l.b16 %v854
    %v3406 = vunpack.c.h.b16 %v854
    %v3407 = vunpack.c.l.b16 %v855
    %v3408 = vunpack.c.h.b16 %v855
    %v3409 = vunpack.c.l.b16 %v856
    %v3410 = vunpack.c.h.b16 %v856
    %v3411 = vunpack.c.l.b16 %v857
    %v3412 = vunpack.c.h.b16 %v857
    %v3413 = vunpack.c.l.b16 %v858
    %v3414 = vunpack.c.h.b16 %v858
    %v3415 = vunpack.c.l.b16 %v859
    %v3416 = vunpack.c.h.b16 %v859
    %v3417 = vunpack.c.l.b16 %v860
    %v3418 = vunpack.c.h.b16 %v860
    %v3419 = vunpack.c.l.b16 %v861
    %v3420 = vunpack.c.h.b16 %v861
    %v3421 = vunpack.c.l.b16 %v862
    %v3422 = vunpack.c.h.b16 %v862
    %v3423 = vunpack.c.l.b16 %v863
    %v3424 = vunpack.c.h.b16 %v863
    %v3425 = vunpack.c.l.b16 %v864
    %v3426 = vunpack.c.h.b16 %v864
    %v3427 = vunpack.c.l.b16 %v865
    %v3428 = vunpack.c.h.b16 %v865
    %v3429 = vunpack.c.l.b16 %v866
    %v3430 = vunpack.c.h.b16 %v866
    %v3431 = vunpack.c.l.b16 %v867
    %v3432 = vunpack.c.h.b16 %v867
    %v3433 = vunpack.c.l.b16 %v868
    %v3434 = vunpack.c.h.b16 %v868
    %v3435 = vunpack.c.l.b16 %v869
    %v3436 = vunpack.c.h.b16 %v869
    %v3437 = vunpack.c.l.b16 %v870
    %v3438 = vunpack.c.h.b16 %v870
    %v3439 = vunpack.c.l.b16 %v871
    %v3440 = vunpack.c.h.b16 %v871
    %v3441 = vunpack.c.l.b16 %v872
    %v3442 = vunpack.c.h.b16 %v872
    %v3443 = vunpack.c.l.b16 %v873
    %v3444 = vunpack.c.h.b16 %v873
    %v3445 = vunpack.c.l.b16 %v874
    %v3446 = vunpack.c.h.b16 %v874
    %v3447 = vunpack.c.l.b16 %v875
    %v3448 = vunpack.c.h.b16 %v875
    %v3449 = vunpack.c.l.b16 %v876
    %v3450 = vunpack.c.h.b16 %v876
    %v3451 = vunpack.c.l.b16 %v877
    %v3452 = vunpack.c.h.b16 %v877
    %v3453 = vunpack.c.l.b16 %v878
    %v3454 = vunpack.c.h.b16 %v878
    %v3455 = vunpack.c.l.b16 %v879
    %v3456 = vunpack.c.h.b16 %v879
    %v3457 = vunpack.c.l.b16 %v880
    %v3458 = vunpack.c.h.b16 %v880
    %v3459 = vunpack.c.l.b16 %v881
    %v3460 = vunpack.c.h.b16 %v881
    %v3461 = vunpack.c.l.b16 %v882
    %v3462 = vunpack.c.h.b16 %v882
    %v3463 = vunpack.c.l.b16 %v883
    %v3464 = vunpack.c.h.b16 %v883
    %v3465 = vunpack.c.l.b16 %v884
    %v3466 = vunpack.c.h.b16 %v884
    %v3467 = vunpack.c.l.b16 %v885
    %v3468 = vunpack.c.h.b16 %v885
    %v3469 = vunpack.c.l.b16 %v886
    %v3470 = vunpack.c.h.b16 %v886
    %v3471 = vunpack.c.l.b16 %v887
    %v3472 = vunpack.c.h.b16 %v887
    %v3473 = vunpack.c.l.b16 %v888
    %v3474 = vunpack.c.h.b16 %v888
    %v3475 = vunpack.c.l.b16 %v889
    %v3476 = vunpack.c.h.b16 %v889
    %v3477 = vunpack.c.l.b16 %v890
    %v3478 = vunpack.c.h.b16 %v890
    %v3479 = vunpack.c.l.b16 %v891
    %v3480 = vunpack.c.h.b16 %v891
    %v3481 = vunpack.c.l.b16 %v892
    %v3482 = vunpack.c.h.b16 %v892
    %v3483 = vunpack.c.l.b16 %v893
    %v3484 = vunpack.c.h.b16 %v893
    %v3485 = vunpack.c.l.b16 %v894
    %v3486 = vunpack.c.h.b16 %v894
    %v3487 = vunpack.c.l.b16 %v895
    %v3488 = vunpack.c.h.b16 %v895
    %v3489 = vunpack.c.l.b16 %v896
    %v3490 = vunpack.c.h.b16 %v896
    %v3491 = vunpack.c.l.b16 %v897
    %v3492 = vunpack.c.h.b16 %v897
    %v3493 = vunpack.c.l.b16 %v898
    %v3494 = vunpack.c.h.b16 %v898
    %v3495 = vunpack.c.l.b16 %v899
    %v3496 = vunpack.c.h.b16 %v899
    %v3497 = vunpack.c.l.b16 %v900
    %v3498 = vunpack.c.h.b16 %v900
    %v3499 = vunpack.c.l.b16 %v901
    %v3500 = vunpack.c.h.b16 %v901
    %v3501 = vunpack.c.l.b16 %v902
    %v3502 = vunpack.c.h.b16 %v902
    %v3503 = vunpack.c.l.b16 %v903
    %v3504 = vunpack.c.h.b16 %v903
    %v3505 = vunpack.c.l.b16 %v904
    %v3506 = vunpack.c.h.b16 %v904
    %v3507 = vunpack.c.l.b16 %v905
    %v3508 = vunpack.c.h.b16 %v905
    %v3509 = vunpack.c.l.b16 %v906
    %v3510 = vunpack.c.h.b16 %v906
    %v3511 = vunpack.c.l.b16 %v907
    %v3512 = vunpack.c.h.b16 %v907
    %v3513 = vunpack.c.l.b16 %v908
    %v3514 = vunpack.c.h.b16 %v908
    %v3515 = vunpack.c.l.b16 %v909
    %v3516 = vunpack.c.h.b16 %v909
    %v3517 = vunpack.c.l.b16 %v910
    %v3518 = vunpack.c.h.b16 %v910
    %v3519 = vunpack.c.l.b16 %v911
    %v3520 = vunpack.c.h.b16 %v911
    %v3521 = vunpack.c.l.b16 %v912
    %v3522 = vunpack.c.h.b16 %v912
    %v3523 = vunpack.c.l.b16 %v913
    %v3524 = vunpack.c.h.b16 %v913
    %v3525 = vunpack.c.l.b16 %v914
    %v3526 = vunpack.c.h.b16 %v914
    %v3527 = vunpack.c.l.b16 %v915
    %v3528 = vunpack.c.h.b16 %v915
    %v3529 = vunpack.c.l.b16 %v916
    %v3530 = vunpack.c.h.b16 %v916
    %v3531 = vunpack.c.l.b16 %v917
    %v3532 = vunpack.c.h.b16 %v917
    %v3533 = vunpack.c.l.b16 %v918
    %v3534 = vunpack.c.h.b16 %v918
    %v3535 = vunpack.c.l.b16 %v919
    %v3536 = vunpack.c.h.b16 %v919
    %v3537 = vunpack.c.l.b16 %v920
    %v3538 = vunpack.c.h.b16 %v920
    %v3539 = vunpack.c.l.b16 %v921
    %v3540 = vunpack.c.h.b16 %v921
    %v3541 = vunpack.c.l.b16 %v922
    %v3542 = vunpack.c.h.b16 %v922
    %v3543 = vunpack.c.l.b16 %v923
    %v3544 = vunpack.c.h.b16 %v923
    %v3545 = vunpack.c.l.b16 %v924
    %v3546 = vunpack.c.h.b16 %v924
    %v3547 = vunpack.c.l.b16 %v925
    %v3548 = vunpack.c.h.b16 %v925
    %v3549 = vunpack.c.l.b16 %v926
    %v3550 = vunpack.c.h.b16 %v926
    %v3551 = vunpack.c.l.b16 %v927
    %v3552 = vunpack.c.h.b16 %v927
    %v3553 = vunpack.c.l.b16 %v928
    %v3554 = vunpack.c.h.b16 %v928
    %v3555 = vunpack.c.l.b16 %v929
    %v3556 = vunpack.c.h.b16 %v929
    %v3557 = vunpack.c.l.b16 %v930
    %v3558 = vunpack.c.h.b16 %v930
    %v3559 = vunpack.c.l.b16 %v931
    %v3560 = vunpack.c.h.b16 %v931
    %v3561 = vunpack.c.l.b16 %v932
    %v3562 = vunpack.c.h.b16 %v932
    %v3563 = vunpack.c.l.b16 %v933
    %v3564 = vunpack.c.h.b16 %v933
    %v3565 = vunpack.c.l.b16 %v934
    %v3566 = vunpack.c.h.b16 %v934
    %v3567 = vunpack.c.l.b16 %v935
    %v3568 = vunpack.c.h.b16 %v935
    %v3569 = vunpack.c.l.b16 %v936
    %v3570 = vunpack.c.h.b16 %v936
    %v3571 = vunpack.c.l.b16 %v937
    %v3572 = vunpack.c.h.b16 %v937
    %v3573 = vunpack.c.l.b16 %v938
    %v3574 = vunpack.c.h.b16 %v938
    %v3575 = vunpack.c.l.b16 %v939
    %v3576 = vunpack.c.h.b16 %v939
    %v3577 = vunpack.c.l.b16 %v940
    %v3578 = vunpack.c.h.b16 %v940
    %v3579 = vunpack.c.l.b16 %v941
    %v3580 = vunpack.c.h.b16 %v941
    %v3581 = vunpack.c.l.b16 %v942
    %v3582 = vunpack.c.h.b16 %v942
    %v3583 = vunpack.c.l.b16 %v943
    %v3584 = vunpack.c.h.b16 %v943
    %v3585 = vunpack.c.l.b16 %v944
    %v3586 = vunpack.c.h.b16 %v944
    %v3587 = vunpack.c.l.b16 %v945
    %v3588 = vunpack.c.h.b16 %v945
    %v3589 = vunpack.c.l.b16 %v946
    %v3590 = vunpack.c.h.b16 %v946
    %v3591 = vunpack.c.l.b16 %v947
    %v3592 = vunpack.c.h.b16 %v947
    %v3593 = vunpack.c.l.b16 %v948
    %v3594 = vunpack.c.h.b16 %v948
    %v3595 = vunpack.c.l.b16 %v949
    %v3596 = vunpack.c.h.b16 %v949
    %v3597 = vunpack.c.l.b16 %v950
    %v3598 = vunpack.c.h.b16 %v950
    %v3599 = vunpack.c.l.b16 %v951
    %v3600 = vunpack.c.h.b16 %v951
    %v3601 = vunpack.c.l.b16 %v952
    %v3602 = vunpack.c.h.b16 %v952
    %v3603 = vunpack.c.l.b16 %v953
    %v3604 = vunpack.c.h.b16 %v953
    %v3605 = vunpack.c.l.b16 %v954
    %v3606 = vunpack.c.h.b16 %v954
    %v3607 = vunpack.c.l.b16 %v955
    %v3608 = vunpack.c.h.b16 %v955
    %v3609 = vunpack.c.l.b16 %v956
    %v3610 = vunpack.c.h.b16 %v956
    %v3611 = vunpack.c.l.b16 %v957
    %v3612 = vunpack.c.h.b16 %v957
    %v3613 = vunpack.c.l.b16 %v958
    %v3614 = vunpack.c.h.b16 %v958
    %v3615 = vunpack.c.l.b16 %v959
    %v3616 = vunpack.c.h.b16 %v959
    %v3617 = vunpack.c.l.b16 %v960
    %v3618 = vunpack.c.h.b16 %v960
    %v3619 = vunpack.c.l.b16 %v961
    %v3620 = vunpack.c.h.b16 %v961
    %v3621 = vunpack.c.l.b16 %v962
    %v3622 = vunpack.c.h.b16 %v962
    %v3623 = vunpack.c.l.b16 %v963
    %v3624 = vunpack.c.h.b16 %v963
    %v3625 = vunpack.c.l.b16 %v964
    %v3626 = vunpack.c.h.b16 %v964
    %v3627 = vunpack.c.l.b16 %v965
    %v3628 = vunpack.c.h.b16 %v965
    %v3629 = vunpack.c.l.b16 %v966
    %v3630 = vunpack.c.h.b16 %v966
    %v3631 = vunpack.c.l.b16 %v967
    %v3632 = vunpack.c.h.b16 %v967
    %v3633 = vunpack.c.l.b16 %v968
    %v3634 = vunpack.c.h.b16 %v968
    %v3635 = vunpack.c.l.b16 %v969
    %v3636 = vunpack.c.h.b16 %v969
    %v3637 = vunpack.c.l.b16 %v970
    %v3638 = vunpack.c.h.b16 %v970
    %v3639 = vunpack.c.l.b16 %v971
    %v3640 = vunpack.c.h.b16 %v971
    %v3641 = vunpack.c.l.b16 %v972
    %v3642 = vunpack.c.h.b16 %v972
    %v3643 = vunpack.c.l.b16 %v973
    %v3644 = vunpack.c.h.b16 %v973
    %v3645 = vunpack.c.l.b16 %v974
    %v3646 = vunpack.c.h.b16 %v974
    %v3647 = vunpack.c.l.b16 %v975
    %v3648 = vunpack.c.h.b16 %v975
    %v3649 = vunpack.c.l.b16 %v976
    %v3650 = vunpack.c.h.b16 %v976
    %v3651 = vunpack.c.l.b16 %v977
    %v3652 = vunpack.c.h.b16 %v977
    %v3653 = vunpack.c.l.b16 %v978
    %v3654 = vunpack.c.h.b16 %v978
    %v3655 = vunpack.c.l.b16 %v979
    %v3656 = vunpack.c.h.b16 %v979
    %v3657 = vunpack.c.l.b16 %v980
    %v3658 = vunpack.c.h.b16 %v980
    %v3659 = vunpack.c.l.b16 %v981
    %v3660 = vunpack.c.h.b16 %v981
    %v3661 = vunpack.c.l.b16 %v982
    %v3662 = vunpack.c.h.b16 %v982
    %v3663 = vunpack.c.l.b16 %v983
    %v3664 = vunpack.c.h.b16 %v983
    %v3665 = vunpack.c.l.b16 %v984
    %v3666 = vunpack.c.h.b16 %v984
    %v3667 = vunpack.c.l.b16 %v985
    %v3668 = vunpack.c.h.b16 %v985
    %v3669 = vunpack.c.l.b16 %v986
    %v3670 = vunpack.c.h.b16 %v986
    %v3671 = vunpack.c.l.b16 %v987
    %v3672 = vunpack.c.h.b16 %v987
    %v3673 = vunpack.c.l.b16 %v988
    %v3674 = vunpack.c.h.b16 %v988
    %v3675 = vunpack.c.l.b16 %v989
    %v3676 = vunpack.c.h.b16 %v989
    %v3677 = vunpack.c.l.b16 %v990
    %v3678 = vunpack.c.h.b16 %v990
    %v3679 = vpack.c.b16 %v1969, %v1951
    %v3680 = vpack.c.b16 %v1970, %v1952
    %v3681 = vpack.c.b16 %v1971, %v1953
    %v3682 = vpack.c.b16 %v1972, %v1954
    %v3683 = vpack.c.b16 %v1973, %v1955
    %v3684 = vpack.c.b16 %v1974, %v1956
    %v3685 = vpack.c.b16 %v1975, %v1957
    %v3686 = vpack.c.b16 %v1976, %v1958
    %v3687 = vpack.c.b16 %v1977, %v1959
    %v3688 = vpack.c.b16 %v1978, %v1960
    %v3689 = vpack.c.b16 %v1979, %v1961
    %v3690 = vpack.c.b16 %v1980, %v1962
    %v3691 = vpack.c.b16 %v1981, %v1963
    %v3692 = vpack.c.b16 %v1982, %v1964
    %v3693 = vpack.c.b16 %v1983, %v1965
    %v3694 = vpack.c.b16 %v1984, %v1966
    %v3695 = vpack.c.b16 %v1985, %v1967
    %v3696 = vpack.c.b16 %v1986, %v1968
    %v3697 = vpack.c.b16 %v2005, %v1987
    %v3698 = vpack.c.b16 %v2006, %v1988
    %v3699 = vpack.c.b16 %v2007, %v1989
    %v3700 = vpack.c.b16 %v2008, %v1990
    %v3701 = vpack.c.b16 %v2009, %v1991
    %v3702 = vpack.c.b16 %v2010, %v1992
    %v3703 = vpack.c.b16 %v2011, %v1993
    %v3704 = vpack.c.b16 %v2012, %v1994
    %v3705 = vpack.c.b16 %v2013, %v1995
    %v3706 = vpack.c.b16 %v2014, %v1996
    %v3707 = vpack.c.b16 %v2015, %v1997
    %v3708 = vpack.c.b16 %v2016, %v1998
    %v3709 = vpack.c.b16 %v2017, %v1999
    %v3710 = vpack.c.b16 %v2018, %v2000
    %v3711 = vpack.c.b16 %v2019, %v2001
    %v3712 = vpack.c.b16 %v2020, %v2002
    %v3713 = vpack.c.b16 %v2021, %v2003
    %v3714 = vpack.c.b16 %v2022, %v2004
    %v3715 = vpack.c.b16 %v2041, %v2023
    %v3716 = vpack.c.b16 %v2042, %v2024
    %v3717 = vpack.c.b16 %v2043, %v2025
    %v3718 = vpack.c.b16 %v2044, %v2026
    %v3719 = vpack.c.b16 %v2045, %v2027
    %v3720 = vpack.c.b16 %v2046, %v2028
    %v3721 = vpack.c.b16 %v2047, %v2029
    %v3722 = vpack.c.b16 %v2048, %v2030
    %v3723 = vpack.c.b16 %v2049, %v2031
    %v3724 = vpack.c.b16 %v2050, %v2032
    %v3725 = vpack.c.b16 %v2051, %v2033
    %v3726 = vpack.c.b16 %v2052, %v2034
    %v3727 = vpack.c.b16 %v2053, %v2035
    %v3728 = vpack.c.b16 %v2054, %v2036
    %v3729 = vpack.c.b16 %v2055, %v2037
    %v3730 = vpack.c.b16 %v2056, %v2038
    %v3731 = vpack.c.b16 %v2057, %v2039
    %v3732 = vpack.c.b16 %v2058, %v2040
    %v3733 = vpack.c.b16 %v2077, %v2059
    %v3734 = vpack.c.b16 %v2078, %v2060
    %v3735 = vpack.c.b16 %v2079, %v2061
    %v3736 = vpack.c.b16 %v2080, %v2062
    %v3737 = vpack.c.b16 %v2081, %v2063
    %v3738 = vpack.c.b16 %v2082, %v2064
    %v3739 = vpack.c.b16 %v2083, %v2065
    %v3740 = vpack.c.b16 %v2084, %v2066
    %v3741 = vpack.c.b16 %v2085, %v2067
    %v3742 = vpack.c.b16 %v2086, %v2068
    %v3743 = vpack.c.b16 %v2087, %v2069
    %v3744 = vpack.c.b16 %v2088, %v2070
    %v3745 = vpack.c.b16 %v2089, %v2071
    %v3746 = vpack.c.b16 %v2090, %v2072
    %v3747 = vpack.c.b16 %v2091, %v2073
    %v3748 = vpack.c.b16 %v2092, %v2074
    %v3749 = vpack.c.b16 %v2093, %v2075
    %v3750 = vpack.c.b16 %v2094, %v2076
    %v3751 = vpack.c.b16 %v2113, %v2095
    %v3752 = vpack.c.b16 %v2114, %v2096
    %v3753 = vpack.c.b16 %v2115, %v2097
    %v3754 = vpack.c.b16 %v2116, %v2098
    %v3755 = vpack.c.b16 %v2117, %v2099
    %v3756 = vpack.c.b16 %v2118, %v2100
    %v3757 = vpack.c.b16 %v2119, %v2101
    %v3758 = vpack.c.b16 %v2120, %v2102
    %v3759 = vpack.c.b16 %v2121, %v2103
    %v3760 = vpack.c.b16 %v2122, %v2104
    %v3761 = vpack.c.b16 %v2123, %v2105
    %v3762 = vpack.c.b16 %v2124, %v2106
    %v3763 = vpack.c.b16 %v2125, %v2107
    %v3764 = vpack.c.b16 %v2126, %v2108
    %v3765 = vpack.c.b16 %v2127, %v2109
    %v3766 = vpack.c.b16 %v2128, %v2110
    %v3767 = vpack.c.b16 %v2129, %v2111
    %v3768 = vpack.c.b16 %v2130, %v2112
    %v3769 = vpack.c.b16 %v2149, %v2131
    %v3770 = vpack.c.b16 %v2150, %v2132
    %v3771 = vpack.c.b16 %v2151, %v2133
    %v3772 = vpack.c.b16 %v2152, %v2134
    %v3773 = vpack.c.b16 %v2153, %v2135
    %v3774 = vpack.c.b16 %v2154, %v2136
    %v3775 = vpack.c.b16 %v2155, %v2137
    %v3776 = vpack.c.b16 %v2156, %v2138
    %v3777 = vpack.c.b16 %v2157, %v2139
    %v3778 = vpack.c.b16 %v2158, %v2140
    %v3779 = vpack.c.b16 %v2159, %v2141
    %v3780 = vpack.c.b16 %v2160, %v2142
    %v3781 = vpack.c.b16 %v2161, %v2143
    %v3782 = vpack.c.b16 %v2162, %v2144
    %v3783 = vpack.c.b16 %v2163, %v2145
    %v3784 = vpack.c.b16 %v2164, %v2146
    %v3785 = vpack.c.b16 %v2165, %v2147
    %v3786 = vpack.c.b16 %v2166, %v2148
    %v3787 = vpack.c.b16 %v2185, %v2167
    %v3788 = vpack.c.b16 %v2186, %v2168
    %v3789 = vpack.c.b16 %v2187, %v2169
    %v3790 = vpack.c.b16 %v2188, %v2170
    %v3791 = vpack.c.b16 %v2189, %v2171
    %v3792 = vpack.c.b16 %v2190, %v2172
    %v3793 = vpack.c.b16 %v2191, %v2173
    %v3794 = vpack.c.b16 %v2192, %v2174
    %v3795 = vpack.c.b16 %v2193, %v2175
    %v3796 = vpack.c.b16 %v2194, %v2176
    %v3797 = vpack.c.b16 %v2195, %v2177
    %v3798 = vpack.c.b16 %v2196, %v2178
    %v3799 = vpack.c.b16 %v2197, %v2179
    %v3800 = vpack.c.b16 %v2198, %v2180
    %v3801 = vpack.c.b16 %v2199, %v2181
    %v3802 = vpack.c.b16 %v2200, %v2182
    %v3803 = vpack.c.b16 %v2201, %v2183
    %v3804 = vpack.c.b16 %v2202, %v2184
    %v3805 = vpack.c.b16 %v2221, %v2203
    %v3806 = vpack.c.b16 %v2222, %v2204
    %v3807 = vpack.c.b16 %v2223, %v2205
    %v3808 = vpack.c.b16 %v2224, %v2206
    %v3809 = vpack.c.b16 %v2225, %v2207
    %v3810 = vpack.c.b16 %v2226, %v2208
    %v3811 = vpack.c.b16 %v2227, %v2209
    %v3812 = vpack.c.b16 %v2228, %v2210
    %v3813 = vpack.c.b16 %v2229, %v2211
    %v3814 = vpack.c.b16 %v2230, %v2212
    %v3815 = vpack.c.b16 %v2231, %v2213
    %v3816 = vpack.c.b16 %v2232, %v2214
    %v3817 = vpack.c.b16 %v2233, %v2215
    %v3818 = vpack.c.b16 %v2234, %v2216
    %v3819 = vpack.c.b16 %v2235, %v2217
    %v3820 = vpack.c.b16 %v2236, %v2218
    %v3821 = vpack.c.b16 %v2237, %v2219
    %v3822 = vpack.c.b16 %v2238, %v2220
    %v3823 = vpack.c.b16 %v2257, %v2239
    %v3824 = vpack.c.b16 %v2258, %v2240
    %v3825 = vpack.c.b16 %v2259, %v2241
    %v3826 = vpack.c.b16 %v2260, %v2242
    %v3827 = vpack.c.b16 %v2261, %v2243
    %v3828 = vpack.c.b16 %v2262, %v2244
    %v3829 = vpack.c.b16 %v2263, %v2245
    %v3830 = vpack.c.b16 %v2264, %v2246
    %v3831 = vpack.c.b16 %v2265, %v2247
    %v3832 = vpack.c.b16 %v2266, %v2248
    %v3833 = vpack.c.b16 %v2267, %v2249
    %v3834 = vpack.c.b16 %v2268, %v2250
    %v3835 = vpack.c.b16 %v2269, %v2251
    %v3836 = vpack.c.b16 %v2270, %v2252
    %v3837 = vpack.c.b16 %v2271, %v2253
    %v3838 = vpack.c.b16 %v2272, %v2254
    %v3839 = vpack.c.b16 %v2273, %v2255
    %v3840 = vpack.c.b16 %v2274, %v2256
    %v3841 = vpack.c.b16 %v2293, %v2275
    %v3842 = vpack.c.b16 %v2294, %v2276
    %v3843 = vpack.c.b16 %v2295, %v2277
    %v3844 = vpack.c.b16 %v2296, %v2278
    %v3845 = vpack.c.b16 %v2297, %v2279
    %v3846 = vpack.c.b16 %v2298, %v2280
    %v3847 = vpack.c.b16 %v2299, %v2281
    %v3848 = vpack.c.b16 %v2300, %v2282
    %v3849 = vpack.c.b16 %v2301, %v2283
    %v3850 = vpack.c.b16 %v2302, %v2284
    %v3851 = vpack.c.b16 %v2303, %v2285
    %v3852 = vpack.c.b16 %v2304, %v2286
    %v3853 = vpack.c.b16 %v2305, %v2287
    %v3854 = vpack.c.b16 %v2306, %v2288
    %v3855 = vpack.c.b16 %v2307, %v2289
    %v3856 = vpack.c.b16 %v2308, %v2290
    %v3857 = vpack.c.b16 %v2309, %v2291
    %v3858 = vpack.c.b16 %v2310, %v2292
    %v3859 = vpack.c.b16 %v2329, %v2311
    %v3860 = vpack.c.b16 %v2330, %v2312
    %v3861 = vpack.c.b16 %v2331, %v2313
    %v3862 = vpack.c.b16 %v2332, %v2314
    %v3863 = vpack.c.b16 %v2333, %v2315
    %v3864 = vpack.c.b16 %v2334, %v2316
    %v3865 = vpack.c.b16 %v2335, %v2317
    %v3866 = vpack.c.b16 %v2336, %v2318
    %v3867 = vpack.c.b16 %v2337, %v2319
    %v3868 = vpack.c.b16 %v2338, %v2320
    %v3869 = vpack.c.b16 %v2339, %v2321
    %v3870 = vpack.c.b16 %v2340, %v2322
    %v3871 = vpack.c.b16 %v2341, %v2323
    %v3872 = vpack.c.b16 %v2342, %v2324
    %v3873 = vpack.c.b16 %v2343, %v2325
    %v3874 = vpack.c.b16 %v2344, %v2326
    %v3875 = vpack.c.b16 %v2345, %v2327
    %v3876 = vpack.c.b16 %v2346, %v2328
    %v3877 = vpack.c.b16 %v2365, %v2347
    %v3878 = vpack.c.b16 %v2366, %v2348
    %v3879 = vpack.c.b16 %v2367, %v2349
    %v3880 = vpack.c.b16 %v2368, %v2350
    %v3881 = vpack.c.b16 %v2369, %v2351
    %v3882 = vpack.c.b16 %v2370, %v2352
    %v3883 = vpack.c.b16 %v2371, %v2353
    %v3884 = vpack.c.b16 %v2372, %v2354
    %v3885 = vpack.c.b16 %v2373, %v2355
    %v3886 = vpack.c.b16 %v2374, %v2356
    %v3887 = vpack.c.b16 %v2375, %v2357
    %v3888 = vpack.c.b16 %v2376, %v2358
    %v3889 = vpack.c.b16 %v2377, %v2359
    %v3890 = vpack.c.b16 %v2378, %v2360
    %v3891 = vpack.c.b16 %v2379, %v2361
    %v3892 = vpack.c.b16 %v2380, %v2362
    %v3893 = vpack.c.b16 %v2381, %v2363
    %v3894 = vpack.c.b16 %v2382, %v2364
    %v3895 = vpack.c.b16 %v2401, %v2383
    %v3896 = vpack.c.b16 %v2402, %v2384
    %v3897 = vpack.c.b16 %v2403, %v2385
    %v3898 = vpack.c.b16 %v2404, %v2386
    %v3899 = vpack.c.b16 %v2405, %v2387
    %v3900 = vpack.c.b16 %v2406, %v2388
    %v3901 = vpack.c.b16 %v2407, %v2389
    %v3902 = vpack.c.b16 %v2408, %v2390
    %v3903 = vpack.c.b16 %v2409, %v2391
    %v3904 = vpack.c.b16 %v2410, %v2392
    %v3905 = vpack.c.b16 %v2411, %v2393
    %v3906 = vpack.c.b16 %v2412, %v2394
    %v3907 = vpack.c.b16 %v2413, %v2395
    %v3908 = vpack.c.b16 %v2414, %v2396
    %v3909 = vpack.c.b16 %v2415, %v2397
    %v3910 = vpack.c.b16 %v2416, %v2398
    %v3911 = vpack.c.b16 %v2417, %v2399
    %v3912 = vpack.c.b16 %v2418, %v2400
    %v3913 = vpack.c.b16 %v2437, %v2419
    %v3914 = vpack.c.b16 %v2438, %v2420
    %v3915 = vpack.c.b16 %v2439, %v2421
    %v3916 = vpack.c.b16 %v2440, %v2422
    %v3917 = vpack.c.b16 %v2441, %v2423
    %v3918 = vpack.c.b16 %v2442, %v2424
    %v3919 = vpack.c.b16 %v2443, %v2425
    %v3920 = vpack.c.b16 %v2444, %v2426
    %v3921 = vpack.c.b16 %v2445, %v2427
    %v3922 = vpack.c.b16 %v2446, %v2428
    %v3923 = vpack.c.b16 %v2447, %v2429
    %v3924 = vpack.c.b16 %v2448, %v2430
    %v3925 = vpack.c.b16 %v2449, %v2431
    %v3926 = vpack.c.b16 %v2450, %v2432
    %v3927 = vpack.c.b16 %v2451, %v2433
    %v3928 = vpack.c.b16 %v2452, %v2434
    %v3929 = vpack.c.b16 %v2453, %v2435
    %v3930 = vpack.c.b16 %v2454, %v2436
    %v3931 = vpack.c.b16 %v2473, %v2455
    %v3932 = vpack.c.b16 %v2474, %v2456
    %v3933 = vpack.c.b16 %v2475, %v2457
    %v3934 = vpack.c.b16 %v2476, %v2458
    %v3935 = vpack.c.b16 %v2477, %v2459
    %v3936 = vpack.c.b16 %v2478, %v2460
    %v3937 = vpack.c.b16 %v2479, %v2461
    %v3938 = vpack.c.b16 %v2480, %v2462
    %v3939 = vpack.c.b16 %v2481, %v2463
    %v3940 = vpack.c.b16 %v2482, %v2464
    %v3941 = vpack.c.b16 %v2483, %v2465
    %v3942 = vpack.c.b16 %v2484, %v2466
    %v3943 = vpack.c.b16 %v2485, %v2467
    %v3944 = vpack.c.b16 %v2486, %v2468
    %v3945 = vpack.c.b16 %v2487, %v2469
    %v3946 = vpack.c.b16 %v2488, %v2470
    %v3947 = vpack.c.b16 %v2489, %v2471
    %v3948 = vpack.c.b16 %v2490, %v2472
    %v3949 = vpack.c.b16 %v2509, %v2491
    %v3950 = vpack.c.b16 %v2510, %v2492
    %v3951 = vpack.c.b16 %v2511, %v2493
    %v3952 = vpack.c.b16 %v2512, %v2494
    %v3953 = vpack.c.b16 %v2513, %v2495
    %v3954 = vpack.c.b16 %v2514, %v2496
    %v3955 = vpack.c.b16 %v2515, %v2497
    %v3956 = vpack.c.b16 %v2516, %v2498
    %v3957 = vpack.c.b16 %v2517, %v2499
    %v3958 = vpack.c.b16 %v2518, %v2500
    %v3959 = vpack.c.b16 %v2519, %v2501
    %v3960 = vpack.c.b16 %v2520, %v2502
    %v3961 = vpack.c.b16 %v2521, %v2503
    %v3962 = vpack.c.b16 %v2522, %v2504
    %v3963 = vpack.c.b16 %v2523, %v2505
    %v3964 = vpack.c.b16 %v2524, %v2506
    %v3965 = vpack.c.b16 %v2525, %v2507
    %v3966 = vpack.c.b16 %v2526, %v2508
    %v3967 = vpack.c.b16 %v2545, %v2527
    %v3968 = vpack.c.b16 %v2546, %v2528
    %v3969 = vpack.c.b16 %v2547, %v2529
    %v3970 = vpack.c.b16 %v2548, %v2530
    %v3971 = vpack.c.b16 %v2549, %v2531
    %v3972 = vpack.c.b16 %v2550, %v2532
    %v3973 = vpack.c.b16 %v2551, %v2533
    %v3974 = vpack.c.b16 %v2552, %v2534
    %v3975 = vpack.c.b16 %v2553, %v2535
    %v3976 = vpack.c.b16 %v2554, %v2536
    %v3977 = vpack.c.b16 %v2555, %v2537
    %v3978 = vpack.c.b16 %v2556, %v2538
    %v3979 = vpack.c.b16 %v2557, %v2539
    %v3980 = vpack.c.b16 %v2558, %v2540
    %v3981 = vpack.c.b16 %v2559, %v2541
    %v3982 = vpack.c.b16 %v2560, %v2542
    %v3983 = vpack.c.b16 %v2561, %v2543
    %v3984 = vpack.c.b16 %v2562, %v2544
    %v3985 = vpack.c.b16 %v2581, %v2563
    %v3986 = vpack.c.b16 %v2582, %v2564
    %v3987 = vpack.c.b16 %v2583, %v2565
    %v3988 = vpack.c.b16 %v2584, %v2566
    %v3989 = vpack.c.b16 %v2585, %v2567
    %v3990 = vpack.c.b16 %v2586, %v2568
    %v3991 = vpack.c.b16 %v2587, %v2569
    %v3992 = vpack.c.b16 %v2588, %v2570
    %v3993 = vpack.c.b16 %v2589, %v2571
    %v3994 = vpack.c.b16 %v2590, %v2572
    %v3995 = vpack.c.b16 %v2591, %v2573
    %v3996 = vpack.c.b16 %v2592, %v2574
    %v3997 = vpack.c.b16 %v2593, %v2575
    %v3998 = vpack.c.b16 %v2594, %v2576
    %v3999 = vpack.c.b16 %v2595, %v2577
    %v4000 = vpack.c.b16 %v2596, %v2578
    %v4001 = vpack.c.b16 %v2597, %v2579
    %v4002 = vpack.c.b16 %v2598, %v2580
    %v4003 = vpack.c.b16 %v2617, %v2599
    %v4004 = vpack.c.b16 %v2618, %v2600
    %v4005 = vpack.c.b16 %v2619, %v2601
    %v4006 = vpack.c.b16 %v2620, %v2602
    %v4007 = vpack.c.b16 %v2621, %v2603
    %v4008 = vpack.c.b16 %v2622, %v2604
    %v4009 = vpack.c.b16 %v2623, %v2605
    %v4010 = vpack.c.b16 %v2624, %v2606
    %v4011 = vpack.c.b16 %v2625, %v2607
    %v4012 = vpack.c.b16 %v2626, %v2608
    %v4013 = vpack.c.b16 %v2627, %v2609
    %v4014 = vpack.c.b16 %v2628, %v2610
    %v4015 = vpack.c.b16 %v2629, %v2611
    %v4016 = vpack.c.b16 %v2630, %v2612
    %v4017 = vpack.c.b16 %v2631, %v2613
    %v4018 = vpack.c.b16 %v2632, %v2614
    %v4019 = vpack.c.b16 %v2633, %v2615
    %v4020 = vpack.c.b16 %v2634, %v2616
    %v4021 = vpack.c.b16 %v2653, %v2635
    %v4022 = vpack.c.b16 %v2654, %v2636
    %v4023 = vpack.c.b16 %v2655, %v2637
    %v4024 = vpack.c.b16 %v2656, %v2638
    %v4025 = vpack.c.b16 %v2657, %v2639
    %v4026 = vpack.c.b16 %v2658, %v2640
    %v4027 = vpack.c.b16 %v2659, %v2641
    %v4028 = vpack.c.b16 %v2660, %v2642
    %v4029 = vpack.c.b16 %v2661, %v2643
    %v4030 = vpack.c.b16 %v2662, %v2644
    %v4031 = vpack.c.b16 %v2663, %v2645
    %v4032 = vpack.c.b16 %v2664, %v2646
    %v4033 = vpack.c.b16 %v2665, %v2647
    %v4034 = vpack.c.b16 %v2666, %v2648
    %v4035 = vpack.c.b16 %v2667, %v2649
    %v4036 = vpack.c.b16 %v2668, %v2650
    %v4037 = vpack.c.b16 %v2669, %v2651
    %v4038 = vpack.c.b16 %v2670, %v2652
    %v4039 = vpack.c.b16 %v2689, %v2671
    %v4040 = vpack.c.b16 %v2690, %v2672
    %v4041 = vpack.c.b16 %v2691, %v2673
    %v4042 = vpack.c.b16 %v2692, %v2674
    %v4043 = vpack.c.b16 %v2693, %v2675
    %v4044 = vpack.c.b16 %v2694, %v2676
    %v4045 = vpack.c.b16 %v2695, %v2677
    %v4046 = vpack.c.b16 %v2696, %v2678
    %v4047 = vpack.c.b16 %v2697, %v2679
    %v4048 = vpack.c.b16 %v2698, %v2680
    %v4049 = vpack.c.b16 %v2699, %v2681
    %v4050 = vpack.c.b16 %v2700, %v2682
    %v4051 = vpack.c.b16 %v2701, %v2683
    %v4052 = vpack.c.b16 %v2702, %v2684
    %v4053 = vpack.c.b16 %v2703, %v2685
    %v4054 = vpack.c.b16 %v2704, %v2686
    %v4055 = vpack.c.b16 %v2705, %v2687
    %v4056 = vpack.c.b16 %v2706, %v2688
    %v4057 = vpack.c.b16 %v2725, %v2707
    %v4058 = vpack.c.b16 %v2726, %v2708
    %v4059 = vpack.c.b16 %v2727, %v2709
    %v4060 = vpack.c.b16 %v2728, %v2710
    %v4061 = vpack.c.b16 %v2729, %v2711
    %v4062 = vpack.c.b16 %v2730, %v2712
    %v4063 = vpack.c.b16 %v2731, %v2713
    %v4064 = vpack.c.b16 %v2732, %v2714
    %v4065 = vpack.c.b16 %v2733, %v2715
    %v4066 = vpack.c.b16 %v2734, %v2716
    %v4067 = vpack.c.b16 %v2735, %v2717
    %v4068 = vpack.c.b16 %v2736, %v2718
    %v4069 = vpack.c.b16 %v2737, %v2719
    %v4070 = vpack.c.b16 %v2738, %v2720
    %v4071 = vpack.c.b16 %v2739, %v2721
    %v4072 = vpack.c.b16 %v2740, %v2722
    %v4073 = vpack.c.b16 %v2741, %v2723
    %v4074 = vpack.c.b16 %v2742, %v2724
    %v4075 = vpack.c.b16 %v2761, %v2743
    %v4076 = vpack.c.b16 %v2762, %v2744
    %v4077 = vpack.c.b16 %v2763, %v2745
    %v4078 = vpack.c.b16 %v2764, %v2746
    %v4079 = vpack.c.b16 %v2765, %v2747
    %v4080 = vpack.c.b16 %v2766, %v2748
    %v4081 = vpack.c.b16 %v2767, %v2749
    %v4082 = vpack.c.b16 %v2768, %v2750
    %v4083 = vpack.c.b16 %v2769, %v2751
    %v4084 = vpack.c.b16 %v2770, %v2752
    %v4085 = vpack.c.b16 %v2771, %v2753
    %v4086 = vpack.c.b16 %v2772, %v2754
    %v4087 = vpack.c.b16 %v2773, %v2755
    %v4088 = vpack.c.b16 %v2774, %v2756
    %v4089 = vpack.c.b16 %v2775, %v2757
    %v4090 = vpack.c.b16 %v2776, %v2758
    %v4091 = vpack.c.b16 %v2777, %v2759
    %v4092 = vpack.c.b16 %v2778, %v2760
    %v4093 = vpack.c.b16 %v2797, %v2779
    %v4094 = vpack.c.b16 %v2798, %v2780
    %v4095 = vpack.c.b16 %v2799, %v2781
    %v4096 = vpack.c.b16 %v2800, %v2782
    %v4097 = vpack.c.b16 %v2801, %v2783
    %v4098 = vpack.c.b16 %v2802, %v2784
    %v4099 = vpack.c.b16 %v2803, %v2785
    %v4100 = vpack.c.b16 %v2804, %v2786
    %v4101 = vpack.c.b16 %v2805, %v2787
    %v4102 = vpack.c.b16 %v2806, %v2788
    %v4103 = vpack.c.b16 %v2807, %v2789
    %v4104 = vpack.c.b16 %v2808, %v2790
    %v4105 = vpack.c.b16 %v2809, %v2791
    %v4106 = vpack.c.b16 %v2810, %v2792
    %v4107 = vpack.c.b16 %v2811, %v2793
    %v4108 = vpack.c.b16 %v2812, %v2794
    %v4109 = vpack.c.b16 %v2813, %v2795
    %v4110 = vpack.c.b16 %v2814, %v2796
    %v4111 = vpack.c.b16 %v2833, %v2815
    %v4112 = vpack.c.b16 %v2834, %v2816
    %v4113 = vpack.c.b16 %v2835, %v2817
    %v4114 = vpack.c.b16 %v2836, %v2818
    %v4115 = vpack.c.b16 %v2837, %v2819
    %v4116 = vpack.c.b16 %v2838, %v2820
    %v4117 = vpack.c.b16 %v2839, %v2821
    %v4118 = vpack.c.b16 %v2840, %v2822
    %v4119 = vpack.c.b16 %v2841, %v2823
    %v4120 = vpack.c.b16 %v2842, %v2824
    %v4121 = vpack.c.b16 %v2843, %v2825
    %v4122 = vpack.c.b16 %v2844, %v2826
    %v4123 = vpack.c.b16 %v2845, %v2827
    %v4124 = vpack.c.b16 %v2846, %v2828
    %v4125 = vpack.c.b16 %v2847, %v2829
    %v4126 = vpack.c.b16 %v2848, %v2830
    %v4127 = vpack.c.b16 %v2849, %v2831
    %v4128 = vpack.c.b16 %v2850, %v2832
    %v4129 = vpack.c.b16 %v2869, %v2851
    %v4130 = vpack.c.b16 %v2870, %v2852
    %v4131 = vpack.c.b16 %v2871, %v2853
    %v4132 = vpack.c.b16 %v2872, %v2854
    %v4133 = vpack.c.b16 %v2873, %v2855
    %v4134 = vpack.c.b16 %v2874, %v2856
    %v4135 = vpack.c.b16 %v2875, %v2857
    %v4136 = vpack.c.b16 %v2876, %v2858
    %v4137 = vpack.c.b16 %v2877, %v2859
    %v4138 = vpack.c.b16 %v2878, %v2860
    %v4139 = vpack.c.b16 %v2879, %v2861
    %v4140 = vpack.c.b16 %v2880, %v2862
    %v4141 = vpack.c.b16 %v2881, %v2863
    %v4142 = vpack.c.b16 %v2882, %v2864
    %v4143 = vpack.c.b16 %v2883, %v2865
    %v4144 = vpack.c.b16 %v2884, %v2866
    %v4145 = vpack.c.b16 %v2885, %v2867
    %v4146 = vpack.c.b16 %v2886, %v2868
    %v4147 = vpack.c.b16 %v2905, %v2887
    %v4148 = vpack.c.b16 %v2906, %v2888
    %v4149 = vpack.c.b16 %v2907, %v2889
    %v4150 = vpack.c.b16 %v2908, %v2890
    %v4151 = vpack.c.b16 %v2909, %v2891
    %v4152 = vpack.c.b16 %v2910, %v2892
    %v4153 = vpack.c.b16 %v2911, %v2893
    %v4154 = vpack.c.b16 %v2912, %v2894
    %v4155 = vpack.c.b16 %v2913, %v2895
    %v4156 = vpack.c.b16 %v2914, %v2896
    %v4157 = vpack.c.b16 %v2915, %v2897
    %v4158 = vpack.c.b16 %v2916, %v2898
    %v4159 = vpack.c.b16 %v2917, %v2899
    %v4160 = vpack.c.b16 %v2918, %v2900
    %v4161 = vpack.c.b16 %v2919, %v2901
    %v4162 = vpack.c.b16 %v2920, %v2902
    %v4163 = vpack.c.b16 %v2921, %v2903
    %v4164 = vpack.c.b16 %v2922, %v2904
    %v4165 = vpack.c.b16 %v2941, %v2923
    %v4166 = vpack.c.b16 %v2942, %v2924
    %v4167 = vpack.c.b16 %v2943, %v2925
    %v4168 = vpack.c.b16 %v2944, %v2926
    %v4169 = vpack.c.b16 %v2945, %v2927
    %v4170 = vpack.c.b16 %v2946, %v2928
    %v4171 = vpack.c.b16 %v2947, %v2929
    %v4172 = vpack.c.b16 %v2948, %v2930
    %v4173 = vpack.c.b16 %v2949, %v2931
    %v4174 = vpack.c.b16 %v2950, %v2932
    %v4175 = vpack.c.b16 %v2951, %v2933
    %v4176 = vpack.c.b16 %v2952, %v2934
    %v4177 = vpack.c.b16 %v2953, %v2935
    %v4178 = vpack.c.b16 %v2954, %v2936
    %v4179 = vpack.c.b16 %v2955, %v2937
    %v4180 = vpack.c.b16 %v2956, %v2938
    %v4181 = vpack.c.b16 %v2957, %v2939
    %v4182 = vpack.c.b16 %v2958, %v2940
    %v4183 = vpack.c.b16 %v2977, %v2959
    %v4184 = vpack.c.b16 %v2978, %v2960
    %v4185 = vpack.c.b16 %v2979, %v2961
    %v4186 = vpack.c.b16 %v2980, %v2962
    %v4187 = vpack.c.b16 %v2981, %v2963
    %v4188 = vpack.c.b16 %v2982, %v2964
    %v4189 = vpack.c.b16 %v2983, %v2965
    %v4190 = vpack.c.b16 %v2984, %v2966
    %v4191 = vpack.c.b16 %v2985, %v2967
    %v4192 = vpack.c.b16 %v2986, %v2968
    %v4193 = vpack.c.b16 %v2987, %v2969
    %v4194 = vpack.c.b16 %v2988, %v2970
    %v4195 = vpack.c.b16 %v2989, %v2971
    %v4196 = vpack.c.b16 %v2990, %v2972
    %v4197 = vpack.c.b16 %v2991, %v2973
    %v4198 = vpack.c.b16 %v2992, %v2974
    %v4199 = vpack.c.b16 %v2993, %v2975
    %v4200 = vpack.c.b16 %v2994, %v2976
    %v4201 = vpack.c.b16 %v3013, %v2995
    %v4202 = vpack.c.b16 %v3014, %v2996
    %v4203 = vpack.c.b16 %v3015, %v2997
    %v4204 = vpack.c.b16 %v3016, %v2998
    %v4205 = vpack.c.b16 %v3017, %v2999
    %v4206 = vpack.c.b16 %v3018, %v3000
    %v4207 = vpack.c.b16 %v3019, %v3001
    %v4208 = vpack.c.b16 %v3020, %v3002
    %v4209 = vpack.c.b16 %v3021, %v3003
    %v4210 = vpack.c.b16 %v3022, %v3004
    %v4211 = vpack.c.b16 %v3023, %v3005
    %v4212 = vpack.c.b16 %v3024, %v3006
    %v4213 = vpack.c.b16 %v3025, %v3007
    %v4214 = vpack.c.b16 %v3026, %v3008
    %v4215 = vpack.c.b16 %v3027, %v3009
    %v4216 = vpack.c.b16 %v3028, %v3010
    %v4217 = vpack.c.b16 %v3029, %v3011
    %v4218 = vpack.c.b16 %v3030, %v3012
    %v4219 = vpack.c.b16 %v3049, %v3031
    %v4220 = vpack.c.b16 %v3050, %v3032
    %v4221 = vpack.c.b16 %v3051, %v3033
    %v4222 = vpack.c.b16 %v3052, %v3034
    %v4223 = vpack.c.b16 %v3053, %v3035
    %v4224 = vpack.c.b16 %v3054, %v3036
    %v4225 = vpack.c.b16 %v3055, %v3037
    %v4226 = vpack.c.b16 %v3056, %v3038
    %v4227 = vpack.c.b16 %v3057, %v3039
    %v4228 = vpack.c.b16 %v3058, %v3040
    %v4229 = vpack.c.b16 %v3059, %v3041
    %v4230 = vpack.c.b16 %v3060, %v3042
    %v4231 = vpack.c.b16 %v3061, %v3043
    %v4232 = vpack.c.b16 %v3062, %v3044
    %v4233 = vpack.c.b16 %v3063, %v3045
    %v4234 = vpack.c.b16 %v3064, %v3046
    %v4235 = vpack.c.b16 %v3065, %v3047
    %v4236 = vpack.c.b16 %v3066, %v3048
    %v4237 = vpack.c.b16 %v3085, %v3067
    %v4238 = vpack.c.b16 %v3086, %v3068
    %v4239 = vpack.c.b16 %v3087, %v3069
    %v4240 = vpack.c.b16 %v3088, %v3070
    %v4241 = vpack.c.b16 %v3089, %v3071
    %v4242 = vpack.c.b16 %v3090, %v3072
    %v4243 = vpack.c.b16 %v3091, %v3073
    %v4244 = vpack.c.b16 %v3092, %v3074
    %v4245 = vpack.c.b16 %v3093, %v3075
    %v4246 = vpack.c.b16 %v3094, %v3076
    %v4247 = vpack.c.b16 %v3095, %v3077
    %v4248 = vpack.c.b16 %v3096, %v3078
    %v4249 = vpack.c.b16 %v3097, %v3079
    %v4250 = vpack.c.b16 %v3098, %v3080
    %v4251 = vpack.c.b16 %v3099, %v3081
    %v4252 = vpack.c.b16 %v3100, %v3082
    %v4253 = vpack.c.b16 %v3101, %v3083
    %v4254 = vpack.c.b16 %v3102, %v3084
    %v4255 = vpack.c.b16 %v3121, %v3103
    %v4256 = vpack.c.b16 %v3122, %v3104
    %v4257 = vpack.c.b16 %v3123, %v3105
    %v4258 = vpack.c.b16 %v3124, %v3106
    %v4259 = vpack.c.b16 %v3125, %v3107
    %v4260 = vpack.c.b16 %v3126, %v3108
    %v4261 = vpack.c.b16 %v3127, %v3109
    %v4262 = vpack.c.b16 %v3128, %v3110
    %v4263 = vpack.c.b16 %v3129, %v3111
    %v4264 = vpack.c.b16 %v3130, %v3112
    %v4265 = vpack.c.b16 %v3131, %v3113
    %v4266 = vpack.c.b16 %v3132, %v3114
    %v4267 = vpack.c.b16 %v3133, %v3115
    %v4268 = vpack.c.b16 %v3134, %v3116
    %v4269 = vpack.c.b16 %v3135, %v3117
    %v4270 = vpack.c.b16 %v3136, %v3118
    %v4271 = vpack.c.b16 %v3137, %v3119
    %v4272 = vpack.c.b16 %v3138, %v3120
    %v4273 = vpack.c.b16 %v3157, %v3139
    %v4274 = vpack.c.b16 %v3158, %v3140
    %v4275 = vpack.c.b16 %v3159, %v3141
    %v4276 = vpack.c.b16 %v3160, %v3142
    %v4277 = vpack.c.b16 %v3161, %v3143
    %v4278 = vpack.c.b16 %v3162, %v3144
    %v4279 = vpack.c.b16 %v3163, %v3145
    %v4280 = vpack.c.b16 %v3164, %v3146
    %v4281 = vpack.c.b16 %v3165, %v3147
    %v4282 = vpack.c.b16 %v3166, %v3148
    %v4283 = vpack.c.b16 %v3167, %v3149
    %v4284 = vpack.c.b16 %v3168, %v3150
    %v4285 = vpack.c.b16 %v3169, %v3151
    %v4286 = vpack.c.b16 %v3170, %v3152
    %v4287 = vpack.c.b16 %v3171, %v3153
    %v4288 = vpack.c.b16 %v3172, %v3154
    %v4289 = vpack.c.b16 %v3173, %v3155
    %v4290 = vpack.c.b16 %v3174, %v3156
    %v4291 = vpack.c.b16 %v3193, %v3175
    %v4292 = vpack.c.b16 %v3194, %v3176
    %v4293 = vpack.c.b16 %v3195, %v3177
    %v4294 = vpack.c.b16 %v3196, %v3178
    %v4295 = vpack.c.b16 %v3197, %v3179
    %v4296 = vpack.c.b16 %v3198, %v3180
    %v4297 = vpack.c.b16 %v3199, %v3181
    %v4298 = vpack.c.b16 %v3200, %v3182
    %v4299 = vpack.c.b16 %v3201, %v3183
    %v4300 = vpack.c.b16 %v3202, %v3184
    %v4301 = vpack.c.b16 %v3203, %v3185
    %v4302 = vpack.c.b16 %v3204, %v3186
    %v4303 = vpack.c.b16 %v3205, %v3187
    %v4304 = vpack.c.b16 %v3206, %v3188
    %v4305 = vpack.c.b16 %v3207, %v3189
    %v4306 = vpack.c.b16 %v3208, %v3190
    %v4307 = vpack.c.b16 %v3209, %v3191
    %v4308 = vpack.c.b16 %v3210, %v3192
    %v4309 = vpack.c.b16 %v3229, %v3211
    %v4310 = vpack.c.b16 %v3230, %v3212
    %v4311 = vpack.c.b16 %v3231, %v3213
    %v4312 = vpack.c.b16 %v3232, %v3214
    %v4313 = vpack.c.b16 %v3233, %v3215
    %v4314 = vpack.c.b16 %v3234, %v3216
    %v4315 = vpack.c.b16 %v3235, %v3217
    %v4316 = vpack.c.b16 %v3236, %v3218
    %v4317 = vpack.c.b16 %v3237, %v3219
    %v4318 = vpack.c.b16 %v3238, %v3220
    %v4319 = vpack.c.b16 %v3239, %v3221
    %v4320 = vpack.c.b16 %v3240, %v3222
    %v4321 = vpack.c.b16 %v3241, %v3223
    %v4322 = vpack.c.b16 %v3242, %v3224
    %v4323 = vpack.c.b16 %v3243, %v3225
    %v4324 = vpack.c.b16 %v3244, %v3226
    %v4325 = vpack.c.b16 %v3245, %v3227
    %v4326 = vpack.c.b16 %v3246, %v3228
    %v4327 = vpack.c.b16 %v3265, %v3247
    %v4328 = vpack.c.b16 %v3266, %v3248
    %v4329 = vpack.c.b16 %v3267, %v3249
    %v4330 = vpack.c.b16 %v3268, %v3250
    %v4331 = vpack.c.b16 %v3269, %v3251
    %v4332 = vpack.c.b16 %v3270, %v3252
    %v4333 = vpack.c.b16 %v3271, %v3253
    %v4334 = vpack.c.b16 %v3272, %v3254
    %v4335 = vpack.c.b16 %v3273, %v3255
    %v4336 = vpack.c.b16 %v3274, %v3256
    %v4337 = vpack.c.b16 %v3275, %v3257
    %v4338 = vpack.c.b16 %v3276, %v3258
    %v4339 = vpack.c.b16 %v3277, %v3259
    %v4340 = vpack.c.b16 %v3278, %v3260
    %v4341 = vpack.c.b16 %v3279, %v3261
    %v4342 = vpack.c.b16 %v3280, %v3262
    %v4343 = vpack.c.b16 %v3281, %v3263
    %v4344 = vpack.c.b16 %v3282, %v3264
    %v4345 = vpack.c.b16 %v3301, %v3283
    %v4346 = vpack.c.b16 %v3302, %v3284
    %v4347 = vpack.c.b16 %v3303, %v3285
    %v4348 = vpack.c.b16 %v3304, %v3286
    %v4349 = vpack.c.b16 %v3305, %v3287
    %v4350 = vpack.c.b16 %v3306, %v3288
    %v4351 = vpack.c.b16 %v3307, %v3289
    %v4352 = vpack.c.b16 %v3308, %v3290
    %v4353 = vpack.c.b16 %v3309, %v3291
    %v4354 = vpack.c.b16 %v3310, %v3292
    %v4355 = vpack.c.b16 %v3311, %v3293
    %v4356 = vpack.c.b16 %v3312, %v3294
    %v4357 = vpack.c.b16 %v3313, %v3295
    %v4358 = vpack.c.b16 %v3314, %v3296
    %v4359 = vpack.c.b16 %v3315, %v3297
    %v4360 = vpack.c.b16 %v3316, %v3298
    %v4361 = vpack.c.b16 %v3317, %v3299
    %v4362 = vpack.c.b16 %v3318, %v3300
    %v4363 = vpack.c.b16 %v3337, %v3319
    %v4364 = vpack.c.b16 %v3338, %v3320
    %v4365 = vpack.c.b16 %v3339, %v3321
    %v4366 = vpack.c.b16 %v3340, %v3322
    %v4367 = vpack.c.b16 %v3341, %v3323
    %v4368 = vpack.c.b16 %v3342, %v3324
    %v4369 = vpack.c.b16 %v3343, %v3325
    %v4370 = vpack.c.b16 %v3344, %v3326
    %v4371 = vpack.c.b16 %v3345, %v3327
    %v4372 = vpack.c.b16 %v3346, %v3328
    %v4373 = vpack.c.b16 %v3347, %v3329
    %v4374 = vpack.c.b16 %v3348, %v3330
    %v4375 = vpack.c.b16 %v3349, %v3331
    %v4376 = vpack.c.b16 %v3350, %v3332
    %v4377 = vpack.c.b16 %v3351, %v3333
    %v4378 = vpack.c.b16 %v3352, %v3334
    %v4379 = vpack.c.b16 %v3353, %v3335
    %v4380 = vpack.c.b16 %v3354, %v3336
    %v4381 = vpack.c.b16 %v3373, %v3355
    %v4382 = vpack.c.b16 %v3374, %v3356
    %v4383 = vpack.c.b16 %v3375, %v3357
    %v4384 = vpack.c.b16 %v3376, %v3358
    %v4385 = vpack.c.b16 %v3377, %v3359
    %v4386 = vpack.c.b16 %v3378, %v3360
    %v4387 = vpack.c.b16 %v3379, %v3361
    %v4388 = vpack.c.b16 %v3380, %v3362
    %v4389 = vpack.c.b16 %v3381, %v3363
    %v4390 = vpack.c.b16 %v3382, %v3364
    %v4391 = vpack.c.b16 %v3383, %v3365
    %v4392 = vpack.c.b16 %v3384, %v3366
    %v4393 = vpack.c.b16 %v3385, %v3367
    %v4394 = vpack.c.b16 %v3386, %v3368
    %v4395 = vpack.c.b16 %v3387, %v3369
    %v4396 = vpack.c.b16 %v3388, %v3370
    %v4397 = vpack.c.b16 %v3389, %v3371
    %v4398 = vpack.c.b16 %v3390, %v3372
    %v4399 = vpack.c.b16 %v3409, %v3391
    %v4400 = vpack.c.b16 %v3410, %v3392
    %v4401 = vpack.c.b16 %v3411, %v3393
    %v4402 = vpack.c.b16 %v3412, %v3394
    %v4403 = vpack.c.b16 %v3413, %v3395
    %v4404 = vpack.c.b16 %v3414, %v3396
    %v4405 = vpack.c.b16 %v3415, %v3397
    %v4406 = vpack.c.b16 %v3416, %v3398
    %v4407 = vpack.c.b16 %v3417, %v3399
    %v4408 = vpack.c.b16 %v3418, %v3400
    %v4409 = vpack.c.b16 %v3419, %v3401
    %v4410 = vpack.c.b16 %v3420, %v3402
    %v4411 = vpack.c.b16 %v3421, %v3403
    %v4412 = vpack.c.b16 %v3422, %v3404
    %v4413 = vpack.c.b16 %v3423, %v3405
    %v4414 = vpack.c.b16 %v3424, %v3406
    %v4415 = vpack.c.b16 %v3425, %v3407
    %v4416 = vpack.c.b16 %v3426, %v3408
    %v4417 = vpack.c.b16 %v3445, %v3427
    %v4418 = vpack.c.b16 %v3446, %v3428
    %v4419 = vpack.c.b16 %v3447, %v3429
    %v4420 = vpack.c.b16 %v3448, %v3430
    %v4421 = vpack.c.b16 %v3449, %v3431
    %v4422 = vpack.c.b16 %v3450, %v3432
    %v4423 = vpack.c.b16 %v3451, %v3433
    %v4424 = vpack.c.b16 %v3452, %v3434
    %v4425 = vpack.c.b16 %v3453, %v3435
    %v4426 = vpack.c.b16 %v3454, %v3436
    %v4427 = vpack.c.b16 %v3455, %v3437
    %v4428 = vpack.c.b16 %v3456, %v3438
    %v4429 = vpack.c.b16 %v3457, %v3439
    %v4430 = vpack.c.b16 %v3458, %v3440
    %v4431 = vpack.c.b16 %v3459, %v3441
    %v4432 = vpack.c.b16 %v3460, %v3442
    %v4433 = vpack.c.b16 %v3461, %v3443
    %v4434 = vpack.c.b16 %v3462, %v3444
    %v4435 = vpack.c.b16 %v3481, %v3463
    %v4436 = vpack.c.b16 %v3482, %v3464
    %v4437 = vpack.c.b16 %v3483, %v3465
    %v4438 = vpack.c.b16 %v3484, %v3466
    %v4439 = vpack.c.b16 %v3485, %v3467
    %v4440 = vpack.c.b16 %v3486, %v3468
    %v4441 = vpack.c.b16 %v3487, %v3469
    %v4442 = vpack.c.b16 %v3488, %v3470
    %v4443 = vpack.c.b16 %v3489, %v3471
    %v4444 = vpack.c.b16 %v3490, %v3472
    %v4445 = vpack.c.b16 %v3491, %v3473
    %v4446 = vpack.c.b16 %v3492, %v3474
    %v4447 = vpack.c.b16 %v3493, %v3475
    %v4448 = vpack.c.b16 %v3494, %v3476
    %v4449 = vpack.c.b16 %v3495, %v3477
    %v4450 = vpack.c.b16 %v3496, %v3478
    %v4451 = vpack.c.b16 %v3497, %v3479
    %v4452 = vpack.c.b16 %v3498, %v3480
    %v4453 = vpack.c.b16 %v3517, %v3499
    %v4454 = vpack.c.b16 %v3518, %v3500
    %v4455 = vpack.c.b16 %v3519, %v3501
    %v4456 = vpack.c.b16 %v3520, %v3502
    %v4457 = vpack.c.b16 %v3521, %v3503
    %v4458 = vpack.c.b16 %v3522, %v3504
    %v4459 = vpack.c.b16 %v3523, %v3505
    %v4460 = vpack.c.b16 %v3524, %v3506
    %v4461 = vpack.c.b16 %v3525, %v3507
    %v4462 = vpack.c.b16 %v3526, %v3508
    %v4463 = vpack.c.b16 %v3527, %v3509
    %v4464 = vpack.c.b16 %v3528, %v3510
    %v4465 = vpack.c.b16 %v3529, %v3511
    %v4466 = vpack.c.b16 %v3530, %v3512
    %v4467 = vpack.c.b16 %v3531, %v3513
    %v4468 = vpack.c.b16 %v3532, %v3514
    %v4469 = vpack.c.b16 %v3533, %v3515
    %v4470 = vpack.c.b16 %v3534, %v3516
    %v4471 = vpack.c.b16 %v3553, %v3535
    %v4472 = vpack.c.b16 %v3554, %v3536
    %v4473 = vpack.c.b16 %v3555, %v3537
    %v4474 = vpack.c.b16 %v3556, %v3538
    %v4475 = vpack.c.b16 %v3557, %v3539
    %v4476 = vpack.c.b16 %v3558, %v3540
    %v4477 = vpack.c.b16 %v3559, %v3541
    %v4478 = vpack.c.b16 %v3560, %v3542
    %v4479 = vpack.c.b16 %v3561, %v3543
    %v4480 = vpack.c.b16 %v3562, %v3544
    %v4481 = vpack.c.b16 %v3563, %v3545
    %v4482 = vpack.c.b16 %v3564, %v3546
    %v4483 = vpack.c.b16 %v3565, %v3547
    %v4484 = vpack.c.b16 %v3566, %v3548
    %v4485 = vpack.c.b16 %v3567, %v3549
    %v4486 = vpack.c.b16 %v3568, %v3550
    %v4487 = vpack.c.b16 %v3569, %v3551
    %v4488 = vpack.c.b16 %v3570, %v3552
    %v4489 = vpack.c.b16 %v3589, %v3571
    %v4490 = vpack.c.b16 %v3590, %v3572
    %v4491 = vpack.c.b16 %v3591, %v3573
    %v4492 = vpack.c.b16 %v3592, %v3574
    %v4493 = vpack.c.b16 %v3593, %v3575
    %v4494 = vpack.c.b16 %v3594, %v3576
    %v4495 = vpack.c.b16 %v3595, %v3577
    %v4496 = vpack.c.b16 %v3596, %v3578
    %v4497 = vpack.c.b16 %v3597, %v3579
    %v4498 = vpack.c.b16 %v3598, %v3580
    %v4499 = vpack.c.b16 %v3599, %v3581
    %v4500 = vpack.c.b16 %v3600, %v3582
    %v4501 = vpack.c.b16 %v3601, %v3583
    %v4502 = vpack.c.b16 %v3602, %v3584
    %v4503 = vpack.c.b16 %v3603, %v3585
    %v4504 = vpack.c.b16 %v3604, %v3586
    %v4505 = vpack.c.b16 %v3605, %v3587
    %v4506 = vpack.c.b16 %v3606, %v3588
    %v4507 = vpack.c.b16 %v3625, %v3607
    %v4508 = vpack.c.b16 %v3626, %v3608
    %v4509 = vpack.c.b16 %v3627, %v3609
    %v4510 = vpack.c.b16 %v3628, %v3610
    %v4511 = vpack.c.b16 %v3629, %v3611
    %v4512 = vpack.c.b16 %v3630, %v3612
    %v4513 = vpack.c.b16 %v3631, %v3613
    %v4514 = vpack.c.b16 %v3632, %v3614
    %v4515 = vpack.c.b16 %v3633, %v3615
    %v4516 = vpack.c.b16 %v3634, %v3616
    %v4517 = vpack.c.b16 %v3635, %v3617
    %v4518 = vpack.c.b16 %v3636, %v3618
    %v4519 = vpack.c.b16 %v3637, %v3619
    %v4520 = vpack.c.b16 %v3638, %v3620
    %v4521 = vpack.c.b16 %v3639, %v3621
    %v4522 = vpack.c.b16 %v3640, %v3622
    %v4523 = vpack.c.b16 %v3641, %v3623
    %v4524 = vpack.c.b16 %v3642, %v3624
    %v4525 = vpack.c.b16 %v3661, %v3643
    %v4526 = vpack.c.b16 %v3662, %v3644
    %v4527 = vpack.c.b16 %v3663, %v3645
    %v4528 = vpack.c.b16 %v3664, %v3646
    %v4529 = vpack.c.b16 %v3665, %v3647
    %v4530 = vpack.c.b16 %v3666, %v3648
    %v4531 = vpack.c.b16 %v3667, %v3649
    %v4532 = vpack.c.b16 %v3668, %v3650
    %v4533 = vpack.c.b16 %v3669, %v3651
    %v4534 = vpack.c.b16 %v3670, %v3652
    %v4535 = vpack.c.b16 %v3671, %v3653
    %v4536 = vpack.c.b16 %v3672, %v3654
    %v4537 = vpack.c.b16 %v3673, %v3655
    %v4538 = vpack.c.b16 %v3674, %v3656
    %v4539 = vpack.c.b16 %v3675, %v3657
    %v4540 = vpack.c.b16 %v3676, %v3658
    %v4541 = vpack.c.b16 %v3677, %v3659
    %v4542 = vpack.c.b16 %v3678, %v3660
    %5407 = vmatprep.subr.bf16.mxu0 %v3806
    %5408 = vmatpush1.bf16.msra.mxu0 %v3805
    %5409 = vmatprep.subr.bf16.mxu0 %v3788
    %5410 = vmatpush1.bf16.msra.mxu0 %v3787
    %5411 = vmatprep.subr.bf16.mxu0 %v3770
    %5412 = vmatpush1.bf16.msra.mxu0 %v3769
    %5413 = vmatprep.subr.bf16.mxu0 %v3752
    %5414 = vmatpush1.bf16.msra.mxu0 %v3751
    %5415 = vmatprep.subr.bf16.mxu0 %v3734
    %5416 = vmatpush1.bf16.msra.mxu0 %v3733
    %5417 = vmatprep.subr.bf16.mxu0 %v3716
    %5418 = vmatpush1.bf16.msra.mxu0 %v3715
    %5419 = vmatprep.subr.bf16.mxu0 %v3698
    %5420 = vmatpush1.bf16.msra.mxu0 %v3697
    %5421 = vmatprep.subr.bf16.mxu0 %v3680
    %5422 = vmatpush1.bf16.msra.mxu0 %v3679
    %5423 = vmatprep.subr.bf16.mxu0 %v3950
    %5424 = vmatpush2.bf16.msra.mxu0 %v3949
    %5425 = vmatprep.subr.bf16.mxu0 %v3932
    %5426 = vmatpush2.bf16.msra.mxu0 %v3931
    %5427 = vmatprep.subr.bf16.mxu0 %v3914
    %5428 = vmatpush2.bf16.msra.mxu0 %v3913
    %5429 = vmatprep.subr.bf16.mxu0 %v3896
    %5430 = vmatpush2.bf16.msra.mxu0 %v3895
    %5431 = vmatprep.subr.bf16.mxu0 %v3878
    %5432 = vmatpush2.bf16.msra.mxu0 %v3877
    %5433 = vmatprep.subr.bf16.mxu0 %v3860
    %5434 = vmatpush2.bf16.msra.mxu0 %v3859
    %5435 = vmatprep.subr.bf16.mxu0 %v3842
    %5436 = vmatpush2.bf16.msra.mxu0 %v3841
    %5437 = vmatprep.subr.bf16.mxu0 %v3824
    %5438 = vmatpush2.bf16.msra.mxu0 %v3823
    %5439 = vmatprep.mubr.bf16.mxu0 %v122
    %5440 = vmatmul.mubr.bf16.gmra.mxu0 %v121
    %v5441 = vpop.f32.mrf.mxu0
    %v5442 = vadd.f32 %v1000, %v5441
    %v5443 = vpop.f32.mrf.mxu0
    %v5444 = vadd.f32 %v1004, %v5443
    %v5445 = vpop.f32.mrf.mxu0
    %v5446 = vpop.f32.mrf.mxu0
    %5447 = vdwg.mxu0
    %5448 = vmatprep.subr.bf16.mxu0 %v4094
    %5449 = vmatpush1.bf16.msra.mxu0 %v4093
    %5450 = vmatprep.subr.bf16.mxu0 %v4076
    %5451 = vmatpush1.bf16.msra.mxu0 %v4075
    %5452 = vmatprep.subr.bf16.mxu0 %v4058
    %5453 = vmatpush1.bf16.msra.mxu0 %v4057
    %5454 = vmatprep.subr.bf16.mxu0 %v4040
    %5455 = vmatpush1.bf16.msra.mxu0 %v4039
    %5456 = vmatprep.subr.bf16.mxu0 %v4022
    %5457 = vmatpush1.bf16.msra.mxu0 %v4021
    %5458 = vmatprep.subr.bf16.mxu0 %v4004
    %5459 = vmatpush1.bf16.msra.mxu0 %v4003
    %5460 = vmatprep.subr.bf16.mxu0 %v3986
    %5461 = vmatpush1.bf16.msra.mxu0 %v3985
    %5462 = vmatprep.subr.bf16.mxu0 %v3968
    %5463 = vmatpush1.bf16.msra.mxu0 %v3967
    %5464 = vmatprep.subr.bf16.mxu0 %v4238
    %5465 = vmatpush2.bf16.msra.mxu0 %v4237
    %5466 = vmatprep.subr.bf16.mxu0 %v4220
    %5467 = vmatpush2.bf16.msra.mxu0 %v4219
    %5468 = vmatprep.subr.bf16.mxu0 %v4202
    %5469 = vmatpush2.bf16.msra.mxu0 %v4201
    %5470 = vmatprep.subr.bf16.mxu0 %v4184
    %5471 = vmatpush2.bf16.msra.mxu0 %v4183
    %5472 = vmatprep.subr.bf16.mxu0 %v4166
    %5473 = vmatpush2.bf16.msra.mxu0 %v4165
    %5474 = vmatprep.subr.bf16.mxu0 %v4148
    %5475 = vmatpush2.bf16.msra.mxu0 %v4147
    %5476 = vmatprep.subr.bf16.mxu0 %v4130
    %5477 = vmatpush2.bf16.msra.mxu0 %v4129
    %5478 = vmatprep.subr.bf16.mxu0 %v4112
    %5479 = vmatpush2.bf16.msra.mxu0 %v4111
    %5480 = vmatprep.mubr.bf16.mxu0 %v124
    %5481 = vmatmul.mubr.bf16.gmra.mxu0 %v123
    %v5482 = vpop.f32.mrf.mxu0
    %v5483 = vadd.f32 %v5442, %v5482
    %v5484 = vpop.f32.mrf.mxu0
    %v5485 = vadd.f32 %v5444, %v5484
    %v5486 = vpop.f32.mrf.mxu0
    %v5487 = vpop.f32.mrf.mxu0
    %5488 = vdwg.mxu0
    %5489 = vmatprep.subr.bf16.mxu0 %v4382
    %5490 = vmatpush1.bf16.msra.mxu0 %v4381
    %5491 = vmatprep.subr.bf16.mxu0 %v4364
    %5492 = vmatpush1.bf16.msra.mxu0 %v4363
    %5493 = vmatprep.subr.bf16.mxu0 %v4346
    %5494 = vmatpush1.bf16.msra.mxu0 %v4345
    %5495 = vmatprep.subr.bf16.mxu0 %v4328
    %5496 = vmatpush1.bf16.msra.mxu0 %v4327
    %5497 = vmatprep.subr.bf16.mxu0 %v4310
    %5498 = vmatpush1.bf16.msra.mxu0 %v4309
    %5499 = vmatprep.subr.bf16.mxu0 %v4292
    %5500 = vmatpush1.bf16.msra.mxu0 %v4291
    %5501 = vmatprep.subr.bf16.mxu0 %v4274
    %5502 = vmatpush1.bf16.msra.mxu0 %v4273
    %5503 = vmatprep.subr.bf16.mxu0 %v4256
    %5504 = vmatpush1.bf16.msra.mxu0 %v4255
    %5505 = vmatprep.subr.bf16.mxu0 %v4526
    %5506 = vmatpush2.bf16.msra.mxu0 %v4525
    %5507 = vmatprep.subr.bf16.mxu0 %v4508
    %5508 = vmatpush2.bf16.msra.mxu0 %v4507
    %5509 = vmatprep.subr.bf16.mxu0 %v4490
    %5510 = vmatpush2.bf16.msra.mxu0 %v4489
    %5511 = vmatprep.subr.bf16.mxu0 %v4472
    %5512 = vmatpush2.bf16.msra.mxu0 %v4471
    %5513 = vmatprep.subr.bf16.mxu0 %v4454
    %5514 = vmatpush2.bf16.msra.mxu0 %v4453
    %5515 = vmatprep.subr.bf16.mxu0 %v4436
    %5516 = vmatpush2.bf16.msra.mxu0 %v4435
    %5517 = vmatprep.subr.bf16.mxu0 %v4418
    %5518 = vmatpush2.bf16.msra.mxu0 %v4417
    %5519 = vmatprep.subr.bf16.mxu0 %v4400
    %5520 = vmatpush2.bf16.msra.mxu0 %v4399
    %5521 = vmatprep.mubr.bf16.mxu0 %v126
    %5522 = vmatmul.mubr.bf16.gmra.mxu0 %v125
    %v5523 = vpop.f32.mrf.mxu0
    %v5524 = vadd.f32 %v5483, %v5523
    %v5525 = vpop.f32.mrf.mxu0
    %v5526 = vadd.f32 %v5485, %v5525
    %v5527 = vpop.f32.mrf.mxu0
    %v5528 = vpop.f32.mrf.mxu0
    %5529 = vdwg.mxu0
    %5530 = vmatprep.subr.bf16.mxu0 %v3808
    %5531 = vmatpush1.bf16.msra.mxu0 %v3807
    %5532 = vmatprep.subr.bf16.mxu0 %v3790
    %5533 = vmatpush1.bf16.msra.mxu0 %v3789
    %5534 = vmatprep.subr.bf16.mxu0 %v3772
    %5535 = vmatpush1.bf16.msra.mxu0 %v3771
    %5536 = vmatprep.subr.bf16.mxu0 %v3754
    %5537 = vmatpush1.bf16.msra.mxu0 %v3753
    %5538 = vmatprep.subr.bf16.mxu0 %v3736
    %5539 = vmatpush1.bf16.msra.mxu0 %v3735
    %5540 = vmatprep.subr.bf16.mxu0 %v3718
    %5541 = vmatpush1.bf16.msra.mxu0 %v3717
    %5542 = vmatprep.subr.bf16.mxu0 %v3700
    %5543 = vmatpush1.bf16.msra.mxu0 %v3699
    %5544 = vmatprep.subr.bf16.mxu0 %v3682
    %5545 = vmatpush1.bf16.msra.mxu0 %v3681
    %5546 = vmatprep.subr.bf16.mxu0 %v3952
    %5547 = vmatpush2.bf16.msra.mxu0 %v3951
    %5548 = vmatprep.subr.bf16.mxu0 %v3934
    %5549 = vmatpush2.bf16.msra.mxu0 %v3933
    %5550 = vmatprep.subr.bf16.mxu0 %v3916
    %5551 = vmatpush2.bf16.msra.mxu0 %v3915
    %5552 = vmatprep.subr.bf16.mxu0 %v3898
    %5553 = vmatpush2.bf16.msra.mxu0 %v3897
    %5554 = vmatprep.subr.bf16.mxu0 %v3880
    %5555 = vmatpush2.bf16.msra.mxu0 %v3879
    %5556 = vmatprep.subr.bf16.mxu0 %v3862
    %5557 = vmatpush2.bf16.msra.mxu0 %v3861
    %5558 = vmatprep.subr.bf16.mxu0 %v3844
    %5559 = vmatpush2.bf16.msra.mxu0 %v3843
    %5560 = vmatprep.subr.bf16.mxu0 %v3826
    %5561 = vmatpush2.bf16.msra.mxu0 %v3825
    %5562 = vmatprep.mubr.bf16.mxu0 %v122
    %5563 = vmatmul.mubr.bf16.gmra.mxu0 %v121
    %v5564 = vpop.f32.mrf.mxu0
    %v5565 = vadd.f32 %v1008, %v5564
    %v5566 = vpop.f32.mrf.mxu0
    %v5567 = vadd.f32 %v1012, %v5566
    %v5568 = vpop.f32.mrf.mxu0
    %v5569 = vpop.f32.mrf.mxu0
    %5570 = vdwg.mxu0
    %5571 = vmatprep.subr.bf16.mxu0 %v4096
    %5572 = vmatpush1.bf16.msra.mxu0 %v4095
    %5573 = vmatprep.subr.bf16.mxu0 %v4078
    %5574 = vmatpush1.bf16.msra.mxu0 %v4077
    %5575 = vmatprep.subr.bf16.mxu0 %v4060
    %5576 = vmatpush1.bf16.msra.mxu0 %v4059
    %5577 = vmatprep.subr.bf16.mxu0 %v4042
    %5578 = vmatpush1.bf16.msra.mxu0 %v4041
    %5579 = vmatprep.subr.bf16.mxu0 %v4024
    %5580 = vmatpush1.bf16.msra.mxu0 %v4023
    %5581 = vmatprep.subr.bf16.mxu0 %v4006
    %5582 = vmatpush1.bf16.msra.mxu0 %v4005
    %5583 = vmatprep.subr.bf16.mxu0 %v3988
    %5584 = vmatpush1.bf16.msra.mxu0 %v3987
    %5585 = vmatprep.subr.bf16.mxu0 %v3970
    %5586 = vmatpush1.bf16.msra.mxu0 %v3969
    %5587 = vmatprep.subr.bf16.mxu0 %v4240
    %5588 = vmatpush2.bf16.msra.mxu0 %v4239
    %5589 = vmatprep.subr.bf16.mxu0 %v4222
    %5590 = vmatpush2.bf16.msra.mxu0 %v4221
    %5591 = vmatprep.subr.bf16.mxu0 %v4204
    %5592 = vmatpush2.bf16.msra.mxu0 %v4203
    %5593 = vmatprep.subr.bf16.mxu0 %v4186
    %5594 = vmatpush2.bf16.msra.mxu0 %v4185
    %5595 = vmatprep.subr.bf16.mxu0 %v4168
    %5596 = vmatpush2.bf16.msra.mxu0 %v4167
    %5597 = vmatprep.subr.bf16.mxu0 %v4150
    %5598 = vmatpush2.bf16.msra.mxu0 %v4149
    %5599 = vmatprep.subr.bf16.mxu0 %v4132
    %5600 = vmatpush2.bf16.msra.mxu0 %v4131
    %5601 = vmatprep.subr.bf16.mxu0 %v4114
    %5602 = vmatpush2.bf16.msra.mxu0 %v4113
    %5603 = vmatprep.mubr.bf16.mxu0 %v124
    %5604 = vmatmul.mubr.bf16.gmra.mxu0 %v123
    %v5605 = vpop.f32.mrf.mxu0
    %v5606 = vadd.f32 %v5565, %v5605
    %v5607 = vpop.f32.mrf.mxu0
    %v5608 = vadd.f32 %v5567, %v5607
    %v5609 = vpop.f32.mrf.mxu0
    %v5610 = vpop.f32.mrf.mxu0
    %5611 = vdwg.mxu0
    %5612 = vmatprep.subr.bf16.mxu0 %v4384
    %5613 = vmatpush1.bf16.msra.mxu0 %v4383
    %5614 = vmatprep.subr.bf16.mxu0 %v4366
    %5615 = vmatpush1.bf16.msra.mxu0 %v4365
    %5616 = vmatprep.subr.bf16.mxu0 %v4348
    %5617 = vmatpush1.bf16.msra.mxu0 %v4347
    %5618 = vmatprep.subr.bf16.mxu0 %v4330
    %5619 = vmatpush1.bf16.msra.mxu0 %v4329
    %5620 = vmatprep.subr.bf16.mxu0 %v4312
    %5621 = vmatpush1.bf16.msra.mxu0 %v4311
    %5622 = vmatprep.subr.bf16.mxu0 %v4294
    %5623 = vmatpush1.bf16.msra.mxu0 %v4293
    %5624 = vmatprep.subr.bf16.mxu0 %v4276
    %5625 = vmatpush1.bf16.msra.mxu0 %v4275
    %5626 = vmatprep.subr.bf16.mxu0 %v4258
    %5627 = vmatpush1.bf16.msra.mxu0 %v4257
    %5628 = vmatprep.subr.bf16.mxu0 %v4528
    %5629 = vmatpush2.bf16.msra.mxu0 %v4527
    %5630 = vmatprep.subr.bf16.mxu0 %v4510
    %5631 = vmatpush2.bf16.msra.mxu0 %v4509
    %5632 = vmatprep.subr.bf16.mxu0 %v4492
    %5633 = vmatpush2.bf16.msra.mxu0 %v4491
    %5634 = vmatprep.subr.bf16.mxu0 %v4474
    %5635 = vmatpush2.bf16.msra.mxu0 %v4473
    %5636 = vmatprep.subr.bf16.mxu0 %v4456
    %5637 = vmatpush2.bf16.msra.mxu0 %v4455
    %5638 = vmatprep.subr.bf16.mxu0 %v4438
    %5639 = vmatpush2.bf16.msra.mxu0 %v4437
    %5640 = vmatprep.subr.bf16.mxu0 %v4420
    %5641 = vmatpush2.bf16.msra.mxu0 %v4419
    %5642 = vmatprep.subr.bf16.mxu0 %v4402
    %5643 = vmatpush2.bf16.msra.mxu0 %v4401
    %5644 = vmatprep.mubr.bf16.mxu0 %v126
    %5645 = vmatmul.mubr.bf16.gmra.mxu0 %v125
    %v5646 = vpop.f32.mrf.mxu0
    %v5647 = vadd.f32 %v5606, %v5646
    %v5648 = vpop.f32.mrf.mxu0
    %v5649 = vadd.f32 %v5608, %v5648
    %v5650 = vpop.f32.mrf.mxu0
    %v5651 = vpop.f32.mrf.mxu0
    %5652 = vdwg.mxu0
    %5653 = vmatprep.subr.bf16.mxu0 %v3810
    %5654 = vmatpush1.bf16.msra.mxu0 %v3809
    %5655 = vmatprep.subr.bf16.mxu0 %v3792
    %5656 = vmatpush1.bf16.msra.mxu0 %v3791
    %5657 = vmatprep.subr.bf16.mxu0 %v3774
    %5658 = vmatpush1.bf16.msra.mxu0 %v3773
    %5659 = vmatprep.subr.bf16.mxu0 %v3756
    %5660 = vmatpush1.bf16.msra.mxu0 %v3755
    %5661 = vmatprep.subr.bf16.mxu0 %v3738
    %5662 = vmatpush1.bf16.msra.mxu0 %v3737
    %5663 = vmatprep.subr.bf16.mxu0 %v3720
    %5664 = vmatpush1.bf16.msra.mxu0 %v3719
    %5665 = vmatprep.subr.bf16.mxu0 %v3702
    %5666 = vmatpush1.bf16.msra.mxu0 %v3701
    %5667 = vmatprep.subr.bf16.mxu0 %v3684
    %5668 = vmatpush1.bf16.msra.mxu0 %v3683
    %5669 = vmatprep.subr.bf16.mxu0 %v3954
    %5670 = vmatpush2.bf16.msra.mxu0 %v3953
    %5671 = vmatprep.subr.bf16.mxu0 %v3936
    %5672 = vmatpush2.bf16.msra.mxu0 %v3935
    %5673 = vmatprep.subr.bf16.mxu0 %v3918
    %5674 = vmatpush2.bf16.msra.mxu0 %v3917
    %5675 = vmatprep.subr.bf16.mxu0 %v3900
    %5676 = vmatpush2.bf16.msra.mxu0 %v3899
    %5677 = vmatprep.subr.bf16.mxu0 %v3882
    %5678 = vmatpush2.bf16.msra.mxu0 %v3881
    %5679 = vmatprep.subr.bf16.mxu0 %v3864
    %5680 = vmatpush2.bf16.msra.mxu0 %v3863
    %5681 = vmatprep.subr.bf16.mxu0 %v3846
    %5682 = vmatpush2.bf16.msra.mxu0 %v3845
    %5683 = vmatprep.subr.bf16.mxu0 %v3828
    %5684 = vmatpush2.bf16.msra.mxu0 %v3827
    %5685 = vmatprep.mubr.bf16.mxu0 %v122
    %5686 = vmatmul.mubr.bf16.gmra.mxu0 %v121
    %v5687 = vpop.f32.mrf.mxu0
    %v5688 = vadd.f32 %v1016, %v5687
    %v5689 = vpop.f32.mrf.mxu0
    %v5690 = vadd.f32 %v1020, %v5689
    %v5691 = vpop.f32.mrf.mxu0
    %v5692 = vpop.f32.mrf.mxu0
    %5693 = vdwg.mxu0
    %5694 = vmatprep.subr.bf16.mxu0 %v4098
    %5695 = vmatpush1.bf16.msra.mxu0 %v4097
    %5696 = vmatprep.subr.bf16.mxu0 %v4080
    %5697 = vmatpush1.bf16.msra.mxu0 %v4079
    %5698 = vmatprep.subr.bf16.mxu0 %v4062
    %5699 = vmatpush1.bf16.msra.mxu0 %v4061
    %5700 = vmatprep.subr.bf16.mxu0 %v4044
    %5701 = vmatpush1.bf16.msra.mxu0 %v4043
    %5702 = vmatprep.subr.bf16.mxu0 %v4026
    %5703 = vmatpush1.bf16.msra.mxu0 %v4025
    %5704 = vmatprep.subr.bf16.mxu0 %v4008
    %5705 = vmatpush1.bf16.msra.mxu0 %v4007
    %5706 = vmatprep.subr.bf16.mxu0 %v3990
    %5707 = vmatpush1.bf16.msra.mxu0 %v3989
    %5708 = vmatprep.subr.bf16.mxu0 %v3972
    %5709 = vmatpush1.bf16.msra.mxu0 %v3971
    %5710 = vmatprep.subr.bf16.mxu0 %v4242
    %5711 = vmatpush2.bf16.msra.mxu0 %v4241
    %5712 = vmatprep.subr.bf16.mxu0 %v4224
    %5713 = vmatpush2.bf16.msra.mxu0 %v4223
    %5714 = vmatprep.subr.bf16.mxu0 %v4206
    %5715 = vmatpush2.bf16.msra.mxu0 %v4205
    %5716 = vmatprep.subr.bf16.mxu0 %v4188
    %5717 = vmatpush2.bf16.msra.mxu0 %v4187
    %5718 = vmatprep.subr.bf16.mxu0 %v4170
    %5719 = vmatpush2.bf16.msra.mxu0 %v4169
    %5720 = vmatprep.subr.bf16.mxu0 %v4152
    %5721 = vmatpush2.bf16.msra.mxu0 %v4151
    %5722 = vmatprep.subr.bf16.mxu0 %v4134
    %5723 = vmatpush2.bf16.msra.mxu0 %v4133
    %5724 = vmatprep.subr.bf16.mxu0 %v4116
    %5725 = vmatpush2.bf16.msra.mxu0 %v4115
    %5726 = vmatprep.mubr.bf16.mxu0 %v124
    %5727 = vmatmul.mubr.bf16.gmra.mxu0 %v123
    %v5728 = vpop.f32.mrf.mxu0
    %v5729 = vadd.f32 %v5688, %v5728
    %v5730 = vpop.f32.mrf.mxu0
    %v5731 = vadd.f32 %v5690, %v5730
    %v5732 = vpop.f32.mrf.mxu0
    %v5733 = vpop.f32.mrf.mxu0
    %5734 = vdwg.mxu0
    %5735 = vmatprep.subr.bf16.mxu0 %v4386
    %5736 = vmatpush1.bf16.msra.mxu0 %v4385
    %5737 = vmatprep.subr.bf16.mxu0 %v4368
    %5738 = vmatpush1.bf16.msra.mxu0 %v4367
    %5739 = vmatprep.subr.bf16.mxu0 %v4350
    %5740 = vmatpush1.bf16.msra.mxu0 %v4349
    %5741 = vmatprep.subr.bf16.mxu0 %v4332
    %5742 = vmatpush1.bf16.msra.mxu0 %v4331
    %5743 = vmatprep.subr.bf16.mxu0 %v4314
    %5744 = vmatpush1.bf16.msra.mxu0 %v4313
    %5745 = vmatprep.subr.bf16.mxu0 %v4296
    %5746 = vmatpush1.bf16.msra.mxu0 %v4295
    %5747 = vmatprep.subr.bf16.mxu0 %v4278
    %5748 = vmatpush1.bf16.msra.mxu0 %v4277
    %5749 = vmatprep.subr.bf16.mxu0 %v4260
    %5750 = vmatpush1.bf16.msra.mxu0 %v4259
    %5751 = vmatprep.subr.bf16.mxu0 %v4530
    %5752 = vmatpush2.bf16.msra.mxu0 %v4529
    %5753 = vmatprep.subr.bf16.mxu0 %v4512
    %5754 = vmatpush2.bf16.msra.mxu0 %v4511
    %5755 = vmatprep.subr.bf16.mxu0 %v4494
    %5756 = vmatpush2.bf16.msra.mxu0 %v4493
    %5757 = vmatprep.subr.bf16.mxu0 %v4476
    %5758 = vmatpush2.bf16.msra.mxu0 %v4475
    %5759 = vmatprep.subr.bf16.mxu0 %v4458
    %5760 = vmatpush2.bf16.msra.mxu0 %v4457
    %5761 = vmatprep.subr.bf16.mxu0 %v4440
    %5762 = vmatpush2.bf16.msra.mxu0 %v4439
    %5763 = vmatprep.subr.bf16.mxu0 %v4422
    %5764 = vmatpush2.bf16.msra.mxu0 %v4421
    %5765 = vmatprep.subr.bf16.mxu0 %v4404
    %5766 = vmatpush2.bf16.msra.mxu0 %v4403
    %5767 = vmatprep.mubr.bf16.mxu0 %v126
    %5768 = vmatmul.mubr.bf16.gmra.mxu0 %v125
    %v5769 = vpop.f32.mrf.mxu0
    %v5770 = vadd.f32 %v5729, %v5769
    %v5771 = vpop.f32.mrf.mxu0
    %v5772 = vadd.f32 %v5731, %v5771
    %v5773 = vpop.f32.mrf.mxu0
    %v5774 = vpop.f32.mrf.mxu0
    %5775 = vdwg.mxu0
    %5776 = vmatprep.subr.bf16.mxu0 %v3812
    %5777 = vmatpush1.bf16.msra.mxu0 %v3811
    %5778 = vmatprep.subr.bf16.mxu0 %v3794
    %5779 = vmatpush1.bf16.msra.mxu0 %v3793
    %5780 = vmatprep.subr.bf16.mxu0 %v3776
    %5781 = vmatpush1.bf16.msra.mxu0 %v3775
    %5782 = vmatprep.subr.bf16.mxu0 %v3758
    %5783 = vmatpush1.bf16.msra.mxu0 %v3757
    %5784 = vmatprep.subr.bf16.mxu0 %v3740
    %5785 = vmatpush1.bf16.msra.mxu0 %v3739
    %5786 = vmatprep.subr.bf16.mxu0 %v3722
    %5787 = vmatpush1.bf16.msra.mxu0 %v3721
    %5788 = vmatprep.subr.bf16.mxu0 %v3704
    %5789 = vmatpush1.bf16.msra.mxu0 %v3703
    %5790 = vmatprep.subr.bf16.mxu0 %v3686
    %5791 = vmatpush1.bf16.msra.mxu0 %v3685
    %5792 = vmatprep.subr.bf16.mxu0 %v3956
    %5793 = vmatpush2.bf16.msra.mxu0 %v3955
    %5794 = vmatprep.subr.bf16.mxu0 %v3938
    %5795 = vmatpush2.bf16.msra.mxu0 %v3937
    %5796 = vmatprep.subr.bf16.mxu0 %v3920
    %5797 = vmatpush2.bf16.msra.mxu0 %v3919
    %5798 = vmatprep.subr.bf16.mxu0 %v3902
    %5799 = vmatpush2.bf16.msra.mxu0 %v3901
    %5800 = vmatprep.subr.bf16.mxu0 %v3884
    %5801 = vmatpush2.bf16.msra.mxu0 %v3883
    %5802 = vmatprep.subr.bf16.mxu0 %v3866
    %5803 = vmatpush2.bf16.msra.mxu0 %v3865
    %5804 = vmatprep.subr.bf16.mxu0 %v3848
    %5805 = vmatpush2.bf16.msra.mxu0 %v3847
    %5806 = vmatprep.subr.bf16.mxu0 %v3830
    %5807 = vmatpush2.bf16.msra.mxu0 %v3829
    %5808 = vmatprep.mubr.bf16.mxu0 %v122
    %5809 = vmatmul.mubr.bf16.gmra.mxu0 %v121
    %v5810 = vpop.f32.mrf.mxu0
    %v5811 = vadd.f32 %v1024, %v5810
    %v5812 = vpop.f32.mrf.mxu0
    %v5813 = vadd.f32 %v1028, %v5812
    %v5814 = vpop.f32.mrf.mxu0
    %v5815 = vpop.f32.mrf.mxu0
    %5816 = vdwg.mxu0
    %5817 = vmatprep.subr.bf16.mxu0 %v4100
    %5818 = vmatpush1.bf16.msra.mxu0 %v4099
    %5819 = vmatprep.subr.bf16.mxu0 %v4082
    %5820 = vmatpush1.bf16.msra.mxu0 %v4081
    %5821 = vmatprep.subr.bf16.mxu0 %v4064
    %5822 = vmatpush1.bf16.msra.mxu0 %v4063
    %5823 = vmatprep.subr.bf16.mxu0 %v4046
    %5824 = vmatpush1.bf16.msra.mxu0 %v4045
    %5825 = vmatprep.subr.bf16.mxu0 %v4028
    %5826 = vmatpush1.bf16.msra.mxu0 %v4027
    %5827 = vmatprep.subr.bf16.mxu0 %v4010
    %5828 = vmatpush1.bf16.msra.mxu0 %v4009
    %5829 = vmatprep.subr.bf16.mxu0 %v3992
    %5830 = vmatpush1.bf16.msra.mxu0 %v3991
    %5831 = vmatprep.subr.bf16.mxu0 %v3974
    %5832 = vmatpush1.bf16.msra.mxu0 %v3973
    %5833 = vmatprep.subr.bf16.mxu0 %v4244
    %5834 = vmatpush2.bf16.msra.mxu0 %v4243
    %5835 = vmatprep.subr.bf16.mxu0 %v4226
    %5836 = vmatpush2.bf16.msra.mxu0 %v4225
    %5837 = vmatprep.subr.bf16.mxu0 %v4208
    %5838 = vmatpush2.bf16.msra.mxu0 %v4207
    %5839 = vmatprep.subr.bf16.mxu0 %v4190
    %5840 = vmatpush2.bf16.msra.mxu0 %v4189
    %5841 = vmatprep.subr.bf16.mxu0 %v4172
    %5842 = vmatpush2.bf16.msra.mxu0 %v4171
    %5843 = vmatprep.subr.bf16.mxu0 %v4154
    %5844 = vmatpush2.bf16.msra.mxu0 %v4153
    %5845 = vmatprep.subr.bf16.mxu0 %v4136
    %5846 = vmatpush2.bf16.msra.mxu0 %v4135
    %5847 = vmatprep.subr.bf16.mxu0 %v4118
    %5848 = vmatpush2.bf16.msra.mxu0 %v4117
    %5849 = vmatprep.mubr.bf16.mxu0 %v124
    %5850 = vmatmul.mubr.bf16.gmra.mxu0 %v123
    %v5851 = vpop.f32.mrf.mxu0
    %v5852 = vadd.f32 %v5811, %v5851
    %v5853 = vpop.f32.mrf.mxu0
    %v5854 = vadd.f32 %v5813, %v5853
    %v5855 = vpop.f32.mrf.mxu0
    %v5856 = vpop.f32.mrf.mxu0
    %5857 = vdwg.mxu0
    %5858 = vmatprep.subr.bf16.mxu0 %v4388
    %5859 = vmatpush1.bf16.msra.mxu0 %v4387
    %5860 = vmatprep.subr.bf16.mxu0 %v4370
    %5861 = vmatpush1.bf16.msra.mxu0 %v4369
    %5862 = vmatprep.subr.bf16.mxu0 %v4352
    %5863 = vmatpush1.bf16.msra.mxu0 %v4351
    %5864 = vmatprep.subr.bf16.mxu0 %v4334
    %5865 = vmatpush1.bf16.msra.mxu0 %v4333
    %5866 = vmatprep.subr.bf16.mxu0 %v4316
    %5867 = vmatpush1.bf16.msra.mxu0 %v4315
    %5868 = vmatprep.subr.bf16.mxu0 %v4298
    %5869 = vmatpush1.bf16.msra.mxu0 %v4297
    %5870 = vmatprep.subr.bf16.mxu0 %v4280
    %5871 = vmatpush1.bf16.msra.mxu0 %v4279
    %5872 = vmatprep.subr.bf16.mxu0 %v4262
    %5873 = vmatpush1.bf16.msra.mxu0 %v4261
    %5874 = vmatprep.subr.bf16.mxu0 %v4532
    %5875 = vmatpush2.bf16.msra.mxu0 %v4531
    %5876 = vmatprep.subr.bf16.mxu0 %v4514
    %5877 = vmatpush2.bf16.msra.mxu0 %v4513
    %5878 = vmatprep.subr.bf16.mxu0 %v4496
    %5879 = vmatpush2.bf16.msra.mxu0 %v4495
    %5880 = vmatprep.subr.bf16.mxu0 %v4478
    %5881 = vmatpush2.bf16.msra.mxu0 %v4477
    %5882 = vmatprep.subr.bf16.mxu0 %v4460
    %5883 = vmatpush2.bf16.msra.mxu0 %v4459
    %5884 = vmatprep.subr.bf16.mxu0 %v4442
    %5885 = vmatpush2.bf16.msra.mxu0 %v4441
    %5886 = vmatprep.subr.bf16.mxu0 %v4424
    %5887 = vmatpush2.bf16.msra.mxu0 %v4423
    %5888 = vmatprep.subr.bf16.mxu0 %v4406
    %5889 = vmatpush2.bf16.msra.mxu0 %v4405
    %5890 = vmatprep.mubr.bf16.mxu0 %v126
    %5891 = vmatmul.mubr.bf16.gmra.mxu0 %v125
    %v5892 = vpop.f32.mrf.mxu0
    %v5893 = vadd.f32 %v5852, %v5892
    %v5894 = vpop.f32.mrf.mxu0
    %v5895 = vadd.f32 %v5854, %v5894
    %v5896 = vpop.f32.mrf.mxu0
    %v5897 = vpop.f32.mrf.mxu0
    %5898 = vdwg.mxu0
    %5899 = vmatprep.subr.bf16.mxu0 %v3814
    %5900 = vmatpush1.bf16.msra.mxu0 %v3813
    %5901 = vmatprep.subr.bf16.mxu0 %v3796
    %5902 = vmatpush1.bf16.msra.mxu0 %v3795
    %5903 = vmatprep.subr.bf16.mxu0 %v3778
    %5904 = vmatpush1.bf16.msra.mxu0 %v3777
    %5905 = vmatprep.subr.bf16.mxu0 %v3760
    %5906 = vmatpush1.bf16.msra.mxu0 %v3759
    %5907 = vmatprep.subr.bf16.mxu0 %v3742
    %5908 = vmatpush1.bf16.msra.mxu0 %v3741
    %5909 = vmatprep.subr.bf16.mxu0 %v3724
    %5910 = vmatpush1.bf16.msra.mxu0 %v3723
    %5911 = vmatprep.subr.bf16.mxu0 %v3706
    %5912 = vmatpush1.bf16.msra.mxu0 %v3705
    %5913 = vmatprep.subr.bf16.mxu0 %v3688
    %5914 = vmatpush1.bf16.msra.mxu0 %v3687
    %5915 = vmatprep.subr.bf16.mxu0 %v3958
    %5916 = vmatpush2.bf16.msra.mxu0 %v3957
    %5917 = vmatprep.subr.bf16.mxu0 %v3940
    %5918 = vmatpush2.bf16.msra.mxu0 %v3939
    %5919 = vmatprep.subr.bf16.mxu0 %v3922
    %5920 = vmatpush2.bf16.msra.mxu0 %v3921
    %5921 = vmatprep.subr.bf16.mxu0 %v3904
    %5922 = vmatpush2.bf16.msra.mxu0 %v3903
    %5923 = vmatprep.subr.bf16.mxu0 %v3886
    %5924 = vmatpush2.bf16.msra.mxu0 %v3885
    %5925 = vmatprep.subr.bf16.mxu0 %v3868
    %5926 = vmatpush2.bf16.msra.mxu0 %v3867
    %5927 = vmatprep.subr.bf16.mxu0 %v3850
    %5928 = vmatpush2.bf16.msra.mxu0 %v3849
    %5929 = vmatprep.subr.bf16.mxu0 %v3832
    %5930 = vmatpush2.bf16.msra.mxu0 %v3831
    %5931 = vmatprep.mubr.bf16.mxu0 %v122
    %5932 = vmatmul.mubr.bf16.gmra.mxu0 %v121
    %v5933 = vpop.f32.mrf.mxu0
    %v5934 = vadd.f32 %v1032, %v5933
    %v5935 = vpop.f32.mrf.mxu0
    %v5936 = vadd.f32 %v1036, %v5935
    %v5937 = vpop.f32.mrf.mxu0
    %v5938 = vpop.f32.mrf.mxu0
    %5939 = vdwg.mxu0
    %5940 = vmatprep.subr.bf16.mxu0 %v4102
    %5941 = vmatpush1.bf16.msra.mxu0 %v4101
    %5942 = vmatprep.subr.bf16.mxu0 %v4084
    %5943 = vmatpush1.bf16.msra.mxu0 %v4083
    %5944 = vmatprep.subr.bf16.mxu0 %v4066
    %5945 = vmatpush1.bf16.msra.mxu0 %v4065
    %5946 = vmatprep.subr.bf16.mxu0 %v4048
    %5947 = vmatpush1.bf16.msra.mxu0 %v4047
    %5948 = vmatprep.subr.bf16.mxu0 %v4030
    %5949 = vmatpush1.bf16.msra.mxu0 %v4029
    %5950 = vmatprep.subr.bf16.mxu0 %v4012
    %5951 = vmatpush1.bf16.msra.mxu0 %v4011
    %5952 = vmatprep.subr.bf16.mxu0 %v3994
    %5953 = vmatpush1.bf16.msra.mxu0 %v3993
    %5954 = vmatprep.subr.bf16.mxu0 %v3976
    %5955 = vmatpush1.bf16.msra.mxu0 %v3975
    %5956 = vmatprep.subr.bf16.mxu0 %v4246
    %5957 = vmatpush2.bf16.msra.mxu0 %v4245
    %5958 = vmatprep.subr.bf16.mxu0 %v4228
    %5959 = vmatpush2.bf16.msra.mxu0 %v4227
    %5960 = vmatprep.subr.bf16.mxu0 %v4210
    %5961 = vmatpush2.bf16.msra.mxu0 %v4209
    %5962 = vmatprep.subr.bf16.mxu0 %v4192
    %5963 = vmatpush2.bf16.msra.mxu0 %v4191
    %5964 = vmatprep.subr.bf16.mxu0 %v4174
    %5965 = vmatpush2.bf16.msra.mxu0 %v4173
    %5966 = vmatprep.subr.bf16.mxu0 %v4156
    %5967 = vmatpush2.bf16.msra.mxu0 %v4155
    %5968 = vmatprep.subr.bf16.mxu0 %v4138
    %5969 = vmatpush2.bf16.msra.mxu0 %v4137
    %5970 = vmatprep.subr.bf16.mxu0 %v4120
    %5971 = vmatpush2.bf16.msra.mxu0 %v4119
    %5972 = vmatprep.mubr.bf16.mxu0 %v124
    %5973 = vmatmul.mubr.bf16.gmra.mxu0 %v123
    %v5974 = vpop.f32.mrf.mxu0
    %v5975 = vadd.f32 %v5934, %v5974
    %v5976 = vpop.f32.mrf.mxu0
    %v5977 = vadd.f32 %v5936, %v5976
    %v5978 = vpop.f32.mrf.mxu0
    %v5979 = vpop.f32.mrf.mxu0
    %5980 = vdwg.mxu0
    %5981 = vmatprep.subr.bf16.mxu0 %v4390
    %5982 = vmatpush1.bf16.msra.mxu0 %v4389
    %5983 = vmatprep.subr.bf16.mxu0 %v4372
    %5984 = vmatpush1.bf16.msra.mxu0 %v4371
    %5985 = vmatprep.subr.bf16.mxu0 %v4354
    %5986 = vmatpush1.bf16.msra.mxu0 %v4353
    %5987 = vmatprep.subr.bf16.mxu0 %v4336
    %5988 = vmatpush1.bf16.msra.mxu0 %v4335
    %5989 = vmatprep.subr.bf16.mxu0 %v4318
    %5990 = vmatpush1.bf16.msra.mxu0 %v4317
    %5991 = vmatprep.subr.bf16.mxu0 %v4300
    %5992 = vmatpush1.bf16.msra.mxu0 %v4299
    %5993 = vmatprep.subr.bf16.mxu0 %v4282
    %5994 = vmatpush1.bf16.msra.mxu0 %v4281
    %5995 = vmatprep.subr.bf16.mxu0 %v4264
    %5996 = vmatpush1.bf16.msra.mxu0 %v4263
    %5997 = vmatprep.subr.bf16.mxu0 %v4534
    %5998 = vmatpush2.bf16.msra.mxu0 %v4533
    %5999 = vmatprep.subr.bf16.mxu0 %v4516
    %6000 = vmatpush2.bf16.msra.mxu0 %v4515
    %6001 = vmatprep.subr.bf16.mxu0 %v4498
    %6002 = vmatpush2.bf16.msra.mxu0 %v4497
    %6003 = vmatprep.subr.bf16.mxu0 %v4480
    %6004 = vmatpush2.bf16.msra.mxu0 %v4479
    %6005 = vmatprep.subr.bf16.mxu0 %v4462
    %6006 = vmatpush2.bf16.msra.mxu0 %v4461
    %6007 = vmatprep.subr.bf16.mxu0 %v4444
    %6008 = vmatpush2.bf16.msra.mxu0 %v4443
    %6009 = vmatprep.subr.bf16.mxu0 %v4426
    %6010 = vmatpush2.bf16.msra.mxu0 %v4425
    %6011 = vmatprep.subr.bf16.mxu0 %v4408
    %6012 = vmatpush2.bf16.msra.mxu0 %v4407
    %6013 = vmatprep.mubr.bf16.mxu0 %v126
    %6014 = vmatmul.mubr.bf16.gmra.mxu0 %v125
    %v6015 = vpop.f32.mrf.mxu0
    %v6016 = vadd.f32 %v5975, %v6015
    %v6017 = vpop.f32.mrf.mxu0
    %v6018 = vadd.f32 %v5977, %v6017
    %v6019 = vpop.f32.mrf.mxu0
    %v6020 = vpop.f32.mrf.mxu0
    %6021 = vdwg.mxu0
    %6022 = vmatprep.subr.bf16.mxu0 %v3816
    %6023 = vmatpush1.bf16.msra.mxu0 %v3815
    %6024 = vmatprep.subr.bf16.mxu0 %v3798
    %6025 = vmatpush1.bf16.msra.mxu0 %v3797
    %6026 = vmatprep.subr.bf16.mxu0 %v3780
    %6027 = vmatpush1.bf16.msra.mxu0 %v3779
    %6028 = vmatprep.subr.bf16.mxu0 %v3762
    %6029 = vmatpush1.bf16.msra.mxu0 %v3761
    %6030 = vmatprep.subr.bf16.mxu0 %v3744
    %6031 = vmatpush1.bf16.msra.mxu0 %v3743
    %6032 = vmatprep.subr.bf16.mxu0 %v3726
    %6033 = vmatpush1.bf16.msra.mxu0 %v3725
    %6034 = vmatprep.subr.bf16.mxu0 %v3708
    %6035 = vmatpush1.bf16.msra.mxu0 %v3707
    %6036 = vmatprep.subr.bf16.mxu0 %v3690
    %6037 = vmatpush1.bf16.msra.mxu0 %v3689
    %6038 = vmatprep.subr.bf16.mxu0 %v3960
    %6039 = vmatpush2.bf16.msra.mxu0 %v3959
    %6040 = vmatprep.subr.bf16.mxu0 %v3942
    %6041 = vmatpush2.bf16.msra.mxu0 %v3941
    %6042 = vmatprep.subr.bf16.mxu0 %v3924
    %6043 = vmatpush2.bf16.msra.mxu0 %v3923
    %6044 = vmatprep.subr.bf16.mxu0 %v3906
    %6045 = vmatpush2.bf16.msra.mxu0 %v3905
    %6046 = vmatprep.subr.bf16.mxu0 %v3888
    %6047 = vmatpush2.bf16.msra.mxu0 %v3887
    %6048 = vmatprep.subr.bf16.mxu0 %v3870
    %6049 = vmatpush2.bf16.msra.mxu0 %v3869
    %6050 = vmatprep.subr.bf16.mxu0 %v3852
    %6051 = vmatpush2.bf16.msra.mxu0 %v3851
    %6052 = vmatprep.subr.bf16.mxu0 %v3834
    %6053 = vmatpush2.bf16.msra.mxu0 %v3833
    %6054 = vmatprep.mubr.bf16.mxu0 %v122
    %6055 = vmatmul.mubr.bf16.gmra.mxu0 %v121
    %v6056 = vpop.f32.mrf.mxu0
    %v6057 = vadd.f32 %v1040, %v6056
    %v6058 = vpop.f32.mrf.mxu0
    %v6059 = vadd.f32 %v1044, %v6058
    %v6060 = vpop.f32.mrf.mxu0
    %v6061 = vpop.f32.mrf.mxu0
    %6062 = vdwg.mxu0
    %6063 = vmatprep.subr.bf16.mxu0 %v4104
    %6064 = vmatpush1.bf16.msra.mxu0 %v4103
    %6065 = vmatprep.subr.bf16.mxu0 %v4086
    %6066 = vmatpush1.bf16.msra.mxu0 %v4085
    %6067 = vmatprep.subr.bf16.mxu0 %v4068
    %6068 = vmatpush1.bf16.msra.mxu0 %v4067
    %6069 = vmatprep.subr.bf16.mxu0 %v4050
    %6070 = vmatpush1.bf16.msra.mxu0 %v4049
    %6071 = vmatprep.subr.bf16.mxu0 %v4032
    %6072 = vmatpush1.bf16.msra.mxu0 %v4031
    %6073 = vmatprep.subr.bf16.mxu0 %v4014
    %6074 = vmatpush1.bf16.msra.mxu0 %v4013
    %6075 = vmatprep.subr.bf16.mxu0 %v3996
    %6076 = vmatpush1.bf16.msra.mxu0 %v3995
    %6077 = vmatprep.subr.bf16.mxu0 %v3978
    %6078 = vmatpush1.bf16.msra.mxu0 %v3977
    %6079 = vmatprep.subr.bf16.mxu0 %v4248
    %6080 = vmatpush2.bf16.msra.mxu0 %v4247
    %6081 = vmatprep.subr.bf16.mxu0 %v4230
    %6082 = vmatpush2.bf16.msra.mxu0 %v4229
    %6083 = vmatprep.subr.bf16.mxu0 %v4212
    %6084 = vmatpush2.bf16.msra.mxu0 %v4211
    %6085 = vmatprep.subr.bf16.mxu0 %v4194
    %6086 = vmatpush2.bf16.msra.mxu0 %v4193
    %6087 = vmatprep.subr.bf16.mxu0 %v4176
    %6088 = vmatpush2.bf16.msra.mxu0 %v4175
    %6089 = vmatprep.subr.bf16.mxu0 %v4158
    %6090 = vmatpush2.bf16.msra.mxu0 %v4157
    %6091 = vmatprep.subr.bf16.mxu0 %v4140
    %6092 = vmatpush2.bf16.msra.mxu0 %v4139
    %6093 = vmatprep.subr.bf16.mxu0 %v4122
    %6094 = vmatpush2.bf16.msra.mxu0 %v4121
    %6095 = vmatprep.mubr.bf16.mxu0 %v124
    %6096 = vmatmul.mubr.bf16.gmra.mxu0 %v123
    %v6097 = vpop.f32.mrf.mxu0
    %v6098 = vadd.f32 %v6057, %v6097
    %v6099 = vpop.f32.mrf.mxu0
    %v6100 = vadd.f32 %v6059, %v6099
    %v6101 = vpop.f32.mrf.mxu0
    %v6102 = vpop.f32.mrf.mxu0
    %6103 = vdwg.mxu0
    %6104 = vmatprep.subr.bf16.mxu0 %v4392
    %6105 = vmatpush1.bf16.msra.mxu0 %v4391
    %6106 = vmatprep.subr.bf16.mxu0 %v4374
    %6107 = vmatpush1.bf16.msra.mxu0 %v4373
    %6108 = vmatprep.subr.bf16.mxu0 %v4356
    %6109 = vmatpush1.bf16.msra.mxu0 %v4355
    %6110 = vmatprep.subr.bf16.mxu0 %v4338
    %6111 = vmatpush1.bf16.msra.mxu0 %v4337
    %6112 = vmatprep.subr.bf16.mxu0 %v4320
    %6113 = vmatpush1.bf16.msra.mxu0 %v4319
    %6114 = vmatprep.subr.bf16.mxu0 %v4302
    %6115 = vmatpush1.bf16.msra.mxu0 %v4301
    %6116 = vmatprep.subr.bf16.mxu0 %v4284
    %6117 = vmatpush1.bf16.msra.mxu0 %v4283
    %6118 = vmatprep.subr.bf16.mxu0 %v4266
    %6119 = vmatpush1.bf16.msra.mxu0 %v4265
    %6120 = vmatprep.subr.bf16.mxu0 %v4536
    %6121 = vmatpush2.bf16.msra.mxu0 %v4535
    %6122 = vmatprep.subr.bf16.mxu0 %v4518
    %6123 = vmatpush2.bf16.msra.mxu0 %v4517
    %6124 = vmatprep.subr.bf16.mxu0 %v4500
    %6125 = vmatpush2.bf16.msra.mxu0 %v4499
    %6126 = vmatprep.subr.bf16.mxu0 %v4482
    %6127 = vmatpush2.bf16.msra.mxu0 %v4481
    %6128 = vmatprep.subr.bf16.mxu0 %v4464
    %6129 = vmatpush2.bf16.msra.mxu0 %v4463
    %6130 = vmatprep.subr.bf16.mxu0 %v4446
    %6131 = vmatpush2.bf16.msra.mxu0 %v4445
    %6132 = vmatprep.subr.bf16.mxu0 %v4428
    %6133 = vmatpush2.bf16.msra.mxu0 %v4427
    %6134 = vmatprep.subr.bf16.mxu0 %v4410
    %6135 = vmatpush2.bf16.msra.mxu0 %v4409
    %6136 = vmatprep.mubr.bf16.mxu0 %v126
    %6137 = vmatmul.mubr.bf16.gmra.mxu0 %v125
    %v6138 = vpop.f32.mrf.mxu0
    %v6139 = vadd.f32 %v6098, %v6138
    %v6140 = vpop.f32.mrf.mxu0
    %v6141 = vadd.f32 %v6100, %v6140
    %v6142 = vpop.f32.mrf.mxu0
    %v6143 = vpop.f32.mrf.mxu0
    %6144 = vdwg.mxu0
    %6145 = vmatprep.subr.bf16.mxu0 %v3818
    %6146 = vmatpush1.bf16.msra.mxu0 %v3817
    %6147 = vmatprep.subr.bf16.mxu0 %v3800
    %6148 = vmatpush1.bf16.msra.mxu0 %v3799
    %6149 = vmatprep.subr.bf16.mxu0 %v3782
    %6150 = vmatpush1.bf16.msra.mxu0 %v3781
    %6151 = vmatprep.subr.bf16.mxu0 %v3764
    %6152 = vmatpush1.bf16.msra.mxu0 %v3763
    %6153 = vmatprep.subr.bf16.mxu0 %v3746
    %6154 = vmatpush1.bf16.msra.mxu0 %v3745
    %6155 = vmatprep.subr.bf16.mxu0 %v3728
    %6156 = vmatpush1.bf16.msra.mxu0 %v3727
    %6157 = vmatprep.subr.bf16.mxu0 %v3710
    %6158 = vmatpush1.bf16.msra.mxu0 %v3709
    %6159 = vmatprep.subr.bf16.mxu0 %v3692
    %6160 = vmatpush1.bf16.msra.mxu0 %v3691
    %6161 = vmatprep.subr.bf16.mxu0 %v3962
    %6162 = vmatpush2.bf16.msra.mxu0 %v3961
    %6163 = vmatprep.subr.bf16.mxu0 %v3944
    %6164 = vmatpush2.bf16.msra.mxu0 %v3943
    %6165 = vmatprep.subr.bf16.mxu0 %v3926
    %6166 = vmatpush2.bf16.msra.mxu0 %v3925
    %6167 = vmatprep.subr.bf16.mxu0 %v3908
    %6168 = vmatpush2.bf16.msra.mxu0 %v3907
    %6169 = vmatprep.subr.bf16.mxu0 %v3890
    %6170 = vmatpush2.bf16.msra.mxu0 %v3889
    %6171 = vmatprep.subr.bf16.mxu0 %v3872
    %6172 = vmatpush2.bf16.msra.mxu0 %v3871
    %6173 = vmatprep.subr.bf16.mxu0 %v3854
    %6174 = vmatpush2.bf16.msra.mxu0 %v3853
    %6175 = vmatprep.subr.bf16.mxu0 %v3836
    %6176 = vmatpush2.bf16.msra.mxu0 %v3835
    %6177 = vmatprep.mubr.bf16.mxu0 %v122
    %6178 = vmatmul.mubr.bf16.gmra.mxu0 %v121
    %v6179 = vpop.f32.mrf.mxu0
    %v6180 = vadd.f32 %v1048, %v6179
    %v6181 = vpop.f32.mrf.mxu0
    %v6182 = vadd.f32 %v1052, %v6181
    %v6183 = vpop.f32.mrf.mxu0
    %v6184 = vpop.f32.mrf.mxu0
    %6185 = vdwg.mxu0
    %6186 = vmatprep.subr.bf16.mxu0 %v4106
    %6187 = vmatpush1.bf16.msra.mxu0 %v4105
    %6188 = vmatprep.subr.bf16.mxu0 %v4088
    %6189 = vmatpush1.bf16.msra.mxu0 %v4087
    %6190 = vmatprep.subr.bf16.mxu0 %v4070
    %6191 = vmatpush1.bf16.msra.mxu0 %v4069
    %6192 = vmatprep.subr.bf16.mxu0 %v4052
    %6193 = vmatpush1.bf16.msra.mxu0 %v4051
    %6194 = vmatprep.subr.bf16.mxu0 %v4034
    %6195 = vmatpush1.bf16.msra.mxu0 %v4033
    %6196 = vmatprep.subr.bf16.mxu0 %v4016
    %6197 = vmatpush1.bf16.msra.mxu0 %v4015
    %6198 = vmatprep.subr.bf16.mxu0 %v3998
    %6199 = vmatpush1.bf16.msra.mxu0 %v3997
    %6200 = vmatprep.subr.bf16.mxu0 %v3980
    %6201 = vmatpush1.bf16.msra.mxu0 %v3979
    %6202 = vmatprep.subr.bf16.mxu0 %v4250
    %6203 = vmatpush2.bf16.msra.mxu0 %v4249
    %6204 = vmatprep.subr.bf16.mxu0 %v4232
    %6205 = vmatpush2.bf16.msra.mxu0 %v4231
    %6206 = vmatprep.subr.bf16.mxu0 %v4214
    %6207 = vmatpush2.bf16.msra.mxu0 %v4213
    %6208 = vmatprep.subr.bf16.mxu0 %v4196
    %6209 = vmatpush2.bf16.msra.mxu0 %v4195
    %6210 = vmatprep.subr.bf16.mxu0 %v4178
    %6211 = vmatpush2.bf16.msra.mxu0 %v4177
    %6212 = vmatprep.subr.bf16.mxu0 %v4160
    %6213 = vmatpush2.bf16.msra.mxu0 %v4159
    %6214 = vmatprep.subr.bf16.mxu0 %v4142
    %6215 = vmatpush2.bf16.msra.mxu0 %v4141
    %6216 = vmatprep.subr.bf16.mxu0 %v4124
    %6217 = vmatpush2.bf16.msra.mxu0 %v4123
    %6218 = vmatprep.mubr.bf16.mxu0 %v124
    %6219 = vmatmul.mubr.bf16.gmra.mxu0 %v123
    %v6220 = vpop.f32.mrf.mxu0
    %v6221 = vadd.f32 %v6180, %v6220
    %v6222 = vpop.f32.mrf.mxu0
    %v6223 = vadd.f32 %v6182, %v6222
    %v6224 = vpop.f32.mrf.mxu0
    %v6225 = vpop.f32.mrf.mxu0
    %6226 = vdwg.mxu0
    %6227 = vmatprep.subr.bf16.mxu0 %v4394
    %6228 = vmatpush1.bf16.msra.mxu0 %v4393
    %6229 = vmatprep.subr.bf16.mxu0 %v4376
    %6230 = vmatpush1.bf16.msra.mxu0 %v4375
    %6231 = vmatprep.subr.bf16.mxu0 %v4358
    %6232 = vmatpush1.bf16.msra.mxu0 %v4357
    %6233 = vmatprep.subr.bf16.mxu0 %v4340
    %6234 = vmatpush1.bf16.msra.mxu0 %v4339
    %6235 = vmatprep.subr.bf16.mxu0 %v4322
    %6236 = vmatpush1.bf16.msra.mxu0 %v4321
    %6237 = vmatprep.subr.bf16.mxu0 %v4304
    %6238 = vmatpush1.bf16.msra.mxu0 %v4303
    %6239 = vmatprep.subr.bf16.mxu0 %v4286
    %6240 = vmatpush1.bf16.msra.mxu0 %v4285
    %6241 = vmatprep.subr.bf16.mxu0 %v4268
    %6242 = vmatpush1.bf16.msra.mxu0 %v4267
    %6243 = vmatprep.subr.bf16.mxu0 %v4538
    %6244 = vmatpush2.bf16.msra.mxu0 %v4537
    %6245 = vmatprep.subr.bf16.mxu0 %v4520
    %6246 = vmatpush2.bf16.msra.mxu0 %v4519
    %6247 = vmatprep.subr.bf16.mxu0 %v4502
    %6248 = vmatpush2.bf16.msra.mxu0 %v4501
    %6249 = vmatprep.subr.bf16.mxu0 %v4484
    %6250 = vmatpush2.bf16.msra.mxu0 %v4483
    %6251 = vmatprep.subr.bf16.mxu0 %v4466
    %6252 = vmatpush2.bf16.msra.mxu0 %v4465
    %6253 = vmatprep.subr.bf16.mxu0 %v4448
    %6254 = vmatpush2.bf16.msra.mxu0 %v4447
    %6255 = vmatprep.subr.bf16.mxu0 %v4430
    %6256 = vmatpush2.bf16.msra.mxu0 %v4429
    %6257 = vmatprep.subr.bf16.mxu0 %v4412
    %6258 = vmatpush2.bf16.msra.mxu0 %v4411
    %6259 = vmatprep.mubr.bf16.mxu0 %v126
    %6260 = vmatmul.mubr.bf16.gmra.mxu0 %v125
    %v6261 = vpop.f32.mrf.mxu0
    %v6262 = vadd.f32 %v6221, %v6261
    %v6263 = vpop.f32.mrf.mxu0
    %v6264 = vadd.f32 %v6223, %v6263
    %v6265 = vpop.f32.mrf.mxu0
    %v6266 = vpop.f32.mrf.mxu0
    %6267 = vdwg.mxu0
    %6268 = vmatprep.subr.bf16.mxu0 %v3820
    %6269 = vmatpush1.bf16.msra.mxu0 %v3819
    %6270 = vmatprep.subr.bf16.mxu0 %v3802
    %6271 = vmatpush1.bf16.msra.mxu0 %v3801
    %6272 = vmatprep.subr.bf16.mxu0 %v3784
    %6273 = vmatpush1.bf16.msra.mxu0 %v3783
    %6274 = vmatprep.subr.bf16.mxu0 %v3766
    %6275 = vmatpush1.bf16.msra.mxu0 %v3765
    %6276 = vmatprep.subr.bf16.mxu0 %v3748
    %6277 = vmatpush1.bf16.msra.mxu0 %v3747
    %6278 = vmatprep.subr.bf16.mxu0 %v3730
    %6279 = vmatpush1.bf16.msra.mxu0 %v3729
    %6280 = vmatprep.subr.bf16.mxu0 %v3712
    %6281 = vmatpush1.bf16.msra.mxu0 %v3711
    %6282 = vmatprep.subr.bf16.mxu0 %v3694
    %6283 = vmatpush1.bf16.msra.mxu0 %v3693
    %6284 = vmatprep.subr.bf16.mxu0 %v3964
    %6285 = vmatpush2.bf16.msra.mxu0 %v3963
    %6286 = vmatprep.subr.bf16.mxu0 %v3946
    %6287 = vmatpush2.bf16.msra.mxu0 %v3945
    %6288 = vmatprep.subr.bf16.mxu0 %v3928
    %6289 = vmatpush2.bf16.msra.mxu0 %v3927
    %6290 = vmatprep.subr.bf16.mxu0 %v3910
    %6291 = vmatpush2.bf16.msra.mxu0 %v3909
    %6292 = vmatprep.subr.bf16.mxu0 %v3892
    %6293 = vmatpush2.bf16.msra.mxu0 %v3891
    %6294 = vmatprep.subr.bf16.mxu0 %v3874
    %6295 = vmatpush2.bf16.msra.mxu0 %v3873
    %6296 = vmatprep.subr.bf16.mxu0 %v3856
    %6297 = vmatpush2.bf16.msra.mxu0 %v3855
    %6298 = vmatprep.subr.bf16.mxu0 %v3838
    %6299 = vmatpush2.bf16.msra.mxu0 %v3837
    %6300 = vmatprep.mubr.bf16.mxu0 %v122
    %6301 = vmatmul.mubr.bf16.gmra.mxu0 %v121
    %v6302 = vpop.f32.mrf.mxu0
    %v6303 = vadd.f32 %v1056, %v6302
    %v6304 = vpop.f32.mrf.mxu0
    %v6305 = vadd.f32 %v1060, %v6304
    %v6306 = vpop.f32.mrf.mxu0
    %v6307 = vpop.f32.mrf.mxu0
    %6308 = vdwg.mxu0
    %6309 = vmatprep.subr.bf16.mxu0 %v4108
    %6310 = vmatpush1.bf16.msra.mxu0 %v4107
    %6311 = vmatprep.subr.bf16.mxu0 %v4090
    %6312 = vmatpush1.bf16.msra.mxu0 %v4089
    %6313 = vmatprep.subr.bf16.mxu0 %v4072
    %6314 = vmatpush1.bf16.msra.mxu0 %v4071
    %6315 = vmatprep.subr.bf16.mxu0 %v4054
    %6316 = vmatpush1.bf16.msra.mxu0 %v4053
    %6317 = vmatprep.subr.bf16.mxu0 %v4036
    %6318 = vmatpush1.bf16.msra.mxu0 %v4035
    %6319 = vmatprep.subr.bf16.mxu0 %v4018
    %6320 = vmatpush1.bf16.msra.mxu0 %v4017
    %6321 = vmatprep.subr.bf16.mxu0 %v4000
    %6322 = vmatpush1.bf16.msra.mxu0 %v3999
    %6323 = vmatprep.subr.bf16.mxu0 %v3982
    %6324 = vmatpush1.bf16.msra.mxu0 %v3981
    %6325 = vmatprep.subr.bf16.mxu0 %v4252
    %6326 = vmatpush2.bf16.msra.mxu0 %v4251
    %6327 = vmatprep.subr.bf16.mxu0 %v4234
    %6328 = vmatpush2.bf16.msra.mxu0 %v4233
    %6329 = vmatprep.subr.bf16.mxu0 %v4216
    %6330 = vmatpush2.bf16.msra.mxu0 %v4215
    %6331 = vmatprep.subr.bf16.mxu0 %v4198
    %6332 = vmatpush2.bf16.msra.mxu0 %v4197
    %6333 = vmatprep.subr.bf16.mxu0 %v4180
    %6334 = vmatpush2.bf16.msra.mxu0 %v4179
    %6335 = vmatprep.subr.bf16.mxu0 %v4162
    %6336 = vmatpush2.bf16.msra.mxu0 %v4161
    %6337 = vmatprep.subr.bf16.mxu0 %v4144
    %6338 = vmatpush2.bf16.msra.mxu0 %v4143
    %6339 = vmatprep.subr.bf16.mxu0 %v4126
    %6340 = vmatpush2.bf16.msra.mxu0 %v4125
    %6341 = vmatprep.mubr.bf16.mxu0 %v124
    %6342 = vmatmul.mubr.bf16.gmra.mxu0 %v123
    %v6343 = vpop.f32.mrf.mxu0
    %v6344 = vadd.f32 %v6303, %v6343
    %v6345 = vpop.f32.mrf.mxu0
    %v6346 = vadd.f32 %v6305, %v6345
    %v6347 = vpop.f32.mrf.mxu0
    %v6348 = vpop.f32.mrf.mxu0
    %6349 = vdwg.mxu0
    %6350 = vmatprep.subr.bf16.mxu0 %v4396
    %6351 = vmatpush1.bf16.msra.mxu0 %v4395
    %6352 = vmatprep.subr.bf16.mxu0 %v4378
    %6353 = vmatpush1.bf16.msra.mxu0 %v4377
    %6354 = vmatprep.subr.bf16.mxu0 %v4360
    %6355 = vmatpush1.bf16.msra.mxu0 %v4359
    %6356 = vmatprep.subr.bf16.mxu0 %v4342
    %6357 = vmatpush1.bf16.msra.mxu0 %v4341
    %6358 = vmatprep.subr.bf16.mxu0 %v4324
    %6359 = vmatpush1.bf16.msra.mxu0 %v4323
    %6360 = vmatprep.subr.bf16.mxu0 %v4306
    %6361 = vmatpush1.bf16.msra.mxu0 %v4305
    %6362 = vmatprep.subr.bf16.mxu0 %v4288
    %6363 = vmatpush1.bf16.msra.mxu0 %v4287
    %6364 = vmatprep.subr.bf16.mxu0 %v4270
    %6365 = vmatpush1.bf16.msra.mxu0 %v4269
    %6366 = vmatprep.subr.bf16.mxu0 %v4540
    %6367 = vmatpush2.bf16.msra.mxu0 %v4539
    %6368 = vmatprep.subr.bf16.mxu0 %v4522
    %6369 = vmatpush2.bf16.msra.mxu0 %v4521
    %6370 = vmatprep.subr.bf16.mxu0 %v4504
    %6371 = vmatpush2.bf16.msra.mxu0 %v4503
    %6372 = vmatprep.subr.bf16.mxu0 %v4486
    %6373 = vmatpush2.bf16.msra.mxu0 %v4485
    %6374 = vmatprep.subr.bf16.mxu0 %v4468
    %6375 = vmatpush2.bf16.msra.mxu0 %v4467
    %6376 = vmatprep.subr.bf16.mxu0 %v4450
    %6377 = vmatpush2.bf16.msra.mxu0 %v4449
    %6378 = vmatprep.subr.bf16.mxu0 %v4432
    %6379 = vmatpush2.bf16.msra.mxu0 %v4431
    %6380 = vmatprep.subr.bf16.mxu0 %v4414
    %6381 = vmatpush2.bf16.msra.mxu0 %v4413
    %6382 = vmatprep.mubr.bf16.mxu0 %v126
    %6383 = vmatmul.mubr.bf16.gmra.mxu0 %v125
    %v6384 = vpop.f32.mrf.mxu0
    %v6385 = vadd.f32 %v6344, %v6384
    %v6386 = vpop.f32.mrf.mxu0
    %v6387 = vadd.f32 %v6346, %v6386
    %v6388 = vpop.f32.mrf.mxu0
    %v6389 = vpop.f32.mrf.mxu0
    %6390 = vdwg.mxu0
    %6391 = vmatprep.subr.bf16.mxu0 %v3822
    %6392 = vmatpush1.bf16.msra.mxu0 %v3821
    %6393 = vmatprep.subr.bf16.mxu0 %v3804
    %6394 = vmatpush1.bf16.msra.mxu0 %v3803
    %6395 = vmatprep.subr.bf16.mxu0 %v3786
    %6396 = vmatpush1.bf16.msra.mxu0 %v3785
    %6397 = vmatprep.subr.bf16.mxu0 %v3768
    %6398 = vmatpush1.bf16.msra.mxu0 %v3767
    %6399 = vmatprep.subr.bf16.mxu0 %v3750
    %6400 = vmatpush1.bf16.msra.mxu0 %v3749
    %6401 = vmatprep.subr.bf16.mxu0 %v3732
    %6402 = vmatpush1.bf16.msra.mxu0 %v3731
    %6403 = vmatprep.subr.bf16.mxu0 %v3714
    %6404 = vmatpush1.bf16.msra.mxu0 %v3713
    %6405 = vmatprep.subr.bf16.mxu0 %v3696
    %6406 = vmatpush1.bf16.msra.mxu0 %v3695
    %6407 = vmatprep.subr.bf16.mxu0 %v3966
    %6408 = vmatpush2.bf16.msra.mxu0 %v3965
    %6409 = vmatprep.subr.bf16.mxu0 %v3948
    %6410 = vmatpush2.bf16.msra.mxu0 %v3947
    %6411 = vmatprep.subr.bf16.mxu0 %v3930
    %6412 = vmatpush2.bf16.msra.mxu0 %v3929
    %6413 = vmatprep.subr.bf16.mxu0 %v3912
    %6414 = vmatpush2.bf16.msra.mxu0 %v3911
    %6415 = vmatprep.subr.bf16.mxu0 %v3894
    %6416 = vmatpush2.bf16.msra.mxu0 %v3893
    %6417 = vmatprep.subr.bf16.mxu0 %v3876
    %6418 = vmatpush2.bf16.msra.mxu0 %v3875
    %6419 = vmatprep.subr.bf16.mxu0 %v3858
    %6420 = vmatpush2.bf16.msra.mxu0 %v3857
    %6421 = vmatprep.subr.bf16.mxu0 %v3840
    %6422 = vmatpush2.bf16.msra.mxu0 %v3839
    %6423 = vmatprep.mubr.bf16.mxu0 %v122
    %6424 = vmatmul.mubr.bf16.gmra.mxu0 %v121
    %v6425 = vpop.f32.mrf.mxu0
    %v6426 = vadd.f32 %v1064, %v6425
    %v6427 = vpop.f32.mrf.mxu0
    %v6428 = vadd.f32 %v1068, %v6427
    %v6429 = vpop.f32.mrf.mxu0
    %v6430 = vpop.f32.mrf.mxu0
    %6431 = vdwg.mxu0
    %6432 = vmatprep.subr.bf16.mxu0 %v4110
    %6433 = vmatpush1.bf16.msra.mxu0 %v4109
    %6434 = vmatprep.subr.bf16.mxu0 %v4092
    %6435 = vmatpush1.bf16.msra.mxu0 %v4091
    %6436 = vmatprep.subr.bf16.mxu0 %v4074
    %6437 = vmatpush1.bf16.msra.mxu0 %v4073
    %6438 = vmatprep.subr.bf16.mxu0 %v4056
    %6439 = vmatpush1.bf16.msra.mxu0 %v4055
    %6440 = vmatprep.subr.bf16.mxu0 %v4038
    %6441 = vmatpush1.bf16.msra.mxu0 %v4037
    %6442 = vmatprep.subr.bf16.mxu0 %v4020
    %6443 = vmatpush1.bf16.msra.mxu0 %v4019
    %6444 = vmatprep.subr.bf16.mxu0 %v4002
    %6445 = vmatpush1.bf16.msra.mxu0 %v4001
    %6446 = vmatprep.subr.bf16.mxu0 %v3984
    %6447 = vmatpush1.bf16.msra.mxu0 %v3983
    %6448 = vmatprep.subr.bf16.mxu0 %v4254
    %6449 = vmatpush2.bf16.msra.mxu0 %v4253
    %6450 = vmatprep.subr.bf16.mxu0 %v4236
    %6451 = vmatpush2.bf16.msra.mxu0 %v4235
    %6452 = vmatprep.subr.bf16.mxu0 %v4218
    %6453 = vmatpush2.bf16.msra.mxu0 %v4217
    %6454 = vmatprep.subr.bf16.mxu0 %v4200
    %6455 = vmatpush2.bf16.msra.mxu0 %v4199
    %6456 = vmatprep.subr.bf16.mxu0 %v4182
    %6457 = vmatpush2.bf16.msra.mxu0 %v4181
    %6458 = vmatprep.subr.bf16.mxu0 %v4164
    %6459 = vmatpush2.bf16.msra.mxu0 %v4163
    %6460 = vmatprep.subr.bf16.mxu0 %v4146
    %6461 = vmatpush2.bf16.msra.mxu0 %v4145
    %6462 = vmatprep.subr.bf16.mxu0 %v4128
    %6463 = vmatpush2.bf16.msra.mxu0 %v4127
    %6464 = vmatprep.mubr.bf16.mxu0 %v124
    %6465 = vmatmul.mubr.bf16.gmra.mxu0 %v123
    %v6466 = vpop.f32.mrf.mxu0
    %v6467 = vadd.f32 %v6426, %v6466
    %v6468 = vpop.f32.mrf.mxu0
    %v6469 = vadd.f32 %v6428, %v6468
    %v6470 = vpop.f32.mrf.mxu0
    %v6471 = vpop.f32.mrf.mxu0
    %6472 = vdwg.mxu0
    %6473 = vmatprep.subr.bf16.mxu0 %v4398
    %6474 = vmatpush1.bf16.msra.mxu0 %v4397
    %6475 = vmatprep.subr.bf16.mxu0 %v4380
    %6476 = vmatpush1.bf16.msra.mxu0 %v4379
    %6477 = vmatprep.subr.bf16.mxu0 %v4362
    %6478 = vmatpush1.bf16.msra.mxu0 %v4361
    %6479 = vmatprep.subr.bf16.mxu0 %v4344
    %6480 = vmatpush1.bf16.msra.mxu0 %v4343
    %6481 = vmatprep.subr.bf16.mxu0 %v4326
    %6482 = vmatpush1.bf16.msra.mxu0 %v4325
    %6483 = vmatprep.subr.bf16.mxu0 %v4308
    %6484 = vmatpush1.bf16.msra.mxu0 %v4307
    %6485 = vmatprep.subr.bf16.mxu0 %v4290
    %6486 = vmatpush1.bf16.msra.mxu0 %v4289
    %6487 = vmatprep.subr.bf16.mxu0 %v4272
    %6488 = vmatpush1.bf16.msra.mxu0 %v4271
    %6489 = vmatprep.subr.bf16.mxu0 %v4542
    %6490 = vmatpush2.bf16.msra.mxu0 %v4541
    %6491 = vmatprep.subr.bf16.mxu0 %v4524
    %6492 = vmatpush2.bf16.msra.mxu0 %v4523
    %6493 = vmatprep.subr.bf16.mxu0 %v4506
    %6494 = vmatpush2.bf16.msra.mxu0 %v4505
    %6495 = vmatprep.subr.bf16.mxu0 %v4488
    %6496 = vmatpush2.bf16.msra.mxu0 %v4487
    %6497 = vmatprep.subr.bf16.mxu0 %v4470
    %6498 = vmatpush2.bf16.msra.mxu0 %v4469
    %6499 = vmatprep.subr.bf16.mxu0 %v4452
    %6500 = vmatpush2.bf16.msra.mxu0 %v4451
    %6501 = vmatprep.subr.bf16.mxu0 %v4434
    %6502 = vmatpush2.bf16.msra.mxu0 %v4433
    %6503 = vmatprep.subr.bf16.mxu0 %v4416
    %6504 = vmatpush2.bf16.msra.mxu0 %v4415
    %6505 = vmatprep.mubr.bf16.mxu0 %v126
    %6506 = vmatmul.mubr.bf16.gmra.mxu0 %v125
    %v6507 = vpop.f32.mrf.mxu0
    %v6508 = vadd.f32 %v6467, %v6507
    %v6509 = vpop.f32.mrf.mxu0
    %v6510 = vadd.f32 %v6469, %v6509
    %v6511 = vpop.f32.mrf.mxu0
    %v6512 = vpop.f32.mrf.mxu0
    %6513 = vdwg.mxu0
    %v6514 = vxor.u32 %v5524, 2147483648
    %v6515 = vxor.u32 %v5526, 2147483648
    %v6516 = vxor.u32 %v5647, 2147483648
    %v6517 = vxor.u32 %v5649, 2147483648
    %v6518 = vxor.u32 %v5770, 2147483648
    %v6519 = vxor.u32 %v5772, 2147483648
    %v6520 = vmul.f32 %v6514, 1.442695
    %v6521 = vpow.pop %v6520
    %v6522 = vmul.f32 %v6515, 1.442695
    %v6523 = vpow.pop %v6522
    %v6524 = vmul.f32 %v6516, 1.442695
    %v6525 = vpow.pop %v6524
    %v6526 = vmul.f32 %v6517, 1.442695
    %v6527 = vpow.pop %v6526
    %v6528 = vmul.f32 %v6518, 1.442695
    %v6529 = vpow.pop %v6528
    %v6530 = vmul.f32 %v6519, 1.442695
    %v6531 = vpow.pop %v6530
    %v6532 = vadd.f32 %v6521, 1.0
    %v6533 = vadd.f32 %v6523, 1.0
    %v6534 = vadd.f32 %v6525, 1.0
    %v6535 = vadd.f32 %v6527, 1.0
    %v6536 = vadd.f32 %v6529, 1.0
    %v6537 = vadd.f32 %v6531, 1.0
    %v6538 = vrcp.pop %v6532
    %v6539 = vmul.f32 1.0, %v6538
    %v6540 = vrcp.pop %v6533
    %v6541 = vmul.f32 1.0, %v6540
    %v6542 = vrcp.pop %v6534
    %v6543 = vmul.f32 1.0, %v6542
    %v6544 = vrcp.pop %v6535
    %v6545 = vmul.f32 1.0, %v6544
    %v6546 = vrcp.pop %v6536
    %v6547 = vmul.f32 1.0, %v6546
    %v6548 = vrcp.pop %v6537
    %v6549 = vmul.f32 1.0, %v6548
    %v6550 = vtanh.pop %v5893
    %v6551 = vtanh.pop %v5895
    %v6552 = vtanh.pop %v6016
    %v6553 = vtanh.pop %v6018
    %v6554 = vtanh.pop %v6139
    %v6555 = vtanh.pop %v6141
    %v6556 = vxor.u32 %v6262, 2147483648
    %v6557 = vxor.u32 %v6264, 2147483648
    %v6558 = vxor.u32 %v6385, 2147483648
    %v6559 = vxor.u32 %v6387, 2147483648
    %v6560 = vxor.u32 %v6508, 2147483648
    %v6561 = vxor.u32 %v6510, 2147483648
    %v6562 = vmul.f32 %v6556, 1.442695
    %v6563 = vpow.pop %v6562
    %v6564 = vmul.f32 %v6557, 1.442695
    %v6565 = vpow.pop %v6564
    %v6566 = vmul.f32 %v6558, 1.442695
    %v6567 = vpow.pop %v6566
    %v6568 = vmul.f32 %v6559, 1.442695
    %v6569 = vpow.pop %v6568
    %v6570 = vmul.f32 %v6560, 1.442695
    %v6571 = vpow.pop %v6570
    %v6572 = vmul.f32 %v6561, 1.442695
    %v6573 = vpow.pop %v6572
    %v6574 = vadd.f32 %v6563, 1.0
    %v6575 = vadd.f32 %v6565, 1.0
    %v6576 = vadd.f32 %v6567, 1.0
    %v6577 = vadd.f32 %v6569, 1.0
    %v6578 = vadd.f32 %v6571, 1.0
    %v6579 = vadd.f32 %v6573, 1.0
    %v6580 = vrcp.pop %v6574
    %v6581 = vmul.f32 1.0, %v6580
    %v6582 = vrcp.pop %v6575
    %v6583 = vmul.f32 1.0, %v6582
    %v6584 = vrcp.pop %v6576
    %v6585 = vmul.f32 1.0, %v6584
    %v6586 = vrcp.pop %v6577
    %v6587 = vmul.f32 1.0, %v6586
    %v6588 = vrcp.pop %v6578
    %v6589 = vmul.f32 1.0, %v6588
    %v6590 = vrcp.pop %v6579
    %v6591 = vmul.f32 1.0, %v6590
    %v6592 = vmul.f32 %v6539, %v6550
    %v6593 = vmul.f32 %v6541, %v6551
    %v6594 = vmul.f32 %v6543, %v6552
    %v6595 = vmul.f32 %v6545, %v6553
    %v6596 = vmul.f32 %v6547, %v6554
    %v6597 = vmul.f32 %v6549, %v6555
    %v6598 = vtanh.pop %v6592
    %v6599 = vtanh.pop %v6593
    %v6600 = vtanh.pop %v6594
    %v6601 = vtanh.pop %v6595
    %v6602 = vtanh.pop %v6596
    %v6603 = vtanh.pop %v6597
    %v6604 = vmul.f32 %v6581, %v6598
    %v6605 = vmul.f32 %v6583, %v6599
    %v6606 = vmul.f32 %v6585, %v6600
    %v6607 = vmul.f32 %v6587, %v6601
    %v6608 = vmul.f32 %v6589, %v6602
    %v6609 = vmul.f32 %v6591, %v6603
    %v6610 = vpack.c.bf16 %v6604, %v6604
    %v6611 = vpack.c.bf16 %v6605, %v6605
    %v6612 = vpack.c.bf16 %v6606, %v6606
    %v6613 = vpack.c.bf16 %v6607, %v6607
    %v6614 = vpack.c.bf16 %v6608, %v6608
    %v6615 = vpack.c.bf16 %v6609, %v6609
    %v6616 = vld [vmem:[#allocation8] sm:$0xff]
    %v6617 = vld [vmem:[#allocation8 + $0x8] sm:$0xff]
    %v6618 = vld [vmem:[#allocation8 + $0x10] sm:$0xff]
    %v6619 = vld [vmem:[#allocation8 + $0x18] sm:$0xff]
    %v6620 = vld [vmem:[#allocation8 + $0x20] sm:$0xff]
    %v6621 = vld [vmem:[#allocation8 + $0x28] sm:$0xff]
    %v6622 = vld [vmem:[#allocation8 + $0x30] sm:$0xff]
    %v6623 = vld [vmem:[#allocation8 + $0x38] sm:$0xff]
    %v6624 = vld [vmem:[#allocation8 + $0x40] sm:$0xff]
    %v6625 = vld [vmem:[#allocation8 + $0x48] sm:$0xff]
    %v6626 = vld [vmem:[#allocation8 + $0x50] sm:$0xff]
    %v6627 = vld [vmem:[#allocation8 + $0x58] sm:$0xff]
    %v6628 = vld [vmem:[#allocation8 + $0x60] sm:$0xff]
    %v6629 = vld [vmem:[#allocation8 + $0x68] sm:$0xff]
    %v6630 = vld [vmem:[#allocation8 + $0x70] sm:$0xff]
    %v6631 = vld [vmem:[#allocation8 + $0x78] sm:$0xff]
    %v6632 = vld [vmem:[#allocation8 + $0x80] sm:$0xff]
    %v6633 = vld [vmem:[#allocation8 + $0x88] sm:$0xff]
    %v6634 = vld [vmem:[#allocation8 + $0x90] sm:$0xff]
    %v6635 = vld [vmem:[#allocation8 + $0x98] sm:$0xff]
    %v6636 = vld [vmem:[#allocation8 + $0xa0] sm:$0xff]
    %v6637 = vld [vmem:[#allocation8 + $0xa8] sm:$0xff]
    %v6638 = vld [vmem:[#allocation8 + $0xb0] sm:$0xff]
    %v6639 = vld [vmem:[#allocation8 + $0xb8] sm:$0xff]
    %v6640 = vld [vmem:[#allocation8 + $0xc0] sm:$0xff]
    %v6641 = vld [vmem:[#allocation8 + $0xc8] sm:$0xff]
    %v6642 = vld [vmem:[#allocation8 + $0xd0] sm:$0xff]
    %v6643 = vld [vmem:[#allocation8 + $0xd8] sm:$0xff]
    %v6644 = vld [vmem:[#allocation8 + $0xe0] sm:$0xff]
    %v6645 = vld [vmem:[#allocation8 + $0xe8] sm:$0xff]
    %v6646 = vld [vmem:[#allocation8 + $0xf0] sm:$0xff]
    %v6647 = vld [vmem:[#allocation8 + $0xf8] sm:$0xff]
    %v6648 = vld [vmem:[#allocation8 + $0x100] sm:$0xff]
    %v6649 = vld [vmem:[#allocation8 + $0x108] sm:$0xff]
    %v6650 = vld [vmem:[#allocation8 + $0x110] sm:$0xff]
    %v6651 = vld [vmem:[#allocation8 + $0x118] sm:$0xff]
    %v6652 = vld [vmem:[#allocation8 + $0x120] sm:$0xff]
    %v6653 = vld [vmem:[#allocation8 + $0x128] sm:$0xff]
    %v6654 = vld [vmem:[#allocation8 + $0x130] sm:$0xff]
    %v6655 = vld [vmem:[#allocation8 + $0x138] sm:$0xff]
    %v6656 = vld [vmem:[#allocation8 + $0x140] sm:$0xff]
    %v6657 = vld [vmem:[#allocation8 + $0x148] sm:$0xff]
    %v6658 = vld [vmem:[#allocation8 + $0x150] sm:$0xff]
    %v6659 = vld [vmem:[#allocation8 + $0x158] sm:$0xff]
    %v6660 = vld [vmem:[#allocation8 + $0x160] sm:$0xff]
    %v6661 = vld [vmem:[#allocation8 + $0x168] sm:$0xff]
    %v6662 = vld [vmem:[#allocation8 + $0x170] sm:$0xff]
    %v6663 = vld [vmem:[#allocation8 + $0x178] sm:$0xff]
    %v6664 = vld [vmem:[#allocation8 + $0x180] sm:$0xff]
    %v6665 = vld [vmem:[#allocation8 + $0x188] sm:$0xff]
    %v6666 = vld [vmem:[#allocation8 + $0x190] sm:$0xff]
    %v6667 = vld [vmem:[#allocation8 + $0x198] sm:$0xff]
    %v6668 = vld [vmem:[#allocation8 + $0x1a0] sm:$0xff]
    %v6669 = vld [vmem:[#allocation8 + $0x1a8] sm:$0xff]
    %v6670 = vld [vmem:[#allocation8 + $0x1b0] sm:$0xff]
    %v6671 = vld [vmem:[#allocation8 + $0x1b8] sm:$0xff]
    %v6672 = vld [vmem:[#allocation8 + $0x1c0] sm:$0xff]
    %v6673 = vld [vmem:[#allocation8 + $0x1c8] sm:$0xff]
    %v6674 = vld [vmem:[#allocation8 + $0x1d0] sm:$0xff]
    %v6675 = vld [vmem:[#allocation8 + $0x1d8] sm:$0xff]
    %v6676 = vld [vmem:[#allocation8 + $0x1e0] sm:$0xff]
    %v6677 = vld [vmem:[#allocation8 + $0x1e8] sm:$0xff]
    %v6678 = vld [vmem:[#allocation8 + $0x1f0] sm:$0xff]
    %v6679 = vld [vmem:[#allocation8 + $0x1f8] sm:$0xff]
    %v6680 = vld [vmem:[#allocation8 + $0x200] sm:$0xff]
    %v6681 = vld [vmem:[#allocation8 + $0x208] sm:$0xff]
    %v6682 = vld [vmem:[#allocation8 + $0x210] sm:$0xff]
    %v6683 = vld [vmem:[#allocation8 + $0x218] sm:$0xff]
    %v6684 = vld [vmem:[#allocation8 + $0x220] sm:$0xff]
    %v6685 = vld [vmem:[#allocation8 + $0x228] sm:$0xff]
    %v6686 = vld [vmem:[#allocation8 + $0x230] sm:$0xff]
    %v6687 = vld [vmem:[#allocation8 + $0x238] sm:$0xff]
    %v6688 = vld [vmem:[#allocation8 + $0x240] sm:$0xff]
    %v6689 = vld [vmem:[#allocation8 + $0x248] sm:$0xff]
    %v6690 = vld [vmem:[#allocation8 + $0x250] sm:$0xff]
    %v6691 = vld [vmem:[#allocation8 + $0x258] sm:$0xff]
    %v6692 = vld [vmem:[#allocation8 + $0x260] sm:$0xff]
    %v6693 = vld [vmem:[#allocation8 + $0x268] sm:$0xff]
    %v6694 = vld [vmem:[#allocation8 + $0x270] sm:$0xff]
    %v6695 = vld [vmem:[#allocation8 + $0x278] sm:$0xff]
    %v6696 = vld [vmem:[#allocation8 + $0x280] sm:$0xff]
    %v6697 = vld [vmem:[#allocation8 + $0x288] sm:$0xff]
    %v6698 = vld [vmem:[#allocation8 + $0x290] sm:$0xff]
    %v6699 = vld [vmem:[#allocation8 + $0x298] sm:$0xff]
    %v6700 = vld [vmem:[#allocation8 + $0x2a0] sm:$0xff]
    %v6701 = vld [vmem:[#allocation8 + $0x2a8] sm:$0xff]
    %v6702 = vld [vmem:[#allocation8 + $0x2b0] sm:$0xff]
    %v6703 = vld [vmem:[#allocation8 + $0x2b8] sm:$0xff]
    %v6704 = vld [vmem:[#allocation8 + $0x2c0] sm:$0xff]
    %v6705 = vld [vmem:[#allocation8 + $0x2c8] sm:$0xff]
    %v6706 = vld [vmem:[#allocation8 + $0x2d0] sm:$0xff]
    %v6707 = vld [vmem:[#allocation8 + $0x2d8] sm:$0xff]
    %v6708 = vld [vmem:[#allocation8 + $0x2e0] sm:$0xff]
    %v6709 = vld [vmem:[#allocation8 + $0x2e8] sm:$0xff]
    %v6710 = vld [vmem:[#allocation8 + $0x2f0] sm:$0xff]
    %v6711 = vld [vmem:[#allocation8 + $0x2f8] sm:$0xff]
    %v6712 = vld [vmem:[#allocation8 + $0x300] sm:$0xff]
    %v6713 = vld [vmem:[#allocation8 + $0x308] sm:$0xff]
    %v6714 = vld [vmem:[#allocation8 + $0x310] sm:$0xff]
    %v6715 = vld [vmem:[#allocation8 + $0x318] sm:$0xff]
    %v6716 = vld [vmem:[#allocation8 + $0x320] sm:$0xff]
    %v6717 = vld [vmem:[#allocation8 + $0x328] sm:$0xff]
    %v6718 = vld [vmem:[#allocation8 + $0x330] sm:$0xff]
    %v6719 = vld [vmem:[#allocation8 + $0x338] sm:$0xff]
    %v6720 = vld [vmem:[#allocation8 + $0x340] sm:$0xff]
    %v6721 = vld [vmem:[#allocation8 + $0x348] sm:$0xff]
    %v6722 = vld [vmem:[#allocation8 + $0x350] sm:$0xff]
    %v6723 = vld [vmem:[#allocation8 + $0x358] sm:$0xff]
    %v6724 = vld [vmem:[#allocation8 + $0x360] sm:$0xff]
    %v6725 = vld [vmem:[#allocation8 + $0x368] sm:$0xff]
    %v6726 = vld [vmem:[#allocation8 + $0x370] sm:$0xff]
    %v6727 = vld [vmem:[#allocation8 + $0x378] sm:$0xff]
    %v6728 = vld [vmem:[#allocation8 + $0x380] sm:$0xff]
    %v6729 = vld [vmem:[#allocation8 + $0x388] sm:$0xff]
    %v6730 = vld [vmem:[#allocation8 + $0x390] sm:$0xff]
    %v6731 = vld [vmem:[#allocation8 + $0x398] sm:$0xff]
    %v6732 = vld [vmem:[#allocation8 + $0x3a0] sm:$0xff]
    %v6733 = vld [vmem:[#allocation8 + $0x3a8] sm:$0xff]
    %v6734 = vld [vmem:[#allocation8 + $0x3b0] sm:$0xff]
    %v6735 = vld [vmem:[#allocation8 + $0x3b8] sm:$0xff]
    %v6736 = vld [vmem:[#allocation8 + $0x3c0] sm:$0xff]
    %v6737 = vld [vmem:[#allocation8 + $0x3c8] sm:$0xff]
    %v6738 = vld [vmem:[#allocation8 + $0x3d0] sm:$0xff]
    %v6739 = vld [vmem:[#allocation8 + $0x3d8] sm:$0xff]
    %v6740 = vld [vmem:[#allocation8 + $0x3e0] sm:$0xff]
    %v6741 = vld [vmem:[#allocation8 + $0x3e8] sm:$0xff]
    %v6742 = vld [vmem:[#allocation8 + $0x3f0] sm:$0xff]
    %v6743 = vld [vmem:[#allocation8 + $0x3f8] sm:$0xff]
    %v6744 = vld [vmem:[#allocation8 + $0x400] sm:$0xff]
    %v6745 = vld [vmem:[#allocation8 + $0x408] sm:$0xff]
    %v6746 = vld [vmem:[#allocation8 + $0x410] sm:$0xff]
    %v6747 = vld [vmem:[#allocation8 + $0x418] sm:$0xff]
    %v6748 = vld [vmem:[#allocation8 + $0x420] sm:$0xff]
    %v6749 = vld [vmem:[#allocation8 + $0x428] sm:$0xff]
    %v6750 = vld [vmem:[#allocation8 + $0x430] sm:$0xff]
    %v6751 = vld [vmem:[#allocation8 + $0x438] sm:$0xff]
    %v6752 = vld [vmem:[#allocation8 + $0x440] sm:$0xff]
    %v6753 = vld [vmem:[#allocation8 + $0x448] sm:$0xff]
    %v6754 = vld [vmem:[#allocation8 + $0x450] sm:$0xff]
    %v6755 = vld [vmem:[#allocation8 + $0x458] sm:$0xff]
    %v6756 = vld [vmem:[#allocation8 + $0x460] sm:$0xff]
    %v6757 = vld [vmem:[#allocation8 + $0x468] sm:$0xff]
    %v6758 = vld [vmem:[#allocation8 + $0x470] sm:$0xff]
    %v6759 = vld [vmem:[#allocation8 + $0x478] sm:$0xff]
    %v6760 = vld [vmem:[#allocation8 + $0x480] sm:$0xff]
    %v6761 = vld [vmem:[#allocation8 + $0x488] sm:$0xff]
    %v6762 = vld [vmem:[#allocation8 + $0x490] sm:$0xff]
    %v6763 = vld [vmem:[#allocation8 + $0x498] sm:$0xff]
    %v6764 = vld [vmem:[#allocation8 + $0x4a0] sm:$0xff]
    %v6765 = vld [vmem:[#allocation8 + $0x4a8] sm:$0xff]
    %v6766 = vld [vmem:[#allocation8 + $0x4b0] sm:$0xff]
    %v6767 = vld [vmem:[#allocation8 + $0x4b8] sm:$0xff]
    %v6768 = vld [vmem:[#allocation8 + $0x4c0] sm:$0xff]
    %v6769 = vld [vmem:[#allocation8 + $0x4c8] sm:$0xff]
    %v6770 = vld [vmem:[#allocation8 + $0x4d0] sm:$0xff]
    %v6771 = vld [vmem:[#allocation8 + $0x4d8] sm:$0xff]
    %v6772 = vld [vmem:[#allocation8 + $0x4e0] sm:$0xff]
    %v6773 = vld [vmem:[#allocation8 + $0x4e8] sm:$0xff]
    %v6774 = vld [vmem:[#allocation8 + $0x4f0] sm:$0xff]
    %v6775 = vld [vmem:[#allocation8 + $0x4f8] sm:$0xff]
    %v6776 = vld [vmem:[#allocation8 + $0x500] sm:$0xff]
    %v6777 = vld [vmem:[#allocation8 + $0x508] sm:$0xff]
    %v6778 = vld [vmem:[#allocation8 + $0x510] sm:$0xff]
    %v6779 = vld [vmem:[#allocation8 + $0x518] sm:$0xff]
    %v6780 = vld [vmem:[#allocation8 + $0x520] sm:$0xff]
    %v6781 = vld [vmem:[#allocation8 + $0x528] sm:$0xff]
    %v6782 = vld [vmem:[#allocation8 + $0x530] sm:$0xff]
    %v6783 = vld [vmem:[#allocation8 + $0x538] sm:$0xff]
    %v6784 = vld [vmem:[#allocation8 + $0x540] sm:$0xff]
    %v6785 = vld [vmem:[#allocation8 + $0x548] sm:$0xff]
    %v6786 = vld [vmem:[#allocation8 + $0x550] sm:$0xff]
    %v6787 = vld [vmem:[#allocation8 + $0x558] sm:$0xff]
    %v6788 = vld [vmem:[#allocation8 + $0x560] sm:$0xff]
    %v6789 = vld [vmem:[#allocation8 + $0x568] sm:$0xff]
    %v6790 = vld [vmem:[#allocation8 + $0x570] sm:$0xff]
    %v6791 = vld [vmem:[#allocation8 + $0x578] sm:$0xff]
    %v6792 = vld [vmem:[#allocation8 + $0x580] sm:$0xff]
    %v6793 = vld [vmem:[#allocation8 + $0x588] sm:$0xff]
    %v6794 = vld [vmem:[#allocation8 + $0x590] sm:$0xff]
    %v6795 = vld [vmem:[#allocation8 + $0x598] sm:$0xff]
    %v6796 = vld [vmem:[#allocation8 + $0x5a0] sm:$0xff]
    %v6797 = vld [vmem:[#allocation8 + $0x5a8] sm:$0xff]
    %v6798 = vld [vmem:[#allocation8 + $0x5b0] sm:$0xff]
    %v6799 = vld [vmem:[#allocation8 + $0x5b8] sm:$0xff]
    %v6800 = vld [vmem:[#allocation8 + $0x5c0] sm:$0xff]
    %v6801 = vld [vmem:[#allocation8 + $0x5c8] sm:$0xff]
    %v6802 = vld [vmem:[#allocation8 + $0x5d0] sm:$0xff]
    %v6803 = vld [vmem:[#allocation8 + $0x5d8] sm:$0xff]
    %v6804 = vld [vmem:[#allocation8 + $0x5e0] sm:$0xff]
    %v6805 = vld [vmem:[#allocation8 + $0x5e8] sm:$0xff]
    %v6806 = vld [vmem:[#allocation8 + $0x5f0] sm:$0xff]
    %v6807 = vld [vmem:[#allocation8 + $0x5f8] sm:$0xff]
    %v6808 = vld [vmem:[#allocation8 + $0x600] sm:$0xff]
    %v6809 = vld [vmem:[#allocation8 + $0x608] sm:$0xff]
    %v6810 = vld [vmem:[#allocation8 + $0x610] sm:$0xff]
    %v6811 = vld [vmem:[#allocation8 + $0x618] sm:$0xff]
    %v6812 = vld [vmem:[#allocation8 + $0x620] sm:$0xff]
    %v6813 = vld [vmem:[#allocation8 + $0x628] sm:$0xff]
    %v6814 = vld [vmem:[#allocation8 + $0x630] sm:$0xff]
    %v6815 = vld [vmem:[#allocation8 + $0x638] sm:$0xff]
    %v6816 = vld [vmem:[#allocation8 + $0x640] sm:$0xff]
    %v6817 = vld [vmem:[#allocation8 + $0x648] sm:$0xff]
    %v6818 = vld [vmem:[#allocation8 + $0x650] sm:$0xff]
    %v6819 = vld [vmem:[#allocation8 + $0x658] sm:$0xff]
    %v6820 = vld [vmem:[#allocation8 + $0x660] sm:$0xff]
    %v6821 = vld [vmem:[#allocation8 + $0x668] sm:$0xff]
    %v6822 = vld [vmem:[#allocation8 + $0x670] sm:$0xff]
    %v6823 = vld [vmem:[#allocation8 + $0x678] sm:$0xff]
    %v6824 = vld [vmem:[#allocation8 + $0x680] sm:$0xff]
    %v6825 = vld [vmem:[#allocation8 + $0x688] sm:$0xff]
    %v6826 = vld [vmem:[#allocation8 + $0x690] sm:$0xff]
    %v6827 = vld [vmem:[#allocation8 + $0x698] sm:$0xff]
    %v6828 = vld [vmem:[#allocation8 + $0x6a0] sm:$0xff]
    %v6829 = vld [vmem:[#allocation8 + $0x6a8] sm:$0xff]
    %v6830 = vld [vmem:[#allocation8 + $0x6b0] sm:$0xff]
    %v6831 = vld [vmem:[#allocation8 + $0x6b8] sm:$0xff]
    %v6832 = vld [vmem:[#allocation8 + $0x6c0] sm:$0xff]
    %v6833 = vld [vmem:[#allocation8 + $0x6c8] sm:$0xff]
    %v6834 = vld [vmem:[#allocation8 + $0x6d0] sm:$0xff]
    %v6835 = vld [vmem:[#allocation8 + $0x6d8] sm:$0xff]
    %v6836 = vld [vmem:[#allocation8 + $0x6e0] sm:$0xff]
    %v6837 = vld [vmem:[#allocation8 + $0x6e8] sm:$0xff]
    %v6838 = vld [vmem:[#allocation8 + $0x6f0] sm:$0xff]
    %v6839 = vld [vmem:[#allocation8 + $0x6f8] sm:$0xff]
    %v6840 = vld [vmem:[#allocation8 + $0x700] sm:$0xff]
    %v6841 = vld [vmem:[#allocation8 + $0x708] sm:$0xff]
    %v6842 = vld [vmem:[#allocation8 + $0x710] sm:$0xff]
    %v6843 = vld [vmem:[#allocation8 + $0x718] sm:$0xff]
    %v6844 = vld [vmem:[#allocation8 + $0x720] sm:$0xff]
    %v6845 = vld [vmem:[#allocation8 + $0x728] sm:$0xff]
    %v6846 = vld [vmem:[#allocation8 + $0x730] sm:$0xff]
    %v6847 = vld [vmem:[#allocation8 + $0x738] sm:$0xff]
    %v6848 = vld [vmem:[#allocation8 + $0x740] sm:$0xff]
    %v6849 = vld [vmem:[#allocation8 + $0x748] sm:$0xff]
    %v6850 = vld [vmem:[#allocation8 + $0x750] sm:$0xff]
    %v6851 = vld [vmem:[#allocation8 + $0x758] sm:$0xff]
    %v6852 = vld [vmem:[#allocation8 + $0x760] sm:$0xff]
    %v6853 = vld [vmem:[#allocation8 + $0x768] sm:$0xff]
    %v6854 = vld [vmem:[#allocation8 + $0x770] sm:$0xff]
    %v6855 = vld [vmem:[#allocation8 + $0x778] sm:$0xff]
    %v6856 = vld [vmem:[#allocation8 + $0x780] sm:$0xff]
    %v6857 = vld [vmem:[#allocation8 + $0x788] sm:$0xff]
    %v6858 = vld [vmem:[#allocation8 + $0x790] sm:$0xff]
    %v6859 = vld [vmem:[#allocation8 + $0x798] sm:$0xff]
    %v6860 = vld [vmem:[#allocation8 + $0x7a0] sm:$0xff]
    %v6861 = vld [vmem:[#allocation8 + $0x7a8] sm:$0xff]
    %v6862 = vld [vmem:[#allocation8 + $0x7b0] sm:$0xff]
    %v6863 = vld [vmem:[#allocation8 + $0x7b8] sm:$0xff]
    %v6864 = vld [vmem:[#allocation8 + $0x7c0] sm:$0xff]
    %v6865 = vld [vmem:[#allocation8 + $0x7c8] sm:$0xff]
    %v6866 = vld [vmem:[#allocation8 + $0x7d0] sm:$0xff]
    %v6867 = vld [vmem:[#allocation8 + $0x7d8] sm:$0xff]
    %v6868 = vld [vmem:[#allocation8 + $0x7e0] sm:$0xff]
    %v6869 = vld [vmem:[#allocation8 + $0x7e8] sm:$0xff]
    %v6870 = vld [vmem:[#allocation8 + $0x7f0] sm:$0xff]
    %v6871 = vld [vmem:[#allocation8 + $0x7f8] sm:$0xff]
    %v6872 = vld [vmem:[#allocation8 + $0x800] sm:$0xff]
    %v6873 = vld [vmem:[#allocation8 + $0x808] sm:$0xff]
    %v6874 = vld [vmem:[#allocation8 + $0x810] sm:$0xff]
    %v6875 = vld [vmem:[#allocation8 + $0x818] sm:$0xff]
    %v6876 = vld [vmem:[#allocation8 + $0x820] sm:$0xff]
    %v6877 = vld [vmem:[#allocation8 + $0x828] sm:$0xff]
    %v6878 = vld [vmem:[#allocation8 + $0x830] sm:$0xff]
    %v6879 = vld [vmem:[#allocation8 + $0x838] sm:$0xff]
    %v6880 = vld [vmem:[#allocation8 + $0x840] sm:$0xff]
    %v6881 = vld [vmem:[#allocation8 + $0x848] sm:$0xff]
    %v6882 = vld [vmem:[#allocation8 + $0x850] sm:$0xff]
    %v6883 = vld [vmem:[#allocation8 + $0x858] sm:$0xff]
    %v6884 = vld [vmem:[#allocation8 + $0x860] sm:$0xff]
    %v6885 = vld [vmem:[#allocation8 + $0x868] sm:$0xff]
    %v6886 = vld [vmem:[#allocation8 + $0x870] sm:$0xff]
    %v6887 = vld [vmem:[#allocation8 + $0x878] sm:$0xff]
    %v6888 = vld [vmem:[#allocation8 + $0x880] sm:$0xff]
    %v6889 = vld [vmem:[#allocation8 + $0x888] sm:$0xff]
    %v6890 = vld [vmem:[#allocation8 + $0x890] sm:$0xff]
    %v6891 = vld [vmem:[#allocation8 + $0x898] sm:$0xff]
    %v6892 = vld [vmem:[#allocation8 + $0x8a0] sm:$0xff]
    %v6893 = vld [vmem:[#allocation8 + $0x8a8] sm:$0xff]
    %v6894 = vld [vmem:[#allocation8 + $0x8b0] sm:$0xff]
    %v6895 = vld [vmem:[#allocation8 + $0x8b8] sm:$0xff]
    %v6896 = vld [vmem:[#allocation8 + $0x8c0] sm:$0xff]
    %v6897 = vld [vmem:[#allocation8 + $0x8c8] sm:$0xff]
    %v6898 = vld [vmem:[#allocation8 + $0x8d0] sm:$0xff]
    %v6899 = vld [vmem:[#allocation8 + $0x8d8] sm:$0xff]
    %v6900 = vld [vmem:[#allocation8 + $0x8e0] sm:$0xff]
    %v6901 = vld [vmem:[#allocation8 + $0x8e8] sm:$0xff]
    %v6902 = vld [vmem:[#allocation8 + $0x8f0] sm:$0xff]
    %v6903 = vld [vmem:[#allocation8 + $0x8f8] sm:$0xff]
    %v6904 = vld [vmem:[#allocation8 + $0x900] sm:$0xff]
    %v6905 = vld [vmem:[#allocation8 + $0x908] sm:$0xff]
    %v6906 = vld [vmem:[#allocation8 + $0x910] sm:$0xff]
    %v6907 = vld [vmem:[#allocation8 + $0x918] sm:$0xff]
    %v6908 = vld [vmem:[#allocation8 + $0x920] sm:$0xff]
    %v6909 = vld [vmem:[#allocation8 + $0x928] sm:$0xff]
    %v6910 = vld [vmem:[#allocation8 + $0x930] sm:$0xff]
    %v6911 = vld [vmem:[#allocation8 + $0x938] sm:$0xff]
    %v6912 = vld [vmem:[#allocation8 + $0x940] sm:$0xff]
    %v6913 = vld [vmem:[#allocation8 + $0x948] sm:$0xff]
    %v6914 = vld [vmem:[#allocation8 + $0x950] sm:$0xff]
    %v6915 = vld [vmem:[#allocation8 + $0x958] sm:$0xff]
    %v6916 = vld [vmem:[#allocation8 + $0x960] sm:$0xff]
    %v6917 = vld [vmem:[#allocation8 + $0x968] sm:$0xff]
    %v6918 = vld [vmem:[#allocation8 + $0x970] sm:$0xff]
    %v6919 = vld [vmem:[#allocation8 + $0x978] sm:$0xff]
    %v6920 = vld [vmem:[#allocation8 + $0x980] sm:$0xff]
    %v6921 = vld [vmem:[#allocation8 + $0x988] sm:$0xff]
    %v6922 = vld [vmem:[#allocation8 + $0x990] sm:$0xff]
    %v6923 = vld [vmem:[#allocation8 + $0x998] sm:$0xff]
    %v6924 = vld [vmem:[#allocation8 + $0x9a0] sm:$0xff]
    %v6925 = vld [vmem:[#allocation8 + $0x9a8] sm:$0xff]
    %v6926 = vld [vmem:[#allocation8 + $0x9b0] sm:$0xff]
    %v6927 = vld [vmem:[#allocation8 + $0x9b8] sm:$0xff]
    %v6928 = vld [vmem:[#allocation8 + $0x9c0] sm:$0xff]
    %v6929 = vld [vmem:[#allocation8 + $0x9c8] sm:$0xff]
    %v6930 = vld [vmem:[#allocation8 + $0x9d0] sm:$0xff]
    %v6931 = vld [vmem:[#allocation8 + $0x9d8] sm:$0xff]
    %v6932 = vld [vmem:[#allocation8 + $0x9e0] sm:$0xff]
    %v6933 = vld [vmem:[#allocation8 + $0x9e8] sm:$0xff]
    %v6934 = vld [vmem:[#allocation8 + $0x9f0] sm:$0xff]
    %v6935 = vld [vmem:[#allocation8 + $0x9f8] sm:$0xff]
    %v6936 = vld [vmem:[#allocation8 + $0xa00] sm:$0xff]
    %v6937 = vld [vmem:[#allocation8 + $0xa08] sm:$0xff]
    %v6938 = vld [vmem:[#allocation8 + $0xa10] sm:$0xff]
    %v6939 = vld [vmem:[#allocation8 + $0xa18] sm:$0xff]
    %v6940 = vld [vmem:[#allocation8 + $0xa20] sm:$0xff]
    %v6941 = vld [vmem:[#allocation8 + $0xa28] sm:$0xff]
    %v6942 = vld [vmem:[#allocation8 + $0xa30] sm:$0xff]
    %v6943 = vld [vmem:[#allocation8 + $0xa38] sm:$0xff]
    %v6944 = vld [vmem:[#allocation8 + $0xa40] sm:$0xff]
    %v6945 = vld [vmem:[#allocation8 + $0xa48] sm:$0xff]
    %v6946 = vld [vmem:[#allocation8 + $0xa50] sm:$0xff]
    %v6947 = vld [vmem:[#allocation8 + $0xa58] sm:$0xff]
    %v6948 = vld [vmem:[#allocation8 + $0xa60] sm:$0xff]
    %v6949 = vld [vmem:[#allocation8 + $0xa68] sm:$0xff]
    %v6950 = vld [vmem:[#allocation8 + $0xa70] sm:$0xff]
    %v6951 = vld [vmem:[#allocation8 + $0xa78] sm:$0xff]
    %v6952 = vld [vmem:[#allocation8 + $0xa80] sm:$0xff]
    %v6953 = vld [vmem:[#allocation8 + $0xa88] sm:$0xff]
    %v6954 = vld [vmem:[#allocation8 + $0xa90] sm:$0xff]
    %v6955 = vld [vmem:[#allocation8 + $0xa98] sm:$0xff]
    %v6956 = vld [vmem:[#allocation8 + $0xaa0] sm:$0xff]
    %v6957 = vld [vmem:[#allocation8 + $0xaa8] sm:$0xff]
    %v6958 = vld [vmem:[#allocation8 + $0xab0] sm:$0xff]
    %v6959 = vld [vmem:[#allocation8 + $0xab8] sm:$0xff]
    %v6960 = vld [vmem:[#allocation8 + $0xac0] sm:$0xff]
    %v6961 = vld [vmem:[#allocation8 + $0xac8] sm:$0xff]
    %v6962 = vld [vmem:[#allocation8 + $0xad0] sm:$0xff]
    %v6963 = vld [vmem:[#allocation8 + $0xad8] sm:$0xff]
    %v6964 = vld [vmem:[#allocation8 + $0xae0] sm:$0xff]
    %v6965 = vld [vmem:[#allocation8 + $0xae8] sm:$0xff]
    %v6966 = vld [vmem:[#allocation8 + $0xaf0] sm:$0xff]
    %v6967 = vld [vmem:[#allocation8 + $0xaf8] sm:$0xff]
    %v6968 = vld [vmem:[#allocation8 + $0xb00] sm:$0xff]
    %v6969 = vld [vmem:[#allocation8 + $0xb08] sm:$0xff]
    %v6970 = vld [vmem:[#allocation8 + $0xb10] sm:$0xff]
    %v6971 = vld [vmem:[#allocation8 + $0xb18] sm:$0xff]
    %v6972 = vld [vmem:[#allocation8 + $0xb20] sm:$0xff]
    %v6973 = vld [vmem:[#allocation8 + $0xb28] sm:$0xff]
    %v6974 = vld [vmem:[#allocation8 + $0xb30] sm:$0xff]
    %v6975 = vld [vmem:[#allocation8 + $0xb38] sm:$0xff]
    %v6976 = vld [vmem:[#allocation8 + $0xb40] sm:$0xff]
    %v6977 = vld [vmem:[#allocation8 + $0xb48] sm:$0xff]
    %v6978 = vld [vmem:[#allocation8 + $0xb50] sm:$0xff]
    %v6979 = vld [vmem:[#allocation8 + $0xb58] sm:$0xff]
    %v6980 = vld [vmem:[#allocation8 + $0xb60] sm:$0xff]
    %v6981 = vld [vmem:[#allocation8 + $0xb68] sm:$0xff]
    %v6982 = vld [vmem:[#allocation8 + $0xb70] sm:$0xff]
    %v6983 = vld [vmem:[#allocation8 + $0xb78] sm:$0xff]
    %v6984 = vld [vmem:[#allocation8 + $0xb80] sm:$0xff]
    %v6985 = vld [vmem:[#allocation8 + $0xb88] sm:$0xff]
    %v6986 = vld [vmem:[#allocation8 + $0xb90] sm:$0xff]
    %v6987 = vld [vmem:[#allocation8 + $0xb98] sm:$0xff]
    %v6988 = vld [vmem:[#allocation8 + $0xba0] sm:$0xff]
    %v6989 = vld [vmem:[#allocation8 + $0xba8] sm:$0xff]
    %v6990 = vld [vmem:[#allocation8 + $0xbb0] sm:$0xff]
    %v6991 = vld [vmem:[#allocation8 + $0xbb8] sm:$0xff]
    %v6992 = vld [vmem:[#allocation8 + $0xbc0] sm:$0xff]
    %v6993 = vld [vmem:[#allocation8 + $0xbc8] sm:$0xff]
    %v6994 = vld [vmem:[#allocation8 + $0xbd0] sm:$0xff]
    %v6995 = vld [vmem:[#allocation8 + $0xbd8] sm:$0xff]
    %v6996 = vld [vmem:[#allocation8 + $0xbe0] sm:$0xff]
    %v6997 = vld [vmem:[#allocation8 + $0xbe8] sm:$0xff]
    %v6998 = vld [vmem:[#allocation8 + $0xbf0] sm:$0xff]
    %v6999 = vld [vmem:[#allocation8 + $0xbf8] sm:$0xff]
    %v7000 = vld [vmem:[#allocation8 + $0xc00] sm:$0xff]
    %v7001 = vld [vmem:[#allocation8 + $0xc08] sm:$0xff]
    %v7002 = vld [vmem:[#allocation8 + $0xc10] sm:$0xff]
    %v7003 = vld [vmem:[#allocation8 + $0xc18] sm:$0xff]
    %v7004 = vld [vmem:[#allocation8 + $0xc20] sm:$0xff]
    %v7005 = vld [vmem:[#allocation8 + $0xc28] sm:$0xff]
    %v7006 = vld [vmem:[#allocation8 + $0xc30] sm:$0xff]
    %v7007 = vld [vmem:[#allocation8 + $0xc38] sm:$0xff]
    %v7008 = vld [vmem:[#allocation8 + $0xc40] sm:$0xff]
    %v7009 = vld [vmem:[#allocation8 + $0xc48] sm:$0xff]
    %v7010 = vld [vmem:[#allocation8 + $0xc50] sm:$0xff]
    %v7011 = vld [vmem:[#allocation8 + $0xc58] sm:$0xff]
    %v7012 = vld [vmem:[#allocation8 + $0xc60] sm:$0xff]
    %v7013 = vld [vmem:[#allocation8 + $0xc68] sm:$0xff]
    %v7014 = vld [vmem:[#allocation8 + $0xc70] sm:$0xff]
    %v7015 = vld [vmem:[#allocation8 + $0xc78] sm:$0xff]
    %v7016 = vld [vmem:[#allocation8 + $0xc80] sm:$0xff]
    %v7017 = vld [vmem:[#allocation8 + $0xc88] sm:$0xff]
    %v7018 = vld [vmem:[#allocation8 + $0xc90] sm:$0xff]
    %v7019 = vld [vmem:[#allocation8 + $0xc98] sm:$0xff]
    %v7020 = vld [vmem:[#allocation8 + $0xca0] sm:$0xff]
    %v7021 = vld [vmem:[#allocation8 + $0xca8] sm:$0xff]
    %v7022 = vld [vmem:[#allocation8 + $0xcb0] sm:$0xff]
    %v7023 = vld [vmem:[#allocation8 + $0xcb8] sm:$0xff]
    %v7024 = vld [vmem:[#allocation8 + $0xcc0] sm:$0xff]
    %v7025 = vld [vmem:[#allocation8 + $0xcc8] sm:$0xff]
    %v7026 = vld [vmem:[#allocation8 + $0xcd0] sm:$0xff]
    %v7027 = vld [vmem:[#allocation8 + $0xcd8] sm:$0xff]
    %v7028 = vld [vmem:[#allocation8 + $0xce0] sm:$0xff]
    %v7029 = vld [vmem:[#allocation8 + $0xce8] sm:$0xff]
    %v7030 = vld [vmem:[#allocation8 + $0xcf0] sm:$0xff]
    %v7031 = vld [vmem:[#allocation8 + $0xcf8] sm:$0xff]
    %v7032 = vld [vmem:[#allocation8 + $0xd00] sm:$0xff]
    %v7033 = vld [vmem:[#allocation8 + $0xd08] sm:$0xff]
    %v7034 = vld [vmem:[#allocation8 + $0xd10] sm:$0xff]
    %v7035 = vld [vmem:[#allocation8 + $0xd18] sm:$0xff]
    %v7036 = vld [vmem:[#allocation8 + $0xd20] sm:$0xff]
    %v7037 = vld [vmem:[#allocation8 + $0xd28] sm:$0xff]
    %v7038 = vld [vmem:[#allocation8 + $0xd30] sm:$0xff]
    %v7039 = vld [vmem:[#allocation8 + $0xd38] sm:$0xff]
    %v7040 = vld [vmem:[#allocation8 + $0xd40] sm:$0xff]
    %v7041 = vld [vmem:[#allocation8 + $0xd48] sm:$0xff]
    %v7042 = vld [vmem:[#allocation8 + $0xd50] sm:$0xff]
    %v7043 = vld [vmem:[#allocation8 + $0xd58] sm:$0xff]
    %v7044 = vld [vmem:[#allocation8 + $0xd60] sm:$0xff]
    %v7045 = vld [vmem:[#allocation8 + $0xd68] sm:$0xff]
    %v7046 = vld [vmem:[#allocation8 + $0xd70] sm:$0xff]
    %v7047 = vld [vmem:[#allocation8 + $0xd78] sm:$0xff]
    %v7048 = vld [vmem:[#allocation8 + $0xd80] sm:$0xff]
    %v7049 = vld [vmem:[#allocation8 + $0xd88] sm:$0xff]
    %v7050 = vld [vmem:[#allocation8 + $0xd90] sm:$0xff]
    %v7051 = vld [vmem:[#allocation8 + $0xd98] sm:$0xff]
    %v7052 = vld [vmem:[#allocation8 + $0xda0] sm:$0xff]
    %v7053 = vld [vmem:[#allocation8 + $0xda8] sm:$0xff]
    %v7054 = vld [vmem:[#allocation8 + $0xdb0] sm:$0xff]
    %v7055 = vld [vmem:[#allocation8 + $0xdb8] sm:$0xff]
    %v7056 = vld [vmem:[#allocation8 + $0xdc0] sm:$0xff]
    %v7057 = vld [vmem:[#allocation8 + $0xdc8] sm:$0xff]
    %v7058 = vld [vmem:[#allocation8 + $0xdd0] sm:$0xff]
    %v7059 = vld [vmem:[#allocation8 + $0xdd8] sm:$0xff]
    %v7060 = vld [vmem:[#allocation8 + $0xde0] sm:$0xff]
    %v7061 = vld [vmem:[#allocation8 + $0xde8] sm:$0xff]
    %v7062 = vld [vmem:[#allocation8 + $0xdf0] sm:$0xff]
    %v7063 = vld [vmem:[#allocation8 + $0xdf8] sm:$0xff]
    %v7064 = vld [vmem:[#allocation8 + $0xe00] sm:$0xff]
    %v7065 = vld [vmem:[#allocation8 + $0xe08] sm:$0xff]
    %v7066 = vld [vmem:[#allocation8 + $0xe10] sm:$0xff]
    %v7067 = vld [vmem:[#allocation8 + $0xe18] sm:$0xff]
    %v7068 = vld [vmem:[#allocation8 + $0xe20] sm:$0xff]
    %v7069 = vld [vmem:[#allocation8 + $0xe28] sm:$0xff]
    %v7070 = vld [vmem:[#allocation8 + $0xe30] sm:$0xff]
    %v7071 = vld [vmem:[#allocation8 + $0xe38] sm:$0xff]
    %v7072 = vld [vmem:[#allocation8 + $0xe40] sm:$0xff]
    %v7073 = vld [vmem:[#allocation8 + $0xe48] sm:$0xff]
    %v7074 = vld [vmem:[#allocation8 + $0xe50] sm:$0xff]
    %v7075 = vld [vmem:[#allocation8 + $0xe58] sm:$0xff]
    %v7076 = vld [vmem:[#allocation8 + $0xe60] sm:$0xff]
    %v7077 = vld [vmem:[#allocation8 + $0xe68] sm:$0xff]
    %v7078 = vld [vmem:[#allocation8 + $0xe70] sm:$0xff]
    %v7079 = vld [vmem:[#allocation8 + $0xe78] sm:$0xff]
    %v7080 = vld [vmem:[#allocation8 + $0xe80] sm:$0xff]
    %v7081 = vld [vmem:[#allocation8 + $0xe88] sm:$0xff]
    %v7082 = vld [vmem:[#allocation8 + $0xe90] sm:$0xff]
    %v7083 = vld [vmem:[#allocation8 + $0xe98] sm:$0xff]
    %v7084 = vld [vmem:[#allocation8 + $0xea0] sm:$0xff]
    %v7085 = vld [vmem:[#allocation8 + $0xea8] sm:$0xff]
    %v7086 = vld [vmem:[#allocation8 + $0xeb0] sm:$0xff]
    %v7087 = vld [vmem:[#allocation8 + $0xeb8] sm:$0xff]
    %v7088 = vld [vmem:[#allocation8 + $0xec0] sm:$0xff]
    %v7089 = vld [vmem:[#allocation8 + $0xec8] sm:$0xff]
    %v7090 = vld [vmem:[#allocation8 + $0xed0] sm:$0xff]
    %v7091 = vld [vmem:[#allocation8 + $0xed8] sm:$0xff]
    %v7092 = vld [vmem:[#allocation8 + $0xee0] sm:$0xff]
    %v7093 = vld [vmem:[#allocation8 + $0xee8] sm:$0xff]
    %v7094 = vld [vmem:[#allocation8 + $0xef0] sm:$0xff]
    %v7095 = vld [vmem:[#allocation8 + $0xef8] sm:$0xff]
    %v7096 = vld [vmem:[#allocation8 + $0xf00] sm:$0xff]
    %v7097 = vld [vmem:[#allocation8 + $0xf08] sm:$0xff]
    %v7098 = vld [vmem:[#allocation8 + $0xf10] sm:$0xff]
    %v7099 = vld [vmem:[#allocation8 + $0xf18] sm:$0xff]
    %v7100 = vld [vmem:[#allocation8 + $0xf20] sm:$0xff]
    %v7101 = vld [vmem:[#allocation8 + $0xf28] sm:$0xff]
    %v7102 = vld [vmem:[#allocation8 + $0xf30] sm:$0xff]
    %v7103 = vld [vmem:[#allocation8 + $0xf38] sm:$0xff]
    %v7104 = vld [vmem:[#allocation8 + $0xf40] sm:$0xff]
    %v7105 = vld [vmem:[#allocation8 + $0xf48] sm:$0xff]
    %v7106 = vld [vmem:[#allocation8 + $0xf50] sm:$0xff]
    %v7107 = vld [vmem:[#allocation8 + $0xf58] sm:$0xff]
    %v7108 = vld [vmem:[#allocation8 + $0xf60] sm:$0xff]
    %v7109 = vld [vmem:[#allocation8 + $0xf68] sm:$0xff]
    %v7110 = vld [vmem:[#allocation8 + $0xf70] sm:$0xff]
    %v7111 = vld [vmem:[#allocation8 + $0xf78] sm:$0xff]
    %v7112 = vld [vmem:[#allocation8 + $0xf80] sm:$0xff]
    %v7113 = vld [vmem:[#allocation8 + $0xf88] sm:$0xff]
    %v7114 = vld [vmem:[#allocation8 + $0xf90] sm:$0xff]
    %v7115 = vld [vmem:[#allocation8 + $0xf98] sm:$0xff]
    %v7116 = vld [vmem:[#allocation8 + $0xfa0] sm:$0xff]
    %v7117 = vld [vmem:[#allocation8 + $0xfa8] sm:$0xff]
    %v7118 = vld [vmem:[#allocation8 + $0xfb0] sm:$0xff]
    %v7119 = vld [vmem:[#allocation8 + $0xfb8] sm:$0xff]
    %v7120 = vld [vmem:[#allocation8 + $0xfc0] sm:$0xff]
    %v7121 = vld [vmem:[#allocation8 + $0xfc8] sm:$0xff]
    %v7122 = vld [vmem:[#allocation8 + $0xfd0] sm:$0xff]
    %v7123 = vld [vmem:[#allocation8 + $0xfd8] sm:$0xff]
    %v7124 = vld [vmem:[#allocation8 + $0xfe0] sm:$0xff]
    %v7125 = vld [vmem:[#allocation8 + $0xfe8] sm:$0xff]
    %v7126 = vld [vmem:[#allocation8 + $0xff0] sm:$0xff]
    %v7127 = vld [vmem:[#allocation8 + $0xff8] sm:$0xff]
    %v7128 = vld [vmem:[#allocation8 + $0x1000] sm:$0xff]
    %v7129 = vld [vmem:[#allocation8 + $0x1008] sm:$0xff]
    %v7130 = vld [vmem:[#allocation8 + $0x1010] sm:$0xff]
    %v7131 = vld [vmem:[#allocation8 + $0x1018] sm:$0xff]
    %v7132 = vld [vmem:[#allocation8 + $0x1020] sm:$0xff]
    %v7133 = vld [vmem:[#allocation8 + $0x1028] sm:$0xff]
    %v7134 = vld [vmem:[#allocation8 + $0x1030] sm:$0xff]
    %v7135 = vld [vmem:[#allocation8 + $0x1038] sm:$0xff]
    %v7136 = vld [vmem:[#allocation8 + $0x1040] sm:$0xff]
    %v7137 = vld [vmem:[#allocation8 + $0x1048] sm:$0xff]
    %v7138 = vld [vmem:[#allocation8 + $0x1050] sm:$0xff]
    %v7139 = vld [vmem:[#allocation8 + $0x1058] sm:$0xff]
    %v7140 = vld [vmem:[#allocation8 + $0x1060] sm:$0xff]
    %v7141 = vld [vmem:[#allocation8 + $0x1068] sm:$0xff]
    %v7142 = vld [vmem:[#allocation8 + $0x1070] sm:$0xff]
    %v7143 = vld [vmem:[#allocation8 + $0x1078] sm:$0xff]
    %v7144 = vld [vmem:[#allocation8 + $0x1080] sm:$0xff]
    %v7145 = vld [vmem:[#allocation8 + $0x1088] sm:$0xff]
    %v7146 = vld [vmem:[#allocation8 + $0x1090] sm:$0xff]
    %v7147 = vld [vmem:[#allocation8 + $0x1098] sm:$0xff]
    %v7148 = vld [vmem:[#allocation8 + $0x10a0] sm:$0xff]
    %v7149 = vld [vmem:[#allocation8 + $0x10a8] sm:$0xff]
    %v7150 = vld [vmem:[#allocation8 + $0x10b0] sm:$0xff]
    %v7151 = vld [vmem:[#allocation8 + $0x10b8] sm:$0xff]
    %v7152 = vld [vmem:[#allocation8 + $0x10c0] sm:$0xff]
    %v7153 = vld [vmem:[#allocation8 + $0x10c8] sm:$0xff]
    %v7154 = vld [vmem:[#allocation8 + $0x10d0] sm:$0xff]
    %v7155 = vld [vmem:[#allocation8 + $0x10d8] sm:$0xff]
    %v7156 = vld [vmem:[#allocation8 + $0x10e0] sm:$0xff]
    %v7157 = vld [vmem:[#allocation8 + $0x10e8] sm:$0xff]
    %v7158 = vld [vmem:[#allocation8 + $0x10f0] sm:$0xff]
    %v7159 = vld [vmem:[#allocation8 + $0x10f8] sm:$0xff]
    %v7160 = vld [vmem:[#allocation8 + $0x1100] sm:$0xff]
    %v7161 = vld [vmem:[#allocation8 + $0x1108] sm:$0xff]
    %v7162 = vld [vmem:[#allocation8 + $0x1110] sm:$0xff]
    %v7163 = vld [vmem:[#allocation8 + $0x1118] sm:$0xff]
    %v7164 = vld [vmem:[#allocation8 + $0x1120] sm:$0xff]
    %v7165 = vld [vmem:[#allocation8 + $0x1128] sm:$0xff]
    %v7166 = vld [vmem:[#allocation8 + $0x1130] sm:$0xff]
    %v7167 = vld [vmem:[#allocation8 + $0x1138] sm:$0xff]
    %v7168 = vld [vmem:[#allocation8 + $0x1140] sm:$0xff]
    %v7169 = vld [vmem:[#allocation8 + $0x1148] sm:$0xff]
    %v7170 = vld [vmem:[#allocation8 + $0x1150] sm:$0xff]
    %v7171 = vld [vmem:[#allocation8 + $0x1158] sm:$0xff]
    %v7172 = vld [vmem:[#allocation8 + $0x1160] sm:$0xff]
    %v7173 = vld [vmem:[#allocation8 + $0x1168] sm:$0xff]
    %v7174 = vld [vmem:[#allocation8 + $0x1170] sm:$0xff]
    %v7175 = vld [vmem:[#allocation8 + $0x1178] sm:$0xff]
    %v7176 = vld [vmem:[#allocation8 + $0x1180] sm:$0xff]
    %v7177 = vld [vmem:[#allocation8 + $0x1188] sm:$0xff]
    %v7178 = vld [vmem:[#allocation8 + $0x1190] sm:$0xff]
    %v7179 = vld [vmem:[#allocation8 + $0x1198] sm:$0xff]
    %v7180 = vld [vmem:[#allocation8 + $0x11a0] sm:$0xff]
    %v7181 = vld [vmem:[#allocation8 + $0x11a8] sm:$0xff]
    %v7182 = vld [vmem:[#allocation8 + $0x11b0] sm:$0xff]
    %v7183 = vld [vmem:[#allocation8 + $0x11b8] sm:$0xff]
    %v7184 = vld [vmem:[#allocation8 + $0x11c0] sm:$0xff]
    %v7185 = vld [vmem:[#allocation8 + $0x11c8] sm:$0xff]
    %v7186 = vld [vmem:[#allocation8 + $0x11d0] sm:$0xff]
    %v7187 = vld [vmem:[#allocation8 + $0x11d8] sm:$0xff]
    %v7188 = vld [vmem:[#allocation8 + $0x11e0] sm:$0xff]
    %v7189 = vld [vmem:[#allocation8 + $0x11e8] sm:$0xff]
    %v7190 = vld [vmem:[#allocation8 + $0x11f0] sm:$0xff]
    %v7191 = vld [vmem:[#allocation8 + $0x11f8] sm:$0xff]
    %v7192 = vld [vmem:[#allocation8 + $0x1200] sm:$0xff]
    %v7193 = vld [vmem:[#allocation8 + $0x1208] sm:$0xff]
    %v7194 = vld [vmem:[#allocation8 + $0x1210] sm:$0xff]
    %v7195 = vld [vmem:[#allocation8 + $0x1218] sm:$0xff]
    %v7196 = vld [vmem:[#allocation8 + $0x1220] sm:$0xff]
    %v7197 = vld [vmem:[#allocation8 + $0x1228] sm:$0xff]
    %v7198 = vld [vmem:[#allocation8 + $0x1230] sm:$0xff]
    %v7199 = vld [vmem:[#allocation8 + $0x1238] sm:$0xff]
    %v7200 = vld [vmem:[#allocation8 + $0x1240] sm:$0xff]
    %v7201 = vld [vmem:[#allocation8 + $0x1248] sm:$0xff]
    %v7202 = vld [vmem:[#allocation8 + $0x1250] sm:$0xff]
    %v7203 = vld [vmem:[#allocation8 + $0x1258] sm:$0xff]
    %v7204 = vld [vmem:[#allocation8 + $0x1260] sm:$0xff]
    %v7205 = vld [vmem:[#allocation8 + $0x1268] sm:$0xff]
    %v7206 = vld [vmem:[#allocation8 + $0x1270] sm:$0xff]
    %v7207 = vld [vmem:[#allocation8 + $0x1278] sm:$0xff]
    %v7208 = vld [vmem:[#allocation8 + $0x1280] sm:$0xff]
    %v7209 = vld [vmem:[#allocation8 + $0x1288] sm:$0xff]
    %v7210 = vld [vmem:[#allocation8 + $0x1290] sm:$0xff]
    %v7211 = vld [vmem:[#allocation8 + $0x1298] sm:$0xff]
    %v7212 = vld [vmem:[#allocation8 + $0x12a0] sm:$0xff]
    %v7213 = vld [vmem:[#allocation8 + $0x12a8] sm:$0xff]
    %v7214 = vld [vmem:[#allocation8 + $0x12b0] sm:$0xff]
    %v7215 = vld [vmem:[#allocation8 + $0x12b8] sm:$0xff]
    %v7216 = vld [vmem:[#allocation8 + $0x12c0] sm:$0xff]
    %v7217 = vld [vmem:[#allocation8 + $0x12c8] sm:$0xff]
    %v7218 = vld [vmem:[#allocation8 + $0x12d0] sm:$0xff]
    %v7219 = vld [vmem:[#allocation8 + $0x12d8] sm:$0xff]
    %v7220 = vld [vmem:[#allocation8 + $0x12e0] sm:$0xff]
    %v7221 = vld [vmem:[#allocation8 + $0x12e8] sm:$0xff]
    %v7222 = vld [vmem:[#allocation8 + $0x12f0] sm:$0xff]
    %v7223 = vld [vmem:[#allocation8 + $0x12f8] sm:$0xff]
    %v7224 = vld [vmem:[#allocation8 + $0x1300] sm:$0xff]
    %v7225 = vld [vmem:[#allocation8 + $0x1308] sm:$0xff]
    %v7226 = vld [vmem:[#allocation8 + $0x1310] sm:$0xff]
    %v7227 = vld [vmem:[#allocation8 + $0x1318] sm:$0xff]
    %v7228 = vld [vmem:[#allocation8 + $0x1320] sm:$0xff]
    %v7229 = vld [vmem:[#allocation8 + $0x1328] sm:$0xff]
    %v7230 = vld [vmem:[#allocation8 + $0x1330] sm:$0xff]
    %v7231 = vld [vmem:[#allocation8 + $0x1338] sm:$0xff]
    %v7232 = vld [vmem:[#allocation8 + $0x1340] sm:$0xff]
    %v7233 = vld [vmem:[#allocation8 + $0x1348] sm:$0xff]
    %v7234 = vld [vmem:[#allocation8 + $0x1350] sm:$0xff]
    %v7235 = vld [vmem:[#allocation8 + $0x1358] sm:$0xff]
    %v7236 = vld [vmem:[#allocation8 + $0x1360] sm:$0xff]
    %v7237 = vld [vmem:[#allocation8 + $0x1368] sm:$0xff]
    %v7238 = vld [vmem:[#allocation8 + $0x1370] sm:$0xff]
    %v7239 = vld [vmem:[#allocation8 + $0x1378] sm:$0xff]
    %v7240 = vld [vmem:[#allocation8 + $0x1380] sm:$0xff]
    %v7241 = vld [vmem:[#allocation8 + $0x1388] sm:$0xff]
    %v7242 = vld [vmem:[#allocation8 + $0x1390] sm:$0xff]
    %v7243 = vld [vmem:[#allocation8 + $0x1398] sm:$0xff]
    %v7244 = vld [vmem:[#allocation8 + $0x13a0] sm:$0xff]
    %v7245 = vld [vmem:[#allocation8 + $0x13a8] sm:$0xff]
    %v7246 = vld [vmem:[#allocation8 + $0x13b0] sm:$0xff]
    %v7247 = vld [vmem:[#allocation8 + $0x13b8] sm:$0xff]
    %v7248 = vld [vmem:[#allocation8 + $0x13c0] sm:$0xff]
    %v7249 = vld [vmem:[#allocation8 + $0x13c8] sm:$0xff]
    %v7250 = vld [vmem:[#allocation8 + $0x13d0] sm:$0xff]
    %v7251 = vld [vmem:[#allocation8 + $0x13d8] sm:$0xff]
    %v7252 = vld [vmem:[#allocation8 + $0x13e0] sm:$0xff]
    %v7253 = vld [vmem:[#allocation8 + $0x13e8] sm:$0xff]
    %v7254 = vld [vmem:[#allocation8 + $0x13f0] sm:$0xff]
    %v7255 = vld [vmem:[#allocation8 + $0x13f8] sm:$0xff]
    %v7256 = vld [vmem:[#allocation8 + $0x1400] sm:$0xff]
    %v7257 = vld [vmem:[#allocation8 + $0x1408] sm:$0xff]
    %v7258 = vld [vmem:[#allocation8 + $0x1410] sm:$0xff]
    %v7259 = vld [vmem:[#allocation8 + $0x1418] sm:$0xff]
    %v7260 = vld [vmem:[#allocation8 + $0x1420] sm:$0xff]
    %v7261 = vld [vmem:[#allocation8 + $0x1428] sm:$0xff]
    %v7262 = vld [vmem:[#allocation8 + $0x1430] sm:$0xff]
    %v7263 = vld [vmem:[#allocation8 + $0x1438] sm:$0xff]
    %v7264 = vld [vmem:[#allocation8 + $0x1440] sm:$0xff]
    %v7265 = vld [vmem:[#allocation8 + $0x1448] sm:$0xff]
    %v7266 = vld [vmem:[#allocation8 + $0x1450] sm:$0xff]
    %v7267 = vld [vmem:[#allocation8 + $0x1458] sm:$0xff]
    %v7268 = vld [vmem:[#allocation8 + $0x1460] sm:$0xff]
    %v7269 = vld [vmem:[#allocation8 + $0x1468] sm:$0xff]
    %v7270 = vld [vmem:[#allocation8 + $0x1470] sm:$0xff]
    %v7271 = vld [vmem:[#allocation8 + $0x1478] sm:$0xff]
    %v7272 = vld [vmem:[#allocation8 + $0x1480] sm:$0xff]
    %v7273 = vld [vmem:[#allocation8 + $0x1488] sm:$0xff]
    %v7274 = vld [vmem:[#allocation8 + $0x1490] sm:$0xff]
    %v7275 = vld [vmem:[#allocation8 + $0x1498] sm:$0xff]
    %v7276 = vld [vmem:[#allocation8 + $0x14a0] sm:$0xff]
    %v7277 = vld [vmem:[#allocation8 + $0x14a8] sm:$0xff]
    %v7278 = vld [vmem:[#allocation8 + $0x14b0] sm:$0xff]
    %v7279 = vld [vmem:[#allocation8 + $0x14b8] sm:$0xff]
    %v7280 = vld [vmem:[#allocation8 + $0x14c0] sm:$0xff]
    %v7281 = vld [vmem:[#allocation8 + $0x14c8] sm:$0xff]
    %v7282 = vld [vmem:[#allocation8 + $0x14d0] sm:$0xff]
    %v7283 = vld [vmem:[#allocation8 + $0x14d8] sm:$0xff]
    %v7284 = vld [vmem:[#allocation8 + $0x14e0] sm:$0xff]
    %v7285 = vld [vmem:[#allocation8 + $0x14e8] sm:$0xff]
    %v7286 = vld [vmem:[#allocation8 + $0x14f0] sm:$0xff]
    %v7287 = vld [vmem:[#allocation8 + $0x14f8] sm:$0xff]
    %v7288 = vld [vmem:[#allocation8 + $0x1500] sm:$0xff]
    %v7289 = vld [vmem:[#allocation8 + $0x1508] sm:$0xff]
    %v7290 = vld [vmem:[#allocation8 + $0x1510] sm:$0xff]
    %v7291 = vld [vmem:[#allocation8 + $0x1518] sm:$0xff]
    %v7292 = vld [vmem:[#allocation8 + $0x1520] sm:$0xff]
    %v7293 = vld [vmem:[#allocation8 + $0x1528] sm:$0xff]
    %v7294 = vld [vmem:[#allocation8 + $0x1530] sm:$0xff]
    %v7295 = vld [vmem:[#allocation8 + $0x1538] sm:$0xff]
    %v7296 = vld [vmem:[#allocation8 + $0x1540] sm:$0xff]
    %v7297 = vld [vmem:[#allocation8 + $0x1548] sm:$0xff]
    %v7298 = vld [vmem:[#allocation8 + $0x1550] sm:$0xff]
    %v7299 = vld [vmem:[#allocation8 + $0x1558] sm:$0xff]
    %v7300 = vld [vmem:[#allocation8 + $0x1560] sm:$0xff]
    %v7301 = vld [vmem:[#allocation8 + $0x1568] sm:$0xff]
    %v7302 = vld [vmem:[#allocation8 + $0x1570] sm:$0xff]
    %v7303 = vld [vmem:[#allocation8 + $0x1578] sm:$0xff]
    %v7304 = vld [vmem:[#allocation8 + $0x1580] sm:$0xff]
    %v7305 = vld [vmem:[#allocation8 + $0x1588] sm:$0xff]
    %v7306 = vld [vmem:[#allocation8 + $0x1590] sm:$0xff]
    %v7307 = vld [vmem:[#allocation8 + $0x1598] sm:$0xff]
    %v7308 = vld [vmem:[#allocation8 + $0x15a0] sm:$0xff]
    %v7309 = vld [vmem:[#allocation8 + $0x15a8] sm:$0xff]
    %v7310 = vld [vmem:[#allocation8 + $0x15b0] sm:$0xff]
    %v7311 = vld [vmem:[#allocation8 + $0x15b8] sm:$0xff]
    %v7312 = vld [vmem:[#allocation8 + $0x15c0] sm:$0xff]
    %v7313 = vld [vmem:[#allocation8 + $0x15c8] sm:$0xff]
    %v7314 = vld [vmem:[#allocation8 + $0x15d0] sm:$0xff]
    %v7315 = vld [vmem:[#allocation8 + $0x15d8] sm:$0xff]
    %v7316 = vld [vmem:[#allocation8 + $0x15e0] sm:$0xff]
    %v7317 = vld [vmem:[#allocation8 + $0x15e8] sm:$0xff]
    %v7318 = vld [vmem:[#allocation8 + $0x15f0] sm:$0xff]
    %v7319 = vld [vmem:[#allocation8 + $0x15f8] sm:$0xff]
    %v7320 = vld [vmem:[#allocation8 + $0x1600] sm:$0xff]
    %v7321 = vld [vmem:[#allocation8 + $0x1608] sm:$0xff]
    %v7322 = vld [vmem:[#allocation8 + $0x1610] sm:$0xff]
    %v7323 = vld [vmem:[#allocation8 + $0x1618] sm:$0xff]
    %v7324 = vld [vmem:[#allocation8 + $0x1620] sm:$0xff]
    %v7325 = vld [vmem:[#allocation8 + $0x1628] sm:$0xff]
    %v7326 = vld [vmem:[#allocation8 + $0x1630] sm:$0xff]
    %v7327 = vld [vmem:[#allocation8 + $0x1638] sm:$0xff]
    %v7328 = vld [vmem:[#allocation8 + $0x1640] sm:$0xff]
    %v7329 = vld [vmem:[#allocation8 + $0x1648] sm:$0xff]
    %v7330 = vld [vmem:[#allocation8 + $0x1650] sm:$0xff]
    %v7331 = vld [vmem:[#allocation8 + $0x1658] sm:$0xff]
    %v7332 = vld [vmem:[#allocation8 + $0x1660] sm:$0xff]
    %v7333 = vld [vmem:[#allocation8 + $0x1668] sm:$0xff]
    %v7334 = vld [vmem:[#allocation8 + $0x1670] sm:$0xff]
    %v7335 = vld [vmem:[#allocation8 + $0x1678] sm:$0xff]
    %v7336 = vld [vmem:[#allocation8 + $0x1680] sm:$0xff]
    %v7337 = vld [vmem:[#allocation8 + $0x1688] sm:$0xff]
    %v7338 = vld [vmem:[#allocation8 + $0x1690] sm:$0xff]
    %v7339 = vld [vmem:[#allocation8 + $0x1698] sm:$0xff]
    %v7340 = vld [vmem:[#allocation8 + $0x16a0] sm:$0xff]
    %v7341 = vld [vmem:[#allocation8 + $0x16a8] sm:$0xff]
    %v7342 = vld [vmem:[#allocation8 + $0x16b0] sm:$0xff]
    %v7343 = vld [vmem:[#allocation8 + $0x16b8] sm:$0xff]
    %v7344 = vld [vmem:[#allocation8 + $0x16c0] sm:$0xff]
    %v7345 = vld [vmem:[#allocation8 + $0x16c8] sm:$0xff]
    %v7346 = vld [vmem:[#allocation8 + $0x16d0] sm:$0xff]
    %v7347 = vld [vmem:[#allocation8 + $0x16d8] sm:$0xff]
    %v7348 = vld [vmem:[#allocation8 + $0x16e0] sm:$0xff]
    %v7349 = vld [vmem:[#allocation8 + $0x16e8] sm:$0xff]
    %v7350 = vld [vmem:[#allocation8 + $0x16f0] sm:$0xff]
    %v7351 = vld [vmem:[#allocation8 + $0x16f8] sm:$0xff]
    %v7352 = vld [vmem:[#allocation8 + $0x1700] sm:$0xff]
    %v7353 = vld [vmem:[#allocation8 + $0x1708] sm:$0xff]
    %v7354 = vld [vmem:[#allocation8 + $0x1710] sm:$0xff]
    %v7355 = vld [vmem:[#allocation8 + $0x1718] sm:$0xff]
    %v7356 = vld [vmem:[#allocation8 + $0x1720] sm:$0xff]
    %v7357 = vld [vmem:[#allocation8 + $0x1728] sm:$0xff]
    %v7358 = vld [vmem:[#allocation8 + $0x1730] sm:$0xff]
    %v7359 = vld [vmem:[#allocation8 + $0x1738] sm:$0xff]
    %v7360 = vld [vmem:[#allocation8 + $0x1740] sm:$0xff]
    %v7361 = vld [vmem:[#allocation8 + $0x1748] sm:$0xff]
    %v7362 = vld [vmem:[#allocation8 + $0x1750] sm:$0xff]
    %v7363 = vld [vmem:[#allocation8 + $0x1758] sm:$0xff]
    %v7364 = vld [vmem:[#allocation8 + $0x1760] sm:$0xff]
    %v7365 = vld [vmem:[#allocation8 + $0x1768] sm:$0xff]
    %v7366 = vld [vmem:[#allocation8 + $0x1770] sm:$0xff]
    %v7367 = vld [vmem:[#allocation8 + $0x1778] sm:$0xff]
    %v7368 = vld [vmem:[#allocation8 + $0x1780] sm:$0xff]
    %v7369 = vld [vmem:[#allocation8 + $0x1788] sm:$0xff]
    %v7370 = vld [vmem:[#allocation8 + $0x1790] sm:$0xff]
    %v7371 = vld [vmem:[#allocation8 + $0x1798] sm:$0xff]
    %v7372 = vld [vmem:[#allocation8 + $0x17a0] sm:$0xff]
    %v7373 = vld [vmem:[#allocation8 + $0x17a8] sm:$0xff]
    %v7374 = vld [vmem:[#allocation8 + $0x17b0] sm:$0xff]
    %v7375 = vld [vmem:[#allocation8 + $0x17b8] sm:$0xff]
    %v7376 = vld [vmem:[#allocation8 + $0x17c0] sm:$0xff]
    %v7377 = vld [vmem:[#allocation8 + $0x17c8] sm:$0xff]
    %v7378 = vld [vmem:[#allocation8 + $0x17d0] sm:$0xff]
    %v7379 = vld [vmem:[#allocation8 + $0x17d8] sm:$0xff]
    %v7380 = vld [vmem:[#allocation8 + $0x17e0] sm:$0xff]
    %v7381 = vld [vmem:[#allocation8 + $0x17e8] sm:$0xff]
    %v7382 = vld [vmem:[#allocation8 + $0x17f0] sm:$0xff]
    %v7383 = vld [vmem:[#allocation8 + $0x17f8] sm:$0xff]
    %v7384 = vld [vmem:[#allocation8 + $0x1800] sm:$0xff]
    %v7385 = vld [vmem:[#allocation8 + $0x1808] sm:$0xff]
    %v7386 = vld [vmem:[#allocation8 + $0x1810] sm:$0xff]
    %v7387 = vld [vmem:[#allocation8 + $0x1818] sm:$0xff]
    %v7388 = vld [vmem:[#allocation8 + $0x1820] sm:$0xff]
    %v7389 = vld [vmem:[#allocation8 + $0x1828] sm:$0xff]
    %v7390 = vld [vmem:[#allocation8 + $0x1830] sm:$0xff]
    %v7391 = vld [vmem:[#allocation8 + $0x1838] sm:$0xff]
    %v7392 = vld [vmem:[#allocation8 + $0x1840] sm:$0xff]
    %v7393 = vld [vmem:[#allocation8 + $0x1848] sm:$0xff]
    %v7394 = vld [vmem:[#allocation8 + $0x1850] sm:$0xff]
    %v7395 = vld [vmem:[#allocation8 + $0x1858] sm:$0xff]
    %v7396 = vld [vmem:[#allocation8 + $0x1860] sm:$0xff]
    %v7397 = vld [vmem:[#allocation8 + $0x1868] sm:$0xff]
    %v7398 = vld [vmem:[#allocation8 + $0x1870] sm:$0xff]
    %v7399 = vld [vmem:[#allocation8 + $0x1878] sm:$0xff]
    %v7400 = vld [vmem:[#allocation8 + $0x1880] sm:$0xff]
    %v7401 = vld [vmem:[#allocation8 + $0x1888] sm:$0xff]
    %v7402 = vld [vmem:[#allocation8 + $0x1890] sm:$0xff]
    %v7403 = vld [vmem:[#allocation8 + $0x1898] sm:$0xff]
    %v7404 = vld [vmem:[#allocation8 + $0x18a0] sm:$0xff]
    %v7405 = vld [vmem:[#allocation8 + $0x18a8] sm:$0xff]
    %v7406 = vld [vmem:[#allocation8 + $0x18b0] sm:$0xff]
    %v7407 = vld [vmem:[#allocation8 + $0x18b8] sm:$0xff]
    %v7408 = vld [vmem:[#allocation8 + $0x18c0] sm:$0xff]
    %v7409 = vld [vmem:[#allocation8 + $0x18c8] sm:$0xff]
    %v7410 = vld [vmem:[#allocation8 + $0x18d0] sm:$0xff]
    %v7411 = vld [vmem:[#allocation8 + $0x18d8] sm:$0xff]
    %v7412 = vld [vmem:[#allocation8 + $0x18e0] sm:$0xff]
    %v7413 = vld [vmem:[#allocation8 + $0x18e8] sm:$0xff]
    %v7414 = vld [vmem:[#allocation8 + $0x18f0] sm:$0xff]
    %v7415 = vld [vmem:[#allocation8 + $0x18f8] sm:$0xff]
    %v7416 = vld [vmem:[#allocation8 + $0x1900] sm:$0xff]
    %v7417 = vld [vmem:[#allocation8 + $0x1908] sm:$0xff]
    %v7418 = vld [vmem:[#allocation8 + $0x1910] sm:$0xff]
    %v7419 = vld [vmem:[#allocation8 + $0x1918] sm:$0xff]
    %v7420 = vld [vmem:[#allocation8 + $0x1920] sm:$0xff]
    %v7421 = vld [vmem:[#allocation8 + $0x1928] sm:$0xff]
    %v7422 = vld [vmem:[#allocation8 + $0x1930] sm:$0xff]
    %v7423 = vld [vmem:[#allocation8 + $0x1938] sm:$0xff]
    %v7424 = vld [vmem:[#allocation8 + $0x1940] sm:$0xff]
    %v7425 = vld [vmem:[#allocation8 + $0x1948] sm:$0xff]
    %v7426 = vld [vmem:[#allocation8 + $0x1950] sm:$0xff]
    %v7427 = vld [vmem:[#allocation8 + $0x1958] sm:$0xff]
    %v7428 = vld [vmem:[#allocation8 + $0x1960] sm:$0xff]
    %v7429 = vld [vmem:[#allocation8 + $0x1968] sm:$0xff]
    %v7430 = vld [vmem:[#allocation8 + $0x1970] sm:$0xff]
    %v7431 = vld [vmem:[#allocation8 + $0x1978] sm:$0xff]
    %v7432 = vld [vmem:[#allocation8 + $0x1980] sm:$0xff]
    %v7433 = vld [vmem:[#allocation8 + $0x1988] sm:$0xff]
    %v7434 = vld [vmem:[#allocation8 + $0x1990] sm:$0xff]
    %v7435 = vld [vmem:[#allocation8 + $0x1998] sm:$0xff]
    %v7436 = vld [vmem:[#allocation8 + $0x19a0] sm:$0xff]
    %v7437 = vld [vmem:[#allocation8 + $0x19a8] sm:$0xff]
    %v7438 = vld [vmem:[#allocation8 + $0x19b0] sm:$0xff]
    %v7439 = vld [vmem:[#allocation8 + $0x19b8] sm:$0xff]
    %v7440 = vld [vmem:[#allocation8 + $0x19c0] sm:$0xff]
    %v7441 = vld [vmem:[#allocation8 + $0x19c8] sm:$0xff]
    %v7442 = vld [vmem:[#allocation8 + $0x19d0] sm:$0xff]
    %v7443 = vld [vmem:[#allocation8 + $0x19d8] sm:$0xff]
    %v7444 = vld [vmem:[#allocation8 + $0x19e0] sm:$0xff]
    %v7445 = vld [vmem:[#allocation8 + $0x19e8] sm:$0xff]
    %v7446 = vld [vmem:[#allocation8 + $0x19f0] sm:$0xff]
    %v7447 = vld [vmem:[#allocation8 + $0x19f8] sm:$0xff]
    %v7448 = vld [vmem:[#allocation8 + $0x1a00] sm:$0xff]
    %v7449 = vld [vmem:[#allocation8 + $0x1a08] sm:$0xff]
    %v7450 = vld [vmem:[#allocation8 + $0x1a10] sm:$0xff]
    %v7451 = vld [vmem:[#allocation8 + $0x1a18] sm:$0xff]
    %v7452 = vld [vmem:[#allocation8 + $0x1a20] sm:$0xff]
    %v7453 = vld [vmem:[#allocation8 + $0x1a28] sm:$0xff]
    %v7454 = vld [vmem:[#allocation8 + $0x1a30] sm:$0xff]
    %v7455 = vld [vmem:[#allocation8 + $0x1a38] sm:$0xff]
    %v7456 = vld [vmem:[#allocation8 + $0x1a40] sm:$0xff]
    %v7457 = vld [vmem:[#allocation8 + $0x1a48] sm:$0xff]
    %v7458 = vld [vmem:[#allocation8 + $0x1a50] sm:$0xff]
    %v7459 = vld [vmem:[#allocation8 + $0x1a58] sm:$0xff]
    %v7460 = vld [vmem:[#allocation8 + $0x1a60] sm:$0xff]
    %v7461 = vld [vmem:[#allocation8 + $0x1a68] sm:$0xff]
    %v7462 = vld [vmem:[#allocation8 + $0x1a70] sm:$0xff]
    %v7463 = vld [vmem:[#allocation8 + $0x1a78] sm:$0xff]
    %v7464 = vld [vmem:[#allocation8 + $0x1a80] sm:$0xff]
    %v7465 = vld [vmem:[#allocation8 + $0x1a88] sm:$0xff]
    %v7466 = vld [vmem:[#allocation8 + $0x1a90] sm:$0xff]
    %v7467 = vld [vmem:[#allocation8 + $0x1a98] sm:$0xff]
    %v7468 = vld [vmem:[#allocation8 + $0x1aa0] sm:$0xff]
    %v7469 = vld [vmem:[#allocation8 + $0x1aa8] sm:$0xff]
    %v7470 = vld [vmem:[#allocation8 + $0x1ab0] sm:$0xff]
    %v7471 = vld [vmem:[#allocation8 + $0x1ab8] sm:$0xff]
    %v7472 = vld [vmem:[#allocation8 + $0x1ac0] sm:$0xff]
    %v7473 = vld [vmem:[#allocation8 + $0x1ac8] sm:$0xff]
    %v7474 = vld [vmem:[#allocation8 + $0x1ad0] sm:$0xff]
    %v7475 = vld [vmem:[#allocation8 + $0x1ad8] sm:$0xff]
    %v7476 = vld [vmem:[#allocation8 + $0x1ae0] sm:$0xff]
    %v7477 = vld [vmem:[#allocation8 + $0x1ae8] sm:$0xff]
    %v7478 = vld [vmem:[#allocation8 + $0x1af0] sm:$0xff]
    %v7479 = vld [vmem:[#allocation8 + $0x1af8] sm:$0xff]
    %v7480 = vld [vmem:[#allocation10] sm:$0xff]
    %v7481 = vld [vmem:[#allocation10 + $0x8] sm:$0xff]
    %v7482 = vld [vmem:[#allocation10 + $0x10] sm:$0x3]
    %v7486 = vlaneseq
    %v7487 = vshrl.u32 %v7486, 7
    %v7488 = vsub.s32 0, %v7487
    %v7489 = vrot.slane %v7480, %v7488
    %v7490 = vlaneseq
    %v7491 = vshrl.u32 %v7490, 7
    %v7492 = vsub.s32 1, %v7491
    %v7493 = vrot.slane %v7480, %v7492
    %v7494 = vlaneseq
    %v7495 = vshrl.u32 %v7494, 7
    %v7496 = vsub.s32 2, %v7495
    %v7497 = vrot.slane %v7480, %v7496
    %v7498 = vlaneseq
    %v7499 = vshrl.u32 %v7498, 7
    %v7500 = vsub.s32 3, %v7499
    %v7501 = vrot.slane %v7480, %v7500
    %v7502 = vlaneseq
    %v7503 = vshrl.u32 %v7502, 7
    %v7504 = vsub.s32 4, %v7503
    %v7505 = vrot.slane %v7480, %v7504
    %v7506 = vlaneseq
    %v7507 = vshrl.u32 %v7506, 7
    %v7508 = vsub.s32 5, %v7507
    %v7509 = vrot.slane %v7480, %v7508
    %v7510 = vlaneseq
    %v7511 = vshrl.u32 %v7510, 7
    %v7512 = vsub.s32 6, %v7511
    %v7513 = vrot.slane %v7480, %v7512
    %v7514 = vlaneseq
    %v7515 = vshrl.u32 %v7514, 7
    %v7516 = vsub.s32 7, %v7515
    %v7517 = vrot.slane %v7480, %v7516
    %v7518 = vlaneseq
    %v7519 = vshrl.u32 %v7518, 7
    %v7520 = vsub.s32 0, %v7519
    %v7521 = vrot.slane %v7481, %v7520
    %v7522 = vlaneseq
    %v7523 = vshrl.u32 %v7522, 7
    %v7524 = vsub.s32 1, %v7523
    %v7525 = vrot.slane %v7481, %v7524
    %v7526 = vlaneseq
    %v7527 = vshrl.u32 %v7526, 7
    %v7528 = vsub.s32 2, %v7527
    %v7529 = vrot.slane %v7481, %v7528
    %v7530 = vlaneseq
    %v7531 = vshrl.u32 %v7530, 7
    %v7532 = vsub.s32 3, %v7531
    %v7533 = vrot.slane %v7481, %v7532
    %v7534 = vlaneseq
    %v7535 = vshrl.u32 %v7534, 7
    %v7536 = vsub.s32 4, %v7535
    %v7537 = vrot.slane %v7481, %v7536
    %v7538 = vlaneseq
    %v7539 = vshrl.u32 %v7538, 7
    %v7540 = vsub.s32 5, %v7539
    %v7541 = vrot.slane %v7481, %v7540
    %v7542 = vlaneseq
    %v7543 = vshrl.u32 %v7542, 7
    %v7544 = vsub.s32 6, %v7543
    %v7545 = vrot.slane %v7481, %v7544
    %v7546 = vlaneseq
    %v7547 = vshrl.u32 %v7546, 7
    %v7548 = vsub.s32 7, %v7547
    %v7549 = vrot.slane %v7481, %v7548
    %v7550 = vlaneseq
    %v7551 = vshrl.u32 %v7550, 7
    %v7552 = vsub.s32 0, %v7551
    %v7553 = vrot.slane %v7482, %v7552
    %v7554 = vlaneseq
    %v7555 = vshrl.u32 %v7554, 7
    %v7556 = vsub.s32 1, %v7555
    %v7557 = vrot.slane %v7482, %v7556
    %v8440 = vunpack.c.l.b16 %v6616
    %v8441 = vunpack.c.h.b16 %v6616
    %v8442 = vunpack.c.l.b16 %v6617
    %v8443 = vunpack.c.h.b16 %v6617
    %v8444 = vunpack.c.l.b16 %v6618
    %v8445 = vunpack.c.h.b16 %v6618
    %v8446 = vunpack.c.l.b16 %v6619
    %v8447 = vunpack.c.h.b16 %v6619
    %v8448 = vunpack.c.l.b16 %v6620
    %v8449 = vunpack.c.h.b16 %v6620
    %v8450 = vunpack.c.l.b16 %v6621
    %v8451 = vunpack.c.h.b16 %v6621
    %v8452 = vunpack.c.l.b16 %v6622
    %v8453 = vunpack.c.h.b16 %v6622
    %v8454 = vunpack.c.l.b16 %v6623
    %v8455 = vunpack.c.h.b16 %v6623
    %v8456 = vunpack.c.l.b16 %v6624
    %v8457 = vunpack.c.h.b16 %v6624
    %v8458 = vunpack.c.l.b16 %v6625
    %v8459 = vunpack.c.h.b16 %v6625
    %v8460 = vunpack.c.l.b16 %v6626
    %v8461 = vunpack.c.h.b16 %v6626
    %v8462 = vunpack.c.l.b16 %v6627
    %v8463 = vunpack.c.h.b16 %v6627
    %v8464 = vunpack.c.l.b16 %v6628
    %v8465 = vunpack.c.h.b16 %v6628
    %v8466 = vunpack.c.l.b16 %v6629
    %v8467 = vunpack.c.h.b16 %v6629
    %v8468 = vunpack.c.l.b16 %v6630
    %v8469 = vunpack.c.h.b16 %v6630
    %v8470 = vunpack.c.l.b16 %v6631
    %v8471 = vunpack.c.h.b16 %v6631
    %v8472 = vunpack.c.l.b16 %v6632
    %v8473 = vunpack.c.h.b16 %v6632
    %v8474 = vunpack.c.l.b16 %v6633
    %v8475 = vunpack.c.h.b16 %v6633
    %v8476 = vunpack.c.l.b16 %v6634
    %v8477 = vunpack.c.h.b16 %v6634
    %v8478 = vunpack.c.l.b16 %v6635
    %v8479 = vunpack.c.h.b16 %v6635
    %v8480 = vunpack.c.l.b16 %v6636
    %v8481 = vunpack.c.h.b16 %v6636
    %v8482 = vunpack.c.l.b16 %v6637
    %v8483 = vunpack.c.h.b16 %v6637
    %v8484 = vunpack.c.l.b16 %v6638
    %v8485 = vunpack.c.h.b16 %v6638
    %v8486 = vunpack.c.l.b16 %v6639
    %v8487 = vunpack.c.h.b16 %v6639
    %v8488 = vunpack.c.l.b16 %v6640
    %v8489 = vunpack.c.h.b16 %v6640
    %v8490 = vunpack.c.l.b16 %v6641
    %v8491 = vunpack.c.h.b16 %v6641
    %v8492 = vunpack.c.l.b16 %v6642
    %v8493 = vunpack.c.h.b16 %v6642
    %v8494 = vunpack.c.l.b16 %v6643
    %v8495 = vunpack.c.h.b16 %v6643
    %v8496 = vunpack.c.l.b16 %v6644
    %v8497 = vunpack.c.h.b16 %v6644
    %v8498 = vunpack.c.l.b16 %v6645
    %v8499 = vunpack.c.h.b16 %v6645
    %v8500 = vunpack.c.l.b16 %v6646
    %v8501 = vunpack.c.h.b16 %v6646
    %v8502 = vunpack.c.l.b16 %v6647
    %v8503 = vunpack.c.h.b16 %v6647
    %v8504 = vunpack.c.l.b16 %v6648
    %v8505 = vunpack.c.h.b16 %v6648
    %v8506 = vunpack.c.l.b16 %v6649
    %v8507 = vunpack.c.h.b16 %v6649
    %v8508 = vunpack.c.l.b16 %v6650
    %v8509 = vunpack.c.h.b16 %v6650
    %v8510 = vunpack.c.l.b16 %v6651
    %v8511 = vunpack.c.h.b16 %v6651
    %v8512 = vunpack.c.l.b16 %v6652
    %v8513 = vunpack.c.h.b16 %v6652
    %v8514 = vunpack.c.l.b16 %v6653
    %v8515 = vunpack.c.h.b16 %v6653
    %v8516 = vunpack.c.l.b16 %v6654
    %v8517 = vunpack.c.h.b16 %v6654
    %v8518 = vunpack.c.l.b16 %v6655
    %v8519 = vunpack.c.h.b16 %v6655
    %v8520 = vunpack.c.l.b16 %v6656
    %v8521 = vunpack.c.h.b16 %v6656
    %v8522 = vunpack.c.l.b16 %v6657
    %v8523 = vunpack.c.h.b16 %v6657
    %v8524 = vunpack.c.l.b16 %v6658
    %v8525 = vunpack.c.h.b16 %v6658
    %v8526 = vunpack.c.l.b16 %v6659
    %v8527 = vunpack.c.h.b16 %v6659
    %v8528 = vunpack.c.l.b16 %v6660
    %v8529 = vunpack.c.h.b16 %v6660
    %v8530 = vunpack.c.l.b16 %v6661
    %v8531 = vunpack.c.h.b16 %v6661
    %v8532 = vunpack.c.l.b16 %v6662
    %v8533 = vunpack.c.h.b16 %v6662
    %v8534 = vunpack.c.l.b16 %v6663
    %v8535 = vunpack.c.h.b16 %v6663
    %v8536 = vunpack.c.l.b16 %v6664
    %v8537 = vunpack.c.h.b16 %v6664
    %v8538 = vunpack.c.l.b16 %v6665
    %v8539 = vunpack.c.h.b16 %v6665
    %v8540 = vunpack.c.l.b16 %v6666
    %v8541 = vunpack.c.h.b16 %v6666
    %v8542 = vunpack.c.l.b16 %v6667
    %v8543 = vunpack.c.h.b16 %v6667
    %v8544 = vunpack.c.l.b16 %v6668
    %v8545 = vunpack.c.h.b16 %v6668
    %v8546 = vunpack.c.l.b16 %v6669
    %v8547 = vunpack.c.h.b16 %v6669
    %v8548 = vunpack.c.l.b16 %v6670
    %v8549 = vunpack.c.h.b16 %v6670
    %v8550 = vunpack.c.l.b16 %v6671
    %v8551 = vunpack.c.h.b16 %v6671
    %v8552 = vunpack.c.l.b16 %v6672
    %v8553 = vunpack.c.h.b16 %v6672
    %v8554 = vunpack.c.l.b16 %v6673
    %v8555 = vunpack.c.h.b16 %v6673
    %v8556 = vunpack.c.l.b16 %v6674
    %v8557 = vunpack.c.h.b16 %v6674
    %v8558 = vunpack.c.l.b16 %v6675
    %v8559 = vunpack.c.h.b16 %v6675
    %v8560 = vunpack.c.l.b16 %v6676
    %v8561 = vunpack.c.h.b16 %v6676
    %v8562 = vunpack.c.l.b16 %v6677
    %v8563 = vunpack.c.h.b16 %v6677
    %v8564 = vunpack.c.l.b16 %v6678
    %v8565 = vunpack.c.h.b16 %v6678
    %v8566 = vunpack.c.l.b16 %v6679
    %v8567 = vunpack.c.h.b16 %v6679
    %v8568 = vunpack.c.l.b16 %v6680
    %v8569 = vunpack.c.h.b16 %v6680
    %v8570 = vunpack.c.l.b16 %v6681
    %v8571 = vunpack.c.h.b16 %v6681
    %v8572 = vunpack.c.l.b16 %v6682
    %v8573 = vunpack.c.h.b16 %v6682
    %v8574 = vunpack.c.l.b16 %v6683
    %v8575 = vunpack.c.h.b16 %v6683
    %v8576 = vunpack.c.l.b16 %v6684
    %v8577 = vunpack.c.h.b16 %v6684
    %v8578 = vunpack.c.l.b16 %v6685
    %v8579 = vunpack.c.h.b16 %v6685
    %v8580 = vunpack.c.l.b16 %v6686
    %v8581 = vunpack.c.h.b16 %v6686
    %v8582 = vunpack.c.l.b16 %v6687
    %v8583 = vunpack.c.h.b16 %v6687
    %v8584 = vunpack.c.l.b16 %v6688
    %v8585 = vunpack.c.h.b16 %v6688
    %v8586 = vunpack.c.l.b16 %v6689
    %v8587 = vunpack.c.h.b16 %v6689
    %v8588 = vunpack.c.l.b16 %v6690
    %v8589 = vunpack.c.h.b16 %v6690
    %v8590 = vunpack.c.l.b16 %v6691
    %v8591 = vunpack.c.h.b16 %v6691
    %v8592 = vunpack.c.l.b16 %v6692
    %v8593 = vunpack.c.h.b16 %v6692
    %v8594 = vunpack.c.l.b16 %v6693
    %v8595 = vunpack.c.h.b16 %v6693
    %v8596 = vunpack.c.l.b16 %v6694
    %v8597 = vunpack.c.h.b16 %v6694
    %v8598 = vunpack.c.l.b16 %v6695
    %v8599 = vunpack.c.h.b16 %v6695
    %v8600 = vunpack.c.l.b16 %v6696
    %v8601 = vunpack.c.h.b16 %v6696
    %v8602 = vunpack.c.l.b16 %v6697
    %v8603 = vunpack.c.h.b16 %v6697
    %v8604 = vunpack.c.l.b16 %v6698
    %v8605 = vunpack.c.h.b16 %v6698
    %v8606 = vunpack.c.l.b16 %v6699
    %v8607 = vunpack.c.h.b16 %v6699
    %v8608 = vunpack.c.l.b16 %v6700
    %v8609 = vunpack.c.h.b16 %v6700
    %v8610 = vunpack.c.l.b16 %v6701
    %v8611 = vunpack.c.h.b16 %v6701
    %v8612 = vunpack.c.l.b16 %v6702
    %v8613 = vunpack.c.h.b16 %v6702
    %v8614 = vunpack.c.l.b16 %v6703
    %v8615 = vunpack.c.h.b16 %v6703
    %v8616 = vunpack.c.l.b16 %v6704
    %v8617 = vunpack.c.h.b16 %v6704
    %v8618 = vunpack.c.l.b16 %v6705
    %v8619 = vunpack.c.h.b16 %v6705
    %v8620 = vunpack.c.l.b16 %v6706
    %v8621 = vunpack.c.h.b16 %v6706
    %v8622 = vunpack.c.l.b16 %v6707
    %v8623 = vunpack.c.h.b16 %v6707
    %v8624 = vunpack.c.l.b16 %v6708
    %v8625 = vunpack.c.h.b16 %v6708
    %v8626 = vunpack.c.l.b16 %v6709
    %v8627 = vunpack.c.h.b16 %v6709
    %v8628 = vunpack.c.l.b16 %v6710
    %v8629 = vunpack.c.h.b16 %v6710
    %v8630 = vunpack.c.l.b16 %v6711
    %v8631 = vunpack.c.h.b16 %v6711
    %v8632 = vunpack.c.l.b16 %v6712
    %v8633 = vunpack.c.h.b16 %v6712
    %v8634 = vunpack.c.l.b16 %v6713
    %v8635 = vunpack.c.h.b16 %v6713
    %v8636 = vunpack.c.l.b16 %v6714
    %v8637 = vunpack.c.h.b16 %v6714
    %v8638 = vunpack.c.l.b16 %v6715
    %v8639 = vunpack.c.h.b16 %v6715
    %v8640 = vunpack.c.l.b16 %v6716
    %v8641 = vunpack.c.h.b16 %v6716
    %v8642 = vunpack.c.l.b16 %v6717
    %v8643 = vunpack.c.h.b16 %v6717
    %v8644 = vunpack.c.l.b16 %v6718
    %v8645 = vunpack.c.h.b16 %v6718
    %v8646 = vunpack.c.l.b16 %v6719
    %v8647 = vunpack.c.h.b16 %v6719
    %v8648 = vunpack.c.l.b16 %v6720
    %v8649 = vunpack.c.h.b16 %v6720
    %v8650 = vunpack.c.l.b16 %v6721
    %v8651 = vunpack.c.h.b16 %v6721
    %v8652 = vunpack.c.l.b16 %v6722
    %v8653 = vunpack.c.h.b16 %v6722
    %v8654 = vunpack.c.l.b16 %v6723
    %v8655 = vunpack.c.h.b16 %v6723
    %v8656 = vunpack.c.l.b16 %v6724
    %v8657 = vunpack.c.h.b16 %v6724
    %v8658 = vunpack.c.l.b16 %v6725
    %v8659 = vunpack.c.h.b16 %v6725
    %v8660 = vunpack.c.l.b16 %v6726
    %v8661 = vunpack.c.h.b16 %v6726
    %v8662 = vunpack.c.l.b16 %v6727
    %v8663 = vunpack.c.h.b16 %v6727
    %v8664 = vunpack.c.l.b16 %v6728
    %v8665 = vunpack.c.h.b16 %v6728
    %v8666 = vunpack.c.l.b16 %v6729
    %v8667 = vunpack.c.h.b16 %v6729
    %v8668 = vunpack.c.l.b16 %v6730
    %v8669 = vunpack.c.h.b16 %v6730
    %v8670 = vunpack.c.l.b16 %v6731
    %v8671 = vunpack.c.h.b16 %v6731
    %v8672 = vunpack.c.l.b16 %v6732
    %v8673 = vunpack.c.h.b16 %v6732
    %v8674 = vunpack.c.l.b16 %v6733
    %v8675 = vunpack.c.h.b16 %v6733
    %v8676 = vunpack.c.l.b16 %v6734
    %v8677 = vunpack.c.h.b16 %v6734
    %v8678 = vunpack.c.l.b16 %v6735
    %v8679 = vunpack.c.h.b16 %v6735
    %v8680 = vunpack.c.l.b16 %v6736
    %v8681 = vunpack.c.h.b16 %v6736
    %v8682 = vunpack.c.l.b16 %v6737
    %v8683 = vunpack.c.h.b16 %v6737
    %v8684 = vunpack.c.l.b16 %v6738
    %v8685 = vunpack.c.h.b16 %v6738
    %v8686 = vunpack.c.l.b16 %v6739
    %v8687 = vunpack.c.h.b16 %v6739
    %v8688 = vunpack.c.l.b16 %v6740
    %v8689 = vunpack.c.h.b16 %v6740
    %v8690 = vunpack.c.l.b16 %v6741
    %v8691 = vunpack.c.h.b16 %v6741
    %v8692 = vunpack.c.l.b16 %v6742
    %v8693 = vunpack.c.h.b16 %v6742
    %v8694 = vunpack.c.l.b16 %v6743
    %v8695 = vunpack.c.h.b16 %v6743
    %v8696 = vunpack.c.l.b16 %v6744
    %v8697 = vunpack.c.h.b16 %v6744
    %v8698 = vunpack.c.l.b16 %v6745
    %v8699 = vunpack.c.h.b16 %v6745
    %v8700 = vunpack.c.l.b16 %v6746
    %v8701 = vunpack.c.h.b16 %v6746
    %v8702 = vunpack.c.l.b16 %v6747
    %v8703 = vunpack.c.h.b16 %v6747
    %v8704 = vunpack.c.l.b16 %v6748
    %v8705 = vunpack.c.h.b16 %v6748
    %v8706 = vunpack.c.l.b16 %v6749
    %v8707 = vunpack.c.h.b16 %v6749
    %v8708 = vunpack.c.l.b16 %v6750
    %v8709 = vunpack.c.h.b16 %v6750
    %v8710 = vunpack.c.l.b16 %v6751
    %v8711 = vunpack.c.h.b16 %v6751
    %v8712 = vunpack.c.l.b16 %v6752
    %v8713 = vunpack.c.h.b16 %v6752
    %v8714 = vunpack.c.l.b16 %v6753
    %v8715 = vunpack.c.h.b16 %v6753
    %v8716 = vunpack.c.l.b16 %v6754
    %v8717 = vunpack.c.h.b16 %v6754
    %v8718 = vunpack.c.l.b16 %v6755
    %v8719 = vunpack.c.h.b16 %v6755
    %v8720 = vunpack.c.l.b16 %v6756
    %v8721 = vunpack.c.h.b16 %v6756
    %v8722 = vunpack.c.l.b16 %v6757
    %v8723 = vunpack.c.h.b16 %v6757
    %v8724 = vunpack.c.l.b16 %v6758
    %v8725 = vunpack.c.h.b16 %v6758
    %v8726 = vunpack.c.l.b16 %v6759
    %v8727 = vunpack.c.h.b16 %v6759
    %v8728 = vunpack.c.l.b16 %v6760
    %v8729 = vunpack.c.h.b16 %v6760
    %v8730 = vunpack.c.l.b16 %v6761
    %v8731 = vunpack.c.h.b16 %v6761
    %v8732 = vunpack.c.l.b16 %v6762
    %v8733 = vunpack.c.h.b16 %v6762
    %v8734 = vunpack.c.l.b16 %v6763
    %v8735 = vunpack.c.h.b16 %v6763
    %v8736 = vunpack.c.l.b16 %v6764
    %v8737 = vunpack.c.h.b16 %v6764
    %v8738 = vunpack.c.l.b16 %v6765
    %v8739 = vunpack.c.h.b16 %v6765
    %v8740 = vunpack.c.l.b16 %v6766
    %v8741 = vunpack.c.h.b16 %v6766
    %v8742 = vunpack.c.l.b16 %v6767
    %v8743 = vunpack.c.h.b16 %v6767
    %v8744 = vunpack.c.l.b16 %v6768
    %v8745 = vunpack.c.h.b16 %v6768
    %v8746 = vunpack.c.l.b16 %v6769
    %v8747 = vunpack.c.h.b16 %v6769
    %v8748 = vunpack.c.l.b16 %v6770
    %v8749 = vunpack.c.h.b16 %v6770
    %v8750 = vunpack.c.l.b16 %v6771
    %v8751 = vunpack.c.h.b16 %v6771
    %v8752 = vunpack.c.l.b16 %v6772
    %v8753 = vunpack.c.h.b16 %v6772
    %v8754 = vunpack.c.l.b16 %v6773
    %v8755 = vunpack.c.h.b16 %v6773
    %v8756 = vunpack.c.l.b16 %v6774
    %v8757 = vunpack.c.h.b16 %v6774
    %v8758 = vunpack.c.l.b16 %v6775
    %v8759 = vunpack.c.h.b16 %v6775
    %v8760 = vunpack.c.l.b16 %v6776
    %v8761 = vunpack.c.h.b16 %v6776
    %v8762 = vunpack.c.l.b16 %v6777
    %v8763 = vunpack.c.h.b16 %v6777
    %v8764 = vunpack.c.l.b16 %v6778
    %v8765 = vunpack.c.h.b16 %v6778
    %v8766 = vunpack.c.l.b16 %v6779
    %v8767 = vunpack.c.h.b16 %v6779
    %v8768 = vunpack.c.l.b16 %v6780
    %v8769 = vunpack.c.h.b16 %v6780
    %v8770 = vunpack.c.l.b16 %v6781
    %v8771 = vunpack.c.h.b16 %v6781
    %v8772 = vunpack.c.l.b16 %v6782
    %v8773 = vunpack.c.h.b16 %v6782
    %v8774 = vunpack.c.l.b16 %v6783
    %v8775 = vunpack.c.h.b16 %v6783
    %v8776 = vunpack.c.l.b16 %v6784
    %v8777 = vunpack.c.h.b16 %v6784
    %v8778 = vunpack.c.l.b16 %v6785
    %v8779 = vunpack.c.h.b16 %v6785
    %v8780 = vunpack.c.l.b16 %v6786
    %v8781 = vunpack.c.h.b16 %v6786
    %v8782 = vunpack.c.l.b16 %v6787
    %v8783 = vunpack.c.h.b16 %v6787
    %v8784 = vunpack.c.l.b16 %v6788
    %v8785 = vunpack.c.h.b16 %v6788
    %v8786 = vunpack.c.l.b16 %v6789
    %v8787 = vunpack.c.h.b16 %v6789
    %v8788 = vunpack.c.l.b16 %v6790
    %v8789 = vunpack.c.h.b16 %v6790
    %v8790 = vunpack.c.l.b16 %v6791
    %v8791 = vunpack.c.h.b16 %v6791
    %v8792 = vunpack.c.l.b16 %v6792
    %v8793 = vunpack.c.h.b16 %v6792
    %v8794 = vunpack.c.l.b16 %v6793
    %v8795 = vunpack.c.h.b16 %v6793
    %v8796 = vunpack.c.l.b16 %v6794
    %v8797 = vunpack.c.h.b16 %v6794
    %v8798 = vunpack.c.l.b16 %v6795
    %v8799 = vunpack.c.h.b16 %v6795
    %v8800 = vunpack.c.l.b16 %v6796
    %v8801 = vunpack.c.h.b16 %v6796
    %v8802 = vunpack.c.l.b16 %v6797
    %v8803 = vunpack.c.h.b16 %v6797
    %v8804 = vunpack.c.l.b16 %v6798
    %v8805 = vunpack.c.h.b16 %v6798
    %v8806 = vunpack.c.l.b16 %v6799
    %v8807 = vunpack.c.h.b16 %v6799
    %v8808 = vunpack.c.l.b16 %v6800
    %v8809 = vunpack.c.h.b16 %v6800
    %v8810 = vunpack.c.l.b16 %v6801
    %v8811 = vunpack.c.h.b16 %v6801
    %v8812 = vunpack.c.l.b16 %v6802
    %v8813 = vunpack.c.h.b16 %v6802
    %v8814 = vunpack.c.l.b16 %v6803
    %v8815 = vunpack.c.h.b16 %v6803
    %v8816 = vunpack.c.l.b16 %v6804
    %v8817 = vunpack.c.h.b16 %v6804
    %v8818 = vunpack.c.l.b16 %v6805
    %v8819 = vunpack.c.h.b16 %v6805
    %v8820 = vunpack.c.l.b16 %v6806
    %v8821 = vunpack.c.h.b16 %v6806
    %v8822 = vunpack.c.l.b16 %v6807
    %v8823 = vunpack.c.h.b16 %v6807
    %v8824 = vunpack.c.l.b16 %v6808
    %v8825 = vunpack.c.h.b16 %v6808
    %v8826 = vunpack.c.l.b16 %v6809
    %v8827 = vunpack.c.h.b16 %v6809
    %v8828 = vunpack.c.l.b16 %v6810
    %v8829 = vunpack.c.h.b16 %v6810
    %v8830 = vunpack.c.l.b16 %v6811
    %v8831 = vunpack.c.h.b16 %v6811
    %v8832 = vunpack.c.l.b16 %v6812
    %v8833 = vunpack.c.h.b16 %v6812
    %v8834 = vunpack.c.l.b16 %v6813
    %v8835 = vunpack.c.h.b16 %v6813
    %v8836 = vunpack.c.l.b16 %v6814
    %v8837 = vunpack.c.h.b16 %v6814
    %v8838 = vunpack.c.l.b16 %v6815
    %v8839 = vunpack.c.h.b16 %v6815
    %v8840 = vunpack.c.l.b16 %v6816
    %v8841 = vunpack.c.h.b16 %v6816
    %v8842 = vunpack.c.l.b16 %v6817
    %v8843 = vunpack.c.h.b16 %v6817
    %v8844 = vunpack.c.l.b16 %v6818
    %v8845 = vunpack.c.h.b16 %v6818
    %v8846 = vunpack.c.l.b16 %v6819
    %v8847 = vunpack.c.h.b16 %v6819
    %v8848 = vunpack.c.l.b16 %v6820
    %v8849 = vunpack.c.h.b16 %v6820
    %v8850 = vunpack.c.l.b16 %v6821
    %v8851 = vunpack.c.h.b16 %v6821
    %v8852 = vunpack.c.l.b16 %v6822
    %v8853 = vunpack.c.h.b16 %v6822
    %v8854 = vunpack.c.l.b16 %v6823
    %v8855 = vunpack.c.h.b16 %v6823
    %v8856 = vunpack.c.l.b16 %v6824
    %v8857 = vunpack.c.h.b16 %v6824
    %v8858 = vunpack.c.l.b16 %v6825
    %v8859 = vunpack.c.h.b16 %v6825
    %v8860 = vunpack.c.l.b16 %v6826
    %v8861 = vunpack.c.h.b16 %v6826
    %v8862 = vunpack.c.l.b16 %v6827
    %v8863 = vunpack.c.h.b16 %v6827
    %v8864 = vunpack.c.l.b16 %v6828
    %v8865 = vunpack.c.h.b16 %v6828
    %v8866 = vunpack.c.l.b16 %v6829
    %v8867 = vunpack.c.h.b16 %v6829
    %v8868 = vunpack.c.l.b16 %v6830
    %v8869 = vunpack.c.h.b16 %v6830
    %v8870 = vunpack.c.l.b16 %v6831
    %v8871 = vunpack.c.h.b16 %v6831
    %v8872 = vunpack.c.l.b16 %v6832
    %v8873 = vunpack.c.h.b16 %v6832
    %v8874 = vunpack.c.l.b16 %v6833
    %v8875 = vunpack.c.h.b16 %v6833
    %v8876 = vunpack.c.l.b16 %v6834
    %v8877 = vunpack.c.h.b16 %v6834
    %v8878 = vunpack.c.l.b16 %v6835
    %v8879 = vunpack.c.h.b16 %v6835
    %v8880 = vunpack.c.l.b16 %v6836
    %v8881 = vunpack.c.h.b16 %v6836
    %v8882 = vunpack.c.l.b16 %v6837
    %v8883 = vunpack.c.h.b16 %v6837
    %v8884 = vunpack.c.l.b16 %v6838
    %v8885 = vunpack.c.h.b16 %v6838
    %v8886 = vunpack.c.l.b16 %v6839
    %v8887 = vunpack.c.h.b16 %v6839
    %v8888 = vunpack.c.l.b16 %v6840
    %v8889 = vunpack.c.h.b16 %v6840
    %v8890 = vunpack.c.l.b16 %v6841
    %v8891 = vunpack.c.h.b16 %v6841
    %v8892 = vunpack.c.l.b16 %v6842
    %v8893 = vunpack.c.h.b16 %v6842
    %v8894 = vunpack.c.l.b16 %v6843
    %v8895 = vunpack.c.h.b16 %v6843
    %v8896 = vunpack.c.l.b16 %v6844
    %v8897 = vunpack.c.h.b16 %v6844
    %v8898 = vunpack.c.l.b16 %v6845
    %v8899 = vunpack.c.h.b16 %v6845
    %v8900 = vunpack.c.l.b16 %v6846
    %v8901 = vunpack.c.h.b16 %v6846
    %v8902 = vunpack.c.l.b16 %v6847
    %v8903 = vunpack.c.h.b16 %v6847
    %v8904 = vunpack.c.l.b16 %v6848
    %v8905 = vunpack.c.h.b16 %v6848
    %v8906 = vunpack.c.l.b16 %v6849
    %v8907 = vunpack.c.h.b16 %v6849
    %v8908 = vunpack.c.l.b16 %v6850
    %v8909 = vunpack.c.h.b16 %v6850
    %v8910 = vunpack.c.l.b16 %v6851
    %v8911 = vunpack.c.h.b16 %v6851
    %v8912 = vunpack.c.l.b16 %v6852
    %v8913 = vunpack.c.h.b16 %v6852
    %v8914 = vunpack.c.l.b16 %v6853
    %v8915 = vunpack.c.h.b16 %v6853
    %v8916 = vunpack.c.l.b16 %v6854
    %v8917 = vunpack.c.h.b16 %v6854
    %v8918 = vunpack.c.l.b16 %v6855
    %v8919 = vunpack.c.h.b16 %v6855
    %v8920 = vunpack.c.l.b16 %v6856
    %v8921 = vunpack.c.h.b16 %v6856
    %v8922 = vunpack.c.l.b16 %v6857
    %v8923 = vunpack.c.h.b16 %v6857
    %v8924 = vunpack.c.l.b16 %v6858
    %v8925 = vunpack.c.h.b16 %v6858
    %v8926 = vunpack.c.l.b16 %v6859
    %v8927 = vunpack.c.h.b16 %v6859
    %v8928 = vunpack.c.l.b16 %v6860
    %v8929 = vunpack.c.h.b16 %v6860
    %v8930 = vunpack.c.l.b16 %v6861
    %v8931 = vunpack.c.h.b16 %v6861
    %v8932 = vunpack.c.l.b16 %v6862
    %v8933 = vunpack.c.h.b16 %v6862
    %v8934 = vunpack.c.l.b16 %v6863
    %v8935 = vunpack.c.h.b16 %v6863
    %v8936 = vunpack.c.l.b16 %v6864
    %v8937 = vunpack.c.h.b16 %v6864
    %v8938 = vunpack.c.l.b16 %v6865
    %v8939 = vunpack.c.h.b16 %v6865
    %v8940 = vunpack.c.l.b16 %v6866
    %v8941 = vunpack.c.h.b16 %v6866
    %v8942 = vunpack.c.l.b16 %v6867
    %v8943 = vunpack.c.h.b16 %v6867
    %v8944 = vunpack.c.l.b16 %v6868
    %v8945 = vunpack.c.h.b16 %v6868
    %v8946 = vunpack.c.l.b16 %v6869
    %v8947 = vunpack.c.h.b16 %v6869
    %v8948 = vunpack.c.l.b16 %v6870
    %v8949 = vunpack.c.h.b16 %v6870
    %v8950 = vunpack.c.l.b16 %v6871
    %v8951 = vunpack.c.h.b16 %v6871
    %v8952 = vunpack.c.l.b16 %v6872
    %v8953 = vunpack.c.h.b16 %v6872
    %v8954 = vunpack.c.l.b16 %v6873
    %v8955 = vunpack.c.h.b16 %v6873
    %v8956 = vunpack.c.l.b16 %v6874
    %v8957 = vunpack.c.h.b16 %v6874
    %v8958 = vunpack.c.l.b16 %v6875
    %v8959 = vunpack.c.h.b16 %v6875
    %v8960 = vunpack.c.l.b16 %v6876
    %v8961 = vunpack.c.h.b16 %v6876
    %v8962 = vunpack.c.l.b16 %v6877
    %v8963 = vunpack.c.h.b16 %v6877
    %v8964 = vunpack.c.l.b16 %v6878
    %v8965 = vunpack.c.h.b16 %v6878
    %v8966 = vunpack.c.l.b16 %v6879
    %v8967 = vunpack.c.h.b16 %v6879
    %v8968 = vunpack.c.l.b16 %v6880
    %v8969 = vunpack.c.h.b16 %v6880
    %v8970 = vunpack.c.l.b16 %v6881
    %v8971 = vunpack.c.h.b16 %v6881
    %v8972 = vunpack.c.l.b16 %v6882
    %v8973 = vunpack.c.h.b16 %v6882
    %v8974 = vunpack.c.l.b16 %v6883
    %v8975 = vunpack.c.h.b16 %v6883
    %v8976 = vunpack.c.l.b16 %v6884
    %v8977 = vunpack.c.h.b16 %v6884
    %v8978 = vunpack.c.l.b16 %v6885
    %v8979 = vunpack.c.h.b16 %v6885
    %v8980 = vunpack.c.l.b16 %v6886
    %v8981 = vunpack.c.h.b16 %v6886
    %v8982 = vunpack.c.l.b16 %v6887
    %v8983 = vunpack.c.h.b16 %v6887
    %v8984 = vunpack.c.l.b16 %v6888
    %v8985 = vunpack.c.h.b16 %v6888
    %v8986 = vunpack.c.l.b16 %v6889
    %v8987 = vunpack.c.h.b16 %v6889
    %v8988 = vunpack.c.l.b16 %v6890
    %v8989 = vunpack.c.h.b16 %v6890
    %v8990 = vunpack.c.l.b16 %v6891
    %v8991 = vunpack.c.h.b16 %v6891
    %v8992 = vunpack.c.l.b16 %v6892
    %v8993 = vunpack.c.h.b16 %v6892
    %v8994 = vunpack.c.l.b16 %v6893
    %v8995 = vunpack.c.h.b16 %v6893
    %v8996 = vunpack.c.l.b16 %v6894
    %v8997 = vunpack.c.h.b16 %v6894
    %v8998 = vunpack.c.l.b16 %v6895
    %v8999 = vunpack.c.h.b16 %v6895
    %v9000 = vunpack.c.l.b16 %v6896
    %v9001 = vunpack.c.h.b16 %v6896
    %v9002 = vunpack.c.l.b16 %v6897
    %v9003 = vunpack.c.h.b16 %v6897
    %v9004 = vunpack.c.l.b16 %v6898
    %v9005 = vunpack.c.h.b16 %v6898
    %v9006 = vunpack.c.l.b16 %v6899
    %v9007 = vunpack.c.h.b16 %v6899
    %v9008 = vunpack.c.l.b16 %v6900
    %v9009 = vunpack.c.h.b16 %v6900
    %v9010 = vunpack.c.l.b16 %v6901
    %v9011 = vunpack.c.h.b16 %v6901
    %v9012 = vunpack.c.l.b16 %v6902
    %v9013 = vunpack.c.h.b16 %v6902
    %v9014 = vunpack.c.l.b16 %v6903
    %v9015 = vunpack.c.h.b16 %v6903
    %v9016 = vunpack.c.l.b16 %v6904
    %v9017 = vunpack.c.h.b16 %v6904
    %v9018 = vunpack.c.l.b16 %v6905
    %v9019 = vunpack.c.h.b16 %v6905
    %v9020 = vunpack.c.l.b16 %v6906
    %v9021 = vunpack.c.h.b16 %v6906
    %v9022 = vunpack.c.l.b16 %v6907
    %v9023 = vunpack.c.h.b16 %v6907
    %v9024 = vunpack.c.l.b16 %v6908
    %v9025 = vunpack.c.h.b16 %v6908
    %v9026 = vunpack.c.l.b16 %v6909
    %v9027 = vunpack.c.h.b16 %v6909
    %v9028 = vunpack.c.l.b16 %v6910
    %v9029 = vunpack.c.h.b16 %v6910
    %v9030 = vunpack.c.l.b16 %v6911
    %v9031 = vunpack.c.h.b16 %v6911
    %v9032 = vunpack.c.l.b16 %v6912
    %v9033 = vunpack.c.h.b16 %v6912
    %v9034 = vunpack.c.l.b16 %v6913
    %v9035 = vunpack.c.h.b16 %v6913
    %v9036 = vunpack.c.l.b16 %v6914
    %v9037 = vunpack.c.h.b16 %v6914
    %v9038 = vunpack.c.l.b16 %v6915
    %v9039 = vunpack.c.h.b16 %v6915
    %v9040 = vunpack.c.l.b16 %v6916
    %v9041 = vunpack.c.h.b16 %v6916
    %v9042 = vunpack.c.l.b16 %v6917
    %v9043 = vunpack.c.h.b16 %v6917
    %v9044 = vunpack.c.l.b16 %v6918
    %v9045 = vunpack.c.h.b16 %v6918
    %v9046 = vunpack.c.l.b16 %v6919
    %v9047 = vunpack.c.h.b16 %v6919
    %v9048 = vunpack.c.l.b16 %v6920
    %v9049 = vunpack.c.h.b16 %v6920
    %v9050 = vunpack.c.l.b16 %v6921
    %v9051 = vunpack.c.h.b16 %v6921
    %v9052 = vunpack.c.l.b16 %v6922
    %v9053 = vunpack.c.h.b16 %v6922
    %v9054 = vunpack.c.l.b16 %v6923
    %v9055 = vunpack.c.h.b16 %v6923
    %v9056 = vunpack.c.l.b16 %v6924
    %v9057 = vunpack.c.h.b16 %v6924
    %v9058 = vunpack.c.l.b16 %v6925
    %v9059 = vunpack.c.h.b16 %v6925
    %v9060 = vunpack.c.l.b16 %v6926
    %v9061 = vunpack.c.h.b16 %v6926
    %v9062 = vunpack.c.l.b16 %v6927
    %v9063 = vunpack.c.h.b16 %v6927
    %v9064 = vunpack.c.l.b16 %v6928
    %v9065 = vunpack.c.h.b16 %v6928
    %v9066 = vunpack.c.l.b16 %v6929
    %v9067 = vunpack.c.h.b16 %v6929
    %v9068 = vunpack.c.l.b16 %v6930
    %v9069 = vunpack.c.h.b16 %v6930
    %v9070 = vunpack.c.l.b16 %v6931
    %v9071 = vunpack.c.h.b16 %v6931
    %v9072 = vunpack.c.l.b16 %v6932
    %v9073 = vunpack.c.h.b16 %v6932
    %v9074 = vunpack.c.l.b16 %v6933
    %v9075 = vunpack.c.h.b16 %v6933
    %v9076 = vunpack.c.l.b16 %v6934
    %v9077 = vunpack.c.h.b16 %v6934
    %v9078 = vunpack.c.l.b16 %v6935
    %v9079 = vunpack.c.h.b16 %v6935
    %v9080 = vunpack.c.l.b16 %v6936
    %v9081 = vunpack.c.h.b16 %v6936
    %v9082 = vunpack.c.l.b16 %v6937
    %v9083 = vunpack.c.h.b16 %v6937
    %v9084 = vunpack.c.l.b16 %v6938
    %v9085 = vunpack.c.h.b16 %v6938
    %v9086 = vunpack.c.l.b16 %v6939
    %v9087 = vunpack.c.h.b16 %v6939
    %v9088 = vunpack.c.l.b16 %v6940
    %v9089 = vunpack.c.h.b16 %v6940
    %v9090 = vunpack.c.l.b16 %v6941
    %v9091 = vunpack.c.h.b16 %v6941
    %v9092 = vunpack.c.l.b16 %v6942
    %v9093 = vunpack.c.h.b16 %v6942
    %v9094 = vunpack.c.l.b16 %v6943
    %v9095 = vunpack.c.h.b16 %v6943
    %v9096 = vunpack.c.l.b16 %v6944
    %v9097 = vunpack.c.h.b16 %v6944
    %v9098 = vunpack.c.l.b16 %v6945
    %v9099 = vunpack.c.h.b16 %v6945
    %v9100 = vunpack.c.l.b16 %v6946
    %v9101 = vunpack.c.h.b16 %v6946
    %v9102 = vunpack.c.l.b16 %v6947
    %v9103 = vunpack.c.h.b16 %v6947
    %v9104 = vunpack.c.l.b16 %v6948
    %v9105 = vunpack.c.h.b16 %v6948
    %v9106 = vunpack.c.l.b16 %v6949
    %v9107 = vunpack.c.h.b16 %v6949
    %v9108 = vunpack.c.l.b16 %v6950
    %v9109 = vunpack.c.h.b16 %v6950
    %v9110 = vunpack.c.l.b16 %v6951
    %v9111 = vunpack.c.h.b16 %v6951
    %v9112 = vunpack.c.l.b16 %v6952
    %v9113 = vunpack.c.h.b16 %v6952
    %v9114 = vunpack.c.l.b16 %v6953
    %v9115 = vunpack.c.h.b16 %v6953
    %v9116 = vunpack.c.l.b16 %v6954
    %v9117 = vunpack.c.h.b16 %v6954
    %v9118 = vunpack.c.l.b16 %v6955
    %v9119 = vunpack.c.h.b16 %v6955
    %v9120 = vunpack.c.l.b16 %v6956
    %v9121 = vunpack.c.h.b16 %v6956
    %v9122 = vunpack.c.l.b16 %v6957
    %v9123 = vunpack.c.h.b16 %v6957
    %v9124 = vunpack.c.l.b16 %v6958
    %v9125 = vunpack.c.h.b16 %v6958
    %v9126 = vunpack.c.l.b16 %v6959
    %v9127 = vunpack.c.h.b16 %v6959
    %v9128 = vunpack.c.l.b16 %v6960
    %v9129 = vunpack.c.h.b16 %v6960
    %v9130 = vunpack.c.l.b16 %v6961
    %v9131 = vunpack.c.h.b16 %v6961
    %v9132 = vunpack.c.l.b16 %v6962
    %v9133 = vunpack.c.h.b16 %v6962
    %v9134 = vunpack.c.l.b16 %v6963
    %v9135 = vunpack.c.h.b16 %v6963
    %v9136 = vunpack.c.l.b16 %v6964
    %v9137 = vunpack.c.h.b16 %v6964
    %v9138 = vunpack.c.l.b16 %v6965
    %v9139 = vunpack.c.h.b16 %v6965
    %v9140 = vunpack.c.l.b16 %v6966
    %v9141 = vunpack.c.h.b16 %v6966
    %v9142 = vunpack.c.l.b16 %v6967
    %v9143 = vunpack.c.h.b16 %v6967
    %v9144 = vunpack.c.l.b16 %v6968
    %v9145 = vunpack.c.h.b16 %v6968
    %v9146 = vunpack.c.l.b16 %v6969
    %v9147 = vunpack.c.h.b16 %v6969
    %v9148 = vunpack.c.l.b16 %v6970
    %v9149 = vunpack.c.h.b16 %v6970
    %v9150 = vunpack.c.l.b16 %v6971
    %v9151 = vunpack.c.h.b16 %v6971
    %v9152 = vunpack.c.l.b16 %v6972
    %v9153 = vunpack.c.h.b16 %v6972
    %v9154 = vunpack.c.l.b16 %v6973
    %v9155 = vunpack.c.h.b16 %v6973
    %v9156 = vunpack.c.l.b16 %v6974
    %v9157 = vunpack.c.h.b16 %v6974
    %v9158 = vunpack.c.l.b16 %v6975
    %v9159 = vunpack.c.h.b16 %v6975
    %v9160 = vunpack.c.l.b16 %v6976
    %v9161 = vunpack.c.h.b16 %v6976
    %v9162 = vunpack.c.l.b16 %v6977
    %v9163 = vunpack.c.h.b16 %v6977
    %v9164 = vunpack.c.l.b16 %v6978
    %v9165 = vunpack.c.h.b16 %v6978
    %v9166 = vunpack.c.l.b16 %v6979
    %v9167 = vunpack.c.h.b16 %v6979
    %v9168 = vunpack.c.l.b16 %v6980
    %v9169 = vunpack.c.h.b16 %v6980
    %v9170 = vunpack.c.l.b16 %v6981
    %v9171 = vunpack.c.h.b16 %v6981
    %v9172 = vunpack.c.l.b16 %v6982
    %v9173 = vunpack.c.h.b16 %v6982
    %v9174 = vunpack.c.l.b16 %v6983
    %v9175 = vunpack.c.h.b16 %v6983
    %v9176 = vunpack.c.l.b16 %v6984
    %v9177 = vunpack.c.h.b16 %v6984
    %v9178 = vunpack.c.l.b16 %v6985
    %v9179 = vunpack.c.h.b16 %v6985
    %v9180 = vunpack.c.l.b16 %v6986
    %v9181 = vunpack.c.h.b16 %v6986
    %v9182 = vunpack.c.l.b16 %v6987
    %v9183 = vunpack.c.h.b16 %v6987
    %v9184 = vunpack.c.l.b16 %v6988
    %v9185 = vunpack.c.h.b16 %v6988
    %v9186 = vunpack.c.l.b16 %v6989
    %v9187 = vunpack.c.h.b16 %v6989
    %v9188 = vunpack.c.l.b16 %v6990
    %v9189 = vunpack.c.h.b16 %v6990
    %v9190 = vunpack.c.l.b16 %v6991
    %v9191 = vunpack.c.h.b16 %v6991
    %v9192 = vunpack.c.l.b16 %v6992
    %v9193 = vunpack.c.h.b16 %v6992
    %v9194 = vunpack.c.l.b16 %v6993
    %v9195 = vunpack.c.h.b16 %v6993
    %v9196 = vunpack.c.l.b16 %v6994
    %v9197 = vunpack.c.h.b16 %v6994
    %v9198 = vunpack.c.l.b16 %v6995
    %v9199 = vunpack.c.h.b16 %v6995
    %v9200 = vunpack.c.l.b16 %v6996
    %v9201 = vunpack.c.h.b16 %v6996
    %v9202 = vunpack.c.l.b16 %v6997
    %v9203 = vunpack.c.h.b16 %v6997
    %v9204 = vunpack.c.l.b16 %v6998
    %v9205 = vunpack.c.h.b16 %v6998
    %v9206 = vunpack.c.l.b16 %v6999
    %v9207 = vunpack.c.h.b16 %v6999
    %v9208 = vunpack.c.l.b16 %v7000
    %v9209 = vunpack.c.h.b16 %v7000
    %v9210 = vunpack.c.l.b16 %v7001
    %v9211 = vunpack.c.h.b16 %v7001
    %v9212 = vunpack.c.l.b16 %v7002
    %v9213 = vunpack.c.h.b16 %v7002
    %v9214 = vunpack.c.l.b16 %v7003
    %v9215 = vunpack.c.h.b16 %v7003
    %v9216 = vunpack.c.l.b16 %v7004
    %v9217 = vunpack.c.h.b16 %v7004
    %v9218 = vunpack.c.l.b16 %v7005
    %v9219 = vunpack.c.h.b16 %v7005
    %v9220 = vunpack.c.l.b16 %v7006
    %v9221 = vunpack.c.h.b16 %v7006
    %v9222 = vunpack.c.l.b16 %v7007
    %v9223 = vunpack.c.h.b16 %v7007
    %v9224 = vunpack.c.l.b16 %v7008
    %v9225 = vunpack.c.h.b16 %v7008
    %v9226 = vunpack.c.l.b16 %v7009
    %v9227 = vunpack.c.h.b16 %v7009
    %v9228 = vunpack.c.l.b16 %v7010
    %v9229 = vunpack.c.h.b16 %v7010
    %v9230 = vunpack.c.l.b16 %v7011
    %v9231 = vunpack.c.h.b16 %v7011
    %v9232 = vunpack.c.l.b16 %v7012
    %v9233 = vunpack.c.h.b16 %v7012
    %v9234 = vunpack.c.l.b16 %v7013
    %v9235 = vunpack.c.h.b16 %v7013
    %v9236 = vunpack.c.l.b16 %v7014
    %v9237 = vunpack.c.h.b16 %v7014
    %v9238 = vunpack.c.l.b16 %v7015
    %v9239 = vunpack.c.h.b16 %v7015
    %v9240 = vunpack.c.l.b16 %v7016
    %v9241 = vunpack.c.h.b16 %v7016
    %v9242 = vunpack.c.l.b16 %v7017
    %v9243 = vunpack.c.h.b16 %v7017
    %v9244 = vunpack.c.l.b16 %v7018
    %v9245 = vunpack.c.h.b16 %v7018
    %v9246 = vunpack.c.l.b16 %v7019
    %v9247 = vunpack.c.h.b16 %v7019
    %v9248 = vunpack.c.l.b16 %v7020
    %v9249 = vunpack.c.h.b16 %v7020
    %v9250 = vunpack.c.l.b16 %v7021
    %v9251 = vunpack.c.h.b16 %v7021
    %v9252 = vunpack.c.l.b16 %v7022
    %v9253 = vunpack.c.h.b16 %v7022
    %v9254 = vunpack.c.l.b16 %v7023
    %v9255 = vunpack.c.h.b16 %v7023
    %v9256 = vunpack.c.l.b16 %v7024
    %v9257 = vunpack.c.h.b16 %v7024
    %v9258 = vunpack.c.l.b16 %v7025
    %v9259 = vunpack.c.h.b16 %v7025
    %v9260 = vunpack.c.l.b16 %v7026
    %v9261 = vunpack.c.h.b16 %v7026
    %v9262 = vunpack.c.l.b16 %v7027
    %v9263 = vunpack.c.h.b16 %v7027
    %v9264 = vunpack.c.l.b16 %v7028
    %v9265 = vunpack.c.h.b16 %v7028
    %v9266 = vunpack.c.l.b16 %v7029
    %v9267 = vunpack.c.h.b16 %v7029
    %v9268 = vunpack.c.l.b16 %v7030
    %v9269 = vunpack.c.h.b16 %v7030
    %v9270 = vunpack.c.l.b16 %v7031
    %v9271 = vunpack.c.h.b16 %v7031
    %v9272 = vunpack.c.l.b16 %v7032
    %v9273 = vunpack.c.h.b16 %v7032
    %v9274 = vunpack.c.l.b16 %v7033
    %v9275 = vunpack.c.h.b16 %v7033
    %v9276 = vunpack.c.l.b16 %v7034
    %v9277 = vunpack.c.h.b16 %v7034
    %v9278 = vunpack.c.l.b16 %v7035
    %v9279 = vunpack.c.h.b16 %v7035
    %v9280 = vunpack.c.l.b16 %v7036
    %v9281 = vunpack.c.h.b16 %v7036
    %v9282 = vunpack.c.l.b16 %v7037
    %v9283 = vunpack.c.h.b16 %v7037
    %v9284 = vunpack.c.l.b16 %v7038
    %v9285 = vunpack.c.h.b16 %v7038
    %v9286 = vunpack.c.l.b16 %v7039
    %v9287 = vunpack.c.h.b16 %v7039
    %v9288 = vunpack.c.l.b16 %v7040
    %v9289 = vunpack.c.h.b16 %v7040
    %v9290 = vunpack.c.l.b16 %v7041
    %v9291 = vunpack.c.h.b16 %v7041
    %v9292 = vunpack.c.l.b16 %v7042
    %v9293 = vunpack.c.h.b16 %v7042
    %v9294 = vunpack.c.l.b16 %v7043
    %v9295 = vunpack.c.h.b16 %v7043
    %v9296 = vunpack.c.l.b16 %v7044
    %v9297 = vunpack.c.h.b16 %v7044
    %v9298 = vunpack.c.l.b16 %v7045
    %v9299 = vunpack.c.h.b16 %v7045
    %v9300 = vunpack.c.l.b16 %v7046
    %v9301 = vunpack.c.h.b16 %v7046
    %v9302 = vunpack.c.l.b16 %v7047
    %v9303 = vunpack.c.h.b16 %v7047
    %v9304 = vunpack.c.l.b16 %v7048
    %v9305 = vunpack.c.h.b16 %v7048
    %v9306 = vunpack.c.l.b16 %v7049
    %v9307 = vunpack.c.h.b16 %v7049
    %v9308 = vunpack.c.l.b16 %v7050
    %v9309 = vunpack.c.h.b16 %v7050
    %v9310 = vunpack.c.l.b16 %v7051
    %v9311 = vunpack.c.h.b16 %v7051
    %v9312 = vunpack.c.l.b16 %v7052
    %v9313 = vunpack.c.h.b16 %v7052
    %v9314 = vunpack.c.l.b16 %v7053
    %v9315 = vunpack.c.h.b16 %v7053
    %v9316 = vunpack.c.l.b16 %v7054
    %v9317 = vunpack.c.h.b16 %v7054
    %v9318 = vunpack.c.l.b16 %v7055
    %v9319 = vunpack.c.h.b16 %v7055
    %v9320 = vunpack.c.l.b16 %v7056
    %v9321 = vunpack.c.h.b16 %v7056
    %v9322 = vunpack.c.l.b16 %v7057
    %v9323 = vunpack.c.h.b16 %v7057
    %v9324 = vunpack.c.l.b16 %v7058
    %v9325 = vunpack.c.h.b16 %v7058
    %v9326 = vunpack.c.l.b16 %v7059
    %v9327 = vunpack.c.h.b16 %v7059
    %v9328 = vunpack.c.l.b16 %v7060
    %v9329 = vunpack.c.h.b16 %v7060
    %v9330 = vunpack.c.l.b16 %v7061
    %v9331 = vunpack.c.h.b16 %v7061
    %v9332 = vunpack.c.l.b16 %v7062
    %v9333 = vunpack.c.h.b16 %v7062
    %v9334 = vunpack.c.l.b16 %v7063
    %v9335 = vunpack.c.h.b16 %v7063
    %v9336 = vunpack.c.l.b16 %v7064
    %v9337 = vunpack.c.h.b16 %v7064
    %v9338 = vunpack.c.l.b16 %v7065
    %v9339 = vunpack.c.h.b16 %v7065
    %v9340 = vunpack.c.l.b16 %v7066
    %v9341 = vunpack.c.h.b16 %v7066
    %v9342 = vunpack.c.l.b16 %v7067
    %v9343 = vunpack.c.h.b16 %v7067
    %v9344 = vunpack.c.l.b16 %v7068
    %v9345 = vunpack.c.h.b16 %v7068
    %v9346 = vunpack.c.l.b16 %v7069
    %v9347 = vunpack.c.h.b16 %v7069
    %v9348 = vunpack.c.l.b16 %v7070
    %v9349 = vunpack.c.h.b16 %v7070
    %v9350 = vunpack.c.l.b16 %v7071
    %v9351 = vunpack.c.h.b16 %v7071
    %v9352 = vunpack.c.l.b16 %v7072
    %v9353 = vunpack.c.h.b16 %v7072
    %v9354 = vunpack.c.l.b16 %v7073
    %v9355 = vunpack.c.h.b16 %v7073
    %v9356 = vunpack.c.l.b16 %v7074
    %v9357 = vunpack.c.h.b16 %v7074
    %v9358 = vunpack.c.l.b16 %v7075
    %v9359 = vunpack.c.h.b16 %v7075
    %v9360 = vunpack.c.l.b16 %v7076
    %v9361 = vunpack.c.h.b16 %v7076
    %v9362 = vunpack.c.l.b16 %v7077
    %v9363 = vunpack.c.h.b16 %v7077
    %v9364 = vunpack.c.l.b16 %v7078
    %v9365 = vunpack.c.h.b16 %v7078
    %v9366 = vunpack.c.l.b16 %v7079
    %v9367 = vunpack.c.h.b16 %v7079
    %v9368 = vunpack.c.l.b16 %v7080
    %v9369 = vunpack.c.h.b16 %v7080
    %v9370 = vunpack.c.l.b16 %v7081
    %v9371 = vunpack.c.h.b16 %v7081
    %v9372 = vunpack.c.l.b16 %v7082
    %v9373 = vunpack.c.h.b16 %v7082
    %v9374 = vunpack.c.l.b16 %v7083
    %v9375 = vunpack.c.h.b16 %v7083
    %v9376 = vunpack.c.l.b16 %v7084
    %v9377 = vunpack.c.h.b16 %v7084
    %v9378 = vunpack.c.l.b16 %v7085
    %v9379 = vunpack.c.h.b16 %v7085
    %v9380 = vunpack.c.l.b16 %v7086
    %v9381 = vunpack.c.h.b16 %v7086
    %v9382 = vunpack.c.l.b16 %v7087
    %v9383 = vunpack.c.h.b16 %v7087
    %v9384 = vunpack.c.l.b16 %v7088
    %v9385 = vunpack.c.h.b16 %v7088
    %v9386 = vunpack.c.l.b16 %v7089
    %v9387 = vunpack.c.h.b16 %v7089
    %v9388 = vunpack.c.l.b16 %v7090
    %v9389 = vunpack.c.h.b16 %v7090
    %v9390 = vunpack.c.l.b16 %v7091
    %v9391 = vunpack.c.h.b16 %v7091
    %v9392 = vunpack.c.l.b16 %v7092
    %v9393 = vunpack.c.h.b16 %v7092
    %v9394 = vunpack.c.l.b16 %v7093
    %v9395 = vunpack.c.h.b16 %v7093
    %v9396 = vunpack.c.l.b16 %v7094
    %v9397 = vunpack.c.h.b16 %v7094
    %v9398 = vunpack.c.l.b16 %v7095
    %v9399 = vunpack.c.h.b16 %v7095
    %v9400 = vunpack.c.l.b16 %v7096
    %v9401 = vunpack.c.h.b16 %v7096
    %v9402 = vunpack.c.l.b16 %v7097
    %v9403 = vunpack.c.h.b16 %v7097
    %v9404 = vunpack.c.l.b16 %v7098
    %v9405 = vunpack.c.h.b16 %v7098
    %v9406 = vunpack.c.l.b16 %v7099
    %v9407 = vunpack.c.h.b16 %v7099
    %v9408 = vunpack.c.l.b16 %v7100
    %v9409 = vunpack.c.h.b16 %v7100
    %v9410 = vunpack.c.l.b16 %v7101
    %v9411 = vunpack.c.h.b16 %v7101
    %v9412 = vunpack.c.l.b16 %v7102
    %v9413 = vunpack.c.h.b16 %v7102
    %v9414 = vunpack.c.l.b16 %v7103
    %v9415 = vunpack.c.h.b16 %v7103
    %v9416 = vunpack.c.l.b16 %v7104
    %v9417 = vunpack.c.h.b16 %v7104
    %v9418 = vunpack.c.l.b16 %v7105
    %v9419 = vunpack.c.h.b16 %v7105
    %v9420 = vunpack.c.l.b16 %v7106
    %v9421 = vunpack.c.h.b16 %v7106
    %v9422 = vunpack.c.l.b16 %v7107
    %v9423 = vunpack.c.h.b16 %v7107
    %v9424 = vunpack.c.l.b16 %v7108
    %v9425 = vunpack.c.h.b16 %v7108
    %v9426 = vunpack.c.l.b16 %v7109
    %v9427 = vunpack.c.h.b16 %v7109
    %v9428 = vunpack.c.l.b16 %v7110
    %v9429 = vunpack.c.h.b16 %v7110
    %v9430 = vunpack.c.l.b16 %v7111
    %v9431 = vunpack.c.h.b16 %v7111
    %v9432 = vunpack.c.l.b16 %v7112
    %v9433 = vunpack.c.h.b16 %v7112
    %v9434 = vunpack.c.l.b16 %v7113
    %v9435 = vunpack.c.h.b16 %v7113
    %v9436 = vunpack.c.l.b16 %v7114
    %v9437 = vunpack.c.h.b16 %v7114
    %v9438 = vunpack.c.l.b16 %v7115
    %v9439 = vunpack.c.h.b16 %v7115
    %v9440 = vunpack.c.l.b16 %v7116
    %v9441 = vunpack.c.h.b16 %v7116
    %v9442 = vunpack.c.l.b16 %v7117
    %v9443 = vunpack.c.h.b16 %v7117
    %v9444 = vunpack.c.l.b16 %v7118
    %v9445 = vunpack.c.h.b16 %v7118
    %v9446 = vunpack.c.l.b16 %v7119
    %v9447 = vunpack.c.h.b16 %v7119
    %v9448 = vunpack.c.l.b16 %v7120
    %v9449 = vunpack.c.h.b16 %v7120
    %v9450 = vunpack.c.l.b16 %v7121
    %v9451 = vunpack.c.h.b16 %v7121
    %v9452 = vunpack.c.l.b16 %v7122
    %v9453 = vunpack.c.h.b16 %v7122
    %v9454 = vunpack.c.l.b16 %v7123
    %v9455 = vunpack.c.h.b16 %v7123
    %v9456 = vunpack.c.l.b16 %v7124
    %v9457 = vunpack.c.h.b16 %v7124
    %v9458 = vunpack.c.l.b16 %v7125
    %v9459 = vunpack.c.h.b16 %v7125
    %v9460 = vunpack.c.l.b16 %v7126
    %v9461 = vunpack.c.h.b16 %v7126
    %v9462 = vunpack.c.l.b16 %v7127
    %v9463 = vunpack.c.h.b16 %v7127
    %v9464 = vunpack.c.l.b16 %v7128
    %v9465 = vunpack.c.h.b16 %v7128
    %v9466 = vunpack.c.l.b16 %v7129
    %v9467 = vunpack.c.h.b16 %v7129
    %v9468 = vunpack.c.l.b16 %v7130
    %v9469 = vunpack.c.h.b16 %v7130
    %v9470 = vunpack.c.l.b16 %v7131
    %v9471 = vunpack.c.h.b16 %v7131
    %v9472 = vunpack.c.l.b16 %v7132
    %v9473 = vunpack.c.h.b16 %v7132
    %v9474 = vunpack.c.l.b16 %v7133
    %v9475 = vunpack.c.h.b16 %v7133
    %v9476 = vunpack.c.l.b16 %v7134
    %v9477 = vunpack.c.h.b16 %v7134
    %v9478 = vunpack.c.l.b16 %v7135
    %v9479 = vunpack.c.h.b16 %v7135
    %v9480 = vunpack.c.l.b16 %v7136
    %v9481 = vunpack.c.h.b16 %v7136
    %v9482 = vunpack.c.l.b16 %v7137
    %v9483 = vunpack.c.h.b16 %v7137
    %v9484 = vunpack.c.l.b16 %v7138
    %v9485 = vunpack.c.h.b16 %v7138
    %v9486 = vunpack.c.l.b16 %v7139
    %v9487 = vunpack.c.h.b16 %v7139
    %v9488 = vunpack.c.l.b16 %v7140
    %v9489 = vunpack.c.h.b16 %v7140
    %v9490 = vunpack.c.l.b16 %v7141
    %v9491 = vunpack.c.h.b16 %v7141
    %v9492 = vunpack.c.l.b16 %v7142
    %v9493 = vunpack.c.h.b16 %v7142
    %v9494 = vunpack.c.l.b16 %v7143
    %v9495 = vunpack.c.h.b16 %v7143
    %v9496 = vunpack.c.l.b16 %v7144
    %v9497 = vunpack.c.h.b16 %v7144
    %v9498 = vunpack.c.l.b16 %v7145
    %v9499 = vunpack.c.h.b16 %v7145
    %v9500 = vunpack.c.l.b16 %v7146
    %v9501 = vunpack.c.h.b16 %v7146
    %v9502 = vunpack.c.l.b16 %v7147
    %v9503 = vunpack.c.h.b16 %v7147
    %v9504 = vunpack.c.l.b16 %v7148
    %v9505 = vunpack.c.h.b16 %v7148
    %v9506 = vunpack.c.l.b16 %v7149
    %v9507 = vunpack.c.h.b16 %v7149
    %v9508 = vunpack.c.l.b16 %v7150
    %v9509 = vunpack.c.h.b16 %v7150
    %v9510 = vunpack.c.l.b16 %v7151
    %v9511 = vunpack.c.h.b16 %v7151
    %v9512 = vunpack.c.l.b16 %v7152
    %v9513 = vunpack.c.h.b16 %v7152
    %v9514 = vunpack.c.l.b16 %v7153
    %v9515 = vunpack.c.h.b16 %v7153
    %v9516 = vunpack.c.l.b16 %v7154
    %v9517 = vunpack.c.h.b16 %v7154
    %v9518 = vunpack.c.l.b16 %v7155
    %v9519 = vunpack.c.h.b16 %v7155
    %v9520 = vunpack.c.l.b16 %v7156
    %v9521 = vunpack.c.h.b16 %v7156
    %v9522 = vunpack.c.l.b16 %v7157
    %v9523 = vunpack.c.h.b16 %v7157
    %v9524 = vunpack.c.l.b16 %v7158
    %v9525 = vunpack.c.h.b16 %v7158
    %v9526 = vunpack.c.l.b16 %v7159
    %v9527 = vunpack.c.h.b16 %v7159
    %v9528 = vunpack.c.l.b16 %v7160
    %v9529 = vunpack.c.h.b16 %v7160
    %v9530 = vunpack.c.l.b16 %v7161
    %v9531 = vunpack.c.h.b16 %v7161
    %v9532 = vunpack.c.l.b16 %v7162
    %v9533 = vunpack.c.h.b16 %v7162
    %v9534 = vunpack.c.l.b16 %v7163
    %v9535 = vunpack.c.h.b16 %v7163
    %v9536 = vunpack.c.l.b16 %v7164
    %v9537 = vunpack.c.h.b16 %v7164
    %v9538 = vunpack.c.l.b16 %v7165
    %v9539 = vunpack.c.h.b16 %v7165
    %v9540 = vunpack.c.l.b16 %v7166
    %v9541 = vunpack.c.h.b16 %v7166
    %v9542 = vunpack.c.l.b16 %v7167
    %v9543 = vunpack.c.h.b16 %v7167
    %v9544 = vunpack.c.l.b16 %v7168
    %v9545 = vunpack.c.h.b16 %v7168
    %v9546 = vunpack.c.l.b16 %v7169
    %v9547 = vunpack.c.h.b16 %v7169
    %v9548 = vunpack.c.l.b16 %v7170
    %v9549 = vunpack.c.h.b16 %v7170
    %v9550 = vunpack.c.l.b16 %v7171
    %v9551 = vunpack.c.h.b16 %v7171
    %v9552 = vunpack.c.l.b16 %v7172
    %v9553 = vunpack.c.h.b16 %v7172
    %v9554 = vunpack.c.l.b16 %v7173
    %v9555 = vunpack.c.h.b16 %v7173
    %v9556 = vunpack.c.l.b16 %v7174
    %v9557 = vunpack.c.h.b16 %v7174
    %v9558 = vunpack.c.l.b16 %v7175
    %v9559 = vunpack.c.h.b16 %v7175
    %v9560 = vunpack.c.l.b16 %v7176
    %v9561 = vunpack.c.h.b16 %v7176
    %v9562 = vunpack.c.l.b16 %v7177
    %v9563 = vunpack.c.h.b16 %v7177
    %v9564 = vunpack.c.l.b16 %v7178
    %v9565 = vunpack.c.h.b16 %v7178
    %v9566 = vunpack.c.l.b16 %v7179
    %v9567 = vunpack.c.h.b16 %v7179
    %v9568 = vunpack.c.l.b16 %v7180
    %v9569 = vunpack.c.h.b16 %v7180
    %v9570 = vunpack.c.l.b16 %v7181
    %v9571 = vunpack.c.h.b16 %v7181
    %v9572 = vunpack.c.l.b16 %v7182
    %v9573 = vunpack.c.h.b16 %v7182
    %v9574 = vunpack.c.l.b16 %v7183
    %v9575 = vunpack.c.h.b16 %v7183
    %v9576 = vunpack.c.l.b16 %v7184
    %v9577 = vunpack.c.h.b16 %v7184
    %v9578 = vunpack.c.l.b16 %v7185
    %v9579 = vunpack.c.h.b16 %v7185
    %v9580 = vunpack.c.l.b16 %v7186
    %v9581 = vunpack.c.h.b16 %v7186
    %v9582 = vunpack.c.l.b16 %v7187
    %v9583 = vunpack.c.h.b16 %v7187
    %v9584 = vunpack.c.l.b16 %v7188
    %v9585 = vunpack.c.h.b16 %v7188
    %v9586 = vunpack.c.l.b16 %v7189
    %v9587 = vunpack.c.h.b16 %v7189
    %v9588 = vunpack.c.l.b16 %v7190
    %v9589 = vunpack.c.h.b16 %v7190
    %v9590 = vunpack.c.l.b16 %v7191
    %v9591 = vunpack.c.h.b16 %v7191
    %v9592 = vunpack.c.l.b16 %v7192
    %v9593 = vunpack.c.h.b16 %v7192
    %v9594 = vunpack.c.l.b16 %v7193
    %v9595 = vunpack.c.h.b16 %v7193
    %v9596 = vunpack.c.l.b16 %v7194
    %v9597 = vunpack.c.h.b16 %v7194
    %v9598 = vunpack.c.l.b16 %v7195
    %v9599 = vunpack.c.h.b16 %v7195
    %v9600 = vunpack.c.l.b16 %v7196
    %v9601 = vunpack.c.h.b16 %v7196
    %v9602 = vunpack.c.l.b16 %v7197
    %v9603 = vunpack.c.h.b16 %v7197
    %v9604 = vunpack.c.l.b16 %v7198
    %v9605 = vunpack.c.h.b16 %v7198
    %v9606 = vunpack.c.l.b16 %v7199
    %v9607 = vunpack.c.h.b16 %v7199
    %v9608 = vunpack.c.l.b16 %v7200
    %v9609 = vunpack.c.h.b16 %v7200
    %v9610 = vunpack.c.l.b16 %v7201
    %v9611 = vunpack.c.h.b16 %v7201
    %v9612 = vunpack.c.l.b16 %v7202
    %v9613 = vunpack.c.h.b16 %v7202
    %v9614 = vunpack.c.l.b16 %v7203
    %v9615 = vunpack.c.h.b16 %v7203
    %v9616 = vunpack.c.l.b16 %v7204
    %v9617 = vunpack.c.h.b16 %v7204
    %v9618 = vunpack.c.l.b16 %v7205
    %v9619 = vunpack.c.h.b16 %v7205
    %v9620 = vunpack.c.l.b16 %v7206
    %v9621 = vunpack.c.h.b16 %v7206
    %v9622 = vunpack.c.l.b16 %v7207
    %v9623 = vunpack.c.h.b16 %v7207
    %v9624 = vunpack.c.l.b16 %v7208
    %v9625 = vunpack.c.h.b16 %v7208
    %v9626 = vunpack.c.l.b16 %v7209
    %v9627 = vunpack.c.h.b16 %v7209
    %v9628 = vunpack.c.l.b16 %v7210
    %v9629 = vunpack.c.h.b16 %v7210
    %v9630 = vunpack.c.l.b16 %v7211
    %v9631 = vunpack.c.h.b16 %v7211
    %v9632 = vunpack.c.l.b16 %v7212
    %v9633 = vunpack.c.h.b16 %v7212
    %v9634 = vunpack.c.l.b16 %v7213
    %v9635 = vunpack.c.h.b16 %v7213
    %v9636 = vunpack.c.l.b16 %v7214
    %v9637 = vunpack.c.h.b16 %v7214
    %v9638 = vunpack.c.l.b16 %v7215
    %v9639 = vunpack.c.h.b16 %v7215
    %v9640 = vunpack.c.l.b16 %v7216
    %v9641 = vunpack.c.h.b16 %v7216
    %v9642 = vunpack.c.l.b16 %v7217
    %v9643 = vunpack.c.h.b16 %v7217
    %v9644 = vunpack.c.l.b16 %v7218
    %v9645 = vunpack.c.h.b16 %v7218
    %v9646 = vunpack.c.l.b16 %v7219
    %v9647 = vunpack.c.h.b16 %v7219
    %v9648 = vunpack.c.l.b16 %v7220
    %v9649 = vunpack.c.h.b16 %v7220
    %v9650 = vunpack.c.l.b16 %v7221
    %v9651 = vunpack.c.h.b16 %v7221
    %v9652 = vunpack.c.l.b16 %v7222
    %v9653 = vunpack.c.h.b16 %v7222
    %v9654 = vunpack.c.l.b16 %v7223
    %v9655 = vunpack.c.h.b16 %v7223
    %v9656 = vunpack.c.l.b16 %v7224
    %v9657 = vunpack.c.h.b16 %v7224
    %v9658 = vunpack.c.l.b16 %v7225
    %v9659 = vunpack.c.h.b16 %v7225
    %v9660 = vunpack.c.l.b16 %v7226
    %v9661 = vunpack.c.h.b16 %v7226
    %v9662 = vunpack.c.l.b16 %v7227
    %v9663 = vunpack.c.h.b16 %v7227
    %v9664 = vunpack.c.l.b16 %v7228
    %v9665 = vunpack.c.h.b16 %v7228
    %v9666 = vunpack.c.l.b16 %v7229
    %v9667 = vunpack.c.h.b16 %v7229
    %v9668 = vunpack.c.l.b16 %v7230
    %v9669 = vunpack.c.h.b16 %v7230
    %v9670 = vunpack.c.l.b16 %v7231
    %v9671 = vunpack.c.h.b16 %v7231
    %v9672 = vunpack.c.l.b16 %v7232
    %v9673 = vunpack.c.h.b16 %v7232
    %v9674 = vunpack.c.l.b16 %v7233
    %v9675 = vunpack.c.h.b16 %v7233
    %v9676 = vunpack.c.l.b16 %v7234
    %v9677 = vunpack.c.h.b16 %v7234
    %v9678 = vunpack.c.l.b16 %v7235
    %v9679 = vunpack.c.h.b16 %v7235
    %v9680 = vunpack.c.l.b16 %v7236
    %v9681 = vunpack.c.h.b16 %v7236
    %v9682 = vunpack.c.l.b16 %v7237
    %v9683 = vunpack.c.h.b16 %v7237
    %v9684 = vunpack.c.l.b16 %v7238
    %v9685 = vunpack.c.h.b16 %v7238
    %v9686 = vunpack.c.l.b16 %v7239
    %v9687 = vunpack.c.h.b16 %v7239
    %v9688 = vunpack.c.l.b16 %v7240
    %v9689 = vunpack.c.h.b16 %v7240
    %v9690 = vunpack.c.l.b16 %v7241
    %v9691 = vunpack.c.h.b16 %v7241
    %v9692 = vunpack.c.l.b16 %v7242
    %v9693 = vunpack.c.h.b16 %v7242
    %v9694 = vunpack.c.l.b16 %v7243
    %v9695 = vunpack.c.h.b16 %v7243
    %v9696 = vunpack.c.l.b16 %v7244
    %v9697 = vunpack.c.h.b16 %v7244
    %v9698 = vunpack.c.l.b16 %v7245
    %v9699 = vunpack.c.h.b16 %v7245
    %v9700 = vunpack.c.l.b16 %v7246
    %v9701 = vunpack.c.h.b16 %v7246
    %v9702 = vunpack.c.l.b16 %v7247
    %v9703 = vunpack.c.h.b16 %v7247
    %v9704 = vunpack.c.l.b16 %v7248
    %v9705 = vunpack.c.h.b16 %v7248
    %v9706 = vunpack.c.l.b16 %v7249
    %v9707 = vunpack.c.h.b16 %v7249
    %v9708 = vunpack.c.l.b16 %v7250
    %v9709 = vunpack.c.h.b16 %v7250
    %v9710 = vunpack.c.l.b16 %v7251
    %v9711 = vunpack.c.h.b16 %v7251
    %v9712 = vunpack.c.l.b16 %v7252
    %v9713 = vunpack.c.h.b16 %v7252
    %v9714 = vunpack.c.l.b16 %v7253
    %v9715 = vunpack.c.h.b16 %v7253
    %v9716 = vunpack.c.l.b16 %v7254
    %v9717 = vunpack.c.h.b16 %v7254
    %v9718 = vunpack.c.l.b16 %v7255
    %v9719 = vunpack.c.h.b16 %v7255
    %v9720 = vunpack.c.l.b16 %v7256
    %v9721 = vunpack.c.h.b16 %v7256
    %v9722 = vunpack.c.l.b16 %v7257
    %v9723 = vunpack.c.h.b16 %v7257
    %v9724 = vunpack.c.l.b16 %v7258
    %v9725 = vunpack.c.h.b16 %v7258
    %v9726 = vunpack.c.l.b16 %v7259
    %v9727 = vunpack.c.h.b16 %v7259
    %v9728 = vunpack.c.l.b16 %v7260
    %v9729 = vunpack.c.h.b16 %v7260
    %v9730 = vunpack.c.l.b16 %v7261
    %v9731 = vunpack.c.h.b16 %v7261
    %v9732 = vunpack.c.l.b16 %v7262
    %v9733 = vunpack.c.h.b16 %v7262
    %v9734 = vunpack.c.l.b16 %v7263
    %v9735 = vunpack.c.h.b16 %v7263
    %v9736 = vunpack.c.l.b16 %v7264
    %v9737 = vunpack.c.h.b16 %v7264
    %v9738 = vunpack.c.l.b16 %v7265
    %v9739 = vunpack.c.h.b16 %v7265
    %v9740 = vunpack.c.l.b16 %v7266
    %v9741 = vunpack.c.h.b16 %v7266
    %v9742 = vunpack.c.l.b16 %v7267
    %v9743 = vunpack.c.h.b16 %v7267
    %v9744 = vunpack.c.l.b16 %v7268
    %v9745 = vunpack.c.h.b16 %v7268
    %v9746 = vunpack.c.l.b16 %v7269
    %v9747 = vunpack.c.h.b16 %v7269
    %v9748 = vunpack.c.l.b16 %v7270
    %v9749 = vunpack.c.h.b16 %v7270
    %v9750 = vunpack.c.l.b16 %v7271
    %v9751 = vunpack.c.h.b16 %v7271
    %v9752 = vunpack.c.l.b16 %v7272
    %v9753 = vunpack.c.h.b16 %v7272
    %v9754 = vunpack.c.l.b16 %v7273
    %v9755 = vunpack.c.h.b16 %v7273
    %v9756 = vunpack.c.l.b16 %v7274
    %v9757 = vunpack.c.h.b16 %v7274
    %v9758 = vunpack.c.l.b16 %v7275
    %v9759 = vunpack.c.h.b16 %v7275
    %v9760 = vunpack.c.l.b16 %v7276
    %v9761 = vunpack.c.h.b16 %v7276
    %v9762 = vunpack.c.l.b16 %v7277
    %v9763 = vunpack.c.h.b16 %v7277
    %v9764 = vunpack.c.l.b16 %v7278
    %v9765 = vunpack.c.h.b16 %v7278
    %v9766 = vunpack.c.l.b16 %v7279
    %v9767 = vunpack.c.h.b16 %v7279
    %v9768 = vunpack.c.l.b16 %v7280
    %v9769 = vunpack.c.h.b16 %v7280
    %v9770 = vunpack.c.l.b16 %v7281
    %v9771 = vunpack.c.h.b16 %v7281
    %v9772 = vunpack.c.l.b16 %v7282
    %v9773 = vunpack.c.h.b16 %v7282
    %v9774 = vunpack.c.l.b16 %v7283
    %v9775 = vunpack.c.h.b16 %v7283
    %v9776 = vunpack.c.l.b16 %v7284
    %v9777 = vunpack.c.h.b16 %v7284
    %v9778 = vunpack.c.l.b16 %v7285
    %v9779 = vunpack.c.h.b16 %v7285
    %v9780 = vunpack.c.l.b16 %v7286
    %v9781 = vunpack.c.h.b16 %v7286
    %v9782 = vunpack.c.l.b16 %v7287
    %v9783 = vunpack.c.h.b16 %v7287
    %v9784 = vunpack.c.l.b16 %v7288
    %v9785 = vunpack.c.h.b16 %v7288
    %v9786 = vunpack.c.l.b16 %v7289
    %v9787 = vunpack.c.h.b16 %v7289
    %v9788 = vunpack.c.l.b16 %v7290
    %v9789 = vunpack.c.h.b16 %v7290
    %v9790 = vunpack.c.l.b16 %v7291
    %v9791 = vunpack.c.h.b16 %v7291
    %v9792 = vunpack.c.l.b16 %v7292
    %v9793 = vunpack.c.h.b16 %v7292
    %v9794 = vunpack.c.l.b16 %v7293
    %v9795 = vunpack.c.h.b16 %v7293
    %v9796 = vunpack.c.l.b16 %v7294
    %v9797 = vunpack.c.h.b16 %v7294
    %v9798 = vunpack.c.l.b16 %v7295
    %v9799 = vunpack.c.h.b16 %v7295
    %v9800 = vunpack.c.l.b16 %v7296
    %v9801 = vunpack.c.h.b16 %v7296
    %v9802 = vunpack.c.l.b16 %v7297
    %v9803 = vunpack.c.h.b16 %v7297
    %v9804 = vunpack.c.l.b16 %v7298
    %v9805 = vunpack.c.h.b16 %v7298
    %v9806 = vunpack.c.l.b16 %v7299
    %v9807 = vunpack.c.h.b16 %v7299
    %v9808 = vunpack.c.l.b16 %v7300
    %v9809 = vunpack.c.h.b16 %v7300
    %v9810 = vunpack.c.l.b16 %v7301
    %v9811 = vunpack.c.h.b16 %v7301
    %v9812 = vunpack.c.l.b16 %v7302
    %v9813 = vunpack.c.h.b16 %v7302
    %v9814 = vunpack.c.l.b16 %v7303
    %v9815 = vunpack.c.h.b16 %v7303
    %v9816 = vunpack.c.l.b16 %v7304
    %v9817 = vunpack.c.h.b16 %v7304
    %v9818 = vunpack.c.l.b16 %v7305
    %v9819 = vunpack.c.h.b16 %v7305
    %v9820 = vunpack.c.l.b16 %v7306
    %v9821 = vunpack.c.h.b16 %v7306
    %v9822 = vunpack.c.l.b16 %v7307
    %v9823 = vunpack.c.h.b16 %v7307
    %v9824 = vunpack.c.l.b16 %v7308
    %v9825 = vunpack.c.h.b16 %v7308
    %v9826 = vunpack.c.l.b16 %v7309
    %v9827 = vunpack.c.h.b16 %v7309
    %v9828 = vunpack.c.l.b16 %v7310
    %v9829 = vunpack.c.h.b16 %v7310
    %v9830 = vunpack.c.l.b16 %v7311
    %v9831 = vunpack.c.h.b16 %v7311
    %v9832 = vunpack.c.l.b16 %v7312
    %v9833 = vunpack.c.h.b16 %v7312
    %v9834 = vunpack.c.l.b16 %v7313
    %v9835 = vunpack.c.h.b16 %v7313
    %v9836 = vunpack.c.l.b16 %v7314
    %v9837 = vunpack.c.h.b16 %v7314
    %v9838 = vunpack.c.l.b16 %v7315
    %v9839 = vunpack.c.h.b16 %v7315
    %v9840 = vunpack.c.l.b16 %v7316
    %v9841 = vunpack.c.h.b16 %v7316
    %v9842 = vunpack.c.l.b16 %v7317
    %v9843 = vunpack.c.h.b16 %v7317
    %v9844 = vunpack.c.l.b16 %v7318
    %v9845 = vunpack.c.h.b16 %v7318
    %v9846 = vunpack.c.l.b16 %v7319
    %v9847 = vunpack.c.h.b16 %v7319
    %v9848 = vunpack.c.l.b16 %v7320
    %v9849 = vunpack.c.h.b16 %v7320
    %v9850 = vunpack.c.l.b16 %v7321
    %v9851 = vunpack.c.h.b16 %v7321
    %v9852 = vunpack.c.l.b16 %v7322
    %v9853 = vunpack.c.h.b16 %v7322
    %v9854 = vunpack.c.l.b16 %v7323
    %v9855 = vunpack.c.h.b16 %v7323
    %v9856 = vunpack.c.l.b16 %v7324
    %v9857 = vunpack.c.h.b16 %v7324
    %v9858 = vunpack.c.l.b16 %v7325
    %v9859 = vunpack.c.h.b16 %v7325
    %v9860 = vunpack.c.l.b16 %v7326
    %v9861 = vunpack.c.h.b16 %v7326
    %v9862 = vunpack.c.l.b16 %v7327
    %v9863 = vunpack.c.h.b16 %v7327
    %v9864 = vunpack.c.l.b16 %v7328
    %v9865 = vunpack.c.h.b16 %v7328
    %v9866 = vunpack.c.l.b16 %v7329
    %v9867 = vunpack.c.h.b16 %v7329
    %v9868 = vunpack.c.l.b16 %v7330
    %v9869 = vunpack.c.h.b16 %v7330
    %v9870 = vunpack.c.l.b16 %v7331
    %v9871 = vunpack.c.h.b16 %v7331
    %v9872 = vunpack.c.l.b16 %v7332
    %v9873 = vunpack.c.h.b16 %v7332
    %v9874 = vunpack.c.l.b16 %v7333
    %v9875 = vunpack.c.h.b16 %v7333
    %v9876 = vunpack.c.l.b16 %v7334
    %v9877 = vunpack.c.h.b16 %v7334
    %v9878 = vunpack.c.l.b16 %v7335
    %v9879 = vunpack.c.h.b16 %v7335
    %v9880 = vunpack.c.l.b16 %v7336
    %v9881 = vunpack.c.h.b16 %v7336
    %v9882 = vunpack.c.l.b16 %v7337
    %v9883 = vunpack.c.h.b16 %v7337
    %v9884 = vunpack.c.l.b16 %v7338
    %v9885 = vunpack.c.h.b16 %v7338
    %v9886 = vunpack.c.l.b16 %v7339
    %v9887 = vunpack.c.h.b16 %v7339
    %v9888 = vunpack.c.l.b16 %v7340
    %v9889 = vunpack.c.h.b16 %v7340
    %v9890 = vunpack.c.l.b16 %v7341
    %v9891 = vunpack.c.h.b16 %v7341
    %v9892 = vunpack.c.l.b16 %v7342
    %v9893 = vunpack.c.h.b16 %v7342
    %v9894 = vunpack.c.l.b16 %v7343
    %v9895 = vunpack.c.h.b16 %v7343
    %v9896 = vunpack.c.l.b16 %v7344
    %v9897 = vunpack.c.h.b16 %v7344
    %v9898 = vunpack.c.l.b16 %v7345
    %v9899 = vunpack.c.h.b16 %v7345
    %v9900 = vunpack.c.l.b16 %v7346
    %v9901 = vunpack.c.h.b16 %v7346
    %v9902 = vunpack.c.l.b16 %v7347
    %v9903 = vunpack.c.h.b16 %v7347
    %v9904 = vunpack.c.l.b16 %v7348
    %v9905 = vunpack.c.h.b16 %v7348
    %v9906 = vunpack.c.l.b16 %v7349
    %v9907 = vunpack.c.h.b16 %v7349
    %v9908 = vunpack.c.l.b16 %v7350
    %v9909 = vunpack.c.h.b16 %v7350
    %v9910 = vunpack.c.l.b16 %v7351
    %v9911 = vunpack.c.h.b16 %v7351
    %v9912 = vunpack.c.l.b16 %v7352
    %v9913 = vunpack.c.h.b16 %v7352
    %v9914 = vunpack.c.l.b16 %v7353
    %v9915 = vunpack.c.h.b16 %v7353
    %v9916 = vunpack.c.l.b16 %v7354
    %v9917 = vunpack.c.h.b16 %v7354
    %v9918 = vunpack.c.l.b16 %v7355
    %v9919 = vunpack.c.h.b16 %v7355
    %v9920 = vunpack.c.l.b16 %v7356
    %v9921 = vunpack.c.h.b16 %v7356
    %v9922 = vunpack.c.l.b16 %v7357
    %v9923 = vunpack.c.h.b16 %v7357
    %v9924 = vunpack.c.l.b16 %v7358
    %v9925 = vunpack.c.h.b16 %v7358
    %v9926 = vunpack.c.l.b16 %v7359
    %v9927 = vunpack.c.h.b16 %v7359
    %v9928 = vunpack.c.l.b16 %v7360
    %v9929 = vunpack.c.h.b16 %v7360
    %v9930 = vunpack.c.l.b16 %v7361
    %v9931 = vunpack.c.h.b16 %v7361
    %v9932 = vunpack.c.l.b16 %v7362
    %v9933 = vunpack.c.h.b16 %v7362
    %v9934 = vunpack.c.l.b16 %v7363
    %v9935 = vunpack.c.h.b16 %v7363
    %v9936 = vunpack.c.l.b16 %v7364
    %v9937 = vunpack.c.h.b16 %v7364
    %v9938 = vunpack.c.l.b16 %v7365
    %v9939 = vunpack.c.h.b16 %v7365
    %v9940 = vunpack.c.l.b16 %v7366
    %v9941 = vunpack.c.h.b16 %v7366
    %v9942 = vunpack.c.l.b16 %v7367
    %v9943 = vunpack.c.h.b16 %v7367
    %v9944 = vunpack.c.l.b16 %v7368
    %v9945 = vunpack.c.h.b16 %v7368
    %v9946 = vunpack.c.l.b16 %v7369
    %v9947 = vunpack.c.h.b16 %v7369
    %v9948 = vunpack.c.l.b16 %v7370
    %v9949 = vunpack.c.h.b16 %v7370
    %v9950 = vunpack.c.l.b16 %v7371
    %v9951 = vunpack.c.h.b16 %v7371
    %v9952 = vunpack.c.l.b16 %v7372
    %v9953 = vunpack.c.h.b16 %v7372
    %v9954 = vunpack.c.l.b16 %v7373
    %v9955 = vunpack.c.h.b16 %v7373
    %v9956 = vunpack.c.l.b16 %v7374
    %v9957 = vunpack.c.h.b16 %v7374
    %v9958 = vunpack.c.l.b16 %v7375
    %v9959 = vunpack.c.h.b16 %v7375
    %v9960 = vunpack.c.l.b16 %v7376
    %v9961 = vunpack.c.h.b16 %v7376
    %v9962 = vunpack.c.l.b16 %v7377
    %v9963 = vunpack.c.h.b16 %v7377
    %v9964 = vunpack.c.l.b16 %v7378
    %v9965 = vunpack.c.h.b16 %v7378
    %v9966 = vunpack.c.l.b16 %v7379
    %v9967 = vunpack.c.h.b16 %v7379
    %v9968 = vunpack.c.l.b16 %v7380
    %v9969 = vunpack.c.h.b16 %v7380
    %v9970 = vunpack.c.l.b16 %v7381
    %v9971 = vunpack.c.h.b16 %v7381
    %v9972 = vunpack.c.l.b16 %v7382
    %v9973 = vunpack.c.h.b16 %v7382
    %v9974 = vunpack.c.l.b16 %v7383
    %v9975 = vunpack.c.h.b16 %v7383
    %v9976 = vunpack.c.l.b16 %v7384
    %v9977 = vunpack.c.h.b16 %v7384
    %v9978 = vunpack.c.l.b16 %v7385
    %v9979 = vunpack.c.h.b16 %v7385
    %v9980 = vunpack.c.l.b16 %v7386
    %v9981 = vunpack.c.h.b16 %v7386
    %v9982 = vunpack.c.l.b16 %v7387
    %v9983 = vunpack.c.h.b16 %v7387
    %v9984 = vunpack.c.l.b16 %v7388
    %v9985 = vunpack.c.h.b16 %v7388
    %v9986 = vunpack.c.l.b16 %v7389
    %v9987 = vunpack.c.h.b16 %v7389
    %v9988 = vunpack.c.l.b16 %v7390
    %v9989 = vunpack.c.h.b16 %v7390
    %v9990 = vunpack.c.l.b16 %v7391
    %v9991 = vunpack.c.h.b16 %v7391
    %v9992 = vunpack.c.l.b16 %v7392
    %v9993 = vunpack.c.h.b16 %v7392
    %v9994 = vunpack.c.l.b16 %v7393
    %v9995 = vunpack.c.h.b16 %v7393
    %v9996 = vunpack.c.l.b16 %v7394
    %v9997 = vunpack.c.h.b16 %v7394
    %v9998 = vunpack.c.l.b16 %v7395
    %v9999 = vunpack.c.h.b16 %v7395
    %v10000 = vunpack.c.l.b16 %v7396
    %v10001 = vunpack.c.h.b16 %v7396
    %v10002 = vunpack.c.l.b16 %v7397
    %v10003 = vunpack.c.h.b16 %v7397
    %v10004 = vunpack.c.l.b16 %v7398
    %v10005 = vunpack.c.h.b16 %v7398
    %v10006 = vunpack.c.l.b16 %v7399
    %v10007 = vunpack.c.h.b16 %v7399
    %v10008 = vunpack.c.l.b16 %v7400
    %v10009 = vunpack.c.h.b16 %v7400
    %v10010 = vunpack.c.l.b16 %v7401
    %v10011 = vunpack.c.h.b16 %v7401
    %v10012 = vunpack.c.l.b16 %v7402
    %v10013 = vunpack.c.h.b16 %v7402
    %v10014 = vunpack.c.l.b16 %v7403
    %v10015 = vunpack.c.h.b16 %v7403
    %v10016 = vunpack.c.l.b16 %v7404
    %v10017 = vunpack.c.h.b16 %v7404
    %v10018 = vunpack.c.l.b16 %v7405
    %v10019 = vunpack.c.h.b16 %v7405
    %v10020 = vunpack.c.l.b16 %v7406
    %v10021 = vunpack.c.h.b16 %v7406
    %v10022 = vunpack.c.l.b16 %v7407
    %v10023 = vunpack.c.h.b16 %v7407
    %v10024 = vunpack.c.l.b16 %v7408
    %v10025 = vunpack.c.h.b16 %v7408
    %v10026 = vunpack.c.l.b16 %v7409
    %v10027 = vunpack.c.h.b16 %v7409
    %v10028 = vunpack.c.l.b16 %v7410
    %v10029 = vunpack.c.h.b16 %v7410
    %v10030 = vunpack.c.l.b16 %v7411
    %v10031 = vunpack.c.h.b16 %v7411
    %v10032 = vunpack.c.l.b16 %v7412
    %v10033 = vunpack.c.h.b16 %v7412
    %v10034 = vunpack.c.l.b16 %v7413
    %v10035 = vunpack.c.h.b16 %v7413
    %v10036 = vunpack.c.l.b16 %v7414
    %v10037 = vunpack.c.h.b16 %v7414
    %v10038 = vunpack.c.l.b16 %v7415
    %v10039 = vunpack.c.h.b16 %v7415
    %v10040 = vunpack.c.l.b16 %v7416
    %v10041 = vunpack.c.h.b16 %v7416
    %v10042 = vunpack.c.l.b16 %v7417
    %v10043 = vunpack.c.h.b16 %v7417
    %v10044 = vunpack.c.l.b16 %v7418
    %v10045 = vunpack.c.h.b16 %v7418
    %v10046 = vunpack.c.l.b16 %v7419
    %v10047 = vunpack.c.h.b16 %v7419
    %v10048 = vunpack.c.l.b16 %v7420
    %v10049 = vunpack.c.h.b16 %v7420
    %v10050 = vunpack.c.l.b16 %v7421
    %v10051 = vunpack.c.h.b16 %v7421
    %v10052 = vunpack.c.l.b16 %v7422
    %v10053 = vunpack.c.h.b16 %v7422
    %v10054 = vunpack.c.l.b16 %v7423
    %v10055 = vunpack.c.h.b16 %v7423
    %v10056 = vunpack.c.l.b16 %v7424
    %v10057 = vunpack.c.h.b16 %v7424
    %v10058 = vunpack.c.l.b16 %v7425
    %v10059 = vunpack.c.h.b16 %v7425
    %v10060 = vunpack.c.l.b16 %v7426
    %v10061 = vunpack.c.h.b16 %v7426
    %v10062 = vunpack.c.l.b16 %v7427
    %v10063 = vunpack.c.h.b16 %v7427
    %v10064 = vunpack.c.l.b16 %v7428
    %v10065 = vunpack.c.h.b16 %v7428
    %v10066 = vunpack.c.l.b16 %v7429
    %v10067 = vunpack.c.h.b16 %v7429
    %v10068 = vunpack.c.l.b16 %v7430
    %v10069 = vunpack.c.h.b16 %v7430
    %v10070 = vunpack.c.l.b16 %v7431
    %v10071 = vunpack.c.h.b16 %v7431
    %v10072 = vunpack.c.l.b16 %v7432
    %v10073 = vunpack.c.h.b16 %v7432
    %v10074 = vunpack.c.l.b16 %v7433
    %v10075 = vunpack.c.h.b16 %v7433
    %v10076 = vunpack.c.l.b16 %v7434
    %v10077 = vunpack.c.h.b16 %v7434
    %v10078 = vunpack.c.l.b16 %v7435
    %v10079 = vunpack.c.h.b16 %v7435
    %v10080 = vunpack.c.l.b16 %v7436
    %v10081 = vunpack.c.h.b16 %v7436
    %v10082 = vunpack.c.l.b16 %v7437
    %v10083 = vunpack.c.h.b16 %v7437
    %v10084 = vunpack.c.l.b16 %v7438
    %v10085 = vunpack.c.h.b16 %v7438
    %v10086 = vunpack.c.l.b16 %v7439
    %v10087 = vunpack.c.h.b16 %v7439
    %v10088 = vunpack.c.l.b16 %v7440
    %v10089 = vunpack.c.h.b16 %v7440
    %v10090 = vunpack.c.l.b16 %v7441
    %v10091 = vunpack.c.h.b16 %v7441
    %v10092 = vunpack.c.l.b16 %v7442
    %v10093 = vunpack.c.h.b16 %v7442
    %v10094 = vunpack.c.l.b16 %v7443
    %v10095 = vunpack.c.h.b16 %v7443
    %v10096 = vunpack.c.l.b16 %v7444
    %v10097 = vunpack.c.h.b16 %v7444
    %v10098 = vunpack.c.l.b16 %v7445
    %v10099 = vunpack.c.h.b16 %v7445
    %v10100 = vunpack.c.l.b16 %v7446
    %v10101 = vunpack.c.h.b16 %v7446
    %v10102 = vunpack.c.l.b16 %v7447
    %v10103 = vunpack.c.h.b16 %v7447
    %v10104 = vunpack.c.l.b16 %v7448
    %v10105 = vunpack.c.h.b16 %v7448
    %v10106 = vunpack.c.l.b16 %v7449
    %v10107 = vunpack.c.h.b16 %v7449
    %v10108 = vunpack.c.l.b16 %v7450
    %v10109 = vunpack.c.h.b16 %v7450
    %v10110 = vunpack.c.l.b16 %v7451
    %v10111 = vunpack.c.h.b16 %v7451
    %v10112 = vunpack.c.l.b16 %v7452
    %v10113 = vunpack.c.h.b16 %v7452
    %v10114 = vunpack.c.l.b16 %v7453
    %v10115 = vunpack.c.h.b16 %v7453
    %v10116 = vunpack.c.l.b16 %v7454
    %v10117 = vunpack.c.h.b16 %v7454
    %v10118 = vunpack.c.l.b16 %v7455
    %v10119 = vunpack.c.h.b16 %v7455
    %v10120 = vunpack.c.l.b16 %v7456
    %v10121 = vunpack.c.h.b16 %v7456
    %v10122 = vunpack.c.l.b16 %v7457
    %v10123 = vunpack.c.h.b16 %v7457
    %v10124 = vunpack.c.l.b16 %v7458
    %v10125 = vunpack.c.h.b16 %v7458
    %v10126 = vunpack.c.l.b16 %v7459
    %v10127 = vunpack.c.h.b16 %v7459
    %v10128 = vunpack.c.l.b16 %v7460
    %v10129 = vunpack.c.h.b16 %v7460
    %v10130 = vunpack.c.l.b16 %v7461
    %v10131 = vunpack.c.h.b16 %v7461
    %v10132 = vunpack.c.l.b16 %v7462
    %v10133 = vunpack.c.h.b16 %v7462
    %v10134 = vunpack.c.l.b16 %v7463
    %v10135 = vunpack.c.h.b16 %v7463
    %v10136 = vunpack.c.l.b16 %v7464
    %v10137 = vunpack.c.h.b16 %v7464
    %v10138 = vunpack.c.l.b16 %v7465
    %v10139 = vunpack.c.h.b16 %v7465
    %v10140 = vunpack.c.l.b16 %v7466
    %v10141 = vunpack.c.h.b16 %v7466
    %v10142 = vunpack.c.l.b16 %v7467
    %v10143 = vunpack.c.h.b16 %v7467
    %v10144 = vunpack.c.l.b16 %v7468
    %v10145 = vunpack.c.h.b16 %v7468
    %v10146 = vunpack.c.l.b16 %v7469
    %v10147 = vunpack.c.h.b16 %v7469
    %v10148 = vunpack.c.l.b16 %v7470
    %v10149 = vunpack.c.h.b16 %v7470
    %v10150 = vunpack.c.l.b16 %v7471
    %v10151 = vunpack.c.h.b16 %v7471
    %v10152 = vunpack.c.l.b16 %v7472
    %v10153 = vunpack.c.h.b16 %v7472
    %v10154 = vunpack.c.l.b16 %v7473
    %v10155 = vunpack.c.h.b16 %v7473
    %v10156 = vunpack.c.l.b16 %v7474
    %v10157 = vunpack.c.h.b16 %v7474
    %v10158 = vunpack.c.l.b16 %v7475
    %v10159 = vunpack.c.h.b16 %v7475
    %v10160 = vunpack.c.l.b16 %v7476
    %v10161 = vunpack.c.h.b16 %v7476
    %v10162 = vunpack.c.l.b16 %v7477
    %v10163 = vunpack.c.h.b16 %v7477
    %v10164 = vunpack.c.l.b16 %v7478
    %v10165 = vunpack.c.h.b16 %v7478
    %v10166 = vunpack.c.l.b16 %v7479
    %v10167 = vunpack.c.h.b16 %v7479
    %v10168 = vpack.c.b16 %v8458, %v8440
    %v10169 = vpack.c.b16 %v8459, %v8441
    %v10170 = vpack.c.b16 %v8460, %v8442
    %v10171 = vpack.c.b16 %v8461, %v8443
    %v10172 = vpack.c.b16 %v8462, %v8444
    %v10173 = vpack.c.b16 %v8463, %v8445
    %v10174 = vpack.c.b16 %v8464, %v8446
    %v10175 = vpack.c.b16 %v8465, %v8447
    %v10176 = vpack.c.b16 %v8466, %v8448
    %v10177 = vpack.c.b16 %v8467, %v8449
    %v10178 = vpack.c.b16 %v8468, %v8450
    %v10179 = vpack.c.b16 %v8469, %v8451
    %v10180 = vpack.c.b16 %v8470, %v8452
    %v10181 = vpack.c.b16 %v8471, %v8453
    %v10182 = vpack.c.b16 %v8472, %v8454
    %v10183 = vpack.c.b16 %v8473, %v8455
    %v10184 = vpack.c.b16 %v8474, %v8456
    %v10185 = vpack.c.b16 %v8475, %v8457
    %v10186 = vpack.c.b16 %v8494, %v8476
    %v10187 = vpack.c.b16 %v8495, %v8477
    %v10188 = vpack.c.b16 %v8496, %v8478
    %v10189 = vpack.c.b16 %v8497, %v8479
    %v10190 = vpack.c.b16 %v8498, %v8480
    %v10191 = vpack.c.b16 %v8499, %v8481
    %v10192 = vpack.c.b16 %v8500, %v8482
    %v10193 = vpack.c.b16 %v8501, %v8483
    %v10194 = vpack.c.b16 %v8502, %v8484
    %v10195 = vpack.c.b16 %v8503, %v8485
    %v10196 = vpack.c.b16 %v8504, %v8486
    %v10197 = vpack.c.b16 %v8505, %v8487
    %v10198 = vpack.c.b16 %v8506, %v8488
    %v10199 = vpack.c.b16 %v8507, %v8489
    %v10200 = vpack.c.b16 %v8508, %v8490
    %v10201 = vpack.c.b16 %v8509, %v8491
    %v10202 = vpack.c.b16 %v8510, %v8492
    %v10203 = vpack.c.b16 %v8511, %v8493
    %v10204 = vpack.c.b16 %v8530, %v8512
    %v10205 = vpack.c.b16 %v8531, %v8513
    %v10206 = vpack.c.b16 %v8532, %v8514
    %v10207 = vpack.c.b16 %v8533, %v8515
    %v10208 = vpack.c.b16 %v8534, %v8516
    %v10209 = vpack.c.b16 %v8535, %v8517
    %v10210 = vpack.c.b16 %v8536, %v8518
    %v10211 = vpack.c.b16 %v8537, %v8519
    %v10212 = vpack.c.b16 %v8538, %v8520
    %v10213 = vpack.c.b16 %v8539, %v8521
    %v10214 = vpack.c.b16 %v8540, %v8522
    %v10215 = vpack.c.b16 %v8541, %v8523
    %v10216 = vpack.c.b16 %v8542, %v8524
    %v10217 = vpack.c.b16 %v8543, %v8525
    %v10218 = vpack.c.b16 %v8544, %v8526
    %v10219 = vpack.c.b16 %v8545, %v8527
    %v10220 = vpack.c.b16 %v8546, %v8528
    %v10221 = vpack.c.b16 %v8547, %v8529
    %v10222 = vpack.c.b16 %v8566, %v8548
    %v10223 = vpack.c.b16 %v8567, %v8549
    %v10224 = vpack.c.b16 %v8568, %v8550
    %v10225 = vpack.c.b16 %v8569, %v8551
    %v10226 = vpack.c.b16 %v8570, %v8552
    %v10227 = vpack.c.b16 %v8571, %v8553
    %v10228 = vpack.c.b16 %v8572, %v8554
    %v10229 = vpack.c.b16 %v8573, %v8555
    %v10230 = vpack.c.b16 %v8574, %v8556
    %v10231 = vpack.c.b16 %v8575, %v8557
    %v10232 = vpack.c.b16 %v8576, %v8558
    %v10233 = vpack.c.b16 %v8577, %v8559
    %v10234 = vpack.c.b16 %v8578, %v8560
    %v10235 = vpack.c.b16 %v8579, %v8561
    %v10236 = vpack.c.b16 %v8580, %v8562
    %v10237 = vpack.c.b16 %v8581, %v8563
    %v10238 = vpack.c.b16 %v8582, %v8564
    %v10239 = vpack.c.b16 %v8583, %v8565
    %v10240 = vpack.c.b16 %v8602, %v8584
    %v10241 = vpack.c.b16 %v8603, %v8585
    %v10242 = vpack.c.b16 %v8604, %v8586
    %v10243 = vpack.c.b16 %v8605, %v8587
    %v10244 = vpack.c.b16 %v8606, %v8588
    %v10245 = vpack.c.b16 %v8607, %v8589
    %v10246 = vpack.c.b16 %v8608, %v8590
    %v10247 = vpack.c.b16 %v8609, %v8591
    %v10248 = vpack.c.b16 %v8610, %v8592
    %v10249 = vpack.c.b16 %v8611, %v8593
    %v10250 = vpack.c.b16 %v8612, %v8594
    %v10251 = vpack.c.b16 %v8613, %v8595
    %v10252 = vpack.c.b16 %v8614, %v8596
    %v10253 = vpack.c.b16 %v8615, %v8597
    %v10254 = vpack.c.b16 %v8616, %v8598
    %v10255 = vpack.c.b16 %v8617, %v8599
    %v10256 = vpack.c.b16 %v8618, %v8600
    %v10257 = vpack.c.b16 %v8619, %v8601
    %v10258 = vpack.c.b16 %v8638, %v8620
    %v10259 = vpack.c.b16 %v8639, %v8621
    %v10260 = vpack.c.b16 %v8640, %v8622
    %v10261 = vpack.c.b16 %v8641, %v8623
    %v10262 = vpack.c.b16 %v8642, %v8624
    %v10263 = vpack.c.b16 %v8643, %v8625
    %v10264 = vpack.c.b16 %v8644, %v8626
    %v10265 = vpack.c.b16 %v8645, %v8627
    %v10266 = vpack.c.b16 %v8646, %v8628
    %v10267 = vpack.c.b16 %v8647, %v8629
    %v10268 = vpack.c.b16 %v8648, %v8630
    %v10269 = vpack.c.b16 %v8649, %v8631
    %v10270 = vpack.c.b16 %v8650, %v8632
    %v10271 = vpack.c.b16 %v8651, %v8633
    %v10272 = vpack.c.b16 %v8652, %v8634
    %v10273 = vpack.c.b16 %v8653, %v8635
    %v10274 = vpack.c.b16 %v8654, %v8636
    %v10275 = vpack.c.b16 %v8655, %v8637
    %v10276 = vpack.c.b16 %v8674, %v8656
    %v10277 = vpack.c.b16 %v8675, %v8657
    %v10278 = vpack.c.b16 %v8676, %v8658
    %v10279 = vpack.c.b16 %v8677, %v8659
    %v10280 = vpack.c.b16 %v8678, %v8660
    %v10281 = vpack.c.b16 %v8679, %v8661
    %v10282 = vpack.c.b16 %v8680, %v8662
    %v10283 = vpack.c.b16 %v8681, %v8663
    %v10284 = vpack.c.b16 %v8682, %v8664
    %v10285 = vpack.c.b16 %v8683, %v8665
    %v10286 = vpack.c.b16 %v8684, %v8666
    %v10287 = vpack.c.b16 %v8685, %v8667
    %v10288 = vpack.c.b16 %v8686, %v8668
    %v10289 = vpack.c.b16 %v8687, %v8669
    %v10290 = vpack.c.b16 %v8688, %v8670
    %v10291 = vpack.c.b16 %v8689, %v8671
    %v10292 = vpack.c.b16 %v8690, %v8672
    %v10293 = vpack.c.b16 %v8691, %v8673
    %v10294 = vpack.c.b16 %v8710, %v8692
    %v10295 = vpack.c.b16 %v8711, %v8693
    %v10296 = vpack.c.b16 %v8712, %v8694
    %v10297 = vpack.c.b16 %v8713, %v8695
    %v10298 = vpack.c.b16 %v8714, %v8696
    %v10299 = vpack.c.b16 %v8715, %v8697
    %v10300 = vpack.c.b16 %v8716, %v8698
    %v10301 = vpack.c.b16 %v8717, %v8699
    %v10302 = vpack.c.b16 %v8718, %v8700
    %v10303 = vpack.c.b16 %v8719, %v8701
    %v10304 = vpack.c.b16 %v8720, %v8702
    %v10305 = vpack.c.b16 %v8721, %v8703
    %v10306 = vpack.c.b16 %v8722, %v8704
    %v10307 = vpack.c.b16 %v8723, %v8705
    %v10308 = vpack.c.b16 %v8724, %v8706
    %v10309 = vpack.c.b16 %v8725, %v8707
    %v10310 = vpack.c.b16 %v8726, %v8708
    %v10311 = vpack.c.b16 %v8727, %v8709
    %v10312 = vpack.c.b16 %v8746, %v8728
    %v10313 = vpack.c.b16 %v8747, %v8729
    %v10314 = vpack.c.b16 %v8748, %v8730
    %v10315 = vpack.c.b16 %v8749, %v8731
    %v10316 = vpack.c.b16 %v8750, %v8732
    %v10317 = vpack.c.b16 %v8751, %v8733
    %v10318 = vpack.c.b16 %v8752, %v8734
    %v10319 = vpack.c.b16 %v8753, %v8735
    %v10320 = vpack.c.b16 %v8754, %v8736
    %v10321 = vpack.c.b16 %v8755, %v8737
    %v10322 = vpack.c.b16 %v8756, %v8738
    %v10323 = vpack.c.b16 %v8757, %v8739
    %v10324 = vpack.c.b16 %v8758, %v8740
    %v10325 = vpack.c.b16 %v8759, %v8741
    %v10326 = vpack.c.b16 %v8760, %v8742
    %v10327 = vpack.c.b16 %v8761, %v8743
    %v10328 = vpack.c.b16 %v8762, %v8744
    %v10329 = vpack.c.b16 %v8763, %v8745
    %v10330 = vpack.c.b16 %v8782, %v8764
    %v10331 = vpack.c.b16 %v8783, %v8765
    %v10332 = vpack.c.b16 %v8784, %v8766
    %v10333 = vpack.c.b16 %v8785, %v8767
    %v10334 = vpack.c.b16 %v8786, %v8768
    %v10335 = vpack.c.b16 %v8787, %v8769
    %v10336 = vpack.c.b16 %v8788, %v8770
    %v10337 = vpack.c.b16 %v8789, %v8771
    %v10338 = vpack.c.b16 %v8790, %v8772
    %v10339 = vpack.c.b16 %v8791, %v8773
    %v10340 = vpack.c.b16 %v8792, %v8774
    %v10341 = vpack.c.b16 %v8793, %v8775
    %v10342 = vpack.c.b16 %v8794, %v8776
    %v10343 = vpack.c.b16 %v8795, %v8777
    %v10344 = vpack.c.b16 %v8796, %v8778
    %v10345 = vpack.c.b16 %v8797, %v8779
    %v10346 = vpack.c.b16 %v8798, %v8780
    %v10347 = vpack.c.b16 %v8799, %v8781
    %v10348 = vpack.c.b16 %v8818, %v8800
    %v10349 = vpack.c.b16 %v8819, %v8801
    %v10350 = vpack.c.b16 %v8820, %v8802
    %v10351 = vpack.c.b16 %v8821, %v8803
    %v10352 = vpack.c.b16 %v8822, %v8804
    %v10353 = vpack.c.b16 %v8823, %v8805
    %v10354 = vpack.c.b16 %v8824, %v8806
    %v10355 = vpack.c.b16 %v8825, %v8807
    %v10356 = vpack.c.b16 %v8826, %v8808
    %v10357 = vpack.c.b16 %v8827, %v8809
    %v10358 = vpack.c.b16 %v8828, %v8810
    %v10359 = vpack.c.b16 %v8829, %v8811
    %v10360 = vpack.c.b16 %v8830, %v8812
    %v10361 = vpack.c.b16 %v8831, %v8813
    %v10362 = vpack.c.b16 %v8832, %v8814
    %v10363 = vpack.c.b16 %v8833, %v8815
    %v10364 = vpack.c.b16 %v8834, %v8816
    %v10365 = vpack.c.b16 %v8835, %v8817
    %v10366 = vpack.c.b16 %v8854, %v8836
    %v10367 = vpack.c.b16 %v8855, %v8837
    %v10368 = vpack.c.b16 %v8856, %v8838
    %v10369 = vpack.c.b16 %v8857, %v8839
    %v10370 = vpack.c.b16 %v8858, %v8840
    %v10371 = vpack.c.b16 %v8859, %v8841
    %v10372 = vpack.c.b16 %v8860, %v8842
    %v10373 = vpack.c.b16 %v8861, %v8843
    %v10374 = vpack.c.b16 %v8862, %v8844
    %v10375 = vpack.c.b16 %v8863, %v8845
    %v10376 = vpack.c.b16 %v8864, %v8846
    %v10377 = vpack.c.b16 %v8865, %v8847
    %v10378 = vpack.c.b16 %v8866, %v8848
    %v10379 = vpack.c.b16 %v8867, %v8849
    %v10380 = vpack.c.b16 %v8868, %v8850
    %v10381 = vpack.c.b16 %v8869, %v8851
    %v10382 = vpack.c.b16 %v8870, %v8852
    %v10383 = vpack.c.b16 %v8871, %v8853
    %v10384 = vpack.c.b16 %v8890, %v8872
    %v10385 = vpack.c.b16 %v8891, %v8873
    %v10386 = vpack.c.b16 %v8892, %v8874
    %v10387 = vpack.c.b16 %v8893, %v8875
    %v10388 = vpack.c.b16 %v8894, %v8876
    %v10389 = vpack.c.b16 %v8895, %v8877
    %v10390 = vpack.c.b16 %v8896, %v8878
    %v10391 = vpack.c.b16 %v8897, %v8879
    %v10392 = vpack.c.b16 %v8898, %v8880
    %v10393 = vpack.c.b16 %v8899, %v8881
    %v10394 = vpack.c.b16 %v8900, %v8882
    %v10395 = vpack.c.b16 %v8901, %v8883
    %v10396 = vpack.c.b16 %v8902, %v8884
    %v10397 = vpack.c.b16 %v8903, %v8885
    %v10398 = vpack.c.b16 %v8904, %v8886
    %v10399 = vpack.c.b16 %v8905, %v8887
    %v10400 = vpack.c.b16 %v8906, %v8888
    %v10401 = vpack.c.b16 %v8907, %v8889
    %v10402 = vpack.c.b16 %v8926, %v8908
    %v10403 = vpack.c.b16 %v8927, %v8909
    %v10404 = vpack.c.b16 %v8928, %v8910
    %v10405 = vpack.c.b16 %v8929, %v8911
    %v10406 = vpack.c.b16 %v8930, %v8912
    %v10407 = vpack.c.b16 %v8931, %v8913
    %v10408 = vpack.c.b16 %v8932, %v8914
    %v10409 = vpack.c.b16 %v8933, %v8915
    %v10410 = vpack.c.b16 %v8934, %v8916
    %v10411 = vpack.c.b16 %v8935, %v8917
    %v10412 = vpack.c.b16 %v8936, %v8918
    %v10413 = vpack.c.b16 %v8937, %v8919
    %v10414 = vpack.c.b16 %v8938, %v8920
    %v10415 = vpack.c.b16 %v8939, %v8921
    %v10416 = vpack.c.b16 %v8940, %v8922
    %v10417 = vpack.c.b16 %v8941, %v8923
    %v10418 = vpack.c.b16 %v8942, %v8924
    %v10419 = vpack.c.b16 %v8943, %v8925
    %v10420 = vpack.c.b16 %v8962, %v8944
    %v10421 = vpack.c.b16 %v8963, %v8945
    %v10422 = vpack.c.b16 %v8964, %v8946
    %v10423 = vpack.c.b16 %v8965, %v8947
    %v10424 = vpack.c.b16 %v8966, %v8948
    %v10425 = vpack.c.b16 %v8967, %v8949
    %v10426 = vpack.c.b16 %v8968, %v8950
    %v10427 = vpack.c.b16 %v8969, %v8951
    %v10428 = vpack.c.b16 %v8970, %v8952
    %v10429 = vpack.c.b16 %v8971, %v8953
    %v10430 = vpack.c.b16 %v8972, %v8954
    %v10431 = vpack.c.b16 %v8973, %v8955
    %v10432 = vpack.c.b16 %v8974, %v8956
    %v10433 = vpack.c.b16 %v8975, %v8957
    %v10434 = vpack.c.b16 %v8976, %v8958
    %v10435 = vpack.c.b16 %v8977, %v8959
    %v10436 = vpack.c.b16 %v8978, %v8960
    %v10437 = vpack.c.b16 %v8979, %v8961
    %v10438 = vpack.c.b16 %v8998, %v8980
    %v10439 = vpack.c.b16 %v8999, %v8981
    %v10440 = vpack.c.b16 %v9000, %v8982
    %v10441 = vpack.c.b16 %v9001, %v8983
    %v10442 = vpack.c.b16 %v9002, %v8984
    %v10443 = vpack.c.b16 %v9003, %v8985
    %v10444 = vpack.c.b16 %v9004, %v8986
    %v10445 = vpack.c.b16 %v9005, %v8987
    %v10446 = vpack.c.b16 %v9006, %v8988
    %v10447 = vpack.c.b16 %v9007, %v8989
    %v10448 = vpack.c.b16 %v9008, %v8990
    %v10449 = vpack.c.b16 %v9009, %v8991
    %v10450 = vpack.c.b16 %v9010, %v8992
    %v10451 = vpack.c.b16 %v9011, %v8993
    %v10452 = vpack.c.b16 %v9012, %v8994
    %v10453 = vpack.c.b16 %v9013, %v8995
    %v10454 = vpack.c.b16 %v9014, %v8996
    %v10455 = vpack.c.b16 %v9015, %v8997
    %v10456 = vpack.c.b16 %v9034, %v9016
    %v10457 = vpack.c.b16 %v9035, %v9017
    %v10458 = vpack.c.b16 %v9036, %v9018
    %v10459 = vpack.c.b16 %v9037, %v9019
    %v10460 = vpack.c.b16 %v9038, %v9020
    %v10461 = vpack.c.b16 %v9039, %v9021
    %v10462 = vpack.c.b16 %v9040, %v9022
    %v10463 = vpack.c.b16 %v9041, %v9023
    %v10464 = vpack.c.b16 %v9042, %v9024
    %v10465 = vpack.c.b16 %v9043, %v9025
    %v10466 = vpack.c.b16 %v9044, %v9026
    %v10467 = vpack.c.b16 %v9045, %v9027
    %v10468 = vpack.c.b16 %v9046, %v9028
    %v10469 = vpack.c.b16 %v9047, %v9029
    %v10470 = vpack.c.b16 %v9048, %v9030
    %v10471 = vpack.c.b16 %v9049, %v9031
    %v10472 = vpack.c.b16 %v9050, %v9032
    %v10473 = vpack.c.b16 %v9051, %v9033
    %v10474 = vpack.c.b16 %v9070, %v9052
    %v10475 = vpack.c.b16 %v9071, %v9053
    %v10476 = vpack.c.b16 %v9072, %v9054
    %v10477 = vpack.c.b16 %v9073, %v9055
    %v10478 = vpack.c.b16 %v9074, %v9056
    %v10479 = vpack.c.b16 %v9075, %v9057
    %v10480 = vpack.c.b16 %v9076, %v9058
    %v10481 = vpack.c.b16 %v9077, %v9059
    %v10482 = vpack.c.b16 %v9078, %v9060
    %v10483 = vpack.c.b16 %v9079, %v9061
    %v10484 = vpack.c.b16 %v9080, %v9062
    %v10485 = vpack.c.b16 %v9081, %v9063
    %v10486 = vpack.c.b16 %v9082, %v9064
    %v10487 = vpack.c.b16 %v9083, %v9065
    %v10488 = vpack.c.b16 %v9084, %v9066
    %v10489 = vpack.c.b16 %v9085, %v9067
    %v10490 = vpack.c.b16 %v9086, %v9068
    %v10491 = vpack.c.b16 %v9087, %v9069
    %v10492 = vpack.c.b16 %v9106, %v9088
    %v10493 = vpack.c.b16 %v9107, %v9089
    %v10494 = vpack.c.b16 %v9108, %v9090
    %v10495 = vpack.c.b16 %v9109, %v9091
    %v10496 = vpack.c.b16 %v9110, %v9092
    %v10497 = vpack.c.b16 %v9111, %v9093
    %v10498 = vpack.c.b16 %v9112, %v9094
    %v10499 = vpack.c.b16 %v9113, %v9095
    %v10500 = vpack.c.b16 %v9114, %v9096
    %v10501 = vpack.c.b16 %v9115, %v9097
    %v10502 = vpack.c.b16 %v9116, %v9098
    %v10503 = vpack.c.b16 %v9117, %v9099
    %v10504 = vpack.c.b16 %v9118, %v9100
    %v10505 = vpack.c.b16 %v9119, %v9101
    %v10506 = vpack.c.b16 %v9120, %v9102
    %v10507 = vpack.c.b16 %v9121, %v9103
    %v10508 = vpack.c.b16 %v9122, %v9104
    %v10509 = vpack.c.b16 %v9123, %v9105
    %v10510 = vpack.c.b16 %v9142, %v9124
    %v10511 = vpack.c.b16 %v9143, %v9125
    %v10512 = vpack.c.b16 %v9144, %v9126
    %v10513 = vpack.c.b16 %v9145, %v9127
    %v10514 = vpack.c.b16 %v9146, %v9128
    %v10515 = vpack.c.b16 %v9147, %v9129
    %v10516 = vpack.c.b16 %v9148, %v9130
    %v10517 = vpack.c.b16 %v9149, %v9131
    %v10518 = vpack.c.b16 %v9150, %v9132
    %v10519 = vpack.c.b16 %v9151, %v9133
    %v10520 = vpack.c.b16 %v9152, %v9134
    %v10521 = vpack.c.b16 %v9153, %v9135
    %v10522 = vpack.c.b16 %v9154, %v9136
    %v10523 = vpack.c.b16 %v9155, %v9137
    %v10524 = vpack.c.b16 %v9156, %v9138
    %v10525 = vpack.c.b16 %v9157, %v9139
    %v10526 = vpack.c.b16 %v9158, %v9140
    %v10527 = vpack.c.b16 %v9159, %v9141
    %v10528 = vpack.c.b16 %v9178, %v9160
    %v10529 = vpack.c.b16 %v9179, %v9161
    %v10530 = vpack.c.b16 %v9180, %v9162
    %v10531 = vpack.c.b16 %v9181, %v9163
    %v10532 = vpack.c.b16 %v9182, %v9164
    %v10533 = vpack.c.b16 %v9183, %v9165
    %v10534 = vpack.c.b16 %v9184, %v9166
    %v10535 = vpack.c.b16 %v9185, %v9167
    %v10536 = vpack.c.b16 %v9186, %v9168
    %v10537 = vpack.c.b16 %v9187, %v9169
    %v10538 = vpack.c.b16 %v9188, %v9170
    %v10539 = vpack.c.b16 %v9189, %v9171
    %v10540 = vpack.c.b16 %v9190, %v9172
    %v10541 = vpack.c.b16 %v9191, %v9173
    %v10542 = vpack.c.b16 %v9192, %v9174
    %v10543 = vpack.c.b16 %v9193, %v9175
    %v10544 = vpack.c.b16 %v9194, %v9176
    %v10545 = vpack.c.b16 %v9195, %v9177
    %v10546 = vpack.c.b16 %v9214, %v9196
    %v10547 = vpack.c.b16 %v9215, %v9197
    %v10548 = vpack.c.b16 %v9216, %v9198
    %v10549 = vpack.c.b16 %v9217, %v9199
    %v10550 = vpack.c.b16 %v9218, %v9200
    %v10551 = vpack.c.b16 %v9219, %v9201
    %v10552 = vpack.c.b16 %v9220, %v9202
    %v10553 = vpack.c.b16 %v9221, %v9203
    %v10554 = vpack.c.b16 %v9222, %v9204
    %v10555 = vpack.c.b16 %v9223, %v9205
    %v10556 = vpack.c.b16 %v9224, %v9206
    %v10557 = vpack.c.b16 %v9225, %v9207
    %v10558 = vpack.c.b16 %v9226, %v9208
    %v10559 = vpack.c.b16 %v9227, %v9209
    %v10560 = vpack.c.b16 %v9228, %v9210
    %v10561 = vpack.c.b16 %v9229, %v9211
    %v10562 = vpack.c.b16 %v9230, %v9212
    %v10563 = vpack.c.b16 %v9231, %v9213
    %v10564 = vpack.c.b16 %v9250, %v9232
    %v10565 = vpack.c.b16 %v9251, %v9233
    %v10566 = vpack.c.b16 %v9252, %v9234
    %v10567 = vpack.c.b16 %v9253, %v9235
    %v10568 = vpack.c.b16 %v9254, %v9236
    %v10569 = vpack.c.b16 %v9255, %v9237
    %v10570 = vpack.c.b16 %v9256, %v9238
    %v10571 = vpack.c.b16 %v9257, %v9239
    %v10572 = vpack.c.b16 %v9258, %v9240
    %v10573 = vpack.c.b16 %v9259, %v9241
    %v10574 = vpack.c.b16 %v9260, %v9242
    %v10575 = vpack.c.b16 %v9261, %v9243
    %v10576 = vpack.c.b16 %v9262, %v9244
    %v10577 = vpack.c.b16 %v9263, %v9245
    %v10578 = vpack.c.b16 %v9264, %v9246
    %v10579 = vpack.c.b16 %v9265, %v9247
    %v10580 = vpack.c.b16 %v9266, %v9248
    %v10581 = vpack.c.b16 %v9267, %v9249
    %v10582 = vpack.c.b16 %v9286, %v9268
    %v10583 = vpack.c.b16 %v9287, %v9269
    %v10584 = vpack.c.b16 %v9288, %v9270
    %v10585 = vpack.c.b16 %v9289, %v9271
    %v10586 = vpack.c.b16 %v9290, %v9272
    %v10587 = vpack.c.b16 %v9291, %v9273
    %v10588 = vpack.c.b16 %v9292, %v9274
    %v10589 = vpack.c.b16 %v9293, %v9275
    %v10590 = vpack.c.b16 %v9294, %v9276
    %v10591 = vpack.c.b16 %v9295, %v9277
    %v10592 = vpack.c.b16 %v9296, %v9278
    %v10593 = vpack.c.b16 %v9297, %v9279
    %v10594 = vpack.c.b16 %v9298, %v9280
    %v10595 = vpack.c.b16 %v9299, %v9281
    %v10596 = vpack.c.b16 %v9300, %v9282
    %v10597 = vpack.c.b16 %v9301, %v9283
    %v10598 = vpack.c.b16 %v9302, %v9284
    %v10599 = vpack.c.b16 %v9303, %v9285
    %v10600 = vpack.c.b16 %v9322, %v9304
    %v10601 = vpack.c.b16 %v9323, %v9305
    %v10602 = vpack.c.b16 %v9324, %v9306
    %v10603 = vpack.c.b16 %v9325, %v9307
    %v10604 = vpack.c.b16 %v9326, %v9308
    %v10605 = vpack.c.b16 %v9327, %v9309
    %v10606 = vpack.c.b16 %v9328, %v9310
    %v10607 = vpack.c.b16 %v9329, %v9311
    %v10608 = vpack.c.b16 %v9330, %v9312
    %v10609 = vpack.c.b16 %v9331, %v9313
    %v10610 = vpack.c.b16 %v9332, %v9314
    %v10611 = vpack.c.b16 %v9333, %v9315
    %v10612 = vpack.c.b16 %v9334, %v9316
    %v10613 = vpack.c.b16 %v9335, %v9317
    %v10614 = vpack.c.b16 %v9336, %v9318
    %v10615 = vpack.c.b16 %v9337, %v9319
    %v10616 = vpack.c.b16 %v9338, %v9320
    %v10617 = vpack.c.b16 %v9339, %v9321
    %v10618 = vpack.c.b16 %v9358, %v9340
    %v10619 = vpack.c.b16 %v9359, %v9341
    %v10620 = vpack.c.b16 %v9360, %v9342
    %v10621 = vpack.c.b16 %v9361, %v9343
    %v10622 = vpack.c.b16 %v9362, %v9344
    %v10623 = vpack.c.b16 %v9363, %v9345
    %v10624 = vpack.c.b16 %v9364, %v9346
    %v10625 = vpack.c.b16 %v9365, %v9347
    %v10626 = vpack.c.b16 %v9366, %v9348
    %v10627 = vpack.c.b16 %v9367, %v9349
    %v10628 = vpack.c.b16 %v9368, %v9350
    %v10629 = vpack.c.b16 %v9369, %v9351
    %v10630 = vpack.c.b16 %v9370, %v9352
    %v10631 = vpack.c.b16 %v9371, %v9353
    %v10632 = vpack.c.b16 %v9372, %v9354
    %v10633 = vpack.c.b16 %v9373, %v9355
    %v10634 = vpack.c.b16 %v9374, %v9356
    %v10635 = vpack.c.b16 %v9375, %v9357
    %v10636 = vpack.c.b16 %v9394, %v9376
    %v10637 = vpack.c.b16 %v9395, %v9377
    %v10638 = vpack.c.b16 %v9396, %v9378
    %v10639 = vpack.c.b16 %v9397, %v9379
    %v10640 = vpack.c.b16 %v9398, %v9380
    %v10641 = vpack.c.b16 %v9399, %v9381
    %v10642 = vpack.c.b16 %v9400, %v9382
    %v10643 = vpack.c.b16 %v9401, %v9383
    %v10644 = vpack.c.b16 %v9402, %v9384
    %v10645 = vpack.c.b16 %v9403, %v9385
    %v10646 = vpack.c.b16 %v9404, %v9386
    %v10647 = vpack.c.b16 %v9405, %v9387
    %v10648 = vpack.c.b16 %v9406, %v9388
    %v10649 = vpack.c.b16 %v9407, %v9389
    %v10650 = vpack.c.b16 %v9408, %v9390
    %v10651 = vpack.c.b16 %v9409, %v9391
    %v10652 = vpack.c.b16 %v9410, %v9392
    %v10653 = vpack.c.b16 %v9411, %v9393
    %v10654 = vpack.c.b16 %v9430, %v9412
    %v10655 = vpack.c.b16 %v9431, %v9413
    %v10656 = vpack.c.b16 %v9432, %v9414
    %v10657 = vpack.c.b16 %v9433, %v9415
    %v10658 = vpack.c.b16 %v9434, %v9416
    %v10659 = vpack.c.b16 %v9435, %v9417
    %v10660 = vpack.c.b16 %v9436, %v9418
    %v10661 = vpack.c.b16 %v9437, %v9419
    %v10662 = vpack.c.b16 %v9438, %v9420
    %v10663 = vpack.c.b16 %v9439, %v9421
    %v10664 = vpack.c.b16 %v9440, %v9422
    %v10665 = vpack.c.b16 %v9441, %v9423
    %v10666 = vpack.c.b16 %v9442, %v9424
    %v10667 = vpack.c.b16 %v9443, %v9425
    %v10668 = vpack.c.b16 %v9444, %v9426
    %v10669 = vpack.c.b16 %v9445, %v9427
    %v10670 = vpack.c.b16 %v9446, %v9428
    %v10671 = vpack.c.b16 %v9447, %v9429
    %v10672 = vpack.c.b16 %v9466, %v9448
    %v10673 = vpack.c.b16 %v9467, %v9449
    %v10674 = vpack.c.b16 %v9468, %v9450
    %v10675 = vpack.c.b16 %v9469, %v9451
    %v10676 = vpack.c.b16 %v9470, %v9452
    %v10677 = vpack.c.b16 %v9471, %v9453
    %v10678 = vpack.c.b16 %v9472, %v9454
    %v10679 = vpack.c.b16 %v9473, %v9455
    %v10680 = vpack.c.b16 %v9474, %v9456
    %v10681 = vpack.c.b16 %v9475, %v9457
    %v10682 = vpack.c.b16 %v9476, %v9458
    %v10683 = vpack.c.b16 %v9477, %v9459
    %v10684 = vpack.c.b16 %v9478, %v9460
    %v10685 = vpack.c.b16 %v9479, %v9461
    %v10686 = vpack.c.b16 %v9480, %v9462
    %v10687 = vpack.c.b16 %v9481, %v9463
    %v10688 = vpack.c.b16 %v9482, %v9464
    %v10689 = vpack.c.b16 %v9483, %v9465
    %v10690 = vpack.c.b16 %v9502, %v9484
    %v10691 = vpack.c.b16 %v9503, %v9485
    %v10692 = vpack.c.b16 %v9504, %v9486
    %v10693 = vpack.c.b16 %v9505, %v9487
    %v10694 = vpack.c.b16 %v9506, %v9488
    %v10695 = vpack.c.b16 %v9507, %v9489
    %v10696 = vpack.c.b16 %v9508, %v9490
    %v10697 = vpack.c.b16 %v9509, %v9491
    %v10698 = vpack.c.b16 %v9510, %v9492
    %v10699 = vpack.c.b16 %v9511, %v9493
    %v10700 = vpack.c.b16 %v9512, %v9494
    %v10701 = vpack.c.b16 %v9513, %v9495
    %v10702 = vpack.c.b16 %v9514, %v9496
    %v10703 = vpack.c.b16 %v9515, %v9497
    %v10704 = vpack.c.b16 %v9516, %v9498
    %v10705 = vpack.c.b16 %v9517, %v9499
    %v10706 = vpack.c.b16 %v9518, %v9500
    %v10707 = vpack.c.b16 %v9519, %v9501
    %v10708 = vpack.c.b16 %v9538, %v9520
    %v10709 = vpack.c.b16 %v9539, %v9521
    %v10710 = vpack.c.b16 %v9540, %v9522
    %v10711 = vpack.c.b16 %v9541, %v9523
    %v10712 = vpack.c.b16 %v9542, %v9524
    %v10713 = vpack.c.b16 %v9543, %v9525
    %v10714 = vpack.c.b16 %v9544, %v9526
    %v10715 = vpack.c.b16 %v9545, %v9527
    %v10716 = vpack.c.b16 %v9546, %v9528
    %v10717 = vpack.c.b16 %v9547, %v9529
    %v10718 = vpack.c.b16 %v9548, %v9530
    %v10719 = vpack.c.b16 %v9549, %v9531
    %v10720 = vpack.c.b16 %v9550, %v9532
    %v10721 = vpack.c.b16 %v9551, %v9533
    %v10722 = vpack.c.b16 %v9552, %v9534
    %v10723 = vpack.c.b16 %v9553, %v9535
    %v10724 = vpack.c.b16 %v9554, %v9536
    %v10725 = vpack.c.b16 %v9555, %v9537
    %v10726 = vpack.c.b16 %v9574, %v9556
    %v10727 = vpack.c.b16 %v9575, %v9557
    %v10728 = vpack.c.b16 %v9576, %v9558
    %v10729 = vpack.c.b16 %v9577, %v9559
    %v10730 = vpack.c.b16 %v9578, %v9560
    %v10731 = vpack.c.b16 %v9579, %v9561
    %v10732 = vpack.c.b16 %v9580, %v9562
    %v10733 = vpack.c.b16 %v9581, %v9563
    %v10734 = vpack.c.b16 %v9582, %v9564
    %v10735 = vpack.c.b16 %v9583, %v9565
    %v10736 = vpack.c.b16 %v9584, %v9566
    %v10737 = vpack.c.b16 %v9585, %v9567
    %v10738 = vpack.c.b16 %v9586, %v9568
    %v10739 = vpack.c.b16 %v9587, %v9569
    %v10740 = vpack.c.b16 %v9588, %v9570
    %v10741 = vpack.c.b16 %v9589, %v9571
    %v10742 = vpack.c.b16 %v9590, %v9572
    %v10743 = vpack.c.b16 %v9591, %v9573
    %v10744 = vpack.c.b16 %v9610, %v9592
    %v10745 = vpack.c.b16 %v9611, %v9593
    %v10746 = vpack.c.b16 %v9612, %v9594
    %v10747 = vpack.c.b16 %v9613, %v9595
    %v10748 = vpack.c.b16 %v9614, %v9596
    %v10749 = vpack.c.b16 %v9615, %v9597
    %v10750 = vpack.c.b16 %v9616, %v9598
    %v10751 = vpack.c.b16 %v9617, %v9599
    %v10752 = vpack.c.b16 %v9618, %v9600
    %v10753 = vpack.c.b16 %v9619, %v9601
    %v10754 = vpack.c.b16 %v9620, %v9602
    %v10755 = vpack.c.b16 %v9621, %v9603
    %v10756 = vpack.c.b16 %v9622, %v9604
    %v10757 = vpack.c.b16 %v9623, %v9605
    %v10758 = vpack.c.b16 %v9624, %v9606
    %v10759 = vpack.c.b16 %v9625, %v9607
    %v10760 = vpack.c.b16 %v9626, %v9608
    %v10761 = vpack.c.b16 %v9627, %v9609
    %v10762 = vpack.c.b16 %v9646, %v9628
    %v10763 = vpack.c.b16 %v9647, %v9629
    %v10764 = vpack.c.b16 %v9648, %v9630
    %v10765 = vpack.c.b16 %v9649, %v9631
    %v10766 = vpack.c.b16 %v9650, %v9632
    %v10767 = vpack.c.b16 %v9651, %v9633
    %v10768 = vpack.c.b16 %v9652, %v9634
    %v10769 = vpack.c.b16 %v9653, %v9635
    %v10770 = vpack.c.b16 %v9654, %v9636
    %v10771 = vpack.c.b16 %v9655, %v9637
    %v10772 = vpack.c.b16 %v9656, %v9638
    %v10773 = vpack.c.b16 %v9657, %v9639
    %v10774 = vpack.c.b16 %v9658, %v9640
    %v10775 = vpack.c.b16 %v9659, %v9641
    %v10776 = vpack.c.b16 %v9660, %v9642
    %v10777 = vpack.c.b16 %v9661, %v9643
    %v10778 = vpack.c.b16 %v9662, %v9644
    %v10779 = vpack.c.b16 %v9663, %v9645
    %v10780 = vpack.c.b16 %v9682, %v9664
    %v10781 = vpack.c.b16 %v9683, %v9665
    %v10782 = vpack.c.b16 %v9684, %v9666
    %v10783 = vpack.c.b16 %v9685, %v9667
    %v10784 = vpack.c.b16 %v9686, %v9668
    %v10785 = vpack.c.b16 %v9687, %v9669
    %v10786 = vpack.c.b16 %v9688, %v9670
    %v10787 = vpack.c.b16 %v9689, %v9671
    %v10788 = vpack.c.b16 %v9690, %v9672
    %v10789 = vpack.c.b16 %v9691, %v9673
    %v10790 = vpack.c.b16 %v9692, %v9674
    %v10791 = vpack.c.b16 %v9693, %v9675
    %v10792 = vpack.c.b16 %v9694, %v9676
    %v10793 = vpack.c.b16 %v9695, %v9677
    %v10794 = vpack.c.b16 %v9696, %v9678
    %v10795 = vpack.c.b16 %v9697, %v9679
    %v10796 = vpack.c.b16 %v9698, %v9680
    %v10797 = vpack.c.b16 %v9699, %v9681
    %v10798 = vpack.c.b16 %v9718, %v9700
    %v10799 = vpack.c.b16 %v9719, %v9701
    %v10800 = vpack.c.b16 %v9720, %v9702
    %v10801 = vpack.c.b16 %v9721, %v9703
    %v10802 = vpack.c.b16 %v9722, %v9704
    %v10803 = vpack.c.b16 %v9723, %v9705
    %v10804 = vpack.c.b16 %v9724, %v9706
    %v10805 = vpack.c.b16 %v9725, %v9707
    %v10806 = vpack.c.b16 %v9726, %v9708
    %v10807 = vpack.c.b16 %v9727, %v9709
    %v10808 = vpack.c.b16 %v9728, %v9710
    %v10809 = vpack.c.b16 %v9729, %v9711
    %v10810 = vpack.c.b16 %v9730, %v9712
    %v10811 = vpack.c.b16 %v9731, %v9713
    %v10812 = vpack.c.b16 %v9732, %v9714
    %v10813 = vpack.c.b16 %v9733, %v9715
    %v10814 = vpack.c.b16 %v9734, %v9716
    %v10815 = vpack.c.b16 %v9735, %v9717
    %v10816 = vpack.c.b16 %v9754, %v9736
    %v10817 = vpack.c.b16 %v9755, %v9737
    %v10818 = vpack.c.b16 %v9756, %v9738
    %v10819 = vpack.c.b16 %v9757, %v9739
    %v10820 = vpack.c.b16 %v9758, %v9740
    %v10821 = vpack.c.b16 %v9759, %v9741
    %v10822 = vpack.c.b16 %v9760, %v9742
    %v10823 = vpack.c.b16 %v9761, %v9743
    %v10824 = vpack.c.b16 %v9762, %v9744
    %v10825 = vpack.c.b16 %v9763, %v9745
    %v10826 = vpack.c.b16 %v9764, %v9746
    %v10827 = vpack.c.b16 %v9765, %v9747
    %v10828 = vpack.c.b16 %v9766, %v9748
    %v10829 = vpack.c.b16 %v9767, %v9749
    %v10830 = vpack.c.b16 %v9768, %v9750
    %v10831 = vpack.c.b16 %v9769, %v9751
    %v10832 = vpack.c.b16 %v9770, %v9752
    %v10833 = vpack.c.b16 %v9771, %v9753
    %v10834 = vpack.c.b16 %v9790, %v9772
    %v10835 = vpack.c.b16 %v9791, %v9773
    %v10836 = vpack.c.b16 %v9792, %v9774
    %v10837 = vpack.c.b16 %v9793, %v9775
    %v10838 = vpack.c.b16 %v9794, %v9776
    %v10839 = vpack.c.b16 %v9795, %v9777
    %v10840 = vpack.c.b16 %v9796, %v9778
    %v10841 = vpack.c.b16 %v9797, %v9779
    %v10842 = vpack.c.b16 %v9798, %v9780
    %v10843 = vpack.c.b16 %v9799, %v9781
    %v10844 = vpack.c.b16 %v9800, %v9782
    %v10845 = vpack.c.b16 %v9801, %v9783
    %v10846 = vpack.c.b16 %v9802, %v9784
    %v10847 = vpack.c.b16 %v9803, %v9785
    %v10848 = vpack.c.b16 %v9804, %v9786
    %v10849 = vpack.c.b16 %v9805, %v9787
    %v10850 = vpack.c.b16 %v9806, %v9788
    %v10851 = vpack.c.b16 %v9807, %v9789
    %v10852 = vpack.c.b16 %v9826, %v9808
    %v10853 = vpack.c.b16 %v9827, %v9809
    %v10854 = vpack.c.b16 %v9828, %v9810
    %v10855 = vpack.c.b16 %v9829, %v9811
    %v10856 = vpack.c.b16 %v9830, %v9812
    %v10857 = vpack.c.b16 %v9831, %v9813
    %v10858 = vpack.c.b16 %v9832, %v9814
    %v10859 = vpack.c.b16 %v9833, %v9815
    %v10860 = vpack.c.b16 %v9834, %v9816
    %v10861 = vpack.c.b16 %v9835, %v9817
    %v10862 = vpack.c.b16 %v9836, %v9818
    %v10863 = vpack.c.b16 %v9837, %v9819
    %v10864 = vpack.c.b16 %v9838, %v9820
    %v10865 = vpack.c.b16 %v9839, %v9821
    %v10866 = vpack.c.b16 %v9840, %v9822
    %v10867 = vpack.c.b16 %v9841, %v9823
    %v10868 = vpack.c.b16 %v9842, %v9824
    %v10869 = vpack.c.b16 %v9843, %v9825
    %v10870 = vpack.c.b16 %v9862, %v9844
    %v10871 = vpack.c.b16 %v9863, %v9845
    %v10872 = vpack.c.b16 %v9864, %v9846
    %v10873 = vpack.c.b16 %v9865, %v9847
    %v10874 = vpack.c.b16 %v9866, %v9848
    %v10875 = vpack.c.b16 %v9867, %v9849
    %v10876 = vpack.c.b16 %v9868, %v9850
    %v10877 = vpack.c.b16 %v9869, %v9851
    %v10878 = vpack.c.b16 %v9870, %v9852
    %v10879 = vpack.c.b16 %v9871, %v9853
    %v10880 = vpack.c.b16 %v9872, %v9854
    %v10881 = vpack.c.b16 %v9873, %v9855
    %v10882 = vpack.c.b16 %v9874, %v9856
    %v10883 = vpack.c.b16 %v9875, %v9857
    %v10884 = vpack.c.b16 %v9876, %v9858
    %v10885 = vpack.c.b16 %v9877, %v9859
    %v10886 = vpack.c.b16 %v9878, %v9860
    %v10887 = vpack.c.b16 %v9879, %v9861
    %v10888 = vpack.c.b16 %v9898, %v9880
    %v10889 = vpack.c.b16 %v9899, %v9881
    %v10890 = vpack.c.b16 %v9900, %v9882
    %v10891 = vpack.c.b16 %v9901, %v9883
    %v10892 = vpack.c.b16 %v9902, %v9884
    %v10893 = vpack.c.b16 %v9903, %v9885
    %v10894 = vpack.c.b16 %v9904, %v9886
    %v10895 = vpack.c.b16 %v9905, %v9887
    %v10896 = vpack.c.b16 %v9906, %v9888
    %v10897 = vpack.c.b16 %v9907, %v9889
    %v10898 = vpack.c.b16 %v9908, %v9890
    %v10899 = vpack.c.b16 %v9909, %v9891
    %v10900 = vpack.c.b16 %v9910, %v9892
    %v10901 = vpack.c.b16 %v9911, %v9893
    %v10902 = vpack.c.b16 %v9912, %v9894
    %v10903 = vpack.c.b16 %v9913, %v9895
    %v10904 = vpack.c.b16 %v9914, %v9896
    %v10905 = vpack.c.b16 %v9915, %v9897
    %v10906 = vpack.c.b16 %v9934, %v9916
    %v10907 = vpack.c.b16 %v9935, %v9917
    %v10908 = vpack.c.b16 %v9936, %v9918
    %v10909 = vpack.c.b16 %v9937, %v9919
    %v10910 = vpack.c.b16 %v9938, %v9920
    %v10911 = vpack.c.b16 %v9939, %v9921
    %v10912 = vpack.c.b16 %v9940, %v9922
    %v10913 = vpack.c.b16 %v9941, %v9923
    %v10914 = vpack.c.b16 %v9942, %v9924
    %v10915 = vpack.c.b16 %v9943, %v9925
    %v10916 = vpack.c.b16 %v9944, %v9926
    %v10917 = vpack.c.b16 %v9945, %v9927
    %v10918 = vpack.c.b16 %v9946, %v9928
    %v10919 = vpack.c.b16 %v9947, %v9929
    %v10920 = vpack.c.b16 %v9948, %v9930
    %v10921 = vpack.c.b16 %v9949, %v9931
    %v10922 = vpack.c.b16 %v9950, %v9932
    %v10923 = vpack.c.b16 %v9951, %v9933
    %v10924 = vpack.c.b16 %v9970, %v9952
    %v10925 = vpack.c.b16 %v9971, %v9953
    %v10926 = vpack.c.b16 %v9972, %v9954
    %v10927 = vpack.c.b16 %v9973, %v9955
    %v10928 = vpack.c.b16 %v9974, %v9956
    %v10929 = vpack.c.b16 %v9975, %v9957
    %v10930 = vpack.c.b16 %v9976, %v9958
    %v10931 = vpack.c.b16 %v9977, %v9959
    %v10932 = vpack.c.b16 %v9978, %v9960
    %v10933 = vpack.c.b16 %v9979, %v9961
    %v10934 = vpack.c.b16 %v9980, %v9962
    %v10935 = vpack.c.b16 %v9981, %v9963
    %v10936 = vpack.c.b16 %v9982, %v9964
    %v10937 = vpack.c.b16 %v9983, %v9965
    %v10938 = vpack.c.b16 %v9984, %v9966
    %v10939 = vpack.c.b16 %v9985, %v9967
    %v10940 = vpack.c.b16 %v9986, %v9968
    %v10941 = vpack.c.b16 %v9987, %v9969
    %v10942 = vpack.c.b16 %v10006, %v9988
    %v10943 = vpack.c.b16 %v10007, %v9989
    %v10944 = vpack.c.b16 %v10008, %v9990
    %v10945 = vpack.c.b16 %v10009, %v9991
    %v10946 = vpack.c.b16 %v10010, %v9992
    %v10947 = vpack.c.b16 %v10011, %v9993
    %v10948 = vpack.c.b16 %v10012, %v9994
    %v10949 = vpack.c.b16 %v10013, %v9995
    %v10950 = vpack.c.b16 %v10014, %v9996
    %v10951 = vpack.c.b16 %v10015, %v9997
    %v10952 = vpack.c.b16 %v10016, %v9998
    %v10953 = vpack.c.b16 %v10017, %v9999
    %v10954 = vpack.c.b16 %v10018, %v10000
    %v10955 = vpack.c.b16 %v10019, %v10001
    %v10956 = vpack.c.b16 %v10020, %v10002
    %v10957 = vpack.c.b16 %v10021, %v10003
    %v10958 = vpack.c.b16 %v10022, %v10004
    %v10959 = vpack.c.b16 %v10023, %v10005
    %v10960 = vpack.c.b16 %v10042, %v10024
    %v10961 = vpack.c.b16 %v10043, %v10025
    %v10962 = vpack.c.b16 %v10044, %v10026
    %v10963 = vpack.c.b16 %v10045, %v10027
    %v10964 = vpack.c.b16 %v10046, %v10028
    %v10965 = vpack.c.b16 %v10047, %v10029
    %v10966 = vpack.c.b16 %v10048, %v10030
    %v10967 = vpack.c.b16 %v10049, %v10031
    %v10968 = vpack.c.b16 %v10050, %v10032
    %v10969 = vpack.c.b16 %v10051, %v10033
    %v10970 = vpack.c.b16 %v10052, %v10034
    %v10971 = vpack.c.b16 %v10053, %v10035
    %v10972 = vpack.c.b16 %v10054, %v10036
    %v10973 = vpack.c.b16 %v10055, %v10037
    %v10974 = vpack.c.b16 %v10056, %v10038
    %v10975 = vpack.c.b16 %v10057, %v10039
    %v10976 = vpack.c.b16 %v10058, %v10040
    %v10977 = vpack.c.b16 %v10059, %v10041
    %v10978 = vpack.c.b16 %v10078, %v10060
    %v10979 = vpack.c.b16 %v10079, %v10061
    %v10980 = vpack.c.b16 %v10080, %v10062
    %v10981 = vpack.c.b16 %v10081, %v10063
    %v10982 = vpack.c.b16 %v10082, %v10064
    %v10983 = vpack.c.b16 %v10083, %v10065
    %v10984 = vpack.c.b16 %v10084, %v10066
    %v10985 = vpack.c.b16 %v10085, %v10067
    %v10986 = vpack.c.b16 %v10086, %v10068
    %v10987 = vpack.c.b16 %v10087, %v10069
    %v10988 = vpack.c.b16 %v10088, %v10070
    %v10989 = vpack.c.b16 %v10089, %v10071
    %v10990 = vpack.c.b16 %v10090, %v10072
    %v10991 = vpack.c.b16 %v10091, %v10073
    %v10992 = vpack.c.b16 %v10092, %v10074
    %v10993 = vpack.c.b16 %v10093, %v10075
    %v10994 = vpack.c.b16 %v10094, %v10076
    %v10995 = vpack.c.b16 %v10095, %v10077
    %v10996 = vpack.c.b16 %v10114, %v10096
    %v10997 = vpack.c.b16 %v10115, %v10097
    %v10998 = vpack.c.b16 %v10116, %v10098
    %v10999 = vpack.c.b16 %v10117, %v10099
    %v11000 = vpack.c.b16 %v10118, %v10100
    %v11001 = vpack.c.b16 %v10119, %v10101
    %v11002 = vpack.c.b16 %v10120, %v10102
    %v11003 = vpack.c.b16 %v10121, %v10103
    %v11004 = vpack.c.b16 %v10122, %v10104
    %v11005 = vpack.c.b16 %v10123, %v10105
    %v11006 = vpack.c.b16 %v10124, %v10106
    %v11007 = vpack.c.b16 %v10125, %v10107
    %v11008 = vpack.c.b16 %v10126, %v10108
    %v11009 = vpack.c.b16 %v10127, %v10109
    %v11010 = vpack.c.b16 %v10128, %v10110
    %v11011 = vpack.c.b16 %v10129, %v10111
    %v11012 = vpack.c.b16 %v10130, %v10112
    %v11013 = vpack.c.b16 %v10131, %v10113
    %v11014 = vpack.c.b16 %v10150, %v10132
    %v11015 = vpack.c.b16 %v10151, %v10133
    %v11016 = vpack.c.b16 %v10152, %v10134
    %v11017 = vpack.c.b16 %v10153, %v10135
    %v11018 = vpack.c.b16 %v10154, %v10136
    %v11019 = vpack.c.b16 %v10155, %v10137
    %v11020 = vpack.c.b16 %v10156, %v10138
    %v11021 = vpack.c.b16 %v10157, %v10139
    %v11022 = vpack.c.b16 %v10158, %v10140
    %v11023 = vpack.c.b16 %v10159, %v10141
    %v11024 = vpack.c.b16 %v10160, %v10142
    %v11025 = vpack.c.b16 %v10161, %v10143
    %v11026 = vpack.c.b16 %v10162, %v10144
    %v11027 = vpack.c.b16 %v10163, %v10145
    %v11028 = vpack.c.b16 %v10164, %v10146
    %v11029 = vpack.c.b16 %v10165, %v10147
    %v11030 = vpack.c.b16 %v10166, %v10148
    %v11031 = vpack.c.b16 %v10167, %v10149
    %11896 = vmatprep.subr.bf16.mxu0 %v10295
    %11897 = vmatpush1.bf16.msra.mxu0 %v10294
    %11898 = vmatprep.subr.bf16.mxu0 %v10277
    %11899 = vmatpush1.bf16.msra.mxu0 %v10276
    %11900 = vmatprep.subr.bf16.mxu0 %v10259
    %11901 = vmatpush1.bf16.msra.mxu0 %v10258
    %11902 = vmatprep.subr.bf16.mxu0 %v10241
    %11903 = vmatpush1.bf16.msra.mxu0 %v10240
    %11904 = vmatprep.subr.bf16.mxu0 %v10223
    %11905 = vmatpush1.bf16.msra.mxu0 %v10222
    %11906 = vmatprep.subr.bf16.mxu0 %v10205
    %11907 = vmatpush1.bf16.msra.mxu0 %v10204
    %11908 = vmatprep.subr.bf16.mxu0 %v10187
    %11909 = vmatpush1.bf16.msra.mxu0 %v10186
    %11910 = vmatprep.subr.bf16.mxu0 %v10169
    %11911 = vmatpush1.bf16.msra.mxu0 %v10168
    %11912 = vmatprep.subr.bf16.mxu0 %v10439
    %11913 = vmatpush2.bf16.msra.mxu0 %v10438
    %11914 = vmatprep.subr.bf16.mxu0 %v10421
    %11915 = vmatpush2.bf16.msra.mxu0 %v10420
    %11916 = vmatprep.subr.bf16.mxu0 %v10403
    %11917 = vmatpush2.bf16.msra.mxu0 %v10402
    %11918 = vmatprep.subr.bf16.mxu0 %v10385
    %11919 = vmatpush2.bf16.msra.mxu0 %v10384
    %11920 = vmatprep.subr.bf16.mxu0 %v10367
    %11921 = vmatpush2.bf16.msra.mxu0 %v10366
    %11922 = vmatprep.subr.bf16.mxu0 %v10349
    %11923 = vmatpush2.bf16.msra.mxu0 %v10348
    %11924 = vmatprep.subr.bf16.mxu0 %v10331
    %11925 = vmatpush2.bf16.msra.mxu0 %v10330
    %11926 = vmatprep.subr.bf16.mxu0 %v10313
    %11927 = vmatpush2.bf16.msra.mxu0 %v10312
    %11928 = vmatprep.mubr.bf16.mxu0 %v6611
    %11929 = vmatmul.mubr.bf16.gmra.mxu0 %v6610
    %v11930 = vpop.f32.mrf.mxu0
    %v11931 = vadd.f32 %v7489, %v11930
    %v11932 = vpop.f32.mrf.mxu0
    %v11933 = vadd.f32 %v7493, %v11932
    %v11934 = vpop.f32.mrf.mxu0
    %v11935 = vpop.f32.mrf.mxu0
    %11936 = vdwg.mxu0
    %11937 = vmatprep.subr.bf16.mxu0 %v10583
    %11938 = vmatpush1.bf16.msra.mxu0 %v10582
    %11939 = vmatprep.subr.bf16.mxu0 %v10565
    %11940 = vmatpush1.bf16.msra.mxu0 %v10564
    %11941 = vmatprep.subr.bf16.mxu0 %v10547
    %11942 = vmatpush1.bf16.msra.mxu0 %v10546
    %11943 = vmatprep.subr.bf16.mxu0 %v10529
    %11944 = vmatpush1.bf16.msra.mxu0 %v10528
    %11945 = vmatprep.subr.bf16.mxu0 %v10511
    %11946 = vmatpush1.bf16.msra.mxu0 %v10510
    %11947 = vmatprep.subr.bf16.mxu0 %v10493
    %11948 = vmatpush1.bf16.msra.mxu0 %v10492
    %11949 = vmatprep.subr.bf16.mxu0 %v10475
    %11950 = vmatpush1.bf16.msra.mxu0 %v10474
    %11951 = vmatprep.subr.bf16.mxu0 %v10457
    %11952 = vmatpush1.bf16.msra.mxu0 %v10456
    %11953 = vmatprep.subr.bf16.mxu0 %v10727
    %11954 = vmatpush2.bf16.msra.mxu0 %v10726
    %11955 = vmatprep.subr.bf16.mxu0 %v10709
    %11956 = vmatpush2.bf16.msra.mxu0 %v10708
    %11957 = vmatprep.subr.bf16.mxu0 %v10691
    %11958 = vmatpush2.bf16.msra.mxu0 %v10690
    %11959 = vmatprep.subr.bf16.mxu0 %v10673
    %11960 = vmatpush2.bf16.msra.mxu0 %v10672
    %11961 = vmatprep.subr.bf16.mxu0 %v10655
    %11962 = vmatpush2.bf16.msra.mxu0 %v10654
    %11963 = vmatprep.subr.bf16.mxu0 %v10637
    %11964 = vmatpush2.bf16.msra.mxu0 %v10636
    %11965 = vmatprep.subr.bf16.mxu0 %v10619
    %11966 = vmatpush2.bf16.msra.mxu0 %v10618
    %11967 = vmatprep.subr.bf16.mxu0 %v10601
    %11968 = vmatpush2.bf16.msra.mxu0 %v10600
    %11969 = vmatprep.mubr.bf16.mxu0 %v6613
    %11970 = vmatmul.mubr.bf16.gmra.mxu0 %v6612
    %v11971 = vpop.f32.mrf.mxu0
    %v11972 = vadd.f32 %v11931, %v11971
    %v11973 = vpop.f32.mrf.mxu0
    %v11974 = vadd.f32 %v11933, %v11973
    %v11975 = vpop.f32.mrf.mxu0
    %v11976 = vpop.f32.mrf.mxu0
    %11977 = vdwg.mxu0
    %11978 = vmatprep.subr.bf16.mxu0 %v10871
    %11979 = vmatpush1.bf16.msra.mxu0 %v10870
    %11980 = vmatprep.subr.bf16.mxu0 %v10853
    %11981 = vmatpush1.bf16.msra.mxu0 %v10852
    %11982 = vmatprep.subr.bf16.mxu0 %v10835
    %11983 = vmatpush1.bf16.msra.mxu0 %v10834
    %11984 = vmatprep.subr.bf16.mxu0 %v10817
    %11985 = vmatpush1.bf16.msra.mxu0 %v10816
    %11986 = vmatprep.subr.bf16.mxu0 %v10799
    %11987 = vmatpush1.bf16.msra.mxu0 %v10798
    %11988 = vmatprep.subr.bf16.mxu0 %v10781
    %11989 = vmatpush1.bf16.msra.mxu0 %v10780
    %11990 = vmatprep.subr.bf16.mxu0 %v10763
    %11991 = vmatpush1.bf16.msra.mxu0 %v10762
    %11992 = vmatprep.subr.bf16.mxu0 %v10745
    %11993 = vmatpush1.bf16.msra.mxu0 %v10744
    %11994 = vmatprep.subr.bf16.mxu0 %v11015
    %11995 = vmatpush2.bf16.msra.mxu0 %v11014
    %11996 = vmatprep.subr.bf16.mxu0 %v10997
    %11997 = vmatpush2.bf16.msra.mxu0 %v10996
    %11998 = vmatprep.subr.bf16.mxu0 %v10979
    %11999 = vmatpush2.bf16.msra.mxu0 %v10978
    %12000 = vmatprep.subr.bf16.mxu0 %v10961
    %12001 = vmatpush2.bf16.msra.mxu0 %v10960
    %12002 = vmatprep.subr.bf16.mxu0 %v10943
    %12003 = vmatpush2.bf16.msra.mxu0 %v10942
    %12004 = vmatprep.subr.bf16.mxu0 %v10925
    %12005 = vmatpush2.bf16.msra.mxu0 %v10924
    %12006 = vmatprep.subr.bf16.mxu0 %v10907
    %12007 = vmatpush2.bf16.msra.mxu0 %v10906
    %12008 = vmatprep.subr.bf16.mxu0 %v10889
    %12009 = vmatpush2.bf16.msra.mxu0 %v10888
    %12010 = vmatprep.mubr.bf16.mxu0 %v6615
    %12011 = vmatmul.mubr.bf16.gmra.mxu0 %v6614
    %v12012 = vpop.f32.mrf.mxu0
    %v12013 = vadd.f32 %v11972, %v12012
    %v12014 = vpop.f32.mrf.mxu0
    %v12015 = vadd.f32 %v11974, %v12014
    %v12016 = vpop.f32.mrf.mxu0
    %v12017 = vpop.f32.mrf.mxu0
    %12018 = vdwg.mxu0
    %12019 = vmatprep.subr.bf16.mxu0 %v10297
    %12020 = vmatpush1.bf16.msra.mxu0 %v10296
    %12021 = vmatprep.subr.bf16.mxu0 %v10279
    %12022 = vmatpush1.bf16.msra.mxu0 %v10278
    %12023 = vmatprep.subr.bf16.mxu0 %v10261
    %12024 = vmatpush1.bf16.msra.mxu0 %v10260
    %12025 = vmatprep.subr.bf16.mxu0 %v10243
    %12026 = vmatpush1.bf16.msra.mxu0 %v10242
    %12027 = vmatprep.subr.bf16.mxu0 %v10225
    %12028 = vmatpush1.bf16.msra.mxu0 %v10224
    %12029 = vmatprep.subr.bf16.mxu0 %v10207
    %12030 = vmatpush1.bf16.msra.mxu0 %v10206
    %12031 = vmatprep.subr.bf16.mxu0 %v10189
    %12032 = vmatpush1.bf16.msra.mxu0 %v10188
    %12033 = vmatprep.subr.bf16.mxu0 %v10171
    %12034 = vmatpush1.bf16.msra.mxu0 %v10170
    %12035 = vmatprep.subr.bf16.mxu0 %v10441
    %12036 = vmatpush2.bf16.msra.mxu0 %v10440
    %12037 = vmatprep.subr.bf16.mxu0 %v10423
    %12038 = vmatpush2.bf16.msra.mxu0 %v10422
    %12039 = vmatprep.subr.bf16.mxu0 %v10405
    %12040 = vmatpush2.bf16.msra.mxu0 %v10404
    %12041 = vmatprep.subr.bf16.mxu0 %v10387
    %12042 = vmatpush2.bf16.msra.mxu0 %v10386
    %12043 = vmatprep.subr.bf16.mxu0 %v10369
    %12044 = vmatpush2.bf16.msra.mxu0 %v10368
    %12045 = vmatprep.subr.bf16.mxu0 %v10351
    %12046 = vmatpush2.bf16.msra.mxu0 %v10350
    %12047 = vmatprep.subr.bf16.mxu0 %v10333
    %12048 = vmatpush2.bf16.msra.mxu0 %v10332
    %12049 = vmatprep.subr.bf16.mxu0 %v10315
    %12050 = vmatpush2.bf16.msra.mxu0 %v10314
    %12051 = vmatprep.mubr.bf16.mxu0 %v6611
    %12052 = vmatmul.mubr.bf16.gmra.mxu0 %v6610
    %v12053 = vpop.f32.mrf.mxu0
    %v12054 = vadd.f32 %v7497, %v12053
    %v12055 = vpop.f32.mrf.mxu0
    %v12056 = vadd.f32 %v7501, %v12055
    %v12057 = vpop.f32.mrf.mxu0
    %v12058 = vpop.f32.mrf.mxu0
    %12059 = vdwg.mxu0
    %12060 = vmatprep.subr.bf16.mxu0 %v10585
    %12061 = vmatpush1.bf16.msra.mxu0 %v10584
    %12062 = vmatprep.subr.bf16.mxu0 %v10567
    %12063 = vmatpush1.bf16.msra.mxu0 %v10566
    %12064 = vmatprep.subr.bf16.mxu0 %v10549
    %12065 = vmatpush1.bf16.msra.mxu0 %v10548
    %12066 = vmatprep.subr.bf16.mxu0 %v10531
    %12067 = vmatpush1.bf16.msra.mxu0 %v10530
    %12068 = vmatprep.subr.bf16.mxu0 %v10513
    %12069 = vmatpush1.bf16.msra.mxu0 %v10512
    %12070 = vmatprep.subr.bf16.mxu0 %v10495
    %12071 = vmatpush1.bf16.msra.mxu0 %v10494
    %12072 = vmatprep.subr.bf16.mxu0 %v10477
    %12073 = vmatpush1.bf16.msra.mxu0 %v10476
    %12074 = vmatprep.subr.bf16.mxu0 %v10459
    %12075 = vmatpush1.bf16.msra.mxu0 %v10458
    %12076 = vmatprep.subr.bf16.mxu0 %v10729
    %12077 = vmatpush2.bf16.msra.mxu0 %v10728
    %12078 = vmatprep.subr.bf16.mxu0 %v10711
    %12079 = vmatpush2.bf16.msra.mxu0 %v10710
    %12080 = vmatprep.subr.bf16.mxu0 %v10693
    %12081 = vmatpush2.bf16.msra.mxu0 %v10692
    %12082 = vmatprep.subr.bf16.mxu0 %v10675
    %12083 = vmatpush2.bf16.msra.mxu0 %v10674
    %12084 = vmatprep.subr.bf16.mxu0 %v10657
    %12085 = vmatpush2.bf16.msra.mxu0 %v10656
    %12086 = vmatprep.subr.bf16.mxu0 %v10639
    %12087 = vmatpush2.bf16.msra.mxu0 %v10638
    %12088 = vmatprep.subr.bf16.mxu0 %v10621
    %12089 = vmatpush2.bf16.msra.mxu0 %v10620
    %12090 = vmatprep.subr.bf16.mxu0 %v10603
    %12091 = vmatpush2.bf16.msra.mxu0 %v10602
    %12092 = vmatprep.mubr.bf16.mxu0 %v6613
    %12093 = vmatmul.mubr.bf16.gmra.mxu0 %v6612
    %v12094 = vpop.f32.mrf.mxu0
    %v12095 = vadd.f32 %v12054, %v12094
    %v12096 = vpop.f32.mrf.mxu0
    %v12097 = vadd.f32 %v12056, %v12096
    %v12098 = vpop.f32.mrf.mxu0
    %v12099 = vpop.f32.mrf.mxu0
    %12100 = vdwg.mxu0
    %12101 = vmatprep.subr.bf16.mxu0 %v10873
    %12102 = vmatpush1.bf16.msra.mxu0 %v10872
    %12103 = vmatprep.subr.bf16.mxu0 %v10855
    %12104 = vmatpush1.bf16.msra.mxu0 %v10854
    %12105 = vmatprep.subr.bf16.mxu0 %v10837
    %12106 = vmatpush1.bf16.msra.mxu0 %v10836
    %12107 = vmatprep.subr.bf16.mxu0 %v10819
    %12108 = vmatpush1.bf16.msra.mxu0 %v10818
    %12109 = vmatprep.subr.bf16.mxu0 %v10801
    %12110 = vmatpush1.bf16.msra.mxu0 %v10800
    %12111 = vmatprep.subr.bf16.mxu0 %v10783
    %12112 = vmatpush1.bf16.msra.mxu0 %v10782
    %12113 = vmatprep.subr.bf16.mxu0 %v10765
    %12114 = vmatpush1.bf16.msra.mxu0 %v10764
    %12115 = vmatprep.subr.bf16.mxu0 %v10747
    %12116 = vmatpush1.bf16.msra.mxu0 %v10746
    %12117 = vmatprep.subr.bf16.mxu0 %v11017
    %12118 = vmatpush2.bf16.msra.mxu0 %v11016
    %12119 = vmatprep.subr.bf16.mxu0 %v10999
    %12120 = vmatpush2.bf16.msra.mxu0 %v10998
    %12121 = vmatprep.subr.bf16.mxu0 %v10981
    %12122 = vmatpush2.bf16.msra.mxu0 %v10980
    %12123 = vmatprep.subr.bf16.mxu0 %v10963
    %12124 = vmatpush2.bf16.msra.mxu0 %v10962
    %12125 = vmatprep.subr.bf16.mxu0 %v10945
    %12126 = vmatpush2.bf16.msra.mxu0 %v10944
    %12127 = vmatprep.subr.bf16.mxu0 %v10927
    %12128 = vmatpush2.bf16.msra.mxu0 %v10926
    %12129 = vmatprep.subr.bf16.mxu0 %v10909
    %12130 = vmatpush2.bf16.msra.mxu0 %v10908
    %12131 = vmatprep.subr.bf16.mxu0 %v10891
    %12132 = vmatpush2.bf16.msra.mxu0 %v10890
    %12133 = vmatprep.mubr.bf16.mxu0 %v6615
    %12134 = vmatmul.mubr.bf16.gmra.mxu0 %v6614
    %v12135 = vpop.f32.mrf.mxu0
    %v12136 = vadd.f32 %v12095, %v12135
    %v12137 = vpop.f32.mrf.mxu0
    %v12138 = vadd.f32 %v12097, %v12137
    %v12139 = vpop.f32.mrf.mxu0
    %v12140 = vpop.f32.mrf.mxu0
    %12141 = vdwg.mxu0
    %12142 = vmatprep.subr.bf16.mxu0 %v10299
    %12143 = vmatpush1.bf16.msra.mxu0 %v10298
    %12144 = vmatprep.subr.bf16.mxu0 %v10281
    %12145 = vmatpush1.bf16.msra.mxu0 %v10280
    %12146 = vmatprep.subr.bf16.mxu0 %v10263
    %12147 = vmatpush1.bf16.msra.mxu0 %v10262
    %12148 = vmatprep.subr.bf16.mxu0 %v10245
    %12149 = vmatpush1.bf16.msra.mxu0 %v10244
    %12150 = vmatprep.subr.bf16.mxu0 %v10227
    %12151 = vmatpush1.bf16.msra.mxu0 %v10226
    %12152 = vmatprep.subr.bf16.mxu0 %v10209
    %12153 = vmatpush1.bf16.msra.mxu0 %v10208
    %12154 = vmatprep.subr.bf16.mxu0 %v10191
    %12155 = vmatpush1.bf16.msra.mxu0 %v10190
    %12156 = vmatprep.subr.bf16.mxu0 %v10173
    %12157 = vmatpush1.bf16.msra.mxu0 %v10172
    %12158 = vmatprep.subr.bf16.mxu0 %v10443
    %12159 = vmatpush2.bf16.msra.mxu0 %v10442
    %12160 = vmatprep.subr.bf16.mxu0 %v10425
    %12161 = vmatpush2.bf16.msra.mxu0 %v10424
    %12162 = vmatprep.subr.bf16.mxu0 %v10407
    %12163 = vmatpush2.bf16.msra.mxu0 %v10406
    %12164 = vmatprep.subr.bf16.mxu0 %v10389
    %12165 = vmatpush2.bf16.msra.mxu0 %v10388
    %12166 = vmatprep.subr.bf16.mxu0 %v10371
    %12167 = vmatpush2.bf16.msra.mxu0 %v10370
    %12168 = vmatprep.subr.bf16.mxu0 %v10353
    %12169 = vmatpush2.bf16.msra.mxu0 %v10352
    %12170 = vmatprep.subr.bf16.mxu0 %v10335
    %12171 = vmatpush2.bf16.msra.mxu0 %v10334
    %12172 = vmatprep.subr.bf16.mxu0 %v10317
    %12173 = vmatpush2.bf16.msra.mxu0 %v10316
    %12174 = vmatprep.mubr.bf16.mxu0 %v6611
    %12175 = vmatmul.mubr.bf16.gmra.mxu0 %v6610
    %v12176 = vpop.f32.mrf.mxu0
    %v12177 = vadd.f32 %v7505, %v12176
    %v12178 = vpop.f32.mrf.mxu0
    %v12179 = vadd.f32 %v7509, %v12178
    %v12180 = vpop.f32.mrf.mxu0
    %v12181 = vpop.f32.mrf.mxu0
    %12182 = vdwg.mxu0
    %12183 = vmatprep.subr.bf16.mxu0 %v10587
    %12184 = vmatpush1.bf16.msra.mxu0 %v10586
    %12185 = vmatprep.subr.bf16.mxu0 %v10569
    %12186 = vmatpush1.bf16.msra.mxu0 %v10568
    %12187 = vmatprep.subr.bf16.mxu0 %v10551
    %12188 = vmatpush1.bf16.msra.mxu0 %v10550
    %12189 = vmatprep.subr.bf16.mxu0 %v10533
    %12190 = vmatpush1.bf16.msra.mxu0 %v10532
    %12191 = vmatprep.subr.bf16.mxu0 %v10515
    %12192 = vmatpush1.bf16.msra.mxu0 %v10514
    %12193 = vmatprep.subr.bf16.mxu0 %v10497
    %12194 = vmatpush1.bf16.msra.mxu0 %v10496
    %12195 = vmatprep.subr.bf16.mxu0 %v10479
    %12196 = vmatpush1.bf16.msra.mxu0 %v10478
    %12197 = vmatprep.subr.bf16.mxu0 %v10461
    %12198 = vmatpush1.bf16.msra.mxu0 %v10460
    %12199 = vmatprep.subr.bf16.mxu0 %v10731
    %12200 = vmatpush2.bf16.msra.mxu0 %v10730
    %12201 = vmatprep.subr.bf16.mxu0 %v10713
    %12202 = vmatpush2.bf16.msra.mxu0 %v10712
    %12203 = vmatprep.subr.bf16.mxu0 %v10695
    %12204 = vmatpush2.bf16.msra.mxu0 %v10694
    %12205 = vmatprep.subr.bf16.mxu0 %v10677
    %12206 = vmatpush2.bf16.msra.mxu0 %v10676
    %12207 = vmatprep.subr.bf16.mxu0 %v10659
    %12208 = vmatpush2.bf16.msra.mxu0 %v10658
    %12209 = vmatprep.subr.bf16.mxu0 %v10641
    %12210 = vmatpush2.bf16.msra.mxu0 %v10640
    %12211 = vmatprep.subr.bf16.mxu0 %v10623
    %12212 = vmatpush2.bf16.msra.mxu0 %v10622
    %12213 = vmatprep.subr.bf16.mxu0 %v10605
    %12214 = vmatpush2.bf16.msra.mxu0 %v10604
    %12215 = vmatprep.mubr.bf16.mxu0 %v6613
    %12216 = vmatmul.mubr.bf16.gmra.mxu0 %v6612
    %v12217 = vpop.f32.mrf.mxu0
    %v12218 = vadd.f32 %v12177, %v12217
    %v12219 = vpop.f32.mrf.mxu0
    %v12220 = vadd.f32 %v12179, %v12219
    %v12221 = vpop.f32.mrf.mxu0
    %v12222 = vpop.f32.mrf.mxu0
    %12223 = vdwg.mxu0
    %12224 = vmatprep.subr.bf16.mxu0 %v10875
    %12225 = vmatpush1.bf16.msra.mxu0 %v10874
    %12226 = vmatprep.subr.bf16.mxu0 %v10857
    %12227 = vmatpush1.bf16.msra.mxu0 %v10856
    %12228 = vmatprep.subr.bf16.mxu0 %v10839
    %12229 = vmatpush1.bf16.msra.mxu0 %v10838
    %12230 = vmatprep.subr.bf16.mxu0 %v10821
    %12231 = vmatpush1.bf16.msra.mxu0 %v10820
    %12232 = vmatprep.subr.bf16.mxu0 %v10803
    %12233 = vmatpush1.bf16.msra.mxu0 %v10802
    %12234 = vmatprep.subr.bf16.mxu0 %v10785
    %12235 = vmatpush1.bf16.msra.mxu0 %v10784
    %12236 = vmatprep.subr.bf16.mxu0 %v10767
    %12237 = vmatpush1.bf16.msra.mxu0 %v10766
    %12238 = vmatprep.subr.bf16.mxu0 %v10749
    %12239 = vmatpush1.bf16.msra.mxu0 %v10748
    %12240 = vmatprep.subr.bf16.mxu0 %v11019
    %12241 = vmatpush2.bf16.msra.mxu0 %v11018
    %12242 = vmatprep.subr.bf16.mxu0 %v11001
    %12243 = vmatpush2.bf16.msra.mxu0 %v11000
    %12244 = vmatprep.subr.bf16.mxu0 %v10983
    %12245 = vmatpush2.bf16.msra.mxu0 %v10982
    %12246 = vmatprep.subr.bf16.mxu0 %v10965
    %12247 = vmatpush2.bf16.msra.mxu0 %v10964
    %12248 = vmatprep.subr.bf16.mxu0 %v10947
    %12249 = vmatpush2.bf16.msra.mxu0 %v10946
    %12250 = vmatprep.subr.bf16.mxu0 %v10929
    %12251 = vmatpush2.bf16.msra.mxu0 %v10928
    %12252 = vmatprep.subr.bf16.mxu0 %v10911
    %12253 = vmatpush2.bf16.msra.mxu0 %v10910
    %12254 = vmatprep.subr.bf16.mxu0 %v10893
    %12255 = vmatpush2.bf16.msra.mxu0 %v10892
    %12256 = vmatprep.mubr.bf16.mxu0 %v6615
    %12257 = vmatmul.mubr.bf16.gmra.mxu0 %v6614
    %v12258 = vpop.f32.mrf.mxu0
    %v12259 = vadd.f32 %v12218, %v12258
    %v12260 = vpop.f32.mrf.mxu0
    %v12261 = vadd.f32 %v12220, %v12260
    %v12262 = vpop.f32.mrf.mxu0
    %v12263 = vpop.f32.mrf.mxu0
    %12264 = vdwg.mxu0
    %12265 = vmatprep.subr.bf16.mxu0 %v10301
    %12266 = vmatpush1.bf16.msra.mxu0 %v10300
    %12267 = vmatprep.subr.bf16.mxu0 %v10283
    %12268 = vmatpush1.bf16.msra.mxu0 %v10282
    %12269 = vmatprep.subr.bf16.mxu0 %v10265
    %12270 = vmatpush1.bf16.msra.mxu0 %v10264
    %12271 = vmatprep.subr.bf16.mxu0 %v10247
    %12272 = vmatpush1.bf16.msra.mxu0 %v10246
    %12273 = vmatprep.subr.bf16.mxu0 %v10229
    %12274 = vmatpush1.bf16.msra.mxu0 %v10228
    %12275 = vmatprep.subr.bf16.mxu0 %v10211
    %12276 = vmatpush1.bf16.msra.mxu0 %v10210
    %12277 = vmatprep.subr.bf16.mxu0 %v10193
    %12278 = vmatpush1.bf16.msra.mxu0 %v10192
    %12279 = vmatprep.subr.bf16.mxu0 %v10175
    %12280 = vmatpush1.bf16.msra.mxu0 %v10174
    %12281 = vmatprep.subr.bf16.mxu0 %v10445
    %12282 = vmatpush2.bf16.msra.mxu0 %v10444
    %12283 = vmatprep.subr.bf16.mxu0 %v10427
    %12284 = vmatpush2.bf16.msra.mxu0 %v10426
    %12285 = vmatprep.subr.bf16.mxu0 %v10409
    %12286 = vmatpush2.bf16.msra.mxu0 %v10408
    %12287 = vmatprep.subr.bf16.mxu0 %v10391
    %12288 = vmatpush2.bf16.msra.mxu0 %v10390
    %12289 = vmatprep.subr.bf16.mxu0 %v10373
    %12290 = vmatpush2.bf16.msra.mxu0 %v10372
    %12291 = vmatprep.subr.bf16.mxu0 %v10355
    %12292 = vmatpush2.bf16.msra.mxu0 %v10354
    %12293 = vmatprep.subr.bf16.mxu0 %v10337
    %12294 = vmatpush2.bf16.msra.mxu0 %v10336
    %12295 = vmatprep.subr.bf16.mxu0 %v10319
    %12296 = vmatpush2.bf16.msra.mxu0 %v10318
    %12297 = vmatprep.mubr.bf16.mxu0 %v6611
    %12298 = vmatmul.mubr.bf16.gmra.mxu0 %v6610
    %v12299 = vpop.f32.mrf.mxu0
    %v12300 = vadd.f32 %v7513, %v12299
    %v12301 = vpop.f32.mrf.mxu0
    %v12302 = vadd.f32 %v7517, %v12301
    %v12303 = vpop.f32.mrf.mxu0
    %v12304 = vpop.f32.mrf.mxu0
    %12305 = vdwg.mxu0
    %12306 = vmatprep.subr.bf16.mxu0 %v10589
    %12307 = vmatpush1.bf16.msra.mxu0 %v10588
    %12308 = vmatprep.subr.bf16.mxu0 %v10571
    %12309 = vmatpush1.bf16.msra.mxu0 %v10570
    %12310 = vmatprep.subr.bf16.mxu0 %v10553
    %12311 = vmatpush1.bf16.msra.mxu0 %v10552
    %12312 = vmatprep.subr.bf16.mxu0 %v10535
    %12313 = vmatpush1.bf16.msra.mxu0 %v10534
    %12314 = vmatprep.subr.bf16.mxu0 %v10517
    %12315 = vmatpush1.bf16.msra.mxu0 %v10516
    %12316 = vmatprep.subr.bf16.mxu0 %v10499
    %12317 = vmatpush1.bf16.msra.mxu0 %v10498
    %12318 = vmatprep.subr.bf16.mxu0 %v10481
    %12319 = vmatpush1.bf16.msra.mxu0 %v10480
    %12320 = vmatprep.subr.bf16.mxu0 %v10463
    %12321 = vmatpush1.bf16.msra.mxu0 %v10462
    %12322 = vmatprep.subr.bf16.mxu0 %v10733
    %12323 = vmatpush2.bf16.msra.mxu0 %v10732
    %12324 = vmatprep.subr.bf16.mxu0 %v10715
    %12325 = vmatpush2.bf16.msra.mxu0 %v10714
    %12326 = vmatprep.subr.bf16.mxu0 %v10697
    %12327 = vmatpush2.bf16.msra.mxu0 %v10696
    %12328 = vmatprep.subr.bf16.mxu0 %v10679
    %12329 = vmatpush2.bf16.msra.mxu0 %v10678
    %12330 = vmatprep.subr.bf16.mxu0 %v10661
    %12331 = vmatpush2.bf16.msra.mxu0 %v10660
    %12332 = vmatprep.subr.bf16.mxu0 %v10643
    %12333 = vmatpush2.bf16.msra.mxu0 %v10642
    %12334 = vmatprep.subr.bf16.mxu0 %v10625
    %12335 = vmatpush2.bf16.msra.mxu0 %v10624
    %12336 = vmatprep.subr.bf16.mxu0 %v10607
    %12337 = vmatpush2.bf16.msra.mxu0 %v10606
    %12338 = vmatprep.mubr.bf16.mxu0 %v6613
    %12339 = vmatmul.mubr.bf16.gmra.mxu0 %v6612
    %v12340 = vpop.f32.mrf.mxu0
    %v12341 = vadd.f32 %v12300, %v12340
    %v12342 = vpop.f32.mrf.mxu0
    %v12343 = vadd.f32 %v12302, %v12342
    %v12344 = vpop.f32.mrf.mxu0
    %v12345 = vpop.f32.mrf.mxu0
    %12346 = vdwg.mxu0
    %12347 = vmatprep.subr.bf16.mxu0 %v10877
    %12348 = vmatpush1.bf16.msra.mxu0 %v10876
    %12349 = vmatprep.subr.bf16.mxu0 %v10859
    %12350 = vmatpush1.bf16.msra.mxu0 %v10858
    %12351 = vmatprep.subr.bf16.mxu0 %v10841
    %12352 = vmatpush1.bf16.msra.mxu0 %v10840
    %12353 = vmatprep.subr.bf16.mxu0 %v10823
    %12354 = vmatpush1.bf16.msra.mxu0 %v10822
    %12355 = vmatprep.subr.bf16.mxu0 %v10805
    %12356 = vmatpush1.bf16.msra.mxu0 %v10804
    %12357 = vmatprep.subr.bf16.mxu0 %v10787
    %12358 = vmatpush1.bf16.msra.mxu0 %v10786
    %12359 = vmatprep.subr.bf16.mxu0 %v10769
    %12360 = vmatpush1.bf16.msra.mxu0 %v10768
    %12361 = vmatprep.subr.bf16.mxu0 %v10751
    %12362 = vmatpush1.bf16.msra.mxu0 %v10750
    %12363 = vmatprep.subr.bf16.mxu0 %v11021
    %12364 = vmatpush2.bf16.msra.mxu0 %v11020
    %12365 = vmatprep.subr.bf16.mxu0 %v11003
    %12366 = vmatpush2.bf16.msra.mxu0 %v11002
    %12367 = vmatprep.subr.bf16.mxu0 %v10985
    %12368 = vmatpush2.bf16.msra.mxu0 %v10984
    %12369 = vmatprep.subr.bf16.mxu0 %v10967
    %12370 = vmatpush2.bf16.msra.mxu0 %v10966
    %12371 = vmatprep.subr.bf16.mxu0 %v10949
    %12372 = vmatpush2.bf16.msra.mxu0 %v10948
    %12373 = vmatprep.subr.bf16.mxu0 %v10931
    %12374 = vmatpush2.bf16.msra.mxu0 %v10930
    %12375 = vmatprep.subr.bf16.mxu0 %v10913
    %12376 = vmatpush2.bf16.msra.mxu0 %v10912
    %12377 = vmatprep.subr.bf16.mxu0 %v10895
    %12378 = vmatpush2.bf16.msra.mxu0 %v10894
    %12379 = vmatprep.mubr.bf16.mxu0 %v6615
    %12380 = vmatmul.mubr.bf16.gmra.mxu0 %v6614
    %v12381 = vpop.f32.mrf.mxu0
    %v12382 = vadd.f32 %v12341, %v12381
    %v12383 = vpop.f32.mrf.mxu0
    %v12384 = vadd.f32 %v12343, %v12383
    %v12385 = vpop.f32.mrf.mxu0
    %v12386 = vpop.f32.mrf.mxu0
    %12387 = vdwg.mxu0
    %12388 = vmatprep.subr.bf16.mxu0 %v10303
    %12389 = vmatpush1.bf16.msra.mxu0 %v10302
    %12390 = vmatprep.subr.bf16.mxu0 %v10285
    %12391 = vmatpush1.bf16.msra.mxu0 %v10284
    %12392 = vmatprep.subr.bf16.mxu0 %v10267
    %12393 = vmatpush1.bf16.msra.mxu0 %v10266
    %12394 = vmatprep.subr.bf16.mxu0 %v10249
    %12395 = vmatpush1.bf16.msra.mxu0 %v10248
    %12396 = vmatprep.subr.bf16.mxu0 %v10231
    %12397 = vmatpush1.bf16.msra.mxu0 %v10230
    %12398 = vmatprep.subr.bf16.mxu0 %v10213
    %12399 = vmatpush1.bf16.msra.mxu0 %v10212
    %12400 = vmatprep.subr.bf16.mxu0 %v10195
    %12401 = vmatpush1.bf16.msra.mxu0 %v10194
    %12402 = vmatprep.subr.bf16.mxu0 %v10177
    %12403 = vmatpush1.bf16.msra.mxu0 %v10176
    %12404 = vmatprep.subr.bf16.mxu0 %v10447
    %12405 = vmatpush2.bf16.msra.mxu0 %v10446
    %12406 = vmatprep.subr.bf16.mxu0 %v10429
    %12407 = vmatpush2.bf16.msra.mxu0 %v10428
    %12408 = vmatprep.subr.bf16.mxu0 %v10411
    %12409 = vmatpush2.bf16.msra.mxu0 %v10410
    %12410 = vmatprep.subr.bf16.mxu0 %v10393
    %12411 = vmatpush2.bf16.msra.mxu0 %v10392
    %12412 = vmatprep.subr.bf16.mxu0 %v10375
    %12413 = vmatpush2.bf16.msra.mxu0 %v10374
    %12414 = vmatprep.subr.bf16.mxu0 %v10357
    %12415 = vmatpush2.bf16.msra.mxu0 %v10356
    %12416 = vmatprep.subr.bf16.mxu0 %v10339
    %12417 = vmatpush2.bf16.msra.mxu0 %v10338
    %12418 = vmatprep.subr.bf16.mxu0 %v10321
    %12419 = vmatpush2.bf16.msra.mxu0 %v10320
    %12420 = vmatprep.mubr.bf16.mxu0 %v6611
    %12421 = vmatmul.mubr.bf16.gmra.mxu0 %v6610
    %v12422 = vpop.f32.mrf.mxu0
    %v12423 = vadd.f32 %v7521, %v12422
    %v12424 = vpop.f32.mrf.mxu0
    %v12425 = vadd.f32 %v7525, %v12424
    %v12426 = vpop.f32.mrf.mxu0
    %v12427 = vpop.f32.mrf.mxu0
    %12428 = vdwg.mxu0
    %12429 = vmatprep.subr.bf16.mxu0 %v10591
    %12430 = vmatpush1.bf16.msra.mxu0 %v10590
    %12431 = vmatprep.subr.bf16.mxu0 %v10573
    %12432 = vmatpush1.bf16.msra.mxu0 %v10572
    %12433 = vmatprep.subr.bf16.mxu0 %v10555
    %12434 = vmatpush1.bf16.msra.mxu0 %v10554
    %12435 = vmatprep.subr.bf16.mxu0 %v10537
    %12436 = vmatpush1.bf16.msra.mxu0 %v10536
    %12437 = vmatprep.subr.bf16.mxu0 %v10519
    %12438 = vmatpush1.bf16.msra.mxu0 %v10518
    %12439 = vmatprep.subr.bf16.mxu0 %v10501
    %12440 = vmatpush1.bf16.msra.mxu0 %v10500
    %12441 = vmatprep.subr.bf16.mxu0 %v10483
    %12442 = vmatpush1.bf16.msra.mxu0 %v10482
    %12443 = vmatprep.subr.bf16.mxu0 %v10465
    %12444 = vmatpush1.bf16.msra.mxu0 %v10464
    %12445 = vmatprep.subr.bf16.mxu0 %v10735
    %12446 = vmatpush2.bf16.msra.mxu0 %v10734
    %12447 = vmatprep.subr.bf16.mxu0 %v10717
    %12448 = vmatpush2.bf16.msra.mxu0 %v10716
    %12449 = vmatprep.subr.bf16.mxu0 %v10699
    %12450 = vmatpush2.bf16.msra.mxu0 %v10698
    %12451 = vmatprep.subr.bf16.mxu0 %v10681
    %12452 = vmatpush2.bf16.msra.mxu0 %v10680
    %12453 = vmatprep.subr.bf16.mxu0 %v10663
    %12454 = vmatpush2.bf16.msra.mxu0 %v10662
    %12455 = vmatprep.subr.bf16.mxu0 %v10645
    %12456 = vmatpush2.bf16.msra.mxu0 %v10644
    %12457 = vmatprep.subr.bf16.mxu0 %v10627
    %12458 = vmatpush2.bf16.msra.mxu0 %v10626
    %12459 = vmatprep.subr.bf16.mxu0 %v10609
    %12460 = vmatpush2.bf16.msra.mxu0 %v10608
    %12461 = vmatprep.mubr.bf16.mxu0 %v6613
    %12462 = vmatmul.mubr.bf16.gmra.mxu0 %v6612
    %v12463 = vpop.f32.mrf.mxu0
    %v12464 = vadd.f32 %v12423, %v12463
    %v12465 = vpop.f32.mrf.mxu0
    %v12466 = vadd.f32 %v12425, %v12465
    %v12467 = vpop.f32.mrf.mxu0
    %v12468 = vpop.f32.mrf.mxu0
    %12469 = vdwg.mxu0
    %12470 = vmatprep.subr.bf16.mxu0 %v10879
    %12471 = vmatpush1.bf16.msra.mxu0 %v10878
    %12472 = vmatprep.subr.bf16.mxu0 %v10861
    %12473 = vmatpush1.bf16.msra.mxu0 %v10860
    %12474 = vmatprep.subr.bf16.mxu0 %v10843
    %12475 = vmatpush1.bf16.msra.mxu0 %v10842
    %12476 = vmatprep.subr.bf16.mxu0 %v10825
    %12477 = vmatpush1.bf16.msra.mxu0 %v10824
    %12478 = vmatprep.subr.bf16.mxu0 %v10807
    %12479 = vmatpush1.bf16.msra.mxu0 %v10806
    %12480 = vmatprep.subr.bf16.mxu0 %v10789
    %12481 = vmatpush1.bf16.msra.mxu0 %v10788
    %12482 = vmatprep.subr.bf16.mxu0 %v10771
    %12483 = vmatpush1.bf16.msra.mxu0 %v10770
    %12484 = vmatprep.subr.bf16.mxu0 %v10753
    %12485 = vmatpush1.bf16.msra.mxu0 %v10752
    %12486 = vmatprep.subr.bf16.mxu0 %v11023
    %12487 = vmatpush2.bf16.msra.mxu0 %v11022
    %12488 = vmatprep.subr.bf16.mxu0 %v11005
    %12489 = vmatpush2.bf16.msra.mxu0 %v11004
    %12490 = vmatprep.subr.bf16.mxu0 %v10987
    %12491 = vmatpush2.bf16.msra.mxu0 %v10986
    %12492 = vmatprep.subr.bf16.mxu0 %v10969
    %12493 = vmatpush2.bf16.msra.mxu0 %v10968
    %12494 = vmatprep.subr.bf16.mxu0 %v10951
    %12495 = vmatpush2.bf16.msra.mxu0 %v10950
    %12496 = vmatprep.subr.bf16.mxu0 %v10933
    %12497 = vmatpush2.bf16.msra.mxu0 %v10932
    %12498 = vmatprep.subr.bf16.mxu0 %v10915
    %12499 = vmatpush2.bf16.msra.mxu0 %v10914
    %12500 = vmatprep.subr.bf16.mxu0 %v10897
    %12501 = vmatpush2.bf16.msra.mxu0 %v10896
    %12502 = vmatprep.mubr.bf16.mxu0 %v6615
    %12503 = vmatmul.mubr.bf16.gmra.mxu0 %v6614
    %v12504 = vpop.f32.mrf.mxu0
    %v12505 = vadd.f32 %v12464, %v12504
    %v12506 = vpop.f32.mrf.mxu0
    %v12507 = vadd.f32 %v12466, %v12506
    %v12508 = vpop.f32.mrf.mxu0
    %v12509 = vpop.f32.mrf.mxu0
    %12510 = vdwg.mxu0
    %12511 = vmatprep.subr.bf16.mxu0 %v10305
    %12512 = vmatpush1.bf16.msra.mxu0 %v10304
    %12513 = vmatprep.subr.bf16.mxu0 %v10287
    %12514 = vmatpush1.bf16.msra.mxu0 %v10286
    %12515 = vmatprep.subr.bf16.mxu0 %v10269
    %12516 = vmatpush1.bf16.msra.mxu0 %v10268
    %12517 = vmatprep.subr.bf16.mxu0 %v10251
    %12518 = vmatpush1.bf16.msra.mxu0 %v10250
    %12519 = vmatprep.subr.bf16.mxu0 %v10233
    %12520 = vmatpush1.bf16.msra.mxu0 %v10232
    %12521 = vmatprep.subr.bf16.mxu0 %v10215
    %12522 = vmatpush1.bf16.msra.mxu0 %v10214
    %12523 = vmatprep.subr.bf16.mxu0 %v10197
    %12524 = vmatpush1.bf16.msra.mxu0 %v10196
    %12525 = vmatprep.subr.bf16.mxu0 %v10179
    %12526 = vmatpush1.bf16.msra.mxu0 %v10178
    %12527 = vmatprep.subr.bf16.mxu0 %v10449
    %12528 = vmatpush2.bf16.msra.mxu0 %v10448
    %12529 = vmatprep.subr.bf16.mxu0 %v10431
    %12530 = vmatpush2.bf16.msra.mxu0 %v10430
    %12531 = vmatprep.subr.bf16.mxu0 %v10413
    %12532 = vmatpush2.bf16.msra.mxu0 %v10412
    %12533 = vmatprep.subr.bf16.mxu0 %v10395
    %12534 = vmatpush2.bf16.msra.mxu0 %v10394
    %12535 = vmatprep.subr.bf16.mxu0 %v10377
    %12536 = vmatpush2.bf16.msra.mxu0 %v10376
    %12537 = vmatprep.subr.bf16.mxu0 %v10359
    %12538 = vmatpush2.bf16.msra.mxu0 %v10358
    %12539 = vmatprep.subr.bf16.mxu0 %v10341
    %12540 = vmatpush2.bf16.msra.mxu0 %v10340
    %12541 = vmatprep.subr.bf16.mxu0 %v10323
    %12542 = vmatpush2.bf16.msra.mxu0 %v10322
    %12543 = vmatprep.mubr.bf16.mxu0 %v6611
    %12544 = vmatmul.mubr.bf16.gmra.mxu0 %v6610
    %v12545 = vpop.f32.mrf.mxu0
    %v12546 = vadd.f32 %v7529, %v12545
    %v12547 = vpop.f32.mrf.mxu0
    %v12548 = vadd.f32 %v7533, %v12547
    %v12549 = vpop.f32.mrf.mxu0
    %v12550 = vpop.f32.mrf.mxu0
    %12551 = vdwg.mxu0
    %12552 = vmatprep.subr.bf16.mxu0 %v10593
    %12553 = vmatpush1.bf16.msra.mxu0 %v10592
    %12554 = vmatprep.subr.bf16.mxu0 %v10575
    %12555 = vmatpush1.bf16.msra.mxu0 %v10574
    %12556 = vmatprep.subr.bf16.mxu0 %v10557
    %12557 = vmatpush1.bf16.msra.mxu0 %v10556
    %12558 = vmatprep.subr.bf16.mxu0 %v10539
    %12559 = vmatpush1.bf16.msra.mxu0 %v10538
    %12560 = vmatprep.subr.bf16.mxu0 %v10521
    %12561 = vmatpush1.bf16.msra.mxu0 %v10520
    %12562 = vmatprep.subr.bf16.mxu0 %v10503
    %12563 = vmatpush1.bf16.msra.mxu0 %v10502
    %12564 = vmatprep.subr.bf16.mxu0 %v10485
    %12565 = vmatpush1.bf16.msra.mxu0 %v10484
    %12566 = vmatprep.subr.bf16.mxu0 %v10467
    %12567 = vmatpush1.bf16.msra.mxu0 %v10466
    %12568 = vmatprep.subr.bf16.mxu0 %v10737
    %12569 = vmatpush2.bf16.msra.mxu0 %v10736
    %12570 = vmatprep.subr.bf16.mxu0 %v10719
    %12571 = vmatpush2.bf16.msra.mxu0 %v10718
    %12572 = vmatprep.subr.bf16.mxu0 %v10701
    %12573 = vmatpush2.bf16.msra.mxu0 %v10700
    %12574 = vmatprep.subr.bf16.mxu0 %v10683
    %12575 = vmatpush2.bf16.msra.mxu0 %v10682
    %12576 = vmatprep.subr.bf16.mxu0 %v10665
    %12577 = vmatpush2.bf16.msra.mxu0 %v10664
    %12578 = vmatprep.subr.bf16.mxu0 %v10647
    %12579 = vmatpush2.bf16.msra.mxu0 %v10646
    %12580 = vmatprep.subr.bf16.mxu0 %v10629
    %12581 = vmatpush2.bf16.msra.mxu0 %v10628
    %12582 = vmatprep.subr.bf16.mxu0 %v10611
    %12583 = vmatpush2.bf16.msra.mxu0 %v10610
    %12584 = vmatprep.mubr.bf16.mxu0 %v6613
    %12585 = vmatmul.mubr.bf16.gmra.mxu0 %v6612
    %v12586 = vpop.f32.mrf.mxu0
    %v12587 = vadd.f32 %v12546, %v12586
    %v12588 = vpop.f32.mrf.mxu0
    %v12589 = vadd.f32 %v12548, %v12588
    %v12590 = vpop.f32.mrf.mxu0
    %v12591 = vpop.f32.mrf.mxu0
    %12592 = vdwg.mxu0
    %12593 = vmatprep.subr.bf16.mxu0 %v10881
    %12594 = vmatpush1.bf16.msra.mxu0 %v10880
    %12595 = vmatprep.subr.bf16.mxu0 %v10863
    %12596 = vmatpush1.bf16.msra.mxu0 %v10862
    %12597 = vmatprep.subr.bf16.mxu0 %v10845
    %12598 = vmatpush1.bf16.msra.mxu0 %v10844
    %12599 = vmatprep.subr.bf16.mxu0 %v10827
    %12600 = vmatpush1.bf16.msra.mxu0 %v10826
    %12601 = vmatprep.subr.bf16.mxu0 %v10809
    %12602 = vmatpush1.bf16.msra.mxu0 %v10808
    %12603 = vmatprep.subr.bf16.mxu0 %v10791
    %12604 = vmatpush1.bf16.msra.mxu0 %v10790
    %12605 = vmatprep.subr.bf16.mxu0 %v10773
    %12606 = vmatpush1.bf16.msra.mxu0 %v10772
    %12607 = vmatprep.subr.bf16.mxu0 %v10755
    %12608 = vmatpush1.bf16.msra.mxu0 %v10754
    %12609 = vmatprep.subr.bf16.mxu0 %v11025
    %12610 = vmatpush2.bf16.msra.mxu0 %v11024
    %12611 = vmatprep.subr.bf16.mxu0 %v11007
    %12612 = vmatpush2.bf16.msra.mxu0 %v11006
    %12613 = vmatprep.subr.bf16.mxu0 %v10989
    %12614 = vmatpush2.bf16.msra.mxu0 %v10988
    %12615 = vmatprep.subr.bf16.mxu0 %v10971
    %12616 = vmatpush2.bf16.msra.mxu0 %v10970
    %12617 = vmatprep.subr.bf16.mxu0 %v10953
    %12618 = vmatpush2.bf16.msra.mxu0 %v10952
    %12619 = vmatprep.subr.bf16.mxu0 %v10935
    %12620 = vmatpush2.bf16.msra.mxu0 %v10934
    %12621 = vmatprep.subr.bf16.mxu0 %v10917
    %12622 = vmatpush2.bf16.msra.mxu0 %v10916
    %12623 = vmatprep.subr.bf16.mxu0 %v10899
    %12624 = vmatpush2.bf16.msra.mxu0 %v10898
    %12625 = vmatprep.mubr.bf16.mxu0 %v6615
    %12626 = vmatmul.mubr.bf16.gmra.mxu0 %v6614
    %v12627 = vpop.f32.mrf.mxu0
    %v12628 = vadd.f32 %v12587, %v12627
    %v12629 = vpop.f32.mrf.mxu0
    %v12630 = vadd.f32 %v12589, %v12629
    %v12631 = vpop.f32.mrf.mxu0
    %v12632 = vpop.f32.mrf.mxu0
    %12633 = vdwg.mxu0
    %12634 = vmatprep.subr.bf16.mxu0 %v10307
    %12635 = vmatpush1.bf16.msra.mxu0 %v10306
    %12636 = vmatprep.subr.bf16.mxu0 %v10289
    %12637 = vmatpush1.bf16.msra.mxu0 %v10288
    %12638 = vmatprep.subr.bf16.mxu0 %v10271
    %12639 = vmatpush1.bf16.msra.mxu0 %v10270
    %12640 = vmatprep.subr.bf16.mxu0 %v10253
    %12641 = vmatpush1.bf16.msra.mxu0 %v10252
    %12642 = vmatprep.subr.bf16.mxu0 %v10235
    %12643 = vmatpush1.bf16.msra.mxu0 %v10234
    %12644 = vmatprep.subr.bf16.mxu0 %v10217
    %12645 = vmatpush1.bf16.msra.mxu0 %v10216
    %12646 = vmatprep.subr.bf16.mxu0 %v10199
    %12647 = vmatpush1.bf16.msra.mxu0 %v10198
    %12648 = vmatprep.subr.bf16.mxu0 %v10181
    %12649 = vmatpush1.bf16.msra.mxu0 %v10180
    %12650 = vmatprep.subr.bf16.mxu0 %v10451
    %12651 = vmatpush2.bf16.msra.mxu0 %v10450
    %12652 = vmatprep.subr.bf16.mxu0 %v10433
    %12653 = vmatpush2.bf16.msra.mxu0 %v10432
    %12654 = vmatprep.subr.bf16.mxu0 %v10415
    %12655 = vmatpush2.bf16.msra.mxu0 %v10414
    %12656 = vmatprep.subr.bf16.mxu0 %v10397
    %12657 = vmatpush2.bf16.msra.mxu0 %v10396
    %12658 = vmatprep.subr.bf16.mxu0 %v10379
    %12659 = vmatpush2.bf16.msra.mxu0 %v10378
    %12660 = vmatprep.subr.bf16.mxu0 %v10361
    %12661 = vmatpush2.bf16.msra.mxu0 %v10360
    %12662 = vmatprep.subr.bf16.mxu0 %v10343
    %12663 = vmatpush2.bf16.msra.mxu0 %v10342
    %12664 = vmatprep.subr.bf16.mxu0 %v10325
    %12665 = vmatpush2.bf16.msra.mxu0 %v10324
    %12666 = vmatprep.mubr.bf16.mxu0 %v6611
    %12667 = vmatmul.mubr.bf16.gmra.mxu0 %v6610
    %v12668 = vpop.f32.mrf.mxu0
    %v12669 = vadd.f32 %v7537, %v12668
    %v12670 = vpop.f32.mrf.mxu0
    %v12671 = vadd.f32 %v7541, %v12670
    %v12672 = vpop.f32.mrf.mxu0
    %v12673 = vpop.f32.mrf.mxu0
    %12674 = vdwg.mxu0
    %12675 = vmatprep.subr.bf16.mxu0 %v10595
    %12676 = vmatpush1.bf16.msra.mxu0 %v10594
    %12677 = vmatprep.subr.bf16.mxu0 %v10577
    %12678 = vmatpush1.bf16.msra.mxu0 %v10576
    %12679 = vmatprep.subr.bf16.mxu0 %v10559
    %12680 = vmatpush1.bf16.msra.mxu0 %v10558
    %12681 = vmatprep.subr.bf16.mxu0 %v10541
    %12682 = vmatpush1.bf16.msra.mxu0 %v10540
    %12683 = vmatprep.subr.bf16.mxu0 %v10523
    %12684 = vmatpush1.bf16.msra.mxu0 %v10522
    %12685 = vmatprep.subr.bf16.mxu0 %v10505
    %12686 = vmatpush1.bf16.msra.mxu0 %v10504
    %12687 = vmatprep.subr.bf16.mxu0 %v10487
    %12688 = vmatpush1.bf16.msra.mxu0 %v10486
    %12689 = vmatprep.subr.bf16.mxu0 %v10469
    %12690 = vmatpush1.bf16.msra.mxu0 %v10468
    %12691 = vmatprep.subr.bf16.mxu0 %v10739
    %12692 = vmatpush2.bf16.msra.mxu0 %v10738
    %12693 = vmatprep.subr.bf16.mxu0 %v10721
    %12694 = vmatpush2.bf16.msra.mxu0 %v10720
    %12695 = vmatprep.subr.bf16.mxu0 %v10703
    %12696 = vmatpush2.bf16.msra.mxu0 %v10702
    %12697 = vmatprep.subr.bf16.mxu0 %v10685
    %12698 = vmatpush2.bf16.msra.mxu0 %v10684
    %12699 = vmatprep.subr.bf16.mxu0 %v10667
    %12700 = vmatpush2.bf16.msra.mxu0 %v10666
    %12701 = vmatprep.subr.bf16.mxu0 %v10649
    %12702 = vmatpush2.bf16.msra.mxu0 %v10648
    %12703 = vmatprep.subr.bf16.mxu0 %v10631
    %12704 = vmatpush2.bf16.msra.mxu0 %v10630
    %12705 = vmatprep.subr.bf16.mxu0 %v10613
    %12706 = vmatpush2.bf16.msra.mxu0 %v10612
    %12707 = vmatprep.mubr.bf16.mxu0 %v6613
    %12708 = vmatmul.mubr.bf16.gmra.mxu0 %v6612
    %v12709 = vpop.f32.mrf.mxu0
    %v12710 = vadd.f32 %v12669, %v12709
    %v12711 = vpop.f32.mrf.mxu0
    %v12712 = vadd.f32 %v12671, %v12711
    %v12713 = vpop.f32.mrf.mxu0
    %v12714 = vpop.f32.mrf.mxu0
    %12715 = vdwg.mxu0
    %12716 = vmatprep.subr.bf16.mxu0 %v10883
    %12717 = vmatpush1.bf16.msra.mxu0 %v10882
    %12718 = vmatprep.subr.bf16.mxu0 %v10865
    %12719 = vmatpush1.bf16.msra.mxu0 %v10864
    %12720 = vmatprep.subr.bf16.mxu0 %v10847
    %12721 = vmatpush1.bf16.msra.mxu0 %v10846
    %12722 = vmatprep.subr.bf16.mxu0 %v10829
    %12723 = vmatpush1.bf16.msra.mxu0 %v10828
    %12724 = vmatprep.subr.bf16.mxu0 %v10811
    %12725 = vmatpush1.bf16.msra.mxu0 %v10810
    %12726 = vmatprep.subr.bf16.mxu0 %v10793
    %12727 = vmatpush1.bf16.msra.mxu0 %v10792
    %12728 = vmatprep.subr.bf16.mxu0 %v10775
    %12729 = vmatpush1.bf16.msra.mxu0 %v10774
    %12730 = vmatprep.subr.bf16.mxu0 %v10757
    %12731 = vmatpush1.bf16.msra.mxu0 %v10756
    %12732 = vmatprep.subr.bf16.mxu0 %v11027
    %12733 = vmatpush2.bf16.msra.mxu0 %v11026
    %12734 = vmatprep.subr.bf16.mxu0 %v11009
    %12735 = vmatpush2.bf16.msra.mxu0 %v11008
    %12736 = vmatprep.subr.bf16.mxu0 %v10991
    %12737 = vmatpush2.bf16.msra.mxu0 %v10990
    %12738 = vmatprep.subr.bf16.mxu0 %v10973
    %12739 = vmatpush2.bf16.msra.mxu0 %v10972
    %12740 = vmatprep.subr.bf16.mxu0 %v10955
    %12741 = vmatpush2.bf16.msra.mxu0 %v10954
    %12742 = vmatprep.subr.bf16.mxu0 %v10937
    %12743 = vmatpush2.bf16.msra.mxu0 %v10936
    %12744 = vmatprep.subr.bf16.mxu0 %v10919
    %12745 = vmatpush2.bf16.msra.mxu0 %v10918
    %12746 = vmatprep.subr.bf16.mxu0 %v10901
    %12747 = vmatpush2.bf16.msra.mxu0 %v10900
    %12748 = vmatprep.mubr.bf16.mxu0 %v6615
    %12749 = vmatmul.mubr.bf16.gmra.mxu0 %v6614
    %v12750 = vpop.f32.mrf.mxu0
    %v12751 = vadd.f32 %v12710, %v12750
    %v12752 = vpop.f32.mrf.mxu0
    %v12753 = vadd.f32 %v12712, %v12752
    %v12754 = vpop.f32.mrf.mxu0
    %v12755 = vpop.f32.mrf.mxu0
    %12756 = vdwg.mxu0
    %12757 = vmatprep.subr.bf16.mxu0 %v10309
    %12758 = vmatpush1.bf16.msra.mxu0 %v10308
    %12759 = vmatprep.subr.bf16.mxu0 %v10291
    %12760 = vmatpush1.bf16.msra.mxu0 %v10290
    %12761 = vmatprep.subr.bf16.mxu0 %v10273
    %12762 = vmatpush1.bf16.msra.mxu0 %v10272
    %12763 = vmatprep.subr.bf16.mxu0 %v10255
    %12764 = vmatpush1.bf16.msra.mxu0 %v10254
    %12765 = vmatprep.subr.bf16.mxu0 %v10237
    %12766 = vmatpush1.bf16.msra.mxu0 %v10236
    %12767 = vmatprep.subr.bf16.mxu0 %v10219
    %12768 = vmatpush1.bf16.msra.mxu0 %v10218
    %12769 = vmatprep.subr.bf16.mxu0 %v10201
    %12770 = vmatpush1.bf16.msra.mxu0 %v10200
    %12771 = vmatprep.subr.bf16.mxu0 %v10183
    %12772 = vmatpush1.bf16.msra.mxu0 %v10182
    %12773 = vmatprep.subr.bf16.mxu0 %v10453
    %12774 = vmatpush2.bf16.msra.mxu0 %v10452
    %12775 = vmatprep.subr.bf16.mxu0 %v10435
    %12776 = vmatpush2.bf16.msra.mxu0 %v10434
    %12777 = vmatprep.subr.bf16.mxu0 %v10417
    %12778 = vmatpush2.bf16.msra.mxu0 %v10416
    %12779 = vmatprep.subr.bf16.mxu0 %v10399
    %12780 = vmatpush2.bf16.msra.mxu0 %v10398
    %12781 = vmatprep.subr.bf16.mxu0 %v10381
    %12782 = vmatpush2.bf16.msra.mxu0 %v10380
    %12783 = vmatprep.subr.bf16.mxu0 %v10363
    %12784 = vmatpush2.bf16.msra.mxu0 %v10362
    %12785 = vmatprep.subr.bf16.mxu0 %v10345
    %12786 = vmatpush2.bf16.msra.mxu0 %v10344
    %12787 = vmatprep.subr.bf16.mxu0 %v10327
    %12788 = vmatpush2.bf16.msra.mxu0 %v10326
    %12789 = vmatprep.mubr.bf16.mxu0 %v6611
    %12790 = vmatmul.mubr.bf16.gmra.mxu0 %v6610
    %v12791 = vpop.f32.mrf.mxu0
    %v12792 = vadd.f32 %v7545, %v12791
    %v12793 = vpop.f32.mrf.mxu0
    %v12794 = vadd.f32 %v7549, %v12793
    %v12795 = vpop.f32.mrf.mxu0
    %v12796 = vpop.f32.mrf.mxu0
    %12797 = vdwg.mxu0
    %12798 = vmatprep.subr.bf16.mxu0 %v10597
    %12799 = vmatpush1.bf16.msra.mxu0 %v10596
    %12800 = vmatprep.subr.bf16.mxu0 %v10579
    %12801 = vmatpush1.bf16.msra.mxu0 %v10578
    %12802 = vmatprep.subr.bf16.mxu0 %v10561
    %12803 = vmatpush1.bf16.msra.mxu0 %v10560
    %12804 = vmatprep.subr.bf16.mxu0 %v10543
    %12805 = vmatpush1.bf16.msra.mxu0 %v10542
    %12806 = vmatprep.subr.bf16.mxu0 %v10525
    %12807 = vmatpush1.bf16.msra.mxu0 %v10524
    %12808 = vmatprep.subr.bf16.mxu0 %v10507
    %12809 = vmatpush1.bf16.msra.mxu0 %v10506
    %12810 = vmatprep.subr.bf16.mxu0 %v10489
    %12811 = vmatpush1.bf16.msra.mxu0 %v10488
    %12812 = vmatprep.subr.bf16.mxu0 %v10471
    %12813 = vmatpush1.bf16.msra.mxu0 %v10470
    %12814 = vmatprep.subr.bf16.mxu0 %v10741
    %12815 = vmatpush2.bf16.msra.mxu0 %v10740
    %12816 = vmatprep.subr.bf16.mxu0 %v10723
    %12817 = vmatpush2.bf16.msra.mxu0 %v10722
    %12818 = vmatprep.subr.bf16.mxu0 %v10705
    %12819 = vmatpush2.bf16.msra.mxu0 %v10704
    %12820 = vmatprep.subr.bf16.mxu0 %v10687
    %12821 = vmatpush2.bf16.msra.mxu0 %v10686
    %12822 = vmatprep.subr.bf16.mxu0 %v10669
    %12823 = vmatpush2.bf16.msra.mxu0 %v10668
    %12824 = vmatprep.subr.bf16.mxu0 %v10651
    %12825 = vmatpush2.bf16.msra.mxu0 %v10650
    %12826 = vmatprep.subr.bf16.mxu0 %v10633
    %12827 = vmatpush2.bf16.msra.mxu0 %v10632
    %12828 = vmatprep.subr.bf16.mxu0 %v10615
    %12829 = vmatpush2.bf16.msra.mxu0 %v10614
    %12830 = vmatprep.mubr.bf16.mxu0 %v6613
    %12831 = vmatmul.mubr.bf16.gmra.mxu0 %v6612
    %v12832 = vpop.f32.mrf.mxu0
    %v12833 = vadd.f32 %v12792, %v12832
    %v12834 = vpop.f32.mrf.mxu0
    %v12835 = vadd.f32 %v12794, %v12834
    %v12836 = vpop.f32.mrf.mxu0
    %v12837 = vpop.f32.mrf.mxu0
    %12838 = vdwg.mxu0
    %12839 = vmatprep.subr.bf16.mxu0 %v10885
    %12840 = vmatpush1.bf16.msra.mxu0 %v10884
    %12841 = vmatprep.subr.bf16.mxu0 %v10867
    %12842 = vmatpush1.bf16.msra.mxu0 %v10866
    %12843 = vmatprep.subr.bf16.mxu0 %v10849
    %12844 = vmatpush1.bf16.msra.mxu0 %v10848
    %12845 = vmatprep.subr.bf16.mxu0 %v10831
    %12846 = vmatpush1.bf16.msra.mxu0 %v10830
    %12847 = vmatprep.subr.bf16.mxu0 %v10813
    %12848 = vmatpush1.bf16.msra.mxu0 %v10812
    %12849 = vmatprep.subr.bf16.mxu0 %v10795
    %12850 = vmatpush1.bf16.msra.mxu0 %v10794
    %12851 = vmatprep.subr.bf16.mxu0 %v10777
    %12852 = vmatpush1.bf16.msra.mxu0 %v10776
    %12853 = vmatprep.subr.bf16.mxu0 %v10759
    %12854 = vmatpush1.bf16.msra.mxu0 %v10758
    %12855 = vmatprep.subr.bf16.mxu0 %v11029
    %12856 = vmatpush2.bf16.msra.mxu0 %v11028
    %12857 = vmatprep.subr.bf16.mxu0 %v11011
    %12858 = vmatpush2.bf16.msra.mxu0 %v11010
    %12859 = vmatprep.subr.bf16.mxu0 %v10993
    %12860 = vmatpush2.bf16.msra.mxu0 %v10992
    %12861 = vmatprep.subr.bf16.mxu0 %v10975
    %12862 = vmatpush2.bf16.msra.mxu0 %v10974
    %12863 = vmatprep.subr.bf16.mxu0 %v10957
    %12864 = vmatpush2.bf16.msra.mxu0 %v10956
    %12865 = vmatprep.subr.bf16.mxu0 %v10939
    %12866 = vmatpush2.bf16.msra.mxu0 %v10938
    %12867 = vmatprep.subr.bf16.mxu0 %v10921
    %12868 = vmatpush2.bf16.msra.mxu0 %v10920
    %12869 = vmatprep.subr.bf16.mxu0 %v10903
    %12870 = vmatpush2.bf16.msra.mxu0 %v10902
    %12871 = vmatprep.mubr.bf16.mxu0 %v6615
    %12872 = vmatmul.mubr.bf16.gmra.mxu0 %v6614
    %v12873 = vpop.f32.mrf.mxu0
    %v12874 = vadd.f32 %v12833, %v12873
    %v12875 = vpop.f32.mrf.mxu0
    %v12876 = vadd.f32 %v12835, %v12875
    %v12877 = vpop.f32.mrf.mxu0
    %v12878 = vpop.f32.mrf.mxu0
    %12879 = vdwg.mxu0
    %12880 = vmatprep.subr.bf16.mxu0 %v10311
    %12881 = vmatpush1.bf16.msra.mxu0 %v10310
    %12882 = vmatprep.subr.bf16.mxu0 %v10293
    %12883 = vmatpush1.bf16.msra.mxu0 %v10292
    %12884 = vmatprep.subr.bf16.mxu0 %v10275
    %12885 = vmatpush1.bf16.msra.mxu0 %v10274
    %12886 = vmatprep.subr.bf16.mxu0 %v10257
    %12887 = vmatpush1.bf16.msra.mxu0 %v10256
    %12888 = vmatprep.subr.bf16.mxu0 %v10239
    %12889 = vmatpush1.bf16.msra.mxu0 %v10238
    %12890 = vmatprep.subr.bf16.mxu0 %v10221
    %12891 = vmatpush1.bf16.msra.mxu0 %v10220
    %12892 = vmatprep.subr.bf16.mxu0 %v10203
    %12893 = vmatpush1.bf16.msra.mxu0 %v10202
    %12894 = vmatprep.subr.bf16.mxu0 %v10185
    %12895 = vmatpush1.bf16.msra.mxu0 %v10184
    %12896 = vmatprep.subr.bf16.mxu0 %v10455
    %12897 = vmatpush2.bf16.msra.mxu0 %v10454
    %12898 = vmatprep.subr.bf16.mxu0 %v10437
    %12899 = vmatpush2.bf16.msra.mxu0 %v10436
    %12900 = vmatprep.subr.bf16.mxu0 %v10419
    %12901 = vmatpush2.bf16.msra.mxu0 %v10418
    %12902 = vmatprep.subr.bf16.mxu0 %v10401
    %12903 = vmatpush2.bf16.msra.mxu0 %v10400
    %12904 = vmatprep.subr.bf16.mxu0 %v10383
    %12905 = vmatpush2.bf16.msra.mxu0 %v10382
    %12906 = vmatprep.subr.bf16.mxu0 %v10365
    %12907 = vmatpush2.bf16.msra.mxu0 %v10364
    %12908 = vmatprep.subr.bf16.mxu0 %v10347
    %12909 = vmatpush2.bf16.msra.mxu0 %v10346
    %12910 = vmatprep.subr.bf16.mxu0 %v10329
    %12911 = vmatpush2.bf16.msra.mxu0 %v10328
    %12912 = vmatprep.mubr.bf16.mxu0 %v6611
    %12913 = vmatmul.mubr.bf16.gmra.mxu0 %v6610
    %v12914 = vpop.f32.mrf.mxu0
    %v12915 = vadd.f32 %v7553, %v12914
    %v12916 = vpop.f32.mrf.mxu0
    %v12917 = vadd.f32 %v7557, %v12916
    %v12918 = vpop.f32.mrf.mxu0
    %v12919 = vpop.f32.mrf.mxu0
    %12920 = vdwg.mxu0
    %12921 = vmatprep.subr.bf16.mxu0 %v10599
    %12922 = vmatpush1.bf16.msra.mxu0 %v10598
    %12923 = vmatprep.subr.bf16.mxu0 %v10581
    %12924 = vmatpush1.bf16.msra.mxu0 %v10580
    %12925 = vmatprep.subr.bf16.mxu0 %v10563
    %12926 = vmatpush1.bf16.msra.mxu0 %v10562
    %12927 = vmatprep.subr.bf16.mxu0 %v10545
    %12928 = vmatpush1.bf16.msra.mxu0 %v10544
    %12929 = vmatprep.subr.bf16.mxu0 %v10527
    %12930 = vmatpush1.bf16.msra.mxu0 %v10526
    %12931 = vmatprep.subr.bf16.mxu0 %v10509
    %12932 = vmatpush1.bf16.msra.mxu0 %v10508
    %12933 = vmatprep.subr.bf16.mxu0 %v10491
    %12934 = vmatpush1.bf16.msra.mxu0 %v10490
    %12935 = vmatprep.subr.bf16.mxu0 %v10473
    %12936 = vmatpush1.bf16.msra.mxu0 %v10472
    %12937 = vmatprep.subr.bf16.mxu0 %v10743
    %12938 = vmatpush2.bf16.msra.mxu0 %v10742
    %12939 = vmatprep.subr.bf16.mxu0 %v10725
    %12940 = vmatpush2.bf16.msra.mxu0 %v10724
    %12941 = vmatprep.subr.bf16.mxu0 %v10707
    %12942 = vmatpush2.bf16.msra.mxu0 %v10706
    %12943 = vmatprep.subr.bf16.mxu0 %v10689
    %12944 = vmatpush2.bf16.msra.mxu0 %v10688
    %12945 = vmatprep.subr.bf16.mxu0 %v10671
    %12946 = vmatpush2.bf16.msra.mxu0 %v10670
    %12947 = vmatprep.subr.bf16.mxu0 %v10653
    %12948 = vmatpush2.bf16.msra.mxu0 %v10652
    %12949 = vmatprep.subr.bf16.mxu0 %v10635
    %12950 = vmatpush2.bf16.msra.mxu0 %v10634
    %12951 = vmatprep.subr.bf16.mxu0 %v10617
    %12952 = vmatpush2.bf16.msra.mxu0 %v10616
    %12953 = vmatprep.mubr.bf16.mxu0 %v6613
    %12954 = vmatmul.mubr.bf16.gmra.mxu0 %v6612
    %v12955 = vpop.f32.mrf.mxu0
    %v12956 = vadd.f32 %v12915, %v12955
    %v12957 = vpop.f32.mrf.mxu0
    %v12958 = vadd.f32 %v12917, %v12957
    %v12959 = vpop.f32.mrf.mxu0
    %v12960 = vpop.f32.mrf.mxu0
    %12961 = vdwg.mxu0
    %12962 = vmatprep.subr.bf16.mxu0 %v10887
    %12963 = vmatpush1.bf16.msra.mxu0 %v10886
    %12964 = vmatprep.subr.bf16.mxu0 %v10869
    %12965 = vmatpush1.bf16.msra.mxu0 %v10868
    %12966 = vmatprep.subr.bf16.mxu0 %v10851
    %12967 = vmatpush1.bf16.msra.mxu0 %v10850
    %12968 = vmatprep.subr.bf16.mxu0 %v10833
    %12969 = vmatpush1.bf16.msra.mxu0 %v10832
    %12970 = vmatprep.subr.bf16.mxu0 %v10815
    %12971 = vmatpush1.bf16.msra.mxu0 %v10814
    %12972 = vmatprep.subr.bf16.mxu0 %v10797
    %12973 = vmatpush1.bf16.msra.mxu0 %v10796
    %12974 = vmatprep.subr.bf16.mxu0 %v10779
    %12975 = vmatpush1.bf16.msra.mxu0 %v10778
    %12976 = vmatprep.subr.bf16.mxu0 %v10761
    %12977 = vmatpush1.bf16.msra.mxu0 %v10760
    %12978 = vmatprep.subr.bf16.mxu0 %v11031
    %12979 = vmatpush2.bf16.msra.mxu0 %v11030
    %12980 = vmatprep.subr.bf16.mxu0 %v11013
    %12981 = vmatpush2.bf16.msra.mxu0 %v11012
    %12982 = vmatprep.subr.bf16.mxu0 %v10995
    %12983 = vmatpush2.bf16.msra.mxu0 %v10994
    %12984 = vmatprep.subr.bf16.mxu0 %v10977
    %12985 = vmatpush2.bf16.msra.mxu0 %v10976
    %12986 = vmatprep.subr.bf16.mxu0 %v10959
    %12987 = vmatpush2.bf16.msra.mxu0 %v10958
    %12988 = vmatprep.subr.bf16.mxu0 %v10941
    %12989 = vmatpush2.bf16.msra.mxu0 %v10940
    %12990 = vmatprep.subr.bf16.mxu0 %v10923
    %12991 = vmatpush2.bf16.msra.mxu0 %v10922
    %12992 = vmatprep.subr.bf16.mxu0 %v10905
    %12993 = vmatpush2.bf16.msra.mxu0 %v10904
    %12994 = vmatprep.mubr.bf16.mxu0 %v6615
    %12995 = vmatmul.mubr.bf16.gmra.mxu0 %v6614
    %v12996 = vpop.f32.mrf.mxu0
    %v12997 = vadd.f32 %v12956, %v12996
    %v12998 = vpop.f32.mrf.mxu0
    %v12999 = vadd.f32 %v12958, %v12998
    %v13000 = vpop.f32.mrf.mxu0
    %v13001 = vpop.f32.mrf.mxu0
    %13002 = vdwg.mxu0
    %v13003 = vxor.u32 %v12013, 2147483648
    %v13004 = vxor.u32 %v12015, 2147483648
    %v13005 = vxor.u32 %v12136, 2147483648
    %v13006 = vxor.u32 %v12138, 2147483648
    %v13007 = vxor.u32 %v12259, 2147483648
    %v13008 = vxor.u32 %v12261, 2147483648
    %v13009 = vmul.f32 %v13003, 1.442695
    %v13010 = vpow.pop %v13009
    %v13011 = vmul.f32 %v13004, 1.442695
    %v13012 = vpow.pop %v13011
    %v13013 = vmul.f32 %v13005, 1.442695
    %v13014 = vpow.pop %v13013
    %v13015 = vmul.f32 %v13006, 1.442695
    %v13016 = vpow.pop %v13015
    %v13017 = vmul.f32 %v13007, 1.442695
    %v13018 = vpow.pop %v13017
    %v13019 = vmul.f32 %v13008, 1.442695
    %v13020 = vpow.pop %v13019
    %v13021 = vadd.f32 %v13010, 1.0
    %v13022 = vadd.f32 %v13012, 1.0
    %v13023 = vadd.f32 %v13014, 1.0
    %v13024 = vadd.f32 %v13016, 1.0
    %v13025 = vadd.f32 %v13018, 1.0
    %v13026 = vadd.f32 %v13020, 1.0
    %v13027 = vrcp.pop %v13021
    %v13028 = vmul.f32 1.0, %v13027
    %v13029 = vrcp.pop %v13022
    %v13030 = vmul.f32 1.0, %v13029
    %v13031 = vrcp.pop %v13023
    %v13032 = vmul.f32 1.0, %v13031
    %v13033 = vrcp.pop %v13024
    %v13034 = vmul.f32 1.0, %v13033
    %v13035 = vrcp.pop %v13025
    %v13036 = vmul.f32 1.0, %v13035
    %v13037 = vrcp.pop %v13026
    %v13038 = vmul.f32 1.0, %v13037
    %v13039 = vtanh.pop %v12382
    %v13040 = vtanh.pop %v12384
    %v13041 = vtanh.pop %v12505
    %v13042 = vtanh.pop %v12507
    %v13043 = vtanh.pop %v12628
    %v13044 = vtanh.pop %v12630
    %v13045 = vxor.u32 %v12751, 2147483648
    %v13046 = vxor.u32 %v12753, 2147483648
    %v13047 = vxor.u32 %v12874, 2147483648
    %v13048 = vxor.u32 %v12876, 2147483648
    %v13049 = vxor.u32 %v12997, 2147483648
    %v13050 = vxor.u32 %v12999, 2147483648
    %v13051 = vmul.f32 %v13045, 1.442695
    %v13052 = vpow.pop %v13051
    %v13053 = vmul.f32 %v13046, 1.442695
    %v13054 = vpow.pop %v13053
    %v13055 = vmul.f32 %v13047, 1.442695
    %v13056 = vpow.pop %v13055
    %v13057 = vmul.f32 %v13048, 1.442695
    %v13058 = vpow.pop %v13057
    %v13059 = vmul.f32 %v13049, 1.442695
    %v13060 = vpow.pop %v13059
    %v13061 = vmul.f32 %v13050, 1.442695
    %v13062 = vpow.pop %v13061
    %v13063 = vadd.f32 %v13052, 1.0
    %v13064 = vadd.f32 %v13054, 1.0
    %v13065 = vadd.f32 %v13056, 1.0
    %v13066 = vadd.f32 %v13058, 1.0
    %v13067 = vadd.f32 %v13060, 1.0
    %v13068 = vadd.f32 %v13062, 1.0
    %v13069 = vrcp.pop %v13063
    %v13070 = vmul.f32 1.0, %v13069
    %v13071 = vrcp.pop %v13064
    %v13072 = vmul.f32 1.0, %v13071
    %v13073 = vrcp.pop %v13065
    %v13074 = vmul.f32 1.0, %v13073
    %v13075 = vrcp.pop %v13066
    %v13076 = vmul.f32 1.0, %v13075
    %v13077 = vrcp.pop %v13067
    %v13078 = vmul.f32 1.0, %v13077
    %v13079 = vrcp.pop %v13068
    %v13080 = vmul.f32 1.0, %v13079
    %v13081 = vmul.f32 %v13028, %v13039
    %v13082 = vmul.f32 %v13030, %v13040
    %v13083 = vmul.f32 %v13032, %v13041
    %v13084 = vmul.f32 %v13034, %v13042
    %v13085 = vmul.f32 %v13036, %v13043
    %v13086 = vmul.f32 %v13038, %v13044
    %v13087 = vtanh.pop %v13081
    %v13088 = vtanh.pop %v13082
    %v13089 = vtanh.pop %v13083
    %v13090 = vtanh.pop %v13084
    %v13091 = vtanh.pop %v13085
    %v13092 = vtanh.pop %v13086
    %v13093 = vmul.f32 %v13070, %v13087
    %v13094 = vmul.f32 %v13072, %v13088
    %v13095 = vmul.f32 %v13074, %v13089
    %v13096 = vmul.f32 %v13076, %v13090
    %v13097 = vmul.f32 %v13078, %v13091
    %v13098 = vmul.f32 %v13080, %v13092
    %v13099 = vpack.c.bf16 %v13093, %v13093
    %v13100 = vpack.c.bf16 %v13094, %v13094
    %v13101 = vpack.c.bf16 %v13095, %v13095
    %v13102 = vpack.c.bf16 %v13096, %v13096
    %v13103 = vpack.c.bf16 %v13097, %v13097
    %v13104 = vpack.c.bf16 %v13098, %v13098
    %v13105 = vld [vmem:[#allocation11] sm:$0xf]
    %v13106 = vld [vmem:[#allocation11 + $0x4] sm:$0xf]
    %v13107 = vld [vmem:[#allocation11 + $0x8] sm:$0xf]
    %v13108 = vld [vmem:[#allocation11 + $0xc] sm:$0xf]
    %v13109 = vld [vmem:[#allocation11 + $0x10] sm:$0xf]
    %v13110 = vld [vmem:[#allocation11 + $0x14] sm:$0xf]
    %v13111 = vld [vmem:[#allocation11 + $0x18] sm:$0xf]
    %v13112 = vld [vmem:[#allocation11 + $0x1c] sm:$0xf]
    %v13113 = vld [vmem:[#allocation11 + $0x20] sm:$0xf]
    %v13114 = vld [vmem:[#allocation11 + $0x24] sm:$0xf]
    %v13115 = vld [vmem:[#allocation11 + $0x28] sm:$0xf]
    %v13116 = vld [vmem:[#allocation11 + $0x2c] sm:$0xf]
    %v13117 = vld [vmem:[#allocation11 + $0x30] sm:$0xf]
    %v13118 = vld [vmem:[#allocation11 + $0x34] sm:$0xf]
    %v13119 = vld [vmem:[#allocation11 + $0x38] sm:$0xf]
    %v13120 = vld [vmem:[#allocation11 + $0x3c] sm:$0xf]
    %v13121 = vld [vmem:[#allocation11 + $0x40] sm:$0xf]
    %v13122 = vld [vmem:[#allocation11 + $0x44] sm:$0xf]
    %v13123 = vld [vmem:[#allocation11 + $0x48] sm:$0xf]
    %v13124 = vld [vmem:[#allocation11 + $0x4c] sm:$0xf]
    %v13125 = vld [vmem:[#allocation11 + $0x50] sm:$0xf]
    %v13126 = vld [vmem:[#allocation11 + $0x54] sm:$0xf]
    %v13127 = vld [vmem:[#allocation11 + $0x58] sm:$0xf]
    %v13128 = vld [vmem:[#allocation11 + $0x5c] sm:$0xf]
    %v13129 = vld [vmem:[#allocation11 + $0x60] sm:$0xf]
    %v13130 = vld [vmem:[#allocation11 + $0x64] sm:$0xf]
    %v13131 = vld [vmem:[#allocation11 + $0x68] sm:$0xf]
    %v13132 = vld [vmem:[#allocation11 + $0x6c] sm:$0xf]
    %v13133 = vld [vmem:[#allocation11 + $0x70] sm:$0xf]
    %v13134 = vld [vmem:[#allocation11 + $0x74] sm:$0xf]
    %v13135 = vld [vmem:[#allocation11 + $0x78] sm:$0xf]
    %v13136 = vld [vmem:[#allocation11 + $0x7c] sm:$0xf]
    %v13137 = vld [vmem:[#allocation11 + $0x80] sm:$0xf]
    %v13138 = vld [vmem:[#allocation11 + $0x84] sm:$0xf]
    %v13139 = vld [vmem:[#allocation11 + $0x88] sm:$0xf]
    %v13140 = vld [vmem:[#allocation11 + $0x8c] sm:$0xf]
    %v13141 = vld [vmem:[#allocation11 + $0x90] sm:$0xf]
    %v13142 = vld [vmem:[#allocation11 + $0x94] sm:$0xf]
    %v13143 = vld [vmem:[#allocation11 + $0x98] sm:$0xf]
    %v13144 = vld [vmem:[#allocation11 + $0x9c] sm:$0xf]
    %v13145 = vld [vmem:[#allocation11 + $0xa0] sm:$0xf]
    %v13146 = vld [vmem:[#allocation11 + $0xa4] sm:$0xf]
    %v13147 = vld [vmem:[#allocation11 + $0xa8] sm:$0xf]
    %v13148 = vld [vmem:[#allocation11 + $0xac] sm:$0xf]
    %v13149 = vld [vmem:[#allocation11 + $0xb0] sm:$0xf]
    %v13150 = vld [vmem:[#allocation11 + $0xb4] sm:$0xf]
    %v13151 = vld [vmem:[#allocation11 + $0xb8] sm:$0xf]
    %v13152 = vld [vmem:[#allocation11 + $0xbc] sm:$0xf]
    %v13153 = vld [vmem:[#allocation11 + $0xc0] sm:$0xf]
    %v13154 = vld [vmem:[#allocation11 + $0xc4] sm:$0xf]
    %v13155 = vld [vmem:[#allocation11 + $0xc8] sm:$0xf]
    %v13156 = vld [vmem:[#allocation11 + $0xcc] sm:$0xf]
    %v13157 = vld [vmem:[#allocation11 + $0xd0] sm:$0xf]
    %v13158 = vld [vmem:[#allocation11 + $0xd4] sm:$0xf]
    %v13159 = vld [vmem:[#allocation11 + $0xd8] sm:$0xf]
    %v13160 = vld [vmem:[#allocation11 + $0xdc] sm:$0xf]
    %v13161 = vld [vmem:[#allocation11 + $0xe0] sm:$0xf]
    %v13162 = vld [vmem:[#allocation11 + $0xe4] sm:$0xf]
    %v13163 = vld [vmem:[#allocation11 + $0xe8] sm:$0xf]
    %v13164 = vld [vmem:[#allocation11 + $0xec] sm:$0xf]
    %v13165 = vld [vmem:[#allocation11 + $0xf0] sm:$0xf]
    %v13166 = vld [vmem:[#allocation11 + $0xf4] sm:$0xf]
    %v13167 = vld [vmem:[#allocation11 + $0xf8] sm:$0xf]
    %v13168 = vld [vmem:[#allocation11 + $0xfc] sm:$0xf]
    %v13169 = vld [vmem:[#allocation11 + $0x100] sm:$0xf]
    %v13170 = vld [vmem:[#allocation11 + $0x104] sm:$0xf]
    %v13171 = vld [vmem:[#allocation11 + $0x108] sm:$0xf]
    %v13172 = vld [vmem:[#allocation11 + $0x10c] sm:$0xf]
    %v13173 = vld [vmem:[#allocation11 + $0x110] sm:$0xf]
    %v13174 = vld [vmem:[#allocation11 + $0x114] sm:$0xf]
    %v13175 = vld [vmem:[#allocation11 + $0x118] sm:$0xf]
    %v13176 = vld [vmem:[#allocation11 + $0x11c] sm:$0xf]
    %v13177 = vld [vmem:[#allocation11 + $0x120] sm:$0xf]
    %v13178 = vld [vmem:[#allocation11 + $0x124] sm:$0xf]
    %v13179 = vld [vmem:[#allocation11 + $0x128] sm:$0xf]
    %v13180 = vld [vmem:[#allocation11 + $0x12c] sm:$0xf]
    %v13181 = vld [vmem:[#allocation11 + $0x130] sm:$0xf]
    %v13182 = vld [vmem:[#allocation11 + $0x134] sm:$0xf]
    %v13183 = vld [vmem:[#allocation11 + $0x138] sm:$0xf]
    %v13184 = vld [vmem:[#allocation11 + $0x13c] sm:$0xf]
    %v13185 = vld [vmem:[#allocation11 + $0x140] sm:$0xf]
    %v13186 = vld [vmem:[#allocation11 + $0x144] sm:$0xf]
    %v13187 = vld [vmem:[#allocation11 + $0x148] sm:$0xf]
    %v13188 = vld [vmem:[#allocation11 + $0x14c] sm:$0xf]
    %v13189 = vld [vmem:[#allocation11 + $0x150] sm:$0xf]
    %v13190 = vld [vmem:[#allocation11 + $0x154] sm:$0xf]
    %v13191 = vld [vmem:[#allocation11 + $0x158] sm:$0xf]
    %v13192 = vld [vmem:[#allocation11 + $0x15c] sm:$0xf]
    %v13193 = vld [vmem:[#allocation11 + $0x160] sm:$0xf]
    %v13194 = vld [vmem:[#allocation11 + $0x164] sm:$0xf]
    %v13195 = vld [vmem:[#allocation11 + $0x168] sm:$0xf]
    %v13196 = vld [vmem:[#allocation11 + $0x16c] sm:$0xf]
    %v13197 = vld [vmem:[#allocation11 + $0x170] sm:$0xf]
    %v13198 = vld [vmem:[#allocation11 + $0x174] sm:$0xf]
    %v13199 = vld [vmem:[#allocation11 + $0x178] sm:$0xf]
    %v13200 = vld [vmem:[#allocation11 + $0x17c] sm:$0xf]
    %v13201 = vld [vmem:[#allocation13] sm:$0x1]
    %v13203 = vlaneseq
    %v13204 = vshrl.u32 %v13203, 7
    %v13205 = vsub.s32 0, %v13204
    %v13206 = vrot.slane %v13201, %v13205
    %v13304 = vunpack.c.l.b16 %v13105
    %v13305 = vunpack.c.l.b16 %v13106
    %v13306 = vunpack.c.l.b16 %v13107
    %v13307 = vunpack.c.l.b16 %v13108
    %v13308 = vunpack.c.l.b16 %v13109
    %v13309 = vunpack.c.l.b16 %v13110
    %v13310 = vunpack.c.l.b16 %v13111
    %v13311 = vunpack.c.l.b16 %v13112
    %v13312 = vunpack.c.l.b16 %v13113
    %v13313 = vunpack.c.l.b16 %v13114
    %v13314 = vunpack.c.l.b16 %v13115
    %v13315 = vunpack.c.l.b16 %v13116
    %v13316 = vunpack.c.l.b16 %v13117
    %v13317 = vunpack.c.l.b16 %v13118
    %v13318 = vunpack.c.l.b16 %v13119
    %v13319 = vunpack.c.l.b16 %v13120
    %v13320 = vunpack.c.l.b16 %v13121
    %v13321 = vunpack.c.l.b16 %v13122
    %v13322 = vunpack.c.l.b16 %v13123
    %v13323 = vunpack.c.l.b16 %v13124
    %v13324 = vunpack.c.l.b16 %v13125
    %v13325 = vunpack.c.l.b16 %v13126
    %v13326 = vunpack.c.l.b16 %v13127
    %v13327 = vunpack.c.l.b16 %v13128
    %v13328 = vunpack.c.l.b16 %v13129
    %v13329 = vunpack.c.l.b16 %v13130
    %v13330 = vunpack.c.l.b16 %v13131
    %v13331 = vunpack.c.l.b16 %v13132
    %v13332 = vunpack.c.l.b16 %v13133
    %v13333 = vunpack.c.l.b16 %v13134
    %v13334 = vunpack.c.l.b16 %v13135
    %v13335 = vunpack.c.l.b16 %v13136
    %v13336 = vunpack.c.l.b16 %v13137
    %v13337 = vunpack.c.l.b16 %v13138
    %v13338 = vunpack.c.l.b16 %v13139
    %v13339 = vunpack.c.l.b16 %v13140
    %v13340 = vunpack.c.l.b16 %v13141
    %v13341 = vunpack.c.l.b16 %v13142
    %v13342 = vunpack.c.l.b16 %v13143
    %v13343 = vunpack.c.l.b16 %v13144
    %v13344 = vunpack.c.l.b16 %v13145
    %v13345 = vunpack.c.l.b16 %v13146
    %v13346 = vunpack.c.l.b16 %v13147
    %v13347 = vunpack.c.l.b16 %v13148
    %v13348 = vunpack.c.l.b16 %v13149
    %v13349 = vunpack.c.l.b16 %v13150
    %v13350 = vunpack.c.l.b16 %v13151
    %v13351 = vunpack.c.l.b16 %v13152
    %v13352 = vunpack.c.l.b16 %v13153
    %v13353 = vunpack.c.l.b16 %v13154
    %v13354 = vunpack.c.l.b16 %v13155
    %v13355 = vunpack.c.l.b16 %v13156
    %v13356 = vunpack.c.l.b16 %v13157
    %v13357 = vunpack.c.l.b16 %v13158
    %v13358 = vunpack.c.l.b16 %v13159
    %v13359 = vunpack.c.l.b16 %v13160
    %v13360 = vunpack.c.l.b16 %v13161
    %v13361 = vunpack.c.l.b16 %v13162
    %v13362 = vunpack.c.l.b16 %v13163
    %v13363 = vunpack.c.l.b16 %v13164
    %v13364 = vunpack.c.l.b16 %v13165
    %v13365 = vunpack.c.l.b16 %v13166
    %v13366 = vunpack.c.l.b16 %v13167
    %v13367 = vunpack.c.l.b16 %v13168
    %v13368 = vunpack.c.l.b16 %v13169
    %v13369 = vunpack.c.l.b16 %v13170
    %v13370 = vunpack.c.l.b16 %v13171
    %v13371 = vunpack.c.l.b16 %v13172
    %v13372 = vunpack.c.l.b16 %v13173
    %v13373 = vunpack.c.l.b16 %v13174
    %v13374 = vunpack.c.l.b16 %v13175
    %v13375 = vunpack.c.l.b16 %v13176
    %v13376 = vunpack.c.l.b16 %v13177
    %v13377 = vunpack.c.l.b16 %v13178
    %v13378 = vunpack.c.l.b16 %v13179
    %v13379 = vunpack.c.l.b16 %v13180
    %v13380 = vunpack.c.l.b16 %v13181
    %v13381 = vunpack.c.l.b16 %v13182
    %v13382 = vunpack.c.l.b16 %v13183
    %v13383 = vunpack.c.l.b16 %v13184
    %v13384 = vunpack.c.l.b16 %v13185
    %v13385 = vunpack.c.l.b16 %v13186
    %v13386 = vunpack.c.l.b16 %v13187
    %v13387 = vunpack.c.l.b16 %v13188
    %v13388 = vunpack.c.l.b16 %v13189
    %v13389 = vunpack.c.l.b16 %v13190
    %v13390 = vunpack.c.l.b16 %v13191
    %v13391 = vunpack.c.l.b16 %v13192
    %v13392 = vunpack.c.l.b16 %v13193
    %v13393 = vunpack.c.l.b16 %v13194
    %v13394 = vunpack.c.l.b16 %v13195
    %v13395 = vunpack.c.l.b16 %v13196
    %v13396 = vunpack.c.l.b16 %v13197
    %v13397 = vunpack.c.l.b16 %v13198
    %v13398 = vunpack.c.l.b16 %v13199
    %v13399 = vunpack.c.l.b16 %v13200
    %v13400 = vpack.c.b16 %v13305, %v13304
    %v13401 = vpack.c.b16 %v13307, %v13306
    %v13402 = vpack.c.b16 %v13309, %v13308
    %v13403 = vpack.c.b16 %v13311, %v13310
    %v13404 = vpack.c.b16 %v13313, %v13312
    %v13405 = vpack.c.b16 %v13315, %v13314
    %v13406 = vpack.c.b16 %v13317, %v13316
    %v13407 = vpack.c.b16 %v13319, %v13318
    %v13408 = vpack.c.b16 %v13321, %v13320
    %v13409 = vpack.c.b16 %v13323, %v13322
    %v13410 = vpack.c.b16 %v13325, %v13324
    %v13411 = vpack.c.b16 %v13327, %v13326
    %v13412 = vpack.c.b16 %v13329, %v13328
    %v13413 = vpack.c.b16 %v13331, %v13330
    %v13414 = vpack.c.b16 %v13333, %v13332
    %v13415 = vpack.c.b16 %v13335, %v13334
    %v13416 = vpack.c.b16 %v13337, %v13336
    %v13417 = vpack.c.b16 %v13339, %v13338
    %v13418 = vpack.c.b16 %v13341, %v13340
    %v13419 = vpack.c.b16 %v13343, %v13342
    %v13420 = vpack.c.b16 %v13345, %v13344
    %v13421 = vpack.c.b16 %v13347, %v13346
    %v13422 = vpack.c.b16 %v13349, %v13348
    %v13423 = vpack.c.b16 %v13351, %v13350
    %v13424 = vpack.c.b16 %v13353, %v13352
    %v13425 = vpack.c.b16 %v13355, %v13354
    %v13426 = vpack.c.b16 %v13357, %v13356
    %v13427 = vpack.c.b16 %v13359, %v13358
    %v13428 = vpack.c.b16 %v13361, %v13360
    %v13429 = vpack.c.b16 %v13363, %v13362
    %v13430 = vpack.c.b16 %v13365, %v13364
    %v13431 = vpack.c.b16 %v13367, %v13366
    %v13432 = vpack.c.b16 %v13369, %v13368
    %v13433 = vpack.c.b16 %v13371, %v13370
    %v13434 = vpack.c.b16 %v13373, %v13372
    %v13435 = vpack.c.b16 %v13375, %v13374
    %v13436 = vpack.c.b16 %v13377, %v13376
    %v13437 = vpack.c.b16 %v13379, %v13378
    %v13438 = vpack.c.b16 %v13381, %v13380
    %v13439 = vpack.c.b16 %v13383, %v13382
    %v13440 = vpack.c.b16 %v13385, %v13384
    %v13441 = vpack.c.b16 %v13387, %v13386
    %v13442 = vpack.c.b16 %v13389, %v13388
    %v13443 = vpack.c.b16 %v13391, %v13390
    %v13444 = vpack.c.b16 %v13393, %v13392
    %v13445 = vpack.c.b16 %v13395, %v13394
    %v13446 = vpack.c.b16 %v13397, %v13396
    %v13447 = vpack.c.b16 %v13399, %v13398
    %13496 = vmatprep.subr.bf16.mxu0 0
    %13497 = vmatpush1.bf16.msra.mxu0 %v13407
    %13498 = vmatprep.subr.bf16.mxu0 0
    %13499 = vmatpush1.bf16.msra.mxu0 %v13406
    %13500 = vmatprep.subr.bf16.mxu0 0
    %13501 = vmatpush1.bf16.msra.mxu0 %v13405
    %13502 = vmatprep.subr.bf16.mxu0 0
    %13503 = vmatpush1.bf16.msra.mxu0 %v13404
    %13504 = vmatprep.subr.bf16.mxu0 0
    %13505 = vmatpush1.bf16.msra.mxu0 %v13403
    %13506 = vmatprep.subr.bf16.mxu0 0
    %13507 = vmatpush1.bf16.msra.mxu0 %v13402
    %13508 = vmatprep.subr.bf16.mxu0 0
    %13509 = vmatpush1.bf16.msra.mxu0 %v13401
    %13510 = vmatprep.subr.bf16.mxu0 0
    %13511 = vmatpush1.bf16.msra.mxu0 %v13400
    %13512 = vmatprep.subr.bf16.mxu0 0
    %13513 = vmatpush2.bf16.msra.mxu0 %v13415
    %13514 = vmatprep.subr.bf16.mxu0 0
    %13515 = vmatpush2.bf16.msra.mxu0 %v13414
    %13516 = vmatprep.subr.bf16.mxu0 0
    %13517 = vmatpush2.bf16.msra.mxu0 %v13413
    %13518 = vmatprep.subr.bf16.mxu0 0
    %13519 = vmatpush2.bf16.msra.mxu0 %v13412
    %13520 = vmatprep.subr.bf16.mxu0 0
    %13521 = vmatpush2.bf16.msra.mxu0 %v13411
    %13522 = vmatprep.subr.bf16.mxu0 0
    %13523 = vmatpush2.bf16.msra.mxu0 %v13410
    %13524 = vmatprep.subr.bf16.mxu0 0
    %13525 = vmatpush2.bf16.msra.mxu0 %v13409
    %13526 = vmatprep.subr.bf16.mxu0 0
    %13527 = vmatpush2.bf16.msra.mxu0 %v13408
    %13528 = vmatprep.mubr.bf16.mxu0 %v13100
    %13529 = vmatmul.mubr.bf16.gmra.mxu0 %v13099
    %v13530 = vpop.f32.mrf.mxu0
    %v13531 = vadd.f32 %v13206, %v13530
    %v13532 = vpop.f32.mrf.mxu0
    %v13533 = vpop.f32.mrf.mxu0
    %v13534 = vpop.f32.mrf.mxu0
    %13535 = vdwg.mxu0
    %13536 = vmatprep.subr.bf16.mxu0 0
    %13537 = vmatpush1.bf16.msra.mxu0 %v13423
    %13538 = vmatprep.subr.bf16.mxu0 0
    %13539 = vmatpush1.bf16.msra.mxu0 %v13422
    %13540 = vmatprep.subr.bf16.mxu0 0
    %13541 = vmatpush1.bf16.msra.mxu0 %v13421
    %13542 = vmatprep.subr.bf16.mxu0 0
    %13543 = vmatpush1.bf16.msra.mxu0 %v13420
    %13544 = vmatprep.subr.bf16.mxu0 0
    %13545 = vmatpush1.bf16.msra.mxu0 %v13419
    %13546 = vmatprep.subr.bf16.mxu0 0
    %13547 = vmatpush1.bf16.msra.mxu0 %v13418
    %13548 = vmatprep.subr.bf16.mxu0 0
    %13549 = vmatpush1.bf16.msra.mxu0 %v13417
    %13550 = vmatprep.subr.bf16.mxu0 0
    %13551 = vmatpush1.bf16.msra.mxu0 %v13416
    %13552 = vmatprep.subr.bf16.mxu0 0
    %13553 = vmatpush2.bf16.msra.mxu0 %v13431
    %13554 = vmatprep.subr.bf16.mxu0 0
    %13555 = vmatpush2.bf16.msra.mxu0 %v13430
    %13556 = vmatprep.subr.bf16.mxu0 0
    %13557 = vmatpush2.bf16.msra.mxu0 %v13429
    %13558 = vmatprep.subr.bf16.mxu0 0
    %13559 = vmatpush2.bf16.msra.mxu0 %v13428
    %13560 = vmatprep.subr.bf16.mxu0 0
    %13561 = vmatpush2.bf16.msra.mxu0 %v13427
    %13562 = vmatprep.subr.bf16.mxu0 0
    %13563 = vmatpush2.bf16.msra.mxu0 %v13426
    %13564 = vmatprep.subr.bf16.mxu0 0
    %13565 = vmatpush2.bf16.msra.mxu0 %v13425
    %13566 = vmatprep.subr.bf16.mxu0 0
    %13567 = vmatpush2.bf16.msra.mxu0 %v13424
    %13568 = vmatprep.mubr.bf16.mxu0 %v13102
    %13569 = vmatmul.mubr.bf16.gmra.mxu0 %v13101
    %v13570 = vpop.f32.mrf.mxu0
    %v13571 = vadd.f32 %v13531, %v13570
    %v13572 = vpop.f32.mrf.mxu0
    %v13573 = vpop.f32.mrf.mxu0
    %v13574 = vpop.f32.mrf.mxu0
    %13575 = vdwg.mxu0
    %13576 = vmatprep.subr.bf16.mxu0 0
    %13577 = vmatpush1.bf16.msra.mxu0 %v13439
    %13578 = vmatprep.subr.bf16.mxu0 0
    %13579 = vmatpush1.bf16.msra.mxu0 %v13438
    %13580 = vmatprep.subr.bf16.mxu0 0
    %13581 = vmatpush1.bf16.msra.mxu0 %v13437
    %13582 = vmatprep.subr.bf16.mxu0 0
    %13583 = vmatpush1.bf16.msra.mxu0 %v13436
    %13584 = vmatprep.subr.bf16.mxu0 0
    %13585 = vmatpush1.bf16.msra.mxu0 %v13435
    %13586 = vmatprep.subr.bf16.mxu0 0
    %13587 = vmatpush1.bf16.msra.mxu0 %v13434
    %13588 = vmatprep.subr.bf16.mxu0 0
    %13589 = vmatpush1.bf16.msra.mxu0 %v13433
    %13590 = vmatprep.subr.bf16.mxu0 0
    %13591 = vmatpush1.bf16.msra.mxu0 %v13432
    %13592 = vmatprep.subr.bf16.mxu0 0
    %13593 = vmatpush2.bf16.msra.mxu0 %v13447
    %13594 = vmatprep.subr.bf16.mxu0 0
    %13595 = vmatpush2.bf16.msra.mxu0 %v13446
    %13596 = vmatprep.subr.bf16.mxu0 0
    %13597 = vmatpush2.bf16.msra.mxu0 %v13445
    %13598 = vmatprep.subr.bf16.mxu0 0
    %13599 = vmatpush2.bf16.msra.mxu0 %v13444
    %13600 = vmatprep.subr.bf16.mxu0 0
    %13601 = vmatpush2.bf16.msra.mxu0 %v13443
    %13602 = vmatprep.subr.bf16.mxu0 0
    %13603 = vmatpush2.bf16.msra.mxu0 %v13442
    %13604 = vmatprep.subr.bf16.mxu0 0
    %13605 = vmatpush2.bf16.msra.mxu0 %v13441
    %13606 = vmatprep.subr.bf16.mxu0 0
    %13607 = vmatpush2.bf16.msra.mxu0 %v13440
    %13608 = vmatprep.mubr.bf16.mxu0 %v13104
    %13609 = vmatmul.mubr.bf16.gmra.mxu0 %v13103
    %v13610 = vpop.f32.mrf.mxu0
    %v13611 = vadd.f32 %v13571, %v13610
    %v13612 = vpop.f32.mrf.mxu0
    %v13613 = vpop.f32.mrf.mxu0
    %v13614 = vpop.f32.mrf.mxu0
    %13615 = vdwg.mxu0
    %13616 = vst [vmem:[#allocation14] sm:$0xff] %v13611
    // Predicated region
    $region58: #{tpu_custom_call.1} parent=1 // pred_check
      _
    $region59: #{tpu_custom_call.1} parent=1 // pred_check_branch
      %13618 = sbr.rel (0) target = $region61
    $region60: #{tpu_custom_call.1} parent=1 // pred_region
      %s13620 = ssub.s32 128, 128
      %13621 = vsyncadd [#allocation4], %s13620
      %s13623 = sshll.u32 [#allocation14], 4
      %s13624 = int_to_ptr.vmem [resolvable:$true] %s13623
      %13626 = dma.vmem_to_hbm [thread:$0]  %s13624, 128, %s7, [#allocation4]
    $region61: #{tpu_custom_call.1} parent=1 // pred_fallthru
      _
    // Predicated region
    $region62: #{tpu_custom_call.1} parent=1 // pred_check
      _
    $region63: #{tpu_custom_call.1} parent=1 // pred_check_branch
      %13628 = sbr.rel (0) target = $region65
    $region64: #{tpu_custom_call.1} parent=1 // pred_region
      %13629 = dma.done [#allocation4], 128
    $region65: #{tpu_custom_call.1} parent=1 // pred_fallthru
      _
    %13630 = vsyncpa [#allocation3], 1
    %13631 = vsyncpa [#allocation6], 1
    %13632 = vsyncpa [#allocation9], 1
    %13633 = vsyncpa [#allocation12], 1
    %13634 = vsyncpa [#allocation4], 1

</llo_original>
